<compile_context>
chip_gen: v7x
topology: tpu7x:2x2x1
jax: 0.10.0
libtpu: 0.0.40
codegen_flags: <defaults>
</compile_context>

<pallas_src>
import functools

import jax
import jax.numpy as jnp
from jax.experimental import pallas as pl
from jax.experimental.pallas import tpu as pltpu

HASH_LOGSIZE = 10            # synthetic small hash table: 2**10 entries
TABLE_SIZE = 2 ** HASH_LOGSIZE
DIM_FEATURE = 32
DIM_HIDDEN = 32
DIM_VHEAD = 3                # value_no_draw=False -> 3 value logits
VHEAD_PAD = 8                # sublane-padded value head (output stored transposed)
INPUT_LEVEL = 3              # cell levels {empty, own, opp} -> {0, 0.5, 1}
DIM_INPUT = 16               # flattened 4x4 corner
H = W = 7
QMAX = 127.0 / 128.0
TILE_B = 512                 # batch columns (lanes) per grid step
SLAB_T = 256                 # hash-table rows (K) per one-hot/matmul slab

_CORNER_INDEX = ((0, 4, 0, 4, 0),
                 (0, 4, 3, 7, 1),
                 (3, 7, 3, 7, 2),
                 (3, 7, 0, 4, 3))


def _nnue_kernel(idx_ref,              # VMEM [4, TILE_B] int32 per-corner hash indices
                 tab_ref,              # VMEM [F, T]          hash table, transposed
                 w1_ref, b1_ref,       # VMEM [32, F], [32, 1]
                 w2_ref, b2_ref,       # VMEM [32, 32], [32, 1]
                 w3_ref, b3_ref,       # VMEM [8, 32], [8, 1]   (rows 3..7 zero)
                 out_ref):             # VMEM out [8, TILE_B]
    tile_b = idx_ref.shape[1]
    n_feat, tsize = tab_ref.shape

    idx = idx_ref[...]                                                     # [4, TILE_B]

    # get_feature_sum as a fused gather+sum, transposed and K-slabbed:
    #   onehot[t, b] = #corners c with idx[c, b] == t     (SLAB_T rows at a time)
    #   feat[f, b]  += table^T[f, slab] @ onehot[slab, b]
    feat = jnp.zeros((n_feat, tile_b), jnp.float32)
    for t0 in range(0, tsize, SLAB_T):                                     # static slabs
        tids = jax.lax.broadcasted_iota(jnp.int32, (SLAB_T, tile_b), 0) + t0
        onehot = (tids == idx[0:1, :]).astype(jnp.float32)                 # sublane bcast
        for c in range(1, 4):                                              # 4 corners
            onehot = onehot + (tids == idx[c:c + 1, :]).astype(jnp.float32)
        feat = feat + jnp.dot(tab_ref[:, t0:t0 + SLAB_T], onehot,
                              preferred_element_type=jnp.float32)          # [F, TILE_B]

    # value head: clamp -> linear, three LinearBlocks with activation='none',
    # carried transposed so activations are lane-dense [32, TILE_B].
    x = jnp.clip(feat, -1.0, QMAX)                                         # i == 0: min=-1
    x = jnp.dot(w1_ref[...], x, preferred_element_type=jnp.float32) + b1_ref[...]
    x = jnp.clip(x, 0.0, QMAX)                                             # i == 1: min=0
    x = jnp.dot(w2_ref[...], x, preferred_element_type=jnp.float32) + b2_ref[...]
    x = jnp.clip(x, 0.0, QMAX)                                             # i == 2: min=0
    x = jnp.dot(w3_ref[...], x, preferred_element_type=jnp.float32) + b3_ref[...]
    out_ref[...] = x                                                       # lane-dense store


def _corner_hash_indices(board_plane):
    """board_plane: [B, 2, 7, 7] binary planes -> [B, 4] int32 hash indices."""
    combined = board_plane[:, 0] / 2.0 + board_plane[:, 1]                 # {0, 0.5, 1}
    levels = jnp.round(combined * (INPUT_LEVEL - 1)).astype(jnp.int32)     # {0, 1, 2}
    stride = INPUT_LEVEL ** jnp.arange(DIM_INPUT, dtype=jnp.int32)
    idxs = []
    for (y0, y1, x0, x1, k) in _CORNER_INDEX:
        chunk = jnp.rot90(levels[:, y0:y1, x0:x1], k, axes=(1, 2))         # [B, 4, 4]
        flat = chunk.reshape(chunk.shape[0], -1)                           # [B, 16]
        # TODO(synk): original HashLayer's imperfect-hash scheme (sub_features /
        # random hash coefficients) is not available; using the perfect base-3
        # positional hash folded mod 2**hash_logsize.
        idx = jnp.sum(flat * stride[None, :], axis=-1) % TABLE_SIZE
        idxs.append(idx.astype(jnp.int32))
    return jnp.stack(idxs, axis=1)                                         # [B, 4]


@jax.jit
def flat_hash7x7_nnue_forward(board_plane, params):
    B = board_plane.shape[0]
    idx = _corner_hash_indices(board_plane)                                # [B, 4] int32

    # Pad the batch to a multiple of TILE_B; padded columns read table row 0
    # and produce garbage logits that are sliced away below.
    b_pad = pl.cdiv(B, TILE_B) * TILE_B
    idx_t = jnp.zeros((4, b_pad), jnp.int32).at[:, :B].set(idx.T)          # [4, b_pad]

    # Transposed residents: table^T, W^T, b^T; value head padded to 8 sublanes.
    tab_t = params["table"].T                                              # [F, T]
    w1_t = params["w1"].T                                                  # [32, F]
    b1_t = params["b1"].reshape(DIM_HIDDEN, 1)                             # [32, 1]
    w2_t = params["w2"].T
    b2_t = params["b2"].reshape(DIM_HIDDEN, 1)
    w3_t = jnp.zeros((VHEAD_PAD, DIM_HIDDEN), jnp.float32).at[:DIM_VHEAD, :].set(params["w3"].T)
    b3_t = jnp.zeros((VHEAD_PAD, 1), jnp.float32).at[:DIM_VHEAD, :].set(
        params["b3"].reshape(DIM_VHEAD, 1))

    resident = lambda i: (0, 0)  # table / weights stay VMEM-resident across grid steps

    # TODO(synk): at realistic hash_logsize (e.g. 2**20) the table no longer fits
    # VMEM (plan against v7x's 64 MiB); stream table K-slabs from memory_space=pl.ANY
    # per slab of the loop above instead of keeping it resident.
    out_t = pl.pallas_call(
        _nnue_kernel,
        out_shape=jax.ShapeDtypeStruct((VHEAD_PAD, b_pad), jnp.float32),
        grid=(b_pad // TILE_B,),
        in_specs=[
            pl.BlockSpec((4, TILE_B), lambda i: (0, i)),                   # idx (pipelined)
            pl.BlockSpec((DIM_FEATURE, TABLE_SIZE), resident),             # table^T
            pl.BlockSpec((DIM_HIDDEN, DIM_FEATURE), resident),             # w1^T
            pl.BlockSpec((DIM_HIDDEN, 1), resident),                       # b1^T
            pl.BlockSpec((DIM_HIDDEN, DIM_HIDDEN), resident),              # w2^T
            pl.BlockSpec((DIM_HIDDEN, 1), resident),                       # b2^T
            pl.BlockSpec((VHEAD_PAD, DIM_HIDDEN), resident),               # w3^T (padded)
            pl.BlockSpec((VHEAD_PAD, 1), resident),                        # b3^T (padded)
        ],
        out_specs=pl.BlockSpec((VHEAD_PAD, TILE_B), lambda i: (0, i)),
        compiler_params=pltpu.CompilerParams(
            dimension_semantics=("parallel",)),                            # v7x megacore
    )(idx_t, tab_t, w1_t, b1_t, w2_t, b2_t, w3_t, b3_t)

    value = out_t[:DIM_VHEAD, :B].T                                        # [B, 3]
    policy = jnp.zeros((B, H, W), dtype=value.dtype)                       # module returns zeros
    return value, policy


def make_params(key):
    ks = jax.random.split(key, 7)
    u = functools.partial(jax.random.uniform, dtype=jnp.float32)
    return dict(
        table=u(ks[0], (TABLE_SIZE, DIM_FEATURE), minval=-1.0, maxval=QMAX),
        w1=u(ks[1], (DIM_FEATURE, DIM_HIDDEN), minval=-1.0, maxval=QMAX),
        b1=u(ks[2], (1, DIM_HIDDEN), minval=-0.1, maxval=0.1),
        w2=u(ks[3], (DIM_HIDDEN, DIM_HIDDEN), minval=-1.0, maxval=QMAX),
        b2=u(ks[4], (1, DIM_HIDDEN), minval=-0.1, maxval=0.1),
        w3=u(ks[5], (DIM_HIDDEN, DIM_VHEAD), minval=-1.0, maxval=QMAX),
        b3=u(ks[6], (1, DIM_VHEAD), minval=-0.1, maxval=0.1),
    )


if __name__ == "__main__":
    key = jax.random.PRNGKey(0)
    k_board, k_params = jax.random.split(key)

    B = 2
    # synthetic board: each cell is empty / own / opponent (planes never overlap)
    cat = jax.random.randint(k_board, (B, H, W), 0, 3)
    board = jnp.stack([(cat == 1).astype(jnp.float32),
                       (cat == 2).astype(jnp.float32)], axis=1)            # [B, 2, 7, 7]

    params = make_params(k_params)
    value, policy = flat_hash7x7_nnue_forward(board, params)
    jax.block_until_ready((value, policy))

    # reference check of the feature-sum + MLP path in plain JAX
    idx_ref = _corner_hash_indices(board)                                  # [B, 4]
    feat = jnp.sum(params["table"][idx_ref], axis=1)                       # [B, F]
    x = jnp.clip(feat, -1.0, QMAX) @ params["w1"] + params["b1"]
    x = jnp.clip(x, 0.0, QMAX) @ params["w2"] + params["b2"]
    x = jnp.clip(x, 0.0, QMAX) @ params["w3"] + params["b3"]
    assert jnp.allclose(value, x, atol=1e-4, rtol=1e-4)

    assert value.shape == (B, DIM_VHEAD) and value.dtype == jnp.float32
    assert policy.shape == (B, H, W)
    print("KERNEL_OK")
</pallas_src>

<mosaic_0001>
module attributes {stable_mosaic.version = 11 : i64} {
  func.func @_nnue_kernel(%arg0: i32, %arg1: memref<4x512xi32, #tpu.memory_space<vmem>>, %arg2: memref<32x1024xf32, #tpu.memory_space<vmem>>, %arg3: memref<32x32xf32, #tpu.memory_space<vmem>>, %arg4: memref<32x1xf32, #tpu.memory_space<vmem>>, %arg5: memref<32x32xf32, #tpu.memory_space<vmem>>, %arg6: memref<32x1xf32, #tpu.memory_space<vmem>>, %arg7: memref<8x32xf32, #tpu.memory_space<vmem>>, %arg8: memref<8x1xf32, #tpu.memory_space<vmem>>, %arg9: memref<8x512xf32, #tpu.memory_space<vmem>>) attributes {dimension_semantics = [#tpu.dimension_semantics<parallel>], iteration_bounds = array<i64: 1>, scalar_prefetch = 0 : i64, scratch_operands = 0 : i64, tpu.core_type = #tpu.core_type<tc>, window_params = [{transform_indices = @transform_0, window_bounds = array<i64: 4, 512>}, {pipeline_mode = #tpu.pipeline_mode<synchronous>, transform_indices = @transform_1, window_bounds = array<i64: 32, 1024>}, {pipeline_mode = #tpu.pipeline_mode<synchronous>, transform_indices = @transform_2, window_bounds = array<i64: 32, 32>}, {pipeline_mode = #tpu.pipeline_mode<synchronous>, transform_indices = @transform_3, window_bounds = array<i64: 32, 1>}, {pipeline_mode = #tpu.pipeline_mode<synchronous>, transform_indices = @transform_4, window_bounds = array<i64: 32, 32>}, {pipeline_mode = #tpu.pipeline_mode<synchronous>, transform_indices = @transform_5, window_bounds = array<i64: 32, 1>}, {pipeline_mode = #tpu.pipeline_mode<synchronous>, transform_indices = @transform_6, window_bounds = array<i64: 8, 32>}, {pipeline_mode = #tpu.pipeline_mode<synchronous>, transform_indices = @transform_7, window_bounds = array<i64: 8, 1>}, {transform_indices = @transform_8, window_bounds = array<i64: 8, 512>}]} {
    %c0 = arith.constant 0 : index
    %c0_0 = arith.constant 0 : index
    %0 = vector.load %arg1[%c0, %c0_0] : memref<4x512xi32, #tpu.memory_space<vmem>>, vector<4x512xi32>
    %cst = arith.constant 0.000000e+00 : f32
    %1 = vector.broadcast %cst : f32 to vector<32x512xf32>
    %2 = tpu.iota {dimensions = array<i32: 0>} : vector<256x512xi32>
    %c0_i32 = arith.constant 0 : i32
    %3 = vector.broadcast %c0_i32 : i32 to vector<256x512xi32>
    %4 = arith.addi %2, %3 : vector<256x512xi32>
    %5 = vector.extract_strided_slice %0 {offsets = [0, 0], sizes = [1, 512], strides = [1, 1]} : vector<4x512xi32> to vector<1x512xi32>
    %6 = vector.broadcast %5 : vector<1x512xi32> to vector<256x512xi32>
    %7 = arith.cmpi eq, %4, %6 : vector<256x512xi32>
    %8 = arith.extui %7 : vector<256x512xi1> to vector<256x512xi32>
    %9 = arith.sitofp %8 : vector<256x512xi32> to vector<256x512xf32>
    %10 = vector.extract_strided_slice %0 {offsets = [1, 0], sizes = [1, 512], strides = [1, 1]} : vector<4x512xi32> to vector<1x512xi32>
    %11 = vector.broadcast %10 : vector<1x512xi32> to vector<256x512xi32>
    %12 = arith.cmpi eq, %4, %11 : vector<256x512xi32>
    %13 = arith.extui %12 : vector<256x512xi1> to vector<256x512xi32>
    %14 = arith.sitofp %13 : vector<256x512xi32> to vector<256x512xf32>
    %15 = arith.addf %9, %14 : vector<256x512xf32>
    %16 = vector.extract_strided_slice %0 {offsets = [2, 0], sizes = [1, 512], strides = [1, 1]} : vector<4x512xi32> to vector<1x512xi32>
    %17 = vector.broadcast %16 : vector<1x512xi32> to vector<256x512xi32>
    %18 = arith.cmpi eq, %4, %17 : vector<256x512xi32>
    %19 = arith.extui %18 : vector<256x512xi1> to vector<256x512xi32>
    %20 = arith.sitofp %19 : vector<256x512xi32> to vector<256x512xf32>
    %21 = arith.addf %15, %20 : vector<256x512xf32>
    %22 = vector.extract_strided_slice %0 {offsets = [3, 0], sizes = [1, 512], strides = [1, 1]} : vector<4x512xi32> to vector<1x512xi32>
    %23 = vector.broadcast %22 : vector<1x512xi32> to vector<256x512xi32>
    %24 = arith.cmpi eq, %4, %23 : vector<256x512xi32>
    %25 = arith.extui %24 : vector<256x512xi1> to vector<256x512xi32>
    %26 = arith.sitofp %25 : vector<256x512xi32> to vector<256x512xf32>
    %27 = arith.addf %21, %26 : vector<256x512xf32>
    %c0_1 = arith.constant 0 : index
    %c0_2 = arith.constant 0 : index
    %28 = vector.load %arg2[%c0_1, %c0_2] : memref<32x1024xf32, #tpu.memory_space<vmem>>, vector<32x256xf32>
    %cst_3 = arith.constant dense<0.000000e+00> : vector<32x512xf32>
    %29 = tpu.matmul %28, %27, %cst_3 {dimension_numbers = #tpu.dot_dimension_numbers<[1], [0], [0], [1], [0, 0, 1, 1], [], []>} : vector<32x256xf32>, vector<256x512xf32>, vector<32x512xf32> -> vector<32x512xf32>
    %30 = arith.addf %1, %29 : vector<32x512xf32>
    %31 = tpu.iota {dimensions = array<i32: 0>} : vector<256x512xi32>
    %c256_i32 = arith.constant 256 : i32
    %32 = vector.broadcast %c256_i32 : i32 to vector<256x512xi32>
    %33 = arith.addi %31, %32 : vector<256x512xi32>
    %34 = vector.extract_strided_slice %0 {offsets = [0, 0], sizes = [1, 512], strides = [1, 1]} : vector<4x512xi32> to vector<1x512xi32>
    %35 = vector.broadcast %34 : vector<1x512xi32> to vector<256x512xi32>
    %36 = arith.cmpi eq, %33, %35 : vector<256x512xi32>
    %37 = arith.extui %36 : vector<256x512xi1> to vector<256x512xi32>
    %38 = arith.sitofp %37 : vector<256x512xi32> to vector<256x512xf32>
    %39 = vector.extract_strided_slice %0 {offsets = [1, 0], sizes = [1, 512], strides = [1, 1]} : vector<4x512xi32> to vector<1x512xi32>
    %40 = vector.broadcast %39 : vector<1x512xi32> to vector<256x512xi32>
    %41 = arith.cmpi eq, %33, %40 : vector<256x512xi32>
    %42 = arith.extui %41 : vector<256x512xi1> to vector<256x512xi32>
    %43 = arith.sitofp %42 : vector<256x512xi32> to vector<256x512xf32>
    %44 = arith.addf %38, %43 : vector<256x512xf32>
    %45 = vector.extract_strided_slice %0 {offsets = [2, 0], sizes = [1, 512], strides = [1, 1]} : vector<4x512xi32> to vector<1x512xi32>
    %46 = vector.broadcast %45 : vector<1x512xi32> to vector<256x512xi32>
    %47 = arith.cmpi eq, %33, %46 : vector<256x512xi32>
    %48 = arith.extui %47 : vector<256x512xi1> to vector<256x512xi32>
    %49 = arith.sitofp %48 : vector<256x512xi32> to vector<256x512xf32>
    %50 = arith.addf %44, %49 : vector<256x512xf32>
    %51 = vector.extract_strided_slice %0 {offsets = [3, 0], sizes = [1, 512], strides = [1, 1]} : vector<4x512xi32> to vector<1x512xi32>
    %52 = vector.broadcast %51 : vector<1x512xi32> to vector<256x512xi32>
    %53 = arith.cmpi eq, %33, %52 : vector<256x512xi32>
    %54 = arith.extui %53 : vector<256x512xi1> to vector<256x512xi32>
    %55 = arith.sitofp %54 : vector<256x512xi32> to vector<256x512xf32>
    %56 = arith.addf %50, %55 : vector<256x512xf32>
    %c0_4 = arith.constant 0 : index
    %c256 = arith.constant 256 : index
    %57 = vector.load %arg2[%c0_4, %c256] : memref<32x1024xf32, #tpu.memory_space<vmem>>, vector<32x256xf32>
    %cst_5 = arith.constant dense<0.000000e+00> : vector<32x512xf32>
    %58 = tpu.matmul %57, %56, %cst_5 {dimension_numbers = #tpu.dot_dimension_numbers<[1], [0], [0], [1], [0, 0, 1, 1], [], []>} : vector<32x256xf32>, vector<256x512xf32>, vector<32x512xf32> -> vector<32x512xf32>
    %59 = arith.addf %30, %58 : vector<32x512xf32>
    %60 = tpu.iota {dimensions = array<i32: 0>} : vector<256x512xi32>
    %c512_i32 = arith.constant 512 : i32
    %61 = vector.broadcast %c512_i32 : i32 to vector<256x512xi32>
    %62 = arith.addi %60, %61 : vector<256x512xi32>
    %63 = vector.extract_strided_slice %0 {offsets = [0, 0], sizes = [1, 512], strides = [1, 1]} : vector<4x512xi32> to vector<1x512xi32>
    %64 = vector.broadcast %63 : vector<1x512xi32> to vector<256x512xi32>
    %65 = arith.cmpi eq, %62, %64 : vector<256x512xi32>
    %66 = arith.extui %65 : vector<256x512xi1> to vector<256x512xi32>
    %67 = arith.sitofp %66 : vector<256x512xi32> to vector<256x512xf32>
    %68 = vector.extract_strided_slice %0 {offsets = [1, 0], sizes = [1, 512], strides = [1, 1]} : vector<4x512xi32> to vector<1x512xi32>
    %69 = vector.broadcast %68 : vector<1x512xi32> to vector<256x512xi32>
    %70 = arith.cmpi eq, %62, %69 : vector<256x512xi32>
    %71 = arith.extui %70 : vector<256x512xi1> to vector<256x512xi32>
    %72 = arith.sitofp %71 : vector<256x512xi32> to vector<256x512xf32>
    %73 = arith.addf %67, %72 : vector<256x512xf32>
    %74 = vector.extract_strided_slice %0 {offsets = [2, 0], sizes = [1, 512], strides = [1, 1]} : vector<4x512xi32> to vector<1x512xi32>
    %75 = vector.broadcast %74 : vector<1x512xi32> to vector<256x512xi32>
    %76 = arith.cmpi eq, %62, %75 : vector<256x512xi32>
    %77 = arith.extui %76 : vector<256x512xi1> to vector<256x512xi32>
    %78 = arith.sitofp %77 : vector<256x512xi32> to vector<256x512xf32>
    %79 = arith.addf %73, %78 : vector<256x512xf32>
    %80 = vector.extract_strided_slice %0 {offsets = [3, 0], sizes = [1, 512], strides = [1, 1]} : vector<4x512xi32> to vector<1x512xi32>
    %81 = vector.broadcast %80 : vector<1x512xi32> to vector<256x512xi32>
    %82 = arith.cmpi eq, %62, %81 : vector<256x512xi32>
    %83 = arith.extui %82 : vector<256x512xi1> to vector<256x512xi32>
    %84 = arith.sitofp %83 : vector<256x512xi32> to vector<256x512xf32>
    %85 = arith.addf %79, %84 : vector<256x512xf32>
    %c0_6 = arith.constant 0 : index
    %c512 = arith.constant 512 : index
    %86 = vector.load %arg2[%c0_6, %c512] : memref<32x1024xf32, #tpu.memory_space<vmem>>, vector<32x256xf32>
    %cst_7 = arith.constant dense<0.000000e+00> : vector<32x512xf32>
    %87 = tpu.matmul %86, %85, %cst_7 {dimension_numbers = #tpu.dot_dimension_numbers<[1], [0], [0], [1], [0, 0, 1, 1], [], []>} : vector<32x256xf32>, vector<256x512xf32>, vector<32x512xf32> -> vector<32x512xf32>
    %88 = arith.addf %59, %87 : vector<32x512xf32>
    %89 = tpu.iota {dimensions = array<i32: 0>} : vector<256x512xi32>
    %c768_i32 = arith.constant 768 : i32
    %90 = vector.broadcast %c768_i32 : i32 to vector<256x512xi32>
    %91 = arith.addi %89, %90 : vector<256x512xi32>
    %92 = vector.extract_strided_slice %0 {offsets = [0, 0], sizes = [1, 512], strides = [1, 1]} : vector<4x512xi32> to vector<1x512xi32>
    %93 = vector.broadcast %92 : vector<1x512xi32> to vector<256x512xi32>
    %94 = arith.cmpi eq, %91, %93 : vector<256x512xi32>
    %95 = arith.extui %94 : vector<256x512xi1> to vector<256x512xi32>
    %96 = arith.sitofp %95 : vector<256x512xi32> to vector<256x512xf32>
    %97 = vector.extract_strided_slice %0 {offsets = [1, 0], sizes = [1, 512], strides = [1, 1]} : vector<4x512xi32> to vector<1x512xi32>
    %98 = vector.broadcast %97 : vector<1x512xi32> to vector<256x512xi32>
    %99 = arith.cmpi eq, %91, %98 : vector<256x512xi32>
    %100 = arith.extui %99 : vector<256x512xi1> to vector<256x512xi32>
    %101 = arith.sitofp %100 : vector<256x512xi32> to vector<256x512xf32>
    %102 = arith.addf %96, %101 : vector<256x512xf32>
    %103 = vector.extract_strided_slice %0 {offsets = [2, 0], sizes = [1, 512], strides = [1, 1]} : vector<4x512xi32> to vector<1x512xi32>
    %104 = vector.broadcast %103 : vector<1x512xi32> to vector<256x512xi32>
    %105 = arith.cmpi eq, %91, %104 : vector<256x512xi32>
    %106 = arith.extui %105 : vector<256x512xi1> to vector<256x512xi32>
    %107 = arith.sitofp %106 : vector<256x512xi32> to vector<256x512xf32>
    %108 = arith.addf %102, %107 : vector<256x512xf32>
    %109 = vector.extract_strided_slice %0 {offsets = [3, 0], sizes = [1, 512], strides = [1, 1]} : vector<4x512xi32> to vector<1x512xi32>
    %110 = vector.broadcast %109 : vector<1x512xi32> to vector<256x512xi32>
    %111 = arith.cmpi eq, %91, %110 : vector<256x512xi32>
    %112 = arith.extui %111 : vector<256x512xi1> to vector<256x512xi32>
    %113 = arith.sitofp %112 : vector<256x512xi32> to vector<256x512xf32>
    %114 = arith.addf %108, %113 : vector<256x512xf32>
    %c0_8 = arith.constant 0 : index
    %c768 = arith.constant 768 : index
    %115 = vector.load %arg2[%c0_8, %c768] : memref<32x1024xf32, #tpu.memory_space<vmem>>, vector<32x256xf32>
    %cst_9 = arith.constant dense<0.000000e+00> : vector<32x512xf32>
    %116 = tpu.matmul %115, %114, %cst_9 {dimension_numbers = #tpu.dot_dimension_numbers<[1], [0], [0], [1], [0, 0, 1, 1], [], []>} : vector<32x256xf32>, vector<256x512xf32>, vector<32x512xf32> -> vector<32x512xf32>
    %117 = arith.addf %88, %116 : vector<32x512xf32>
    %cst_10 = arith.constant -1.000000e+00 : f32
    %cst_11 = arith.constant 0.9921875 : f32
    %118 = vector.broadcast %cst_10 : f32 to vector<32x512xf32>
    %119 = arith.maximumf %118, %117 : vector<32x512xf32>
    %120 = vector.broadcast %cst_11 : f32 to vector<32x512xf32>
    %121 = arith.minimumf %120, %119 : vector<32x512xf32>
    %c0_12 = arith.constant 0 : index
    %c0_13 = arith.constant 0 : index
    %122 = vector.load %arg3[%c0_12, %c0_13] : memref<32x32xf32, #tpu.memory_space<vmem>>, vector<32x32xf32>
    %cst_14 = arith.constant dense<0.000000e+00> : vector<32x512xf32>
    %123 = tpu.matmul %122, %121, %cst_14 {dimension_numbers = #tpu.dot_dimension_numbers<[1], [0], [0], [1], [0, 0, 1, 1], [], []>} : vector<32x32xf32>, vector<32x512xf32>, vector<32x512xf32> -> vector<32x512xf32>
    %c0_15 = arith.constant 0 : index
    %c0_16 = arith.constant 0 : index
    %124 = vector.load %arg4[%c0_15, %c0_16] : memref<32x1xf32, #tpu.memory_space<vmem>>, vector<32x1xf32>
    %125 = vector.broadcast %124 : vector<32x1xf32> to vector<32x512xf32>
    %126 = arith.addf %123, %125 : vector<32x512xf32>
    %cst_17 = arith.constant 0.000000e+00 : f32
    %cst_18 = arith.constant 0.9921875 : f32
    %127 = vector.broadcast %cst_17 : f32 to vector<32x512xf32>
    %128 = arith.maximumf %127, %126 : vector<32x512xf32>
    %129 = vector.broadcast %cst_18 : f32 to vector<32x512xf32>
    %130 = arith.minimumf %129, %128 : vector<32x512xf32>
    %c0_19 = arith.constant 0 : index
    %c0_20 = arith.constant 0 : index
    %131 = vector.load %arg5[%c0_19, %c0_20] : memref<32x32xf32, #tpu.memory_space<vmem>>, vector<32x32xf32>
    %cst_21 = arith.constant dense<0.000000e+00> : vector<32x512xf32>
    %132 = tpu.matmul %131, %130, %cst_21 {dimension_numbers = #tpu.dot_dimension_numbers<[1], [0], [0], [1], [0, 0, 1, 1], [], []>} : vector<32x32xf32>, vector<32x512xf32>, vector<32x512xf32> -> vector<32x512xf32>
    %c0_22 = arith.constant 0 : index
    %c0_23 = arith.constant 0 : index
    %133 = vector.load %arg6[%c0_22, %c0_23] : memref<32x1xf32, #tpu.memory_space<vmem>>, vector<32x1xf32>
    %134 = vector.broadcast %133 : vector<32x1xf32> to vector<32x512xf32>
    %135 = arith.addf %132, %134 : vector<32x512xf32>
    %cst_24 = arith.constant 0.000000e+00 : f32
    %cst_25 = arith.constant 0.9921875 : f32
    %136 = vector.broadcast %cst_24 : f32 to vector<32x512xf32>
    %137 = arith.maximumf %136, %135 : vector<32x512xf32>
    %138 = vector.broadcast %cst_25 : f32 to vector<32x512xf32>
    %139 = arith.minimumf %138, %137 : vector<32x512xf32>
    %c0_26 = arith.constant 0 : index
    %c0_27 = arith.constant 0 : index
    %140 = vector.load %arg7[%c0_26, %c0_27] : memref<8x32xf32, #tpu.memory_space<vmem>>, vector<8x32xf32>
    %cst_28 = arith.constant dense<0.000000e+00> : vector<8x512xf32>
    %141 = tpu.matmul %140, %139, %cst_28 {dimension_numbers = #tpu.dot_dimension_numbers<[1], [0], [0], [1], [0, 0, 1, 1], [], []>} : vector<8x32xf32>, vector<32x512xf32>, vector<8x512xf32> -> vector<8x512xf32>
    %c0_29 = arith.constant 0 : index
    %c0_30 = arith.constant 0 : index
    %142 = vector.load %arg8[%c0_29, %c0_30] : memref<8x1xf32, #tpu.memory_space<vmem>>, vector<8x1xf32>
    %143 = vector.broadcast %142 : vector<8x1xf32> to vector<8x512xf32>
    %144 = arith.addf %141, %143 : vector<8x512xf32>
    %c0_31 = arith.constant 0 : index
    %c0_32 = arith.constant 0 : index
    %145 = vector.load %arg9[%c0_31, %c0_32] : memref<8x512xf32, #tpu.memory_space<vmem>>, vector<8x512xf32>
    tpu.vector_store %arg9[%c0_31, %c0_32], %144 {strides = array<i32>} : memref<8x512xf32, #tpu.memory_space<vmem>>, vector<8x512xf32>,
    return
  }
  func.func @transform_0(%arg0: i32) -> (i32, i32) {
    %c0_i32 = arith.constant 0 : i32
    %c0_i32_0 = arith.constant 0 : i32
    return %c0_i32, %arg0 : i32, i32
  }
  func.func @transform_1(%arg0: i32) -> (i32, i32) {
    %c0_i32 = arith.constant 0 : i32
    %c0_i32_0 = arith.constant 0 : i32
    %c0_i32_1 = arith.constant 0 : i32
    return %c0_i32, %c0_i32_0 : i32, i32
  }
  func.func @transform_2(%arg0: i32) -> (i32, i32) {
    %c0_i32 = arith.constant 0 : i32
    %c0_i32_0 = arith.constant 0 : i32
    %c0_i32_1 = arith.constant 0 : i32
    return %c0_i32, %c0_i32_0 : i32, i32
  }
  func.func @transform_3(%arg0: i32) -> (i32, i32) {
    %c0_i32 = arith.constant 0 : i32
    %c0_i32_0 = arith.constant 0 : i32
    %c0_i32_1 = arith.constant 0 : i32
    return %c0_i32, %c0_i32_0 : i32, i32
  }
  func.func @transform_4(%arg0: i32) -> (i32, i32) {
    %c0_i32 = arith.constant 0 : i32
    %c0_i32_0 = arith.constant 0 : i32
    %c0_i32_1 = arith.constant 0 : i32
    return %c0_i32, %c0_i32_0 : i32, i32
  }
  func.func @transform_5(%arg0: i32) -> (i32, i32) {
    %c0_i32 = arith.constant 0 : i32
    %c0_i32_0 = arith.constant 0 : i32
    %c0_i32_1 = arith.constant 0 : i32
    return %c0_i32, %c0_i32_0 : i32, i32
  }
  func.func @transform_6(%arg0: i32) -> (i32, i32) {
    %c0_i32 = arith.constant 0 : i32
    %c0_i32_0 = arith.constant 0 : i32
    %c0_i32_1 = arith.constant 0 : i32
    return %c0_i32, %c0_i32_0 : i32, i32
  }
  func.func @transform_7(%arg0: i32) -> (i32, i32) {
    %c0_i32 = arith.constant 0 : i32
    %c0_i32_0 = arith.constant 0 : i32
    %c0_i32_1 = arith.constant 0 : i32
    return %c0_i32, %c0_i32_0 : i32, i32
  }
  func.func @transform_8(%arg0: i32) -> (i32, i32) {
    %c0_i32 = arith.constant 0 : i32
    %c0_i32_0 = arith.constant 0 : i32
    return %c0_i32, %arg0 : i32, i32
  }
}

</mosaic_0001>

<llo_original>
// kernel: flat_hash7x7_nnue_forward.1
$region0: #{flat_hash7x7_nnue_forward.1}
  #allocation0 [shape = 'u32[]', space=smem, size = 0x4, offset = 0x4, fixed_abs, tag = 'smem constant byte address 0x4 - core index']
  #allocation1 [shape = 'u32[144,128]{1,0:T(1,128)}', space=vmem, size = 0x12000, scoped, tag = 'internal scratch']
  %s0 = inlined_call_operand.vmem [shape: s32[4,512], index: 0, kind: input, shape index: {}]
  %s1 = inlined_call_operand.vmem [shape: f32[32,1024], index: 1, kind: input, shape index: {}]
  %s2 = inlined_call_operand.vmem [shape: f32[32,32], index: 2, kind: input, shape index: {}]
  %s3 = inlined_call_operand.vmem [shape: f32[32,1], index: 3, kind: input, shape index: {}]
  %s4 = inlined_call_operand.vmem [shape: f32[32,32], index: 4, kind: input, shape index: {}]
  %s5 = inlined_call_operand.vmem [shape: f32[32,1], index: 5, kind: input, shape index: {}]
  %s6 = inlined_call_operand.vmem [shape: f32[8,32], index: 6, kind: input, shape index: {}]
  %s7 = inlined_call_operand.vmem [shape: f32[8,1], index: 7, kind: input, shape index: {}]
  %s8 = inlined_call_operand.vmem [shape: f32[8,512], index: 8, kind: output, shape index: {}]
  %s9 = sld [smem:[#allocation0]]
  $region42: #{flat_hash7x7_nnue_forward.1} parent=0
    _
  %s11 = ssub.s32 1, %s9
  %s12 = scalar_select 0, %s11, %s9
  // Predicated region
  $region2: #{flat_hash7x7_nnue_forward.1} parent=0 // pred_check
    _
  $region3: #{flat_hash7x7_nnue_forward.1} parent=0 // pred_check_branch
    %14 = sbr.rel (0) target = $region5
  $region4: #{flat_hash7x7_nnue_forward.1} parent=0 // pred_region
    _
  $region5: #{flat_hash7x7_nnue_forward.1} parent=0 // pred_fallthru
    _
  // Predicated region
  $region6: #{flat_hash7x7_nnue_forward.1} parent=0 // pred_check
    _
  $region7: #{flat_hash7x7_nnue_forward.1} parent=0 // pred_check_branch
    %16 = sbr.rel (0) target = $region9
  $region8: #{flat_hash7x7_nnue_forward.1} parent=0 // pred_region
    _
  $region9: #{flat_hash7x7_nnue_forward.1} parent=0 // pred_fallthru
    _
  // Predicated region
  $region10: #{flat_hash7x7_nnue_forward.1} parent=0 // pred_check
    _
  $region11: #{flat_hash7x7_nnue_forward.1} parent=0 // pred_check_branch
    %18 = sbr.rel (0) target = $region13
  $region12: #{flat_hash7x7_nnue_forward.1} parent=0 // pred_region
    _
  $region13: #{flat_hash7x7_nnue_forward.1} parent=0 // pred_fallthru
    _
  // Predicated region
  $region14: #{flat_hash7x7_nnue_forward.1} parent=0 // pred_check
    _
  $region15: #{flat_hash7x7_nnue_forward.1} parent=0 // pred_check_branch
    %20 = sbr.rel (0) target = $region17
  $region16: #{flat_hash7x7_nnue_forward.1} parent=0 // pred_region
    _
  $region17: #{flat_hash7x7_nnue_forward.1} parent=0 // pred_fallthru
    _
  // Predicated region
  $region18: #{flat_hash7x7_nnue_forward.1} parent=0 // pred_check
    _
  $region19: #{flat_hash7x7_nnue_forward.1} parent=0 // pred_check_branch
    %22 = sbr.rel (0) target = $region21
  $region20: #{flat_hash7x7_nnue_forward.1} parent=0 // pred_region
    _
  $region21: #{flat_hash7x7_nnue_forward.1} parent=0 // pred_fallthru
    _
  // Predicated region
  $region22: #{flat_hash7x7_nnue_forward.1} parent=0 // pred_check
    _
  $region23: #{flat_hash7x7_nnue_forward.1} parent=0 // pred_check_branch
    %24 = sbr.rel (0) target = $region25
  $region24: #{flat_hash7x7_nnue_forward.1} parent=0 // pred_region
    _
  $region25: #{flat_hash7x7_nnue_forward.1} parent=0 // pred_fallthru
    _
  // Predicated region
  $region26: #{flat_hash7x7_nnue_forward.1} parent=0 // pred_check
    _
  $region27: #{flat_hash7x7_nnue_forward.1} parent=0 // pred_check_branch
    %26 = sbr.rel (0) target = $region29
  $region28: #{flat_hash7x7_nnue_forward.1} parent=0 // pred_region
    _
  $region29: #{flat_hash7x7_nnue_forward.1} parent=0 // pred_fallthru
    _
  // Predicated region
  $region30: #{flat_hash7x7_nnue_forward.1} parent=0 // pred_check
    _
  $region31: #{flat_hash7x7_nnue_forward.1} parent=0 // pred_check_branch
    %28 = sbr.rel (0) target = $region33
  $region32: #{flat_hash7x7_nnue_forward.1} parent=0 // pred_region
    _
  $region33: #{flat_hash7x7_nnue_forward.1} parent=0 // pred_fallthru
    _
  %v29 = vld [vmem:[%s0] sm:$0xff]
  %v30 = vld [vmem:[%s0 + $0x8] sm:$0xff]
  %v31 = vlaneseq
  %v32 = vshrl.u32 %v31, 7
  %v33 = vadd.s32 %v32, 8
  %v34 = vadd.s32 %v32, 16
  %v35 = vadd.s32 %v32, 24
  %v36 = vadd.s32 %v32, 32
  %v37 = vadd.s32 %v32, 40
  %v38 = vadd.s32 %v32, 48
  %v39 = vadd.s32 %v32, 56
  %v40 = vadd.s32 %v32, 64
  %v41 = vadd.s32 %v32, 72
  %v42 = vadd.s32 %v32, 80
  %v43 = vadd.s32 %v32, 88
  %v44 = vadd.s32 %v32, 96
  %v45 = vadd.s32 %v32, 104
  %v46 = vadd.s32 %v32, 112
  %v47 = vadd.s32 %v32, 120
  %v48 = vadd.s32 %v32, 128
  %v49 = vadd.s32 %v32, 136
  %v50 = vadd.s32 %v32, 144
  %v51 = vadd.s32 %v32, 152
  %v52 = vadd.s32 %v32, 160
  %v53 = vadd.s32 %v32, 168
  %v54 = vadd.s32 %v32, 176
  %v55 = vadd.s32 %v32, 184
  %v56 = vadd.s32 %v32, 192
  %v57 = vadd.s32 %v32, 200
  %v58 = vadd.s32 %v32, 208
  %v59 = vadd.s32 %v32, 216
  %v60 = vadd.s32 %v32, 224
  %v61 = vadd.s32 %v32, 232
  %v62 = vadd.s32 %v32, 240
  %v63 = vadd.s32 %v32, 248
  %v64 = vlaneseq
  %v65 = vshrl.u32 %v64, 7
  %v66 = vsub.s32 0, %v65
  %v67 = vrot.slane %v29, %v66
  %v68 = vlaneseq
  %v69 = vshrl.u32 %v68, 7
  %v70 = vsub.s32 4, %v69
  %v71 = vrot.slane %v29, %v70
  %v72 = vlaneseq
  %v73 = vshrl.u32 %v72, 7
  %v74 = vsub.s32 0, %v73
  %v75 = vrot.slane %v30, %v74
  %v76 = vlaneseq
  %v77 = vshrl.u32 %v76, 7
  %v78 = vsub.s32 4, %v77
  %v79 = vrot.slane %v30, %v78
  %v80 = vlaneseq
  %v81 = vshrl.u32 %v80, 7
  %v82 = vsub.s32 0, %v81
  %v83 = vrot.slane %v67, %v82
  %v84 = vlaneseq
  %v85 = vshrl.u32 %v84, 7
  %v86 = vsub.s32 0, %v85
  %v87 = vrot.slane %v71, %v86
  %v88 = vlaneseq
  %v89 = vshrl.u32 %v88, 7
  %v90 = vsub.s32 0, %v89
  %v91 = vrot.slane %v75, %v90
  %v92 = vlaneseq
  %v93 = vshrl.u32 %v92, 7
  %v94 = vsub.s32 0, %v93
  %v95 = vrot.slane %v79, %v94
  %vm96 = vcmp.eq.s32.totalorder %v32, %v83
  %vm97 = vcmp.eq.s32.totalorder %v32, %v87
  %vm98 = vcmp.eq.s32.totalorder %v32, %v91
  %vm99 = vcmp.eq.s32.totalorder %v32, %v95
  %vm100 = vcmp.eq.s32.totalorder %v33, %v83
  %vm101 = vcmp.eq.s32.totalorder %v33, %v87
  %vm102 = vcmp.eq.s32.totalorder %v33, %v91
  %vm103 = vcmp.eq.s32.totalorder %v33, %v95
  %vm104 = vcmp.eq.s32.totalorder %v34, %v83
  %vm105 = vcmp.eq.s32.totalorder %v34, %v87
  %vm106 = vcmp.eq.s32.totalorder %v34, %v91
  %vm107 = vcmp.eq.s32.totalorder %v34, %v95
  %vm108 = vcmp.eq.s32.totalorder %v35, %v83
  %vm109 = vcmp.eq.s32.totalorder %v35, %v87
  %vm110 = vcmp.eq.s32.totalorder %v35, %v91
  %vm111 = vcmp.eq.s32.totalorder %v35, %v95
  %vm112 = vcmp.eq.s32.totalorder %v36, %v83
  %vm113 = vcmp.eq.s32.totalorder %v36, %v87
  %vm114 = vcmp.eq.s32.totalorder %v36, %v91
  %vm115 = vcmp.eq.s32.totalorder %v36, %v95
  %vm116 = vcmp.eq.s32.totalorder %v37, %v83
  %vm117 = vcmp.eq.s32.totalorder %v37, %v87
  %vm118 = vcmp.eq.s32.totalorder %v37, %v91
  %vm119 = vcmp.eq.s32.totalorder %v37, %v95
  %vm120 = vcmp.eq.s32.totalorder %v38, %v83
  %vm121 = vcmp.eq.s32.totalorder %v38, %v87
  %vm122 = vcmp.eq.s32.totalorder %v38, %v91
  %vm123 = vcmp.eq.s32.totalorder %v38, %v95
  %vm124 = vcmp.eq.s32.totalorder %v39, %v83
  %vm125 = vcmp.eq.s32.totalorder %v39, %v87
  %vm126 = vcmp.eq.s32.totalorder %v39, %v91
  %vm127 = vcmp.eq.s32.totalorder %v39, %v95
  %vm128 = vcmp.eq.s32.totalorder %v40, %v83
  %vm129 = vcmp.eq.s32.totalorder %v40, %v87
  %vm130 = vcmp.eq.s32.totalorder %v40, %v91
  %vm131 = vcmp.eq.s32.totalorder %v40, %v95
  %vm132 = vcmp.eq.s32.totalorder %v41, %v83
  %vm133 = vcmp.eq.s32.totalorder %v41, %v87
  %vm134 = vcmp.eq.s32.totalorder %v41, %v91
  %vm135 = vcmp.eq.s32.totalorder %v41, %v95
  %vm136 = vcmp.eq.s32.totalorder %v42, %v83
  %vm137 = vcmp.eq.s32.totalorder %v42, %v87
  %vm138 = vcmp.eq.s32.totalorder %v42, %v91
  %vm139 = vcmp.eq.s32.totalorder %v42, %v95
  %vm140 = vcmp.eq.s32.totalorder %v43, %v83
  %vm141 = vcmp.eq.s32.totalorder %v43, %v87
  %vm142 = vcmp.eq.s32.totalorder %v43, %v91
  %vm143 = vcmp.eq.s32.totalorder %v43, %v95
  %vm144 = vcmp.eq.s32.totalorder %v44, %v83
  %vm145 = vcmp.eq.s32.totalorder %v44, %v87
  %vm146 = vcmp.eq.s32.totalorder %v44, %v91
  %vm147 = vcmp.eq.s32.totalorder %v44, %v95
  %vm148 = vcmp.eq.s32.totalorder %v45, %v83
  %vm149 = vcmp.eq.s32.totalorder %v45, %v87
  %vm150 = vcmp.eq.s32.totalorder %v45, %v91
  %vm151 = vcmp.eq.s32.totalorder %v45, %v95
  %vm152 = vcmp.eq.s32.totalorder %v46, %v83
  %vm153 = vcmp.eq.s32.totalorder %v46, %v87
  %vm154 = vcmp.eq.s32.totalorder %v46, %v91
  %vm155 = vcmp.eq.s32.totalorder %v46, %v95
  %vm156 = vcmp.eq.s32.totalorder %v47, %v83
  %vm157 = vcmp.eq.s32.totalorder %v47, %v87
  %vm158 = vcmp.eq.s32.totalorder %v47, %v91
  %vm159 = vcmp.eq.s32.totalorder %v47, %v95
  %vm160 = vcmp.eq.s32.totalorder %v48, %v83
  %vm161 = vcmp.eq.s32.totalorder %v48, %v87
  %vm162 = vcmp.eq.s32.totalorder %v48, %v91
  %vm163 = vcmp.eq.s32.totalorder %v48, %v95
  %vm164 = vcmp.eq.s32.totalorder %v49, %v83
  %vm165 = vcmp.eq.s32.totalorder %v49, %v87
  %vm166 = vcmp.eq.s32.totalorder %v49, %v91
  %vm167 = vcmp.eq.s32.totalorder %v49, %v95
  %vm168 = vcmp.eq.s32.totalorder %v50, %v83
  %vm169 = vcmp.eq.s32.totalorder %v50, %v87
  %vm170 = vcmp.eq.s32.totalorder %v50, %v91
  %vm171 = vcmp.eq.s32.totalorder %v50, %v95
  %vm172 = vcmp.eq.s32.totalorder %v51, %v83
  %vm173 = vcmp.eq.s32.totalorder %v51, %v87
  %vm174 = vcmp.eq.s32.totalorder %v51, %v91
  %vm175 = vcmp.eq.s32.totalorder %v51, %v95
  %vm176 = vcmp.eq.s32.totalorder %v52, %v83
  %vm177 = vcmp.eq.s32.totalorder %v52, %v87
  %vm178 = vcmp.eq.s32.totalorder %v52, %v91
  %vm179 = vcmp.eq.s32.totalorder %v52, %v95
  %vm180 = vcmp.eq.s32.totalorder %v53, %v83
  %vm181 = vcmp.eq.s32.totalorder %v53, %v87
  %vm182 = vcmp.eq.s32.totalorder %v53, %v91
  %vm183 = vcmp.eq.s32.totalorder %v53, %v95
  %vm184 = vcmp.eq.s32.totalorder %v54, %v83
  %vm185 = vcmp.eq.s32.totalorder %v54, %v87
  %vm186 = vcmp.eq.s32.totalorder %v54, %v91
  %vm187 = vcmp.eq.s32.totalorder %v54, %v95
  %vm188 = vcmp.eq.s32.totalorder %v55, %v83
  %vm189 = vcmp.eq.s32.totalorder %v55, %v87
  %vm190 = vcmp.eq.s32.totalorder %v55, %v91
  %vm191 = vcmp.eq.s32.totalorder %v55, %v95
  %vm192 = vcmp.eq.s32.totalorder %v56, %v83
  %vm193 = vcmp.eq.s32.totalorder %v56, %v87
  %vm194 = vcmp.eq.s32.totalorder %v56, %v91
  %vm195 = vcmp.eq.s32.totalorder %v56, %v95
  %vm196 = vcmp.eq.s32.totalorder %v57, %v83
  %vm197 = vcmp.eq.s32.totalorder %v57, %v87
  %vm198 = vcmp.eq.s32.totalorder %v57, %v91
  %vm199 = vcmp.eq.s32.totalorder %v57, %v95
  %vm200 = vcmp.eq.s32.totalorder %v58, %v83
  %vm201 = vcmp.eq.s32.totalorder %v58, %v87
  %vm202 = vcmp.eq.s32.totalorder %v58, %v91
  %vm203 = vcmp.eq.s32.totalorder %v58, %v95
  %vm204 = vcmp.eq.s32.totalorder %v59, %v83
  %vm205 = vcmp.eq.s32.totalorder %v59, %v87
  %vm206 = vcmp.eq.s32.totalorder %v59, %v91
  %vm207 = vcmp.eq.s32.totalorder %v59, %v95
  %vm208 = vcmp.eq.s32.totalorder %v60, %v83
  %vm209 = vcmp.eq.s32.totalorder %v60, %v87
  %vm210 = vcmp.eq.s32.totalorder %v60, %v91
  %vm211 = vcmp.eq.s32.totalorder %v60, %v95
  %vm212 = vcmp.eq.s32.totalorder %v61, %v83
  %vm213 = vcmp.eq.s32.totalorder %v61, %v87
  %vm214 = vcmp.eq.s32.totalorder %v61, %v91
  %vm215 = vcmp.eq.s32.totalorder %v61, %v95
  %vm216 = vcmp.eq.s32.totalorder %v62, %v83
  %vm217 = vcmp.eq.s32.totalorder %v62, %v87
  %vm218 = vcmp.eq.s32.totalorder %v62, %v91
  %vm219 = vcmp.eq.s32.totalorder %v62, %v95
  %vm220 = vcmp.eq.s32.totalorder %v63, %v83
  %vm221 = vcmp.eq.s32.totalorder %v63, %v87
  %vm222 = vcmp.eq.s32.totalorder %v63, %v91
  %vm223 = vcmp.eq.s32.totalorder %v63, %v95
  %v224 = vsel %vm96, 1, 0
  %v225 = vsel %vm97, 1, 0
  %v226 = vsel %vm98, 1, 0
  %v227 = vsel %vm99, 1, 0
  %v228 = vsel %vm100, 1, 0
  %v229 = vsel %vm101, 1, 0
  %v230 = vsel %vm102, 1, 0
  %v231 = vsel %vm103, 1, 0
  %v232 = vsel %vm104, 1, 0
  %v233 = vsel %vm105, 1, 0
  %v234 = vsel %vm106, 1, 0
  %v235 = vsel %vm107, 1, 0
  %v236 = vsel %vm108, 1, 0
  %v237 = vsel %vm109, 1, 0
  %v238 = vsel %vm110, 1, 0
  %v239 = vsel %vm111, 1, 0
  %v240 = vsel %vm112, 1, 0
  %v241 = vsel %vm113, 1, 0
  %v242 = vsel %vm114, 1, 0
  %v243 = vsel %vm115, 1, 0
  %v244 = vsel %vm116, 1, 0
  %v245 = vsel %vm117, 1, 0
  %v246 = vsel %vm118, 1, 0
  %v247 = vsel %vm119, 1, 0
  %v248 = vsel %vm120, 1, 0
  %v249 = vsel %vm121, 1, 0
  %v250 = vsel %vm122, 1, 0
  %v251 = vsel %vm123, 1, 0
  %v252 = vsel %vm124, 1, 0
  %v253 = vsel %vm125, 1, 0
  %v254 = vsel %vm126, 1, 0
  %v255 = vsel %vm127, 1, 0
  %v256 = vsel %vm128, 1, 0
  %v257 = vsel %vm129, 1, 0
  %v258 = vsel %vm130, 1, 0
  %v259 = vsel %vm131, 1, 0
  %v260 = vsel %vm132, 1, 0
  %v261 = vsel %vm133, 1, 0
  %v262 = vsel %vm134, 1, 0
  %v263 = vsel %vm135, 1, 0
  %v264 = vsel %vm136, 1, 0
  %v265 = vsel %vm137, 1, 0
  %v266 = vsel %vm138, 1, 0
  %v267 = vsel %vm139, 1, 0
  %v268 = vsel %vm140, 1, 0
  %v269 = vsel %vm141, 1, 0
  %v270 = vsel %vm142, 1, 0
  %v271 = vsel %vm143, 1, 0
  %v272 = vsel %vm144, 1, 0
  %v273 = vsel %vm145, 1, 0
  %v274 = vsel %vm146, 1, 0
  %v275 = vsel %vm147, 1, 0
  %v276 = vsel %vm148, 1, 0
  %v277 = vsel %vm149, 1, 0
  %v278 = vsel %vm150, 1, 0
  %v279 = vsel %vm151, 1, 0
  %v280 = vsel %vm152, 1, 0
  %v281 = vsel %vm153, 1, 0
  %v282 = vsel %vm154, 1, 0
  %v283 = vsel %vm155, 1, 0
  %v284 = vsel %vm156, 1, 0
  %v285 = vsel %vm157, 1, 0
  %v286 = vsel %vm158, 1, 0
  %v287 = vsel %vm159, 1, 0
  %v288 = vsel %vm160, 1, 0
  %v289 = vsel %vm161, 1, 0
  %v290 = vsel %vm162, 1, 0
  %v291 = vsel %vm163, 1, 0
  %v292 = vsel %vm164, 1, 0
  %v293 = vsel %vm165, 1, 0
  %v294 = vsel %vm166, 1, 0
  %v295 = vsel %vm167, 1, 0
  %v296 = vsel %vm168, 1, 0
  %v297 = vsel %vm169, 1, 0
  %v298 = vsel %vm170, 1, 0
  %v299 = vsel %vm171, 1, 0
  %v300 = vsel %vm172, 1, 0
  %v301 = vsel %vm173, 1, 0
  %v302 = vsel %vm174, 1, 0
  %v303 = vsel %vm175, 1, 0
  %v304 = vsel %vm176, 1, 0
  %v305 = vsel %vm177, 1, 0
  %v306 = vsel %vm178, 1, 0
  %v307 = vsel %vm179, 1, 0
  %v308 = vsel %vm180, 1, 0
  %v309 = vsel %vm181, 1, 0
  %v310 = vsel %vm182, 1, 0
  %v311 = vsel %vm183, 1, 0
  %v312 = vsel %vm184, 1, 0
  %v313 = vsel %vm185, 1, 0
  %v314 = vsel %vm186, 1, 0
  %v315 = vsel %vm187, 1, 0
  %v316 = vsel %vm188, 1, 0
  %v317 = vsel %vm189, 1, 0
  %v318 = vsel %vm190, 1, 0
  %v319 = vsel %vm191, 1, 0
  %v320 = vsel %vm192, 1, 0
  %v321 = vsel %vm193, 1, 0
  %v322 = vsel %vm194, 1, 0
  %v323 = vsel %vm195, 1, 0
  %v324 = vsel %vm196, 1, 0
  %v325 = vsel %vm197, 1, 0
  %v326 = vsel %vm198, 1, 0
  %v327 = vsel %vm199, 1, 0
  %v328 = vsel %vm200, 1, 0
  %v329 = vsel %vm201, 1, 0
  %v330 = vsel %vm202, 1, 0
  %v331 = vsel %vm203, 1, 0
  %v332 = vsel %vm204, 1, 0
  %v333 = vsel %vm205, 1, 0
  %v334 = vsel %vm206, 1, 0
  %v335 = vsel %vm207, 1, 0
  %v336 = vsel %vm208, 1, 0
  %v337 = vsel %vm209, 1, 0
  %v338 = vsel %vm210, 1, 0
  %v339 = vsel %vm211, 1, 0
  %v340 = vsel %vm212, 1, 0
  %v341 = vsel %vm213, 1, 0
  %v342 = vsel %vm214, 1, 0
  %v343 = vsel %vm215, 1, 0
  %v344 = vsel %vm216, 1, 0
  %v345 = vsel %vm217, 1, 0
  %v346 = vsel %vm218, 1, 0
  %v347 = vsel %vm219, 1, 0
  %v348 = vsel %vm220, 1, 0
  %v349 = vsel %vm221, 1, 0
  %v350 = vsel %vm222, 1, 0
  %v351 = vsel %vm223, 1, 0
  %v352 = vcvt.s32.f32 %v224
  %v353 = vcvt.s32.f32 %v225
  %v354 = vcvt.s32.f32 %v226
  %v355 = vcvt.s32.f32 %v227
  %v356 = vcvt.s32.f32 %v228
  %v357 = vcvt.s32.f32 %v229
  %v358 = vcvt.s32.f32 %v230
  %v359 = vcvt.s32.f32 %v231
  %v360 = vcvt.s32.f32 %v232
  %v361 = vcvt.s32.f32 %v233
  %v362 = vcvt.s32.f32 %v234
  %v363 = vcvt.s32.f32 %v235
  %v364 = vcvt.s32.f32 %v236
  %v365 = vcvt.s32.f32 %v237
  %v366 = vcvt.s32.f32 %v238
  %v367 = vcvt.s32.f32 %v239
  %v368 = vcvt.s32.f32 %v240
  %v369 = vcvt.s32.f32 %v241
  %v370 = vcvt.s32.f32 %v242
  %v371 = vcvt.s32.f32 %v243
  %v372 = vcvt.s32.f32 %v244
  %v373 = vcvt.s32.f32 %v245
  %v374 = vcvt.s32.f32 %v246
  %v375 = vcvt.s32.f32 %v247
  %v376 = vcvt.s32.f32 %v248
  %v377 = vcvt.s32.f32 %v249
  %v378 = vcvt.s32.f32 %v250
  %v379 = vcvt.s32.f32 %v251
  %v380 = vcvt.s32.f32 %v252
  %v381 = vcvt.s32.f32 %v253
  %v382 = vcvt.s32.f32 %v254
  %v383 = vcvt.s32.f32 %v255
  %v384 = vcvt.s32.f32 %v256
  %v385 = vcvt.s32.f32 %v257
  %v386 = vcvt.s32.f32 %v258
  %v387 = vcvt.s32.f32 %v259
  %v388 = vcvt.s32.f32 %v260
  %v389 = vcvt.s32.f32 %v261
  %v390 = vcvt.s32.f32 %v262
  %v391 = vcvt.s32.f32 %v263
  %v392 = vcvt.s32.f32 %v264
  %v393 = vcvt.s32.f32 %v265
  %v394 = vcvt.s32.f32 %v266
  %v395 = vcvt.s32.f32 %v267
  %v396 = vcvt.s32.f32 %v268
  %v397 = vcvt.s32.f32 %v269
  %v398 = vcvt.s32.f32 %v270
  %v399 = vcvt.s32.f32 %v271
  %v400 = vcvt.s32.f32 %v272
  %v401 = vcvt.s32.f32 %v273
  %v402 = vcvt.s32.f32 %v274
  %v403 = vcvt.s32.f32 %v275
  %v404 = vcvt.s32.f32 %v276
  %v405 = vcvt.s32.f32 %v277
  %v406 = vcvt.s32.f32 %v278
  %v407 = vcvt.s32.f32 %v279
  %v408 = vcvt.s32.f32 %v280
  %v409 = vcvt.s32.f32 %v281
  %v410 = vcvt.s32.f32 %v282
  %v411 = vcvt.s32.f32 %v283
  %v412 = vcvt.s32.f32 %v284
  %v413 = vcvt.s32.f32 %v285
  %v414 = vcvt.s32.f32 %v286
  %v415 = vcvt.s32.f32 %v287
  %v416 = vcvt.s32.f32 %v288
  %v417 = vcvt.s32.f32 %v289
  %v418 = vcvt.s32.f32 %v290
  %v419 = vcvt.s32.f32 %v291
  %v420 = vcvt.s32.f32 %v292
  %v421 = vcvt.s32.f32 %v293
  %v422 = vcvt.s32.f32 %v294
  %v423 = vcvt.s32.f32 %v295
  %v424 = vcvt.s32.f32 %v296
  %v425 = vcvt.s32.f32 %v297
  %v426 = vcvt.s32.f32 %v298
  %v427 = vcvt.s32.f32 %v299
  %v428 = vcvt.s32.f32 %v300
  %v429 = vcvt.s32.f32 %v301
  %v430 = vcvt.s32.f32 %v302
  %v431 = vcvt.s32.f32 %v303
  %v432 = vcvt.s32.f32 %v304
  %v433 = vcvt.s32.f32 %v305
  %v434 = vcvt.s32.f32 %v306
  %v435 = vcvt.s32.f32 %v307
  %v436 = vcvt.s32.f32 %v308
  %v437 = vcvt.s32.f32 %v309
  %v438 = vcvt.s32.f32 %v310
  %v439 = vcvt.s32.f32 %v311
  %v440 = vcvt.s32.f32 %v312
  %v441 = vcvt.s32.f32 %v313
  %v442 = vcvt.s32.f32 %v314
  %v443 = vcvt.s32.f32 %v315
  %v444 = vcvt.s32.f32 %v316
  %v445 = vcvt.s32.f32 %v317
  %v446 = vcvt.s32.f32 %v318
  %v447 = vcvt.s32.f32 %v319
  %v448 = vcvt.s32.f32 %v320
  %v449 = vcvt.s32.f32 %v321
  %v450 = vcvt.s32.f32 %v322
  %v451 = vcvt.s32.f32 %v323
  %v452 = vcvt.s32.f32 %v324
  %v453 = vcvt.s32.f32 %v325
  %v454 = vcvt.s32.f32 %v326
  %v455 = vcvt.s32.f32 %v327
  %v456 = vcvt.s32.f32 %v328
  %v457 = vcvt.s32.f32 %v329
  %v458 = vcvt.s32.f32 %v330
  %v459 = vcvt.s32.f32 %v331
  %v460 = vcvt.s32.f32 %v332
  %v461 = vcvt.s32.f32 %v333
  %v462 = vcvt.s32.f32 %v334
  %v463 = vcvt.s32.f32 %v335
  %v464 = vcvt.s32.f32 %v336
  %v465 = vcvt.s32.f32 %v337
  %v466 = vcvt.s32.f32 %v338
  %v467 = vcvt.s32.f32 %v339
  %v468 = vcvt.s32.f32 %v340
  %v469 = vcvt.s32.f32 %v341
  %v470 = vcvt.s32.f32 %v342
  %v471 = vcvt.s32.f32 %v343
  %v472 = vcvt.s32.f32 %v344
  %v473 = vcvt.s32.f32 %v345
  %v474 = vcvt.s32.f32 %v346
  %v475 = vcvt.s32.f32 %v347
  %v476 = vcvt.s32.f32 %v348
  %v477 = vcvt.s32.f32 %v349
  %v478 = vcvt.s32.f32 %v350
  %v479 = vcvt.s32.f32 %v351
  %v480 = vlaneseq
  %v481 = vshrl.u32 %v480, 7
  %v482 = vsub.s32 1, %v481
  %v483 = vrot.slane %v29, %v482
  %v484 = vlaneseq
  %v485 = vshrl.u32 %v484, 7
  %v486 = vsub.s32 5, %v485
  %v487 = vrot.slane %v29, %v486
  %v488 = vlaneseq
  %v489 = vshrl.u32 %v488, 7
  %v490 = vsub.s32 1, %v489
  %v491 = vrot.slane %v30, %v490
  %v492 = vlaneseq
  %v493 = vshrl.u32 %v492, 7
  %v494 = vsub.s32 5, %v493
  %v495 = vrot.slane %v30, %v494
  %v496 = vlaneseq
  %v497 = vshrl.u32 %v496, 7
  %v498 = vsub.s32 1, %v497
  %v499 = vrot.slane %v483, %v498
  %v500 = vlaneseq
  %v501 = vshrl.u32 %v500, 7
  %v502 = vsub.s32 1, %v501
  %v503 = vrot.slane %v487, %v502
  %v504 = vlaneseq
  %v505 = vshrl.u32 %v504, 7
  %v506 = vsub.s32 1, %v505
  %v507 = vrot.slane %v491, %v506
  %v508 = vlaneseq
  %v509 = vshrl.u32 %v508, 7
  %v510 = vsub.s32 1, %v509
  %v511 = vrot.slane %v495, %v510
  %vm512 = vcmp.eq.s32.totalorder %v32, %v499
  %vm513 = vcmp.eq.s32.totalorder %v32, %v503
  %vm514 = vcmp.eq.s32.totalorder %v32, %v507
  %vm515 = vcmp.eq.s32.totalorder %v32, %v511
  %vm516 = vcmp.eq.s32.totalorder %v33, %v499
  %vm517 = vcmp.eq.s32.totalorder %v33, %v503
  %vm518 = vcmp.eq.s32.totalorder %v33, %v507
  %vm519 = vcmp.eq.s32.totalorder %v33, %v511
  %vm520 = vcmp.eq.s32.totalorder %v34, %v499
  %vm521 = vcmp.eq.s32.totalorder %v34, %v503
  %vm522 = vcmp.eq.s32.totalorder %v34, %v507
  %vm523 = vcmp.eq.s32.totalorder %v34, %v511
  %vm524 = vcmp.eq.s32.totalorder %v35, %v499
  %vm525 = vcmp.eq.s32.totalorder %v35, %v503
  %vm526 = vcmp.eq.s32.totalorder %v35, %v507
  %vm527 = vcmp.eq.s32.totalorder %v35, %v511
  %vm528 = vcmp.eq.s32.totalorder %v36, %v499
  %vm529 = vcmp.eq.s32.totalorder %v36, %v503
  %vm530 = vcmp.eq.s32.totalorder %v36, %v507
  %vm531 = vcmp.eq.s32.totalorder %v36, %v511
  %vm532 = vcmp.eq.s32.totalorder %v37, %v499
  %vm533 = vcmp.eq.s32.totalorder %v37, %v503
  %vm534 = vcmp.eq.s32.totalorder %v37, %v507
  %vm535 = vcmp.eq.s32.totalorder %v37, %v511
  %vm536 = vcmp.eq.s32.totalorder %v38, %v499
  %vm537 = vcmp.eq.s32.totalorder %v38, %v503
  %vm538 = vcmp.eq.s32.totalorder %v38, %v507
  %vm539 = vcmp.eq.s32.totalorder %v38, %v511
  %vm540 = vcmp.eq.s32.totalorder %v39, %v499
  %vm541 = vcmp.eq.s32.totalorder %v39, %v503
  %vm542 = vcmp.eq.s32.totalorder %v39, %v507
  %vm543 = vcmp.eq.s32.totalorder %v39, %v511
  %vm544 = vcmp.eq.s32.totalorder %v40, %v499
  %vm545 = vcmp.eq.s32.totalorder %v40, %v503
  %vm546 = vcmp.eq.s32.totalorder %v40, %v507
  %vm547 = vcmp.eq.s32.totalorder %v40, %v511
  %vm548 = vcmp.eq.s32.totalorder %v41, %v499
  %vm549 = vcmp.eq.s32.totalorder %v41, %v503
  %vm550 = vcmp.eq.s32.totalorder %v41, %v507
  %vm551 = vcmp.eq.s32.totalorder %v41, %v511
  %vm552 = vcmp.eq.s32.totalorder %v42, %v499
  %vm553 = vcmp.eq.s32.totalorder %v42, %v503
  %vm554 = vcmp.eq.s32.totalorder %v42, %v507
  %vm555 = vcmp.eq.s32.totalorder %v42, %v511
  %vm556 = vcmp.eq.s32.totalorder %v43, %v499
  %vm557 = vcmp.eq.s32.totalorder %v43, %v503
  %vm558 = vcmp.eq.s32.totalorder %v43, %v507
  %vm559 = vcmp.eq.s32.totalorder %v43, %v511
  %vm560 = vcmp.eq.s32.totalorder %v44, %v499
  %vm561 = vcmp.eq.s32.totalorder %v44, %v503
  %vm562 = vcmp.eq.s32.totalorder %v44, %v507
  %vm563 = vcmp.eq.s32.totalorder %v44, %v511
  %vm564 = vcmp.eq.s32.totalorder %v45, %v499
  %vm565 = vcmp.eq.s32.totalorder %v45, %v503
  %vm566 = vcmp.eq.s32.totalorder %v45, %v507
  %vm567 = vcmp.eq.s32.totalorder %v45, %v511
  %vm568 = vcmp.eq.s32.totalorder %v46, %v499
  %vm569 = vcmp.eq.s32.totalorder %v46, %v503
  %vm570 = vcmp.eq.s32.totalorder %v46, %v507
  %vm571 = vcmp.eq.s32.totalorder %v46, %v511
  %vm572 = vcmp.eq.s32.totalorder %v47, %v499
  %vm573 = vcmp.eq.s32.totalorder %v47, %v503
  %vm574 = vcmp.eq.s32.totalorder %v47, %v507
  %vm575 = vcmp.eq.s32.totalorder %v47, %v511
  %vm576 = vcmp.eq.s32.totalorder %v48, %v499
  %vm577 = vcmp.eq.s32.totalorder %v48, %v503
  %vm578 = vcmp.eq.s32.totalorder %v48, %v507
  %vm579 = vcmp.eq.s32.totalorder %v48, %v511
  %vm580 = vcmp.eq.s32.totalorder %v49, %v499
  %vm581 = vcmp.eq.s32.totalorder %v49, %v503
  %vm582 = vcmp.eq.s32.totalorder %v49, %v507
  %vm583 = vcmp.eq.s32.totalorder %v49, %v511
  %vm584 = vcmp.eq.s32.totalorder %v50, %v499
  %vm585 = vcmp.eq.s32.totalorder %v50, %v503
  %vm586 = vcmp.eq.s32.totalorder %v50, %v507
  %vm587 = vcmp.eq.s32.totalorder %v50, %v511
  %vm588 = vcmp.eq.s32.totalorder %v51, %v499
  %vm589 = vcmp.eq.s32.totalorder %v51, %v503
  %vm590 = vcmp.eq.s32.totalorder %v51, %v507
  %vm591 = vcmp.eq.s32.totalorder %v51, %v511
  %vm592 = vcmp.eq.s32.totalorder %v52, %v499
  %vm593 = vcmp.eq.s32.totalorder %v52, %v503
  %vm594 = vcmp.eq.s32.totalorder %v52, %v507
  %vm595 = vcmp.eq.s32.totalorder %v52, %v511
  %vm596 = vcmp.eq.s32.totalorder %v53, %v499
  %vm597 = vcmp.eq.s32.totalorder %v53, %v503
  %vm598 = vcmp.eq.s32.totalorder %v53, %v507
  %vm599 = vcmp.eq.s32.totalorder %v53, %v511
  %vm600 = vcmp.eq.s32.totalorder %v54, %v499
  %vm601 = vcmp.eq.s32.totalorder %v54, %v503
  %vm602 = vcmp.eq.s32.totalorder %v54, %v507
  %vm603 = vcmp.eq.s32.totalorder %v54, %v511
  %vm604 = vcmp.eq.s32.totalorder %v55, %v499
  %vm605 = vcmp.eq.s32.totalorder %v55, %v503
  %vm606 = vcmp.eq.s32.totalorder %v55, %v507
  %vm607 = vcmp.eq.s32.totalorder %v55, %v511
  %vm608 = vcmp.eq.s32.totalorder %v56, %v499
  %vm609 = vcmp.eq.s32.totalorder %v56, %v503
  %vm610 = vcmp.eq.s32.totalorder %v56, %v507
  %vm611 = vcmp.eq.s32.totalorder %v56, %v511
  %vm612 = vcmp.eq.s32.totalorder %v57, %v499
  %vm613 = vcmp.eq.s32.totalorder %v57, %v503
  %vm614 = vcmp.eq.s32.totalorder %v57, %v507
  %vm615 = vcmp.eq.s32.totalorder %v57, %v511
  %vm616 = vcmp.eq.s32.totalorder %v58, %v499
  %vm617 = vcmp.eq.s32.totalorder %v58, %v503
  %vm618 = vcmp.eq.s32.totalorder %v58, %v507
  %vm619 = vcmp.eq.s32.totalorder %v58, %v511
  %vm620 = vcmp.eq.s32.totalorder %v59, %v499
  %vm621 = vcmp.eq.s32.totalorder %v59, %v503
  %vm622 = vcmp.eq.s32.totalorder %v59, %v507
  %vm623 = vcmp.eq.s32.totalorder %v59, %v511
  %vm624 = vcmp.eq.s32.totalorder %v60, %v499
  %vm625 = vcmp.eq.s32.totalorder %v60, %v503
  %vm626 = vcmp.eq.s32.totalorder %v60, %v507
  %vm627 = vcmp.eq.s32.totalorder %v60, %v511
  %vm628 = vcmp.eq.s32.totalorder %v61, %v499
  %vm629 = vcmp.eq.s32.totalorder %v61, %v503
  %vm630 = vcmp.eq.s32.totalorder %v61, %v507
  %vm631 = vcmp.eq.s32.totalorder %v61, %v511
  %vm632 = vcmp.eq.s32.totalorder %v62, %v499
  %vm633 = vcmp.eq.s32.totalorder %v62, %v503
  %vm634 = vcmp.eq.s32.totalorder %v62, %v507
  %vm635 = vcmp.eq.s32.totalorder %v62, %v511
  %vm636 = vcmp.eq.s32.totalorder %v63, %v499
  %vm637 = vcmp.eq.s32.totalorder %v63, %v503
  %vm638 = vcmp.eq.s32.totalorder %v63, %v507
  %vm639 = vcmp.eq.s32.totalorder %v63, %v511
  %v640 = vsel %vm512, 1, 0
  %v641 = vsel %vm513, 1, 0
  %v642 = vsel %vm514, 1, 0
  %v643 = vsel %vm515, 1, 0
  %v644 = vsel %vm516, 1, 0
  %v645 = vsel %vm517, 1, 0
  %v646 = vsel %vm518, 1, 0
  %v647 = vsel %vm519, 1, 0
  %v648 = vsel %vm520, 1, 0
  %v649 = vsel %vm521, 1, 0
  %v650 = vsel %vm522, 1, 0
  %v651 = vsel %vm523, 1, 0
  %v652 = vsel %vm524, 1, 0
  %v653 = vsel %vm525, 1, 0
  %v654 = vsel %vm526, 1, 0
  %v655 = vsel %vm527, 1, 0
  %v656 = vsel %vm528, 1, 0
  %v657 = vsel %vm529, 1, 0
  %v658 = vsel %vm530, 1, 0
  %v659 = vsel %vm531, 1, 0
  %v660 = vsel %vm532, 1, 0
  %v661 = vsel %vm533, 1, 0
  %v662 = vsel %vm534, 1, 0
  %v663 = vsel %vm535, 1, 0
  %v664 = vsel %vm536, 1, 0
  %v665 = vsel %vm537, 1, 0
  %v666 = vsel %vm538, 1, 0
  %v667 = vsel %vm539, 1, 0
  %v668 = vsel %vm540, 1, 0
  %v669 = vsel %vm541, 1, 0
  %v670 = vsel %vm542, 1, 0
  %v671 = vsel %vm543, 1, 0
  %v672 = vsel %vm544, 1, 0
  %v673 = vsel %vm545, 1, 0
  %v674 = vsel %vm546, 1, 0
  %v675 = vsel %vm547, 1, 0
  %v676 = vsel %vm548, 1, 0
  %v677 = vsel %vm549, 1, 0
  %v678 = vsel %vm550, 1, 0
  %v679 = vsel %vm551, 1, 0
  %v680 = vsel %vm552, 1, 0
  %v681 = vsel %vm553, 1, 0
  %v682 = vsel %vm554, 1, 0
  %v683 = vsel %vm555, 1, 0
  %v684 = vsel %vm556, 1, 0
  %v685 = vsel %vm557, 1, 0
  %v686 = vsel %vm558, 1, 0
  %v687 = vsel %vm559, 1, 0
  %v688 = vsel %vm560, 1, 0
  %v689 = vsel %vm561, 1, 0
  %v690 = vsel %vm562, 1, 0
  %v691 = vsel %vm563, 1, 0
  %v692 = vsel %vm564, 1, 0
  %v693 = vsel %vm565, 1, 0
  %v694 = vsel %vm566, 1, 0
  %v695 = vsel %vm567, 1, 0
  %v696 = vsel %vm568, 1, 0
  %v697 = vsel %vm569, 1, 0
  %v698 = vsel %vm570, 1, 0
  %v699 = vsel %vm571, 1, 0
  %v700 = vsel %vm572, 1, 0
  %v701 = vsel %vm573, 1, 0
  %v702 = vsel %vm574, 1, 0
  %v703 = vsel %vm575, 1, 0
  %v704 = vsel %vm576, 1, 0
  %v705 = vsel %vm577, 1, 0
  %v706 = vsel %vm578, 1, 0
  %v707 = vsel %vm579, 1, 0
  %v708 = vsel %vm580, 1, 0
  %v709 = vsel %vm581, 1, 0
  %v710 = vsel %vm582, 1, 0
  %v711 = vsel %vm583, 1, 0
  %v712 = vsel %vm584, 1, 0
  %v713 = vsel %vm585, 1, 0
  %v714 = vsel %vm586, 1, 0
  %v715 = vsel %vm587, 1, 0
  %v716 = vsel %vm588, 1, 0
  %v717 = vsel %vm589, 1, 0
  %v718 = vsel %vm590, 1, 0
  %v719 = vsel %vm591, 1, 0
  %v720 = vsel %vm592, 1, 0
  %v721 = vsel %vm593, 1, 0
  %v722 = vsel %vm594, 1, 0
  %v723 = vsel %vm595, 1, 0
  %v724 = vsel %vm596, 1, 0
  %v725 = vsel %vm597, 1, 0
  %v726 = vsel %vm598, 1, 0
  %v727 = vsel %vm599, 1, 0
  %v728 = vsel %vm600, 1, 0
  %v729 = vsel %vm601, 1, 0
  %v730 = vsel %vm602, 1, 0
  %v731 = vsel %vm603, 1, 0
  %v732 = vsel %vm604, 1, 0
  %v733 = vsel %vm605, 1, 0
  %v734 = vsel %vm606, 1, 0
  %v735 = vsel %vm607, 1, 0
  %v736 = vsel %vm608, 1, 0
  %v737 = vsel %vm609, 1, 0
  %v738 = vsel %vm610, 1, 0
  %v739 = vsel %vm611, 1, 0
  %v740 = vsel %vm612, 1, 0
  %v741 = vsel %vm613, 1, 0
  %v742 = vsel %vm614, 1, 0
  %v743 = vsel %vm615, 1, 0
  %v744 = vsel %vm616, 1, 0
  %v745 = vsel %vm617, 1, 0
  %v746 = vsel %vm618, 1, 0
  %v747 = vsel %vm619, 1, 0
  %v748 = vsel %vm620, 1, 0
  %v749 = vsel %vm621, 1, 0
  %v750 = vsel %vm622, 1, 0
  %v751 = vsel %vm623, 1, 0
  %v752 = vsel %vm624, 1, 0
  %v753 = vsel %vm625, 1, 0
  %v754 = vsel %vm626, 1, 0
  %v755 = vsel %vm627, 1, 0
  %v756 = vsel %vm628, 1, 0
  %v757 = vsel %vm629, 1, 0
  %v758 = vsel %vm630, 1, 0
  %v759 = vsel %vm631, 1, 0
  %v760 = vsel %vm632, 1, 0
  %v761 = vsel %vm633, 1, 0
  %v762 = vsel %vm634, 1, 0
  %v763 = vsel %vm635, 1, 0
  %v764 = vsel %vm636, 1, 0
  %v765 = vsel %vm637, 1, 0
  %v766 = vsel %vm638, 1, 0
  %v767 = vsel %vm639, 1, 0
  %v768 = vcvt.s32.f32 %v640
  %v769 = vcvt.s32.f32 %v641
  %v770 = vcvt.s32.f32 %v642
  %v771 = vcvt.s32.f32 %v643
  %v772 = vcvt.s32.f32 %v644
  %v773 = vcvt.s32.f32 %v645
  %v774 = vcvt.s32.f32 %v646
  %v775 = vcvt.s32.f32 %v647
  %v776 = vcvt.s32.f32 %v648
  %v777 = vcvt.s32.f32 %v649
  %v778 = vcvt.s32.f32 %v650
  %v779 = vcvt.s32.f32 %v651
  %v780 = vcvt.s32.f32 %v652
  %v781 = vcvt.s32.f32 %v653
  %v782 = vcvt.s32.f32 %v654
  %v783 = vcvt.s32.f32 %v655
  %v784 = vcvt.s32.f32 %v656
  %v785 = vcvt.s32.f32 %v657
  %v786 = vcvt.s32.f32 %v658
  %v787 = vcvt.s32.f32 %v659
  %v788 = vcvt.s32.f32 %v660
  %v789 = vcvt.s32.f32 %v661
  %v790 = vcvt.s32.f32 %v662
  %v791 = vcvt.s32.f32 %v663
  %v792 = vcvt.s32.f32 %v664
  %v793 = vcvt.s32.f32 %v665
  %v794 = vcvt.s32.f32 %v666
  %v795 = vcvt.s32.f32 %v667
  %v796 = vcvt.s32.f32 %v668
  %v797 = vcvt.s32.f32 %v669
  %v798 = vcvt.s32.f32 %v670
  %v799 = vcvt.s32.f32 %v671
  %v800 = vcvt.s32.f32 %v672
  %v801 = vcvt.s32.f32 %v673
  %v802 = vcvt.s32.f32 %v674
  %v803 = vcvt.s32.f32 %v675
  %v804 = vcvt.s32.f32 %v676
  %v805 = vcvt.s32.f32 %v677
  %v806 = vcvt.s32.f32 %v678
  %v807 = vcvt.s32.f32 %v679
  %v808 = vcvt.s32.f32 %v680
  %v809 = vcvt.s32.f32 %v681
  %v810 = vcvt.s32.f32 %v682
  %v811 = vcvt.s32.f32 %v683
  %v812 = vcvt.s32.f32 %v684
  %v813 = vcvt.s32.f32 %v685
  %v814 = vcvt.s32.f32 %v686
  %v815 = vcvt.s32.f32 %v687
  %v816 = vcvt.s32.f32 %v688
  %v817 = vcvt.s32.f32 %v689
  %v818 = vcvt.s32.f32 %v690
  %v819 = vcvt.s32.f32 %v691
  %v820 = vcvt.s32.f32 %v692
  %v821 = vcvt.s32.f32 %v693
  %v822 = vcvt.s32.f32 %v694
  %v823 = vcvt.s32.f32 %v695
  %v824 = vcvt.s32.f32 %v696
  %v825 = vcvt.s32.f32 %v697
  %v826 = vcvt.s32.f32 %v698
  %v827 = vcvt.s32.f32 %v699
  %v828 = vcvt.s32.f32 %v700
  %v829 = vcvt.s32.f32 %v701
  %v830 = vcvt.s32.f32 %v702
  %v831 = vcvt.s32.f32 %v703
  %v832 = vcvt.s32.f32 %v704
  %v833 = vcvt.s32.f32 %v705
  %v834 = vcvt.s32.f32 %v706
  %v835 = vcvt.s32.f32 %v707
  %v836 = vcvt.s32.f32 %v708
  %v837 = vcvt.s32.f32 %v709
  %v838 = vcvt.s32.f32 %v710
  %v839 = vcvt.s32.f32 %v711
  %v840 = vcvt.s32.f32 %v712
  %v841 = vcvt.s32.f32 %v713
  %v842 = vcvt.s32.f32 %v714
  %v843 = vcvt.s32.f32 %v715
  %v844 = vcvt.s32.f32 %v716
  %v845 = vcvt.s32.f32 %v717
  %v846 = vcvt.s32.f32 %v718
  %v847 = vcvt.s32.f32 %v719
  %v848 = vcvt.s32.f32 %v720
  %v849 = vcvt.s32.f32 %v721
  %v850 = vcvt.s32.f32 %v722
  %v851 = vcvt.s32.f32 %v723
  %v852 = vcvt.s32.f32 %v724
  %v853 = vcvt.s32.f32 %v725
  %v854 = vcvt.s32.f32 %v726
  %v855 = vcvt.s32.f32 %v727
  %v856 = vcvt.s32.f32 %v728
  %v857 = vcvt.s32.f32 %v729
  %v858 = vcvt.s32.f32 %v730
  %v859 = vcvt.s32.f32 %v731
  %v860 = vcvt.s32.f32 %v732
  %v861 = vcvt.s32.f32 %v733
  %v862 = vcvt.s32.f32 %v734
  %v863 = vcvt.s32.f32 %v735
  %v864 = vcvt.s32.f32 %v736
  %v865 = vcvt.s32.f32 %v737
  %v866 = vcvt.s32.f32 %v738
  %v867 = vcvt.s32.f32 %v739
  %v868 = vcvt.s32.f32 %v740
  %v869 = vcvt.s32.f32 %v741
  %v870 = vcvt.s32.f32 %v742
  %v871 = vcvt.s32.f32 %v743
  %v872 = vcvt.s32.f32 %v744
  %v873 = vcvt.s32.f32 %v745
  %v874 = vcvt.s32.f32 %v746
  %v875 = vcvt.s32.f32 %v747
  %v876 = vcvt.s32.f32 %v748
  %v877 = vcvt.s32.f32 %v749
  %v878 = vcvt.s32.f32 %v750
  %v879 = vcvt.s32.f32 %v751
  %v880 = vcvt.s32.f32 %v752
  %v881 = vcvt.s32.f32 %v753
  %v882 = vcvt.s32.f32 %v754
  %v883 = vcvt.s32.f32 %v755
  %v884 = vcvt.s32.f32 %v756
  %v885 = vcvt.s32.f32 %v757
  %v886 = vcvt.s32.f32 %v758
  %v887 = vcvt.s32.f32 %v759
  %v888 = vcvt.s32.f32 %v760
  %v889 = vcvt.s32.f32 %v761
  %v890 = vcvt.s32.f32 %v762
  %v891 = vcvt.s32.f32 %v763
  %v892 = vcvt.s32.f32 %v764
  %v893 = vcvt.s32.f32 %v765
  %v894 = vcvt.s32.f32 %v766
  %v895 = vcvt.s32.f32 %v767
  %v896 = vadd.f32 %v352, %v768
  %v897 = vadd.f32 %v353, %v769
  %v898 = vadd.f32 %v354, %v770
  %v899 = vadd.f32 %v355, %v771
  %v900 = vadd.f32 %v356, %v772
  %v901 = vadd.f32 %v357, %v773
  %v902 = vadd.f32 %v358, %v774
  %v903 = vadd.f32 %v359, %v775
  %v904 = vadd.f32 %v360, %v776
  %v905 = vadd.f32 %v361, %v777
  %v906 = vadd.f32 %v362, %v778
  %v907 = vadd.f32 %v363, %v779
  %v908 = vadd.f32 %v364, %v780
  %v909 = vadd.f32 %v365, %v781
  %v910 = vadd.f32 %v366, %v782
  %v911 = vadd.f32 %v367, %v783
  %v912 = vadd.f32 %v368, %v784
  %v913 = vadd.f32 %v369, %v785
  %v914 = vadd.f32 %v370, %v786
  %v915 = vadd.f32 %v371, %v787
  %v916 = vadd.f32 %v372, %v788
  %v917 = vadd.f32 %v373, %v789
  %v918 = vadd.f32 %v374, %v790
  %v919 = vadd.f32 %v375, %v791
  %v920 = vadd.f32 %v376, %v792
  %v921 = vadd.f32 %v377, %v793
  %v922 = vadd.f32 %v378, %v794
  %v923 = vadd.f32 %v379, %v795
  %v924 = vadd.f32 %v380, %v796
  %v925 = vadd.f32 %v381, %v797
  %v926 = vadd.f32 %v382, %v798
  %v927 = vadd.f32 %v383, %v799
  %v928 = vadd.f32 %v384, %v800
  %v929 = vadd.f32 %v385, %v801
  %v930 = vadd.f32 %v386, %v802
  %v931 = vadd.f32 %v387, %v803
  %v932 = vadd.f32 %v388, %v804
  %v933 = vadd.f32 %v389, %v805
  %v934 = vadd.f32 %v390, %v806
  %v935 = vadd.f32 %v391, %v807
  %v936 = vadd.f32 %v392, %v808
  %v937 = vadd.f32 %v393, %v809
  %v938 = vadd.f32 %v394, %v810
  %v939 = vadd.f32 %v395, %v811
  %v940 = vadd.f32 %v396, %v812
  %v941 = vadd.f32 %v397, %v813
  %v942 = vadd.f32 %v398, %v814
  %v943 = vadd.f32 %v399, %v815
  %v944 = vadd.f32 %v400, %v816
  %v945 = vadd.f32 %v401, %v817
  %v946 = vadd.f32 %v402, %v818
  %v947 = vadd.f32 %v403, %v819
  %v948 = vadd.f32 %v404, %v820
  %v949 = vadd.f32 %v405, %v821
  %v950 = vadd.f32 %v406, %v822
  %v951 = vadd.f32 %v407, %v823
  %v952 = vadd.f32 %v408, %v824
  %v953 = vadd.f32 %v409, %v825
  %v954 = vadd.f32 %v410, %v826
  %v955 = vadd.f32 %v411, %v827
  %v956 = vadd.f32 %v412, %v828
  %v957 = vadd.f32 %v413, %v829
  %v958 = vadd.f32 %v414, %v830
  %v959 = vadd.f32 %v415, %v831
  %v960 = vadd.f32 %v416, %v832
  %v961 = vadd.f32 %v417, %v833
  %v962 = vadd.f32 %v418, %v834
  %v963 = vadd.f32 %v419, %v835
  %v964 = vadd.f32 %v420, %v836
  %v965 = vadd.f32 %v421, %v837
  %v966 = vadd.f32 %v422, %v838
  %v967 = vadd.f32 %v423, %v839
  %v968 = vadd.f32 %v424, %v840
  %v969 = vadd.f32 %v425, %v841
  %v970 = vadd.f32 %v426, %v842
  %v971 = vadd.f32 %v427, %v843
  %v972 = vadd.f32 %v428, %v844
  %v973 = vadd.f32 %v429, %v845
  %v974 = vadd.f32 %v430, %v846
  %v975 = vadd.f32 %v431, %v847
  %v976 = vadd.f32 %v432, %v848
  %v977 = vadd.f32 %v433, %v849
  %v978 = vadd.f32 %v434, %v850
  %v979 = vadd.f32 %v435, %v851
  %v980 = vadd.f32 %v436, %v852
  %v981 = vadd.f32 %v437, %v853
  %v982 = vadd.f32 %v438, %v854
  %v983 = vadd.f32 %v439, %v855
  %v984 = vadd.f32 %v440, %v856
  %v985 = vadd.f32 %v441, %v857
  %v986 = vadd.f32 %v442, %v858
  %v987 = vadd.f32 %v443, %v859
  %v988 = vadd.f32 %v444, %v860
  %v989 = vadd.f32 %v445, %v861
  %v990 = vadd.f32 %v446, %v862
  %v991 = vadd.f32 %v447, %v863
  %v992 = vadd.f32 %v448, %v864
  %v993 = vadd.f32 %v449, %v865
  %v994 = vadd.f32 %v450, %v866
  %v995 = vadd.f32 %v451, %v867
  %v996 = vadd.f32 %v452, %v868
  %v997 = vadd.f32 %v453, %v869
  %v998 = vadd.f32 %v454, %v870
  %v999 = vadd.f32 %v455, %v871
  %v1000 = vadd.f32 %v456, %v872
  %v1001 = vadd.f32 %v457, %v873
  %v1002 = vadd.f32 %v458, %v874
  %v1003 = vadd.f32 %v459, %v875
  %v1004 = vadd.f32 %v460, %v876
  %v1005 = vadd.f32 %v461, %v877
  %v1006 = vadd.f32 %v462, %v878
  %v1007 = vadd.f32 %v463, %v879
  %v1008 = vadd.f32 %v464, %v880
  %v1009 = vadd.f32 %v465, %v881
  %v1010 = vadd.f32 %v466, %v882
  %v1011 = vadd.f32 %v467, %v883
  %v1012 = vadd.f32 %v468, %v884
  %v1013 = vadd.f32 %v469, %v885
  %v1014 = vadd.f32 %v470, %v886
  %v1015 = vadd.f32 %v471, %v887
  %v1016 = vadd.f32 %v472, %v888
  %v1017 = vadd.f32 %v473, %v889
  %v1018 = vadd.f32 %v474, %v890
  %v1019 = vadd.f32 %v475, %v891
  %v1020 = vadd.f32 %v476, %v892
  %v1021 = vadd.f32 %v477, %v893
  %v1022 = vadd.f32 %v478, %v894
  %v1023 = vadd.f32 %v479, %v895
  %v1024 = vlaneseq
  %v1025 = vshrl.u32 %v1024, 7
  %v1026 = vsub.s32 2, %v1025
  %v1027 = vrot.slane %v29, %v1026
  %v1028 = vlaneseq
  %v1029 = vshrl.u32 %v1028, 7
  %v1030 = vsub.s32 6, %v1029
  %v1031 = vrot.slane %v29, %v1030
  %v1032 = vlaneseq
  %v1033 = vshrl.u32 %v1032, 7
  %v1034 = vsub.s32 2, %v1033
  %v1035 = vrot.slane %v30, %v1034
  %v1036 = vlaneseq
  %v1037 = vshrl.u32 %v1036, 7
  %v1038 = vsub.s32 6, %v1037
  %v1039 = vrot.slane %v30, %v1038
  %v1040 = vlaneseq
  %v1041 = vshrl.u32 %v1040, 7
  %v1042 = vsub.s32 2, %v1041
  %v1043 = vrot.slane %v1027, %v1042
  %v1044 = vlaneseq
  %v1045 = vshrl.u32 %v1044, 7
  %v1046 = vsub.s32 2, %v1045
  %v1047 = vrot.slane %v1031, %v1046
  %v1048 = vlaneseq
  %v1049 = vshrl.u32 %v1048, 7
  %v1050 = vsub.s32 2, %v1049
  %v1051 = vrot.slane %v1035, %v1050
  %v1052 = vlaneseq
  %v1053 = vshrl.u32 %v1052, 7
  %v1054 = vsub.s32 2, %v1053
  %v1055 = vrot.slane %v1039, %v1054
  %vm1056 = vcmp.eq.s32.totalorder %v32, %v1043
  %vm1057 = vcmp.eq.s32.totalorder %v32, %v1047
  %vm1058 = vcmp.eq.s32.totalorder %v32, %v1051
  %vm1059 = vcmp.eq.s32.totalorder %v32, %v1055
  %vm1060 = vcmp.eq.s32.totalorder %v33, %v1043
  %vm1061 = vcmp.eq.s32.totalorder %v33, %v1047
  %vm1062 = vcmp.eq.s32.totalorder %v33, %v1051
  %vm1063 = vcmp.eq.s32.totalorder %v33, %v1055
  %vm1064 = vcmp.eq.s32.totalorder %v34, %v1043
  %vm1065 = vcmp.eq.s32.totalorder %v34, %v1047
  %vm1066 = vcmp.eq.s32.totalorder %v34, %v1051
  %vm1067 = vcmp.eq.s32.totalorder %v34, %v1055
  %vm1068 = vcmp.eq.s32.totalorder %v35, %v1043
  %vm1069 = vcmp.eq.s32.totalorder %v35, %v1047
  %vm1070 = vcmp.eq.s32.totalorder %v35, %v1051
  %vm1071 = vcmp.eq.s32.totalorder %v35, %v1055
  %vm1072 = vcmp.eq.s32.totalorder %v36, %v1043
  %vm1073 = vcmp.eq.s32.totalorder %v36, %v1047
  %vm1074 = vcmp.eq.s32.totalorder %v36, %v1051
  %vm1075 = vcmp.eq.s32.totalorder %v36, %v1055
  %vm1076 = vcmp.eq.s32.totalorder %v37, %v1043
  %vm1077 = vcmp.eq.s32.totalorder %v37, %v1047
  %vm1078 = vcmp.eq.s32.totalorder %v37, %v1051
  %vm1079 = vcmp.eq.s32.totalorder %v37, %v1055
  %vm1080 = vcmp.eq.s32.totalorder %v38, %v1043
  %vm1081 = vcmp.eq.s32.totalorder %v38, %v1047
  %vm1082 = vcmp.eq.s32.totalorder %v38, %v1051
  %vm1083 = vcmp.eq.s32.totalorder %v38, %v1055
  %vm1084 = vcmp.eq.s32.totalorder %v39, %v1043
  %vm1085 = vcmp.eq.s32.totalorder %v39, %v1047
  %vm1086 = vcmp.eq.s32.totalorder %v39, %v1051
  %vm1087 = vcmp.eq.s32.totalorder %v39, %v1055
  %vm1088 = vcmp.eq.s32.totalorder %v40, %v1043
  %vm1089 = vcmp.eq.s32.totalorder %v40, %v1047
  %vm1090 = vcmp.eq.s32.totalorder %v40, %v1051
  %vm1091 = vcmp.eq.s32.totalorder %v40, %v1055
  %vm1092 = vcmp.eq.s32.totalorder %v41, %v1043
  %vm1093 = vcmp.eq.s32.totalorder %v41, %v1047
  %vm1094 = vcmp.eq.s32.totalorder %v41, %v1051
  %vm1095 = vcmp.eq.s32.totalorder %v41, %v1055
  %vm1096 = vcmp.eq.s32.totalorder %v42, %v1043
  %vm1097 = vcmp.eq.s32.totalorder %v42, %v1047
  %vm1098 = vcmp.eq.s32.totalorder %v42, %v1051
  %vm1099 = vcmp.eq.s32.totalorder %v42, %v1055
  %vm1100 = vcmp.eq.s32.totalorder %v43, %v1043
  %vm1101 = vcmp.eq.s32.totalorder %v43, %v1047
  %vm1102 = vcmp.eq.s32.totalorder %v43, %v1051
  %vm1103 = vcmp.eq.s32.totalorder %v43, %v1055
  %vm1104 = vcmp.eq.s32.totalorder %v44, %v1043
  %vm1105 = vcmp.eq.s32.totalorder %v44, %v1047
  %vm1106 = vcmp.eq.s32.totalorder %v44, %v1051
  %vm1107 = vcmp.eq.s32.totalorder %v44, %v1055
  %vm1108 = vcmp.eq.s32.totalorder %v45, %v1043
  %vm1109 = vcmp.eq.s32.totalorder %v45, %v1047
  %vm1110 = vcmp.eq.s32.totalorder %v45, %v1051
  %vm1111 = vcmp.eq.s32.totalorder %v45, %v1055
  %vm1112 = vcmp.eq.s32.totalorder %v46, %v1043
  %vm1113 = vcmp.eq.s32.totalorder %v46, %v1047
  %vm1114 = vcmp.eq.s32.totalorder %v46, %v1051
  %vm1115 = vcmp.eq.s32.totalorder %v46, %v1055
  %vm1116 = vcmp.eq.s32.totalorder %v47, %v1043
  %vm1117 = vcmp.eq.s32.totalorder %v47, %v1047
  %vm1118 = vcmp.eq.s32.totalorder %v47, %v1051
  %vm1119 = vcmp.eq.s32.totalorder %v47, %v1055
  %vm1120 = vcmp.eq.s32.totalorder %v48, %v1043
  %vm1121 = vcmp.eq.s32.totalorder %v48, %v1047
  %vm1122 = vcmp.eq.s32.totalorder %v48, %v1051
  %vm1123 = vcmp.eq.s32.totalorder %v48, %v1055
  %vm1124 = vcmp.eq.s32.totalorder %v49, %v1043
  %vm1125 = vcmp.eq.s32.totalorder %v49, %v1047
  %vm1126 = vcmp.eq.s32.totalorder %v49, %v1051
  %vm1127 = vcmp.eq.s32.totalorder %v49, %v1055
  %vm1128 = vcmp.eq.s32.totalorder %v50, %v1043
  %vm1129 = vcmp.eq.s32.totalorder %v50, %v1047
  %vm1130 = vcmp.eq.s32.totalorder %v50, %v1051
  %vm1131 = vcmp.eq.s32.totalorder %v50, %v1055
  %vm1132 = vcmp.eq.s32.totalorder %v51, %v1043
  %vm1133 = vcmp.eq.s32.totalorder %v51, %v1047
  %vm1134 = vcmp.eq.s32.totalorder %v51, %v1051
  %vm1135 = vcmp.eq.s32.totalorder %v51, %v1055
  %vm1136 = vcmp.eq.s32.totalorder %v52, %v1043
  %vm1137 = vcmp.eq.s32.totalorder %v52, %v1047
  %vm1138 = vcmp.eq.s32.totalorder %v52, %v1051
  %vm1139 = vcmp.eq.s32.totalorder %v52, %v1055
  %vm1140 = vcmp.eq.s32.totalorder %v53, %v1043
  %vm1141 = vcmp.eq.s32.totalorder %v53, %v1047
  %vm1142 = vcmp.eq.s32.totalorder %v53, %v1051
  %vm1143 = vcmp.eq.s32.totalorder %v53, %v1055
  %vm1144 = vcmp.eq.s32.totalorder %v54, %v1043
  %vm1145 = vcmp.eq.s32.totalorder %v54, %v1047
  %vm1146 = vcmp.eq.s32.totalorder %v54, %v1051
  %vm1147 = vcmp.eq.s32.totalorder %v54, %v1055
  %vm1148 = vcmp.eq.s32.totalorder %v55, %v1043
  %vm1149 = vcmp.eq.s32.totalorder %v55, %v1047
  %vm1150 = vcmp.eq.s32.totalorder %v55, %v1051
  %vm1151 = vcmp.eq.s32.totalorder %v55, %v1055
  %vm1152 = vcmp.eq.s32.totalorder %v56, %v1043
  %vm1153 = vcmp.eq.s32.totalorder %v56, %v1047
  %vm1154 = vcmp.eq.s32.totalorder %v56, %v1051
  %vm1155 = vcmp.eq.s32.totalorder %v56, %v1055
  %vm1156 = vcmp.eq.s32.totalorder %v57, %v1043
  %vm1157 = vcmp.eq.s32.totalorder %v57, %v1047
  %vm1158 = vcmp.eq.s32.totalorder %v57, %v1051
  %vm1159 = vcmp.eq.s32.totalorder %v57, %v1055
  %vm1160 = vcmp.eq.s32.totalorder %v58, %v1043
  %vm1161 = vcmp.eq.s32.totalorder %v58, %v1047
  %vm1162 = vcmp.eq.s32.totalorder %v58, %v1051
  %vm1163 = vcmp.eq.s32.totalorder %v58, %v1055
  %vm1164 = vcmp.eq.s32.totalorder %v59, %v1043
  %vm1165 = vcmp.eq.s32.totalorder %v59, %v1047
  %vm1166 = vcmp.eq.s32.totalorder %v59, %v1051
  %vm1167 = vcmp.eq.s32.totalorder %v59, %v1055
  %vm1168 = vcmp.eq.s32.totalorder %v60, %v1043
  %vm1169 = vcmp.eq.s32.totalorder %v60, %v1047
  %vm1170 = vcmp.eq.s32.totalorder %v60, %v1051
  %vm1171 = vcmp.eq.s32.totalorder %v60, %v1055
  %vm1172 = vcmp.eq.s32.totalorder %v61, %v1043
  %vm1173 = vcmp.eq.s32.totalorder %v61, %v1047
  %vm1174 = vcmp.eq.s32.totalorder %v61, %v1051
  %vm1175 = vcmp.eq.s32.totalorder %v61, %v1055
  %vm1176 = vcmp.eq.s32.totalorder %v62, %v1043
  %vm1177 = vcmp.eq.s32.totalorder %v62, %v1047
  %vm1178 = vcmp.eq.s32.totalorder %v62, %v1051
  %vm1179 = vcmp.eq.s32.totalorder %v62, %v1055
  %vm1180 = vcmp.eq.s32.totalorder %v63, %v1043
  %vm1181 = vcmp.eq.s32.totalorder %v63, %v1047
  %vm1182 = vcmp.eq.s32.totalorder %v63, %v1051
  %vm1183 = vcmp.eq.s32.totalorder %v63, %v1055
  %v1184 = vsel %vm1056, 1, 0
  %v1185 = vsel %vm1057, 1, 0
  %v1186 = vsel %vm1058, 1, 0
  %v1187 = vsel %vm1059, 1, 0
  %v1188 = vsel %vm1060, 1, 0
  %v1189 = vsel %vm1061, 1, 0
  %v1190 = vsel %vm1062, 1, 0
  %v1191 = vsel %vm1063, 1, 0
  %v1192 = vsel %vm1064, 1, 0
  %v1193 = vsel %vm1065, 1, 0
  %v1194 = vsel %vm1066, 1, 0
  %v1195 = vsel %vm1067, 1, 0
  %v1196 = vsel %vm1068, 1, 0
  %v1197 = vsel %vm1069, 1, 0
  %v1198 = vsel %vm1070, 1, 0
  %v1199 = vsel %vm1071, 1, 0
  %v1200 = vsel %vm1072, 1, 0
  %v1201 = vsel %vm1073, 1, 0
  %v1202 = vsel %vm1074, 1, 0
  %v1203 = vsel %vm1075, 1, 0
  %v1204 = vsel %vm1076, 1, 0
  %v1205 = vsel %vm1077, 1, 0
  %v1206 = vsel %vm1078, 1, 0
  %v1207 = vsel %vm1079, 1, 0
  %v1208 = vsel %vm1080, 1, 0
  %v1209 = vsel %vm1081, 1, 0
  %v1210 = vsel %vm1082, 1, 0
  %v1211 = vsel %vm1083, 1, 0
  %v1212 = vsel %vm1084, 1, 0
  %v1213 = vsel %vm1085, 1, 0
  %v1214 = vsel %vm1086, 1, 0
  %v1215 = vsel %vm1087, 1, 0
  %v1216 = vsel %vm1088, 1, 0
  %v1217 = vsel %vm1089, 1, 0
  %v1218 = vsel %vm1090, 1, 0
  %v1219 = vsel %vm1091, 1, 0
  %v1220 = vsel %vm1092, 1, 0
  %v1221 = vsel %vm1093, 1, 0
  %v1222 = vsel %vm1094, 1, 0
  %v1223 = vsel %vm1095, 1, 0
  %v1224 = vsel %vm1096, 1, 0
  %v1225 = vsel %vm1097, 1, 0
  %v1226 = vsel %vm1098, 1, 0
  %v1227 = vsel %vm1099, 1, 0
  %v1228 = vsel %vm1100, 1, 0
  %v1229 = vsel %vm1101, 1, 0
  %v1230 = vsel %vm1102, 1, 0
  %v1231 = vsel %vm1103, 1, 0
  %v1232 = vsel %vm1104, 1, 0
  %v1233 = vsel %vm1105, 1, 0
  %v1234 = vsel %vm1106, 1, 0
  %v1235 = vsel %vm1107, 1, 0
  %v1236 = vsel %vm1108, 1, 0
  %v1237 = vsel %vm1109, 1, 0
  %v1238 = vsel %vm1110, 1, 0
  %v1239 = vsel %vm1111, 1, 0
  %v1240 = vsel %vm1112, 1, 0
  %v1241 = vsel %vm1113, 1, 0
  %v1242 = vsel %vm1114, 1, 0
  %v1243 = vsel %vm1115, 1, 0
  %v1244 = vsel %vm1116, 1, 0
  %v1245 = vsel %vm1117, 1, 0
  %v1246 = vsel %vm1118, 1, 0
  %v1247 = vsel %vm1119, 1, 0
  %v1248 = vsel %vm1120, 1, 0
  %v1249 = vsel %vm1121, 1, 0
  %v1250 = vsel %vm1122, 1, 0
  %v1251 = vsel %vm1123, 1, 0
  %v1252 = vsel %vm1124, 1, 0
  %v1253 = vsel %vm1125, 1, 0
  %v1254 = vsel %vm1126, 1, 0
  %v1255 = vsel %vm1127, 1, 0
  %v1256 = vsel %vm1128, 1, 0
  %v1257 = vsel %vm1129, 1, 0
  %v1258 = vsel %vm1130, 1, 0
  %v1259 = vsel %vm1131, 1, 0
  %v1260 = vsel %vm1132, 1, 0
  %v1261 = vsel %vm1133, 1, 0
  %v1262 = vsel %vm1134, 1, 0
  %v1263 = vsel %vm1135, 1, 0
  %v1264 = vsel %vm1136, 1, 0
  %v1265 = vsel %vm1137, 1, 0
  %v1266 = vsel %vm1138, 1, 0
  %v1267 = vsel %vm1139, 1, 0
  %v1268 = vsel %vm1140, 1, 0
  %v1269 = vsel %vm1141, 1, 0
  %v1270 = vsel %vm1142, 1, 0
  %v1271 = vsel %vm1143, 1, 0
  %v1272 = vsel %vm1144, 1, 0
  %v1273 = vsel %vm1145, 1, 0
  %v1274 = vsel %vm1146, 1, 0
  %v1275 = vsel %vm1147, 1, 0
  %v1276 = vsel %vm1148, 1, 0
  %v1277 = vsel %vm1149, 1, 0
  %v1278 = vsel %vm1150, 1, 0
  %v1279 = vsel %vm1151, 1, 0
  %v1280 = vsel %vm1152, 1, 0
  %v1281 = vsel %vm1153, 1, 0
  %v1282 = vsel %vm1154, 1, 0
  %v1283 = vsel %vm1155, 1, 0
  %v1284 = vsel %vm1156, 1, 0
  %v1285 = vsel %vm1157, 1, 0
  %v1286 = vsel %vm1158, 1, 0
  %v1287 = vsel %vm1159, 1, 0
  %v1288 = vsel %vm1160, 1, 0
  %v1289 = vsel %vm1161, 1, 0
  %v1290 = vsel %vm1162, 1, 0
  %v1291 = vsel %vm1163, 1, 0
  %v1292 = vsel %vm1164, 1, 0
  %v1293 = vsel %vm1165, 1, 0
  %v1294 = vsel %vm1166, 1, 0
  %v1295 = vsel %vm1167, 1, 0
  %v1296 = vsel %vm1168, 1, 0
  %v1297 = vsel %vm1169, 1, 0
  %v1298 = vsel %vm1170, 1, 0
  %v1299 = vsel %vm1171, 1, 0
  %v1300 = vsel %vm1172, 1, 0
  %v1301 = vsel %vm1173, 1, 0
  %v1302 = vsel %vm1174, 1, 0
  %v1303 = vsel %vm1175, 1, 0
  %v1304 = vsel %vm1176, 1, 0
  %v1305 = vsel %vm1177, 1, 0
  %v1306 = vsel %vm1178, 1, 0
  %v1307 = vsel %vm1179, 1, 0
  %v1308 = vsel %vm1180, 1, 0
  %v1309 = vsel %vm1181, 1, 0
  %v1310 = vsel %vm1182, 1, 0
  %v1311 = vsel %vm1183, 1, 0
  %v1312 = vcvt.s32.f32 %v1184
  %v1313 = vcvt.s32.f32 %v1185
  %v1314 = vcvt.s32.f32 %v1186
  %v1315 = vcvt.s32.f32 %v1187
  %v1316 = vcvt.s32.f32 %v1188
  %v1317 = vcvt.s32.f32 %v1189
  %v1318 = vcvt.s32.f32 %v1190
  %v1319 = vcvt.s32.f32 %v1191
  %v1320 = vcvt.s32.f32 %v1192
  %v1321 = vcvt.s32.f32 %v1193
  %v1322 = vcvt.s32.f32 %v1194
  %v1323 = vcvt.s32.f32 %v1195
  %v1324 = vcvt.s32.f32 %v1196
  %v1325 = vcvt.s32.f32 %v1197
  %v1326 = vcvt.s32.f32 %v1198
  %v1327 = vcvt.s32.f32 %v1199
  %v1328 = vcvt.s32.f32 %v1200
  %v1329 = vcvt.s32.f32 %v1201
  %v1330 = vcvt.s32.f32 %v1202
  %v1331 = vcvt.s32.f32 %v1203
  %v1332 = vcvt.s32.f32 %v1204
  %v1333 = vcvt.s32.f32 %v1205
  %v1334 = vcvt.s32.f32 %v1206
  %v1335 = vcvt.s32.f32 %v1207
  %v1336 = vcvt.s32.f32 %v1208
  %v1337 = vcvt.s32.f32 %v1209
  %v1338 = vcvt.s32.f32 %v1210
  %v1339 = vcvt.s32.f32 %v1211
  %v1340 = vcvt.s32.f32 %v1212
  %v1341 = vcvt.s32.f32 %v1213
  %v1342 = vcvt.s32.f32 %v1214
  %v1343 = vcvt.s32.f32 %v1215
  %v1344 = vcvt.s32.f32 %v1216
  %v1345 = vcvt.s32.f32 %v1217
  %v1346 = vcvt.s32.f32 %v1218
  %v1347 = vcvt.s32.f32 %v1219
  %v1348 = vcvt.s32.f32 %v1220
  %v1349 = vcvt.s32.f32 %v1221
  %v1350 = vcvt.s32.f32 %v1222
  %v1351 = vcvt.s32.f32 %v1223
  %v1352 = vcvt.s32.f32 %v1224
  %v1353 = vcvt.s32.f32 %v1225
  %v1354 = vcvt.s32.f32 %v1226
  %v1355 = vcvt.s32.f32 %v1227
  %v1356 = vcvt.s32.f32 %v1228
  %v1357 = vcvt.s32.f32 %v1229
  %v1358 = vcvt.s32.f32 %v1230
  %v1359 = vcvt.s32.f32 %v1231
  %v1360 = vcvt.s32.f32 %v1232
  %v1361 = vcvt.s32.f32 %v1233
  %v1362 = vcvt.s32.f32 %v1234
  %v1363 = vcvt.s32.f32 %v1235
  %v1364 = vcvt.s32.f32 %v1236
  %v1365 = vcvt.s32.f32 %v1237
  %v1366 = vcvt.s32.f32 %v1238
  %v1367 = vcvt.s32.f32 %v1239
  %v1368 = vcvt.s32.f32 %v1240
  %v1369 = vcvt.s32.f32 %v1241
  %v1370 = vcvt.s32.f32 %v1242
  %v1371 = vcvt.s32.f32 %v1243
  %v1372 = vcvt.s32.f32 %v1244
  %v1373 = vcvt.s32.f32 %v1245
  %v1374 = vcvt.s32.f32 %v1246
  %v1375 = vcvt.s32.f32 %v1247
  %v1376 = vcvt.s32.f32 %v1248
  %v1377 = vcvt.s32.f32 %v1249
  %v1378 = vcvt.s32.f32 %v1250
  %v1379 = vcvt.s32.f32 %v1251
  %v1380 = vcvt.s32.f32 %v1252
  %v1381 = vcvt.s32.f32 %v1253
  %v1382 = vcvt.s32.f32 %v1254
  %v1383 = vcvt.s32.f32 %v1255
  %v1384 = vcvt.s32.f32 %v1256
  %v1385 = vcvt.s32.f32 %v1257
  %v1386 = vcvt.s32.f32 %v1258
  %v1387 = vcvt.s32.f32 %v1259
  %v1388 = vcvt.s32.f32 %v1260
  %v1389 = vcvt.s32.f32 %v1261
  %v1390 = vcvt.s32.f32 %v1262
  %v1391 = vcvt.s32.f32 %v1263
  %v1392 = vcvt.s32.f32 %v1264
  %v1393 = vcvt.s32.f32 %v1265
  %v1394 = vcvt.s32.f32 %v1266
  %v1395 = vcvt.s32.f32 %v1267
  %v1396 = vcvt.s32.f32 %v1268
  %v1397 = vcvt.s32.f32 %v1269
  %v1398 = vcvt.s32.f32 %v1270
  %v1399 = vcvt.s32.f32 %v1271
  %v1400 = vcvt.s32.f32 %v1272
  %v1401 = vcvt.s32.f32 %v1273
  %v1402 = vcvt.s32.f32 %v1274
  %v1403 = vcvt.s32.f32 %v1275
  %v1404 = vcvt.s32.f32 %v1276
  %v1405 = vcvt.s32.f32 %v1277
  %v1406 = vcvt.s32.f32 %v1278
  %v1407 = vcvt.s32.f32 %v1279
  %v1408 = vcvt.s32.f32 %v1280
  %v1409 = vcvt.s32.f32 %v1281
  %v1410 = vcvt.s32.f32 %v1282
  %v1411 = vcvt.s32.f32 %v1283
  %v1412 = vcvt.s32.f32 %v1284
  %v1413 = vcvt.s32.f32 %v1285
  %v1414 = vcvt.s32.f32 %v1286
  %v1415 = vcvt.s32.f32 %v1287
  %v1416 = vcvt.s32.f32 %v1288
  %v1417 = vcvt.s32.f32 %v1289
  %v1418 = vcvt.s32.f32 %v1290
  %v1419 = vcvt.s32.f32 %v1291
  %v1420 = vcvt.s32.f32 %v1292
  %v1421 = vcvt.s32.f32 %v1293
  %v1422 = vcvt.s32.f32 %v1294
  %v1423 = vcvt.s32.f32 %v1295
  %v1424 = vcvt.s32.f32 %v1296
  %v1425 = vcvt.s32.f32 %v1297
  %v1426 = vcvt.s32.f32 %v1298
  %v1427 = vcvt.s32.f32 %v1299
  %v1428 = vcvt.s32.f32 %v1300
  %v1429 = vcvt.s32.f32 %v1301
  %v1430 = vcvt.s32.f32 %v1302
  %v1431 = vcvt.s32.f32 %v1303
  %v1432 = vcvt.s32.f32 %v1304
  %v1433 = vcvt.s32.f32 %v1305
  %v1434 = vcvt.s32.f32 %v1306
  %v1435 = vcvt.s32.f32 %v1307
  %v1436 = vcvt.s32.f32 %v1308
  %v1437 = vcvt.s32.f32 %v1309
  %v1438 = vcvt.s32.f32 %v1310
  %v1439 = vcvt.s32.f32 %v1311
  %v1440 = vadd.f32 %v896, %v1312
  %v1441 = vadd.f32 %v897, %v1313
  %v1442 = vadd.f32 %v898, %v1314
  %v1443 = vadd.f32 %v899, %v1315
  %v1444 = vadd.f32 %v900, %v1316
  %v1445 = vadd.f32 %v901, %v1317
  %v1446 = vadd.f32 %v902, %v1318
  %v1447 = vadd.f32 %v903, %v1319
  %v1448 = vadd.f32 %v904, %v1320
  %v1449 = vadd.f32 %v905, %v1321
  %v1450 = vadd.f32 %v906, %v1322
  %v1451 = vadd.f32 %v907, %v1323
  %v1452 = vadd.f32 %v908, %v1324
  %v1453 = vadd.f32 %v909, %v1325
  %v1454 = vadd.f32 %v910, %v1326
  %v1455 = vadd.f32 %v911, %v1327
  %v1456 = vadd.f32 %v912, %v1328
  %v1457 = vadd.f32 %v913, %v1329
  %v1458 = vadd.f32 %v914, %v1330
  %v1459 = vadd.f32 %v915, %v1331
  %v1460 = vadd.f32 %v916, %v1332
  %v1461 = vadd.f32 %v917, %v1333
  %v1462 = vadd.f32 %v918, %v1334
  %v1463 = vadd.f32 %v919, %v1335
  %v1464 = vadd.f32 %v920, %v1336
  %v1465 = vadd.f32 %v921, %v1337
  %v1466 = vadd.f32 %v922, %v1338
  %v1467 = vadd.f32 %v923, %v1339
  %v1468 = vadd.f32 %v924, %v1340
  %v1469 = vadd.f32 %v925, %v1341
  %v1470 = vadd.f32 %v926, %v1342
  %v1471 = vadd.f32 %v927, %v1343
  %v1472 = vadd.f32 %v928, %v1344
  %v1473 = vadd.f32 %v929, %v1345
  %v1474 = vadd.f32 %v930, %v1346
  %v1475 = vadd.f32 %v931, %v1347
  %v1476 = vadd.f32 %v932, %v1348
  %v1477 = vadd.f32 %v933, %v1349
  %v1478 = vadd.f32 %v934, %v1350
  %v1479 = vadd.f32 %v935, %v1351
  %v1480 = vadd.f32 %v936, %v1352
  %v1481 = vadd.f32 %v937, %v1353
  %v1482 = vadd.f32 %v938, %v1354
  %v1483 = vadd.f32 %v939, %v1355
  %v1484 = vadd.f32 %v940, %v1356
  %v1485 = vadd.f32 %v941, %v1357
  %v1486 = vadd.f32 %v942, %v1358
  %v1487 = vadd.f32 %v943, %v1359
  %v1488 = vadd.f32 %v944, %v1360
  %v1489 = vadd.f32 %v945, %v1361
  %v1490 = vadd.f32 %v946, %v1362
  %v1491 = vadd.f32 %v947, %v1363
  %v1492 = vadd.f32 %v948, %v1364
  %v1493 = vadd.f32 %v949, %v1365
  %v1494 = vadd.f32 %v950, %v1366
  %v1495 = vadd.f32 %v951, %v1367
  %v1496 = vadd.f32 %v952, %v1368
  %v1497 = vadd.f32 %v953, %v1369
  %v1498 = vadd.f32 %v954, %v1370
  %v1499 = vadd.f32 %v955, %v1371
  %v1500 = vadd.f32 %v956, %v1372
  %v1501 = vadd.f32 %v957, %v1373
  %v1502 = vadd.f32 %v958, %v1374
  %v1503 = vadd.f32 %v959, %v1375
  %v1504 = vadd.f32 %v960, %v1376
  %v1505 = vadd.f32 %v961, %v1377
  %v1506 = vadd.f32 %v962, %v1378
  %v1507 = vadd.f32 %v963, %v1379
  %v1508 = vadd.f32 %v964, %v1380
  %v1509 = vadd.f32 %v965, %v1381
  %v1510 = vadd.f32 %v966, %v1382
  %v1511 = vadd.f32 %v967, %v1383
  %v1512 = vadd.f32 %v968, %v1384
  %v1513 = vadd.f32 %v969, %v1385
  %v1514 = vadd.f32 %v970, %v1386
  %v1515 = vadd.f32 %v971, %v1387
  %v1516 = vadd.f32 %v972, %v1388
  %v1517 = vadd.f32 %v973, %v1389
  %v1518 = vadd.f32 %v974, %v1390
  %v1519 = vadd.f32 %v975, %v1391
  %v1520 = vadd.f32 %v976, %v1392
  %v1521 = vadd.f32 %v977, %v1393
  %v1522 = vadd.f32 %v978, %v1394
  %v1523 = vadd.f32 %v979, %v1395
  %v1524 = vadd.f32 %v980, %v1396
  %v1525 = vadd.f32 %v981, %v1397
  %v1526 = vadd.f32 %v982, %v1398
  %v1527 = vadd.f32 %v983, %v1399
  %v1528 = vadd.f32 %v984, %v1400
  %v1529 = vadd.f32 %v985, %v1401
  %v1530 = vadd.f32 %v986, %v1402
  %v1531 = vadd.f32 %v987, %v1403
  %v1532 = vadd.f32 %v988, %v1404
  %v1533 = vadd.f32 %v989, %v1405
  %v1534 = vadd.f32 %v990, %v1406
  %v1535 = vadd.f32 %v991, %v1407
  %v1536 = vadd.f32 %v992, %v1408
  %v1537 = vadd.f32 %v993, %v1409
  %v1538 = vadd.f32 %v994, %v1410
  %v1539 = vadd.f32 %v995, %v1411
  %v1540 = vadd.f32 %v996, %v1412
  %v1541 = vadd.f32 %v997, %v1413
  %v1542 = vadd.f32 %v998, %v1414
  %v1543 = vadd.f32 %v999, %v1415
  %v1544 = vadd.f32 %v1000, %v1416
  %v1545 = vadd.f32 %v1001, %v1417
  %v1546 = vadd.f32 %v1002, %v1418
  %v1547 = vadd.f32 %v1003, %v1419
  %v1548 = vadd.f32 %v1004, %v1420
  %v1549 = vadd.f32 %v1005, %v1421
  %v1550 = vadd.f32 %v1006, %v1422
  %v1551 = vadd.f32 %v1007, %v1423
  %v1552 = vadd.f32 %v1008, %v1424
  %v1553 = vadd.f32 %v1009, %v1425
  %v1554 = vadd.f32 %v1010, %v1426
  %v1555 = vadd.f32 %v1011, %v1427
  %v1556 = vadd.f32 %v1012, %v1428
  %v1557 = vadd.f32 %v1013, %v1429
  %v1558 = vadd.f32 %v1014, %v1430
  %v1559 = vadd.f32 %v1015, %v1431
  %v1560 = vadd.f32 %v1016, %v1432
  %v1561 = vadd.f32 %v1017, %v1433
  %v1562 = vadd.f32 %v1018, %v1434
  %v1563 = vadd.f32 %v1019, %v1435
  %v1564 = vadd.f32 %v1020, %v1436
  %v1565 = vadd.f32 %v1021, %v1437
  %v1566 = vadd.f32 %v1022, %v1438
  %v1567 = vadd.f32 %v1023, %v1439
  %v1568 = vlaneseq
  %v1569 = vshrl.u32 %v1568, 7
  %v1570 = vsub.s32 3, %v1569
  %v1571 = vrot.slane %v29, %v1570
  %v1572 = vlaneseq
  %v1573 = vshrl.u32 %v1572, 7
  %v1574 = vsub.s32 7, %v1573
  %v1575 = vrot.slane %v29, %v1574
  %v1576 = vlaneseq
  %v1577 = vshrl.u32 %v1576, 7
  %v1578 = vsub.s32 3, %v1577
  %v1579 = vrot.slane %v30, %v1578
  %v1580 = vlaneseq
  %v1581 = vshrl.u32 %v1580, 7
  %v1582 = vsub.s32 7, %v1581
  %v1583 = vrot.slane %v30, %v1582
  %v1584 = vlaneseq
  %v1585 = vshrl.u32 %v1584, 7
  %v1586 = vsub.s32 3, %v1585
  %v1587 = vrot.slane %v1571, %v1586
  %v1588 = vlaneseq
  %v1589 = vshrl.u32 %v1588, 7
  %v1590 = vsub.s32 3, %v1589
  %v1591 = vrot.slane %v1575, %v1590
  %v1592 = vlaneseq
  %v1593 = vshrl.u32 %v1592, 7
  %v1594 = vsub.s32 3, %v1593
  %v1595 = vrot.slane %v1579, %v1594
  %v1596 = vlaneseq
  %v1597 = vshrl.u32 %v1596, 7
  %v1598 = vsub.s32 3, %v1597
  %v1599 = vrot.slane %v1583, %v1598
  %vm1600 = vcmp.eq.s32.totalorder %v32, %v1587
  %vm1601 = vcmp.eq.s32.totalorder %v32, %v1591
  %vm1602 = vcmp.eq.s32.totalorder %v32, %v1595
  %vm1603 = vcmp.eq.s32.totalorder %v32, %v1599
  %vm1604 = vcmp.eq.s32.totalorder %v33, %v1587
  %vm1605 = vcmp.eq.s32.totalorder %v33, %v1591
  %vm1606 = vcmp.eq.s32.totalorder %v33, %v1595
  %vm1607 = vcmp.eq.s32.totalorder %v33, %v1599
  %vm1608 = vcmp.eq.s32.totalorder %v34, %v1587
  %vm1609 = vcmp.eq.s32.totalorder %v34, %v1591
  %vm1610 = vcmp.eq.s32.totalorder %v34, %v1595
  %vm1611 = vcmp.eq.s32.totalorder %v34, %v1599
  %vm1612 = vcmp.eq.s32.totalorder %v35, %v1587
  %vm1613 = vcmp.eq.s32.totalorder %v35, %v1591
  %vm1614 = vcmp.eq.s32.totalorder %v35, %v1595
  %vm1615 = vcmp.eq.s32.totalorder %v35, %v1599
  %vm1616 = vcmp.eq.s32.totalorder %v36, %v1587
  %vm1617 = vcmp.eq.s32.totalorder %v36, %v1591
  %vm1618 = vcmp.eq.s32.totalorder %v36, %v1595
  %vm1619 = vcmp.eq.s32.totalorder %v36, %v1599
  %vm1620 = vcmp.eq.s32.totalorder %v37, %v1587
  %vm1621 = vcmp.eq.s32.totalorder %v37, %v1591
  %vm1622 = vcmp.eq.s32.totalorder %v37, %v1595
  %vm1623 = vcmp.eq.s32.totalorder %v37, %v1599
  %vm1624 = vcmp.eq.s32.totalorder %v38, %v1587
  %vm1625 = vcmp.eq.s32.totalorder %v38, %v1591
  %vm1626 = vcmp.eq.s32.totalorder %v38, %v1595
  %vm1627 = vcmp.eq.s32.totalorder %v38, %v1599
  %vm1628 = vcmp.eq.s32.totalorder %v39, %v1587
  %vm1629 = vcmp.eq.s32.totalorder %v39, %v1591
  %vm1630 = vcmp.eq.s32.totalorder %v39, %v1595
  %vm1631 = vcmp.eq.s32.totalorder %v39, %v1599
  %vm1632 = vcmp.eq.s32.totalorder %v40, %v1587
  %vm1633 = vcmp.eq.s32.totalorder %v40, %v1591
  %vm1634 = vcmp.eq.s32.totalorder %v40, %v1595
  %vm1635 = vcmp.eq.s32.totalorder %v40, %v1599
  %vm1636 = vcmp.eq.s32.totalorder %v41, %v1587
  %vm1637 = vcmp.eq.s32.totalorder %v41, %v1591
  %vm1638 = vcmp.eq.s32.totalorder %v41, %v1595
  %vm1639 = vcmp.eq.s32.totalorder %v41, %v1599
  %vm1640 = vcmp.eq.s32.totalorder %v42, %v1587
  %vm1641 = vcmp.eq.s32.totalorder %v42, %v1591
  %vm1642 = vcmp.eq.s32.totalorder %v42, %v1595
  %vm1643 = vcmp.eq.s32.totalorder %v42, %v1599
  %vm1644 = vcmp.eq.s32.totalorder %v43, %v1587
  %vm1645 = vcmp.eq.s32.totalorder %v43, %v1591
  %vm1646 = vcmp.eq.s32.totalorder %v43, %v1595
  %vm1647 = vcmp.eq.s32.totalorder %v43, %v1599
  %vm1648 = vcmp.eq.s32.totalorder %v44, %v1587
  %vm1649 = vcmp.eq.s32.totalorder %v44, %v1591
  %vm1650 = vcmp.eq.s32.totalorder %v44, %v1595
  %vm1651 = vcmp.eq.s32.totalorder %v44, %v1599
  %vm1652 = vcmp.eq.s32.totalorder %v45, %v1587
  %vm1653 = vcmp.eq.s32.totalorder %v45, %v1591
  %vm1654 = vcmp.eq.s32.totalorder %v45, %v1595
  %vm1655 = vcmp.eq.s32.totalorder %v45, %v1599
  %vm1656 = vcmp.eq.s32.totalorder %v46, %v1587
  %vm1657 = vcmp.eq.s32.totalorder %v46, %v1591
  %vm1658 = vcmp.eq.s32.totalorder %v46, %v1595
  %vm1659 = vcmp.eq.s32.totalorder %v46, %v1599
  %vm1660 = vcmp.eq.s32.totalorder %v47, %v1587
  %vm1661 = vcmp.eq.s32.totalorder %v47, %v1591
  %vm1662 = vcmp.eq.s32.totalorder %v47, %v1595
  %vm1663 = vcmp.eq.s32.totalorder %v47, %v1599
  %vm1664 = vcmp.eq.s32.totalorder %v48, %v1587
  %vm1665 = vcmp.eq.s32.totalorder %v48, %v1591
  %vm1666 = vcmp.eq.s32.totalorder %v48, %v1595
  %vm1667 = vcmp.eq.s32.totalorder %v48, %v1599
  %vm1668 = vcmp.eq.s32.totalorder %v49, %v1587
  %vm1669 = vcmp.eq.s32.totalorder %v49, %v1591
  %vm1670 = vcmp.eq.s32.totalorder %v49, %v1595
  %vm1671 = vcmp.eq.s32.totalorder %v49, %v1599
  %vm1672 = vcmp.eq.s32.totalorder %v50, %v1587
  %vm1673 = vcmp.eq.s32.totalorder %v50, %v1591
  %vm1674 = vcmp.eq.s32.totalorder %v50, %v1595
  %vm1675 = vcmp.eq.s32.totalorder %v50, %v1599
  %vm1676 = vcmp.eq.s32.totalorder %v51, %v1587
  %vm1677 = vcmp.eq.s32.totalorder %v51, %v1591
  %vm1678 = vcmp.eq.s32.totalorder %v51, %v1595
  %vm1679 = vcmp.eq.s32.totalorder %v51, %v1599
  %vm1680 = vcmp.eq.s32.totalorder %v52, %v1587
  %vm1681 = vcmp.eq.s32.totalorder %v52, %v1591
  %vm1682 = vcmp.eq.s32.totalorder %v52, %v1595
  %vm1683 = vcmp.eq.s32.totalorder %v52, %v1599
  %vm1684 = vcmp.eq.s32.totalorder %v53, %v1587
  %vm1685 = vcmp.eq.s32.totalorder %v53, %v1591
  %vm1686 = vcmp.eq.s32.totalorder %v53, %v1595
  %vm1687 = vcmp.eq.s32.totalorder %v53, %v1599
  %vm1688 = vcmp.eq.s32.totalorder %v54, %v1587
  %vm1689 = vcmp.eq.s32.totalorder %v54, %v1591
  %vm1690 = vcmp.eq.s32.totalorder %v54, %v1595
  %vm1691 = vcmp.eq.s32.totalorder %v54, %v1599
  %vm1692 = vcmp.eq.s32.totalorder %v55, %v1587
  %vm1693 = vcmp.eq.s32.totalorder %v55, %v1591
  %vm1694 = vcmp.eq.s32.totalorder %v55, %v1595
  %vm1695 = vcmp.eq.s32.totalorder %v55, %v1599
  %vm1696 = vcmp.eq.s32.totalorder %v56, %v1587
  %vm1697 = vcmp.eq.s32.totalorder %v56, %v1591
  %vm1698 = vcmp.eq.s32.totalorder %v56, %v1595
  %vm1699 = vcmp.eq.s32.totalorder %v56, %v1599
  %vm1700 = vcmp.eq.s32.totalorder %v57, %v1587
  %vm1701 = vcmp.eq.s32.totalorder %v57, %v1591
  %vm1702 = vcmp.eq.s32.totalorder %v57, %v1595
  %vm1703 = vcmp.eq.s32.totalorder %v57, %v1599
  %vm1704 = vcmp.eq.s32.totalorder %v58, %v1587
  %vm1705 = vcmp.eq.s32.totalorder %v58, %v1591
  %vm1706 = vcmp.eq.s32.totalorder %v58, %v1595
  %vm1707 = vcmp.eq.s32.totalorder %v58, %v1599
  %vm1708 = vcmp.eq.s32.totalorder %v59, %v1587
  %vm1709 = vcmp.eq.s32.totalorder %v59, %v1591
  %vm1710 = vcmp.eq.s32.totalorder %v59, %v1595
  %vm1711 = vcmp.eq.s32.totalorder %v59, %v1599
  %vm1712 = vcmp.eq.s32.totalorder %v60, %v1587
  %vm1713 = vcmp.eq.s32.totalorder %v60, %v1591
  %vm1714 = vcmp.eq.s32.totalorder %v60, %v1595
  %vm1715 = vcmp.eq.s32.totalorder %v60, %v1599
  %vm1716 = vcmp.eq.s32.totalorder %v61, %v1587
  %vm1717 = vcmp.eq.s32.totalorder %v61, %v1591
  %vm1718 = vcmp.eq.s32.totalorder %v61, %v1595
  %vm1719 = vcmp.eq.s32.totalorder %v61, %v1599
  %vm1720 = vcmp.eq.s32.totalorder %v62, %v1587
  %vm1721 = vcmp.eq.s32.totalorder %v62, %v1591
  %vm1722 = vcmp.eq.s32.totalorder %v62, %v1595
  %vm1723 = vcmp.eq.s32.totalorder %v62, %v1599
  %vm1724 = vcmp.eq.s32.totalorder %v63, %v1587
  %vm1725 = vcmp.eq.s32.totalorder %v63, %v1591
  %vm1726 = vcmp.eq.s32.totalorder %v63, %v1595
  %vm1727 = vcmp.eq.s32.totalorder %v63, %v1599
  %v1728 = vsel %vm1600, 1, 0
  %v1729 = vsel %vm1601, 1, 0
  %v1730 = vsel %vm1602, 1, 0
  %v1731 = vsel %vm1603, 1, 0
  %v1732 = vsel %vm1604, 1, 0
  %v1733 = vsel %vm1605, 1, 0
  %v1734 = vsel %vm1606, 1, 0
  %v1735 = vsel %vm1607, 1, 0
  %v1736 = vsel %vm1608, 1, 0
  %v1737 = vsel %vm1609, 1, 0
  %v1738 = vsel %vm1610, 1, 0
  %v1739 = vsel %vm1611, 1, 0
  %v1740 = vsel %vm1612, 1, 0
  %v1741 = vsel %vm1613, 1, 0
  %v1742 = vsel %vm1614, 1, 0
  %v1743 = vsel %vm1615, 1, 0
  %v1744 = vsel %vm1616, 1, 0
  %v1745 = vsel %vm1617, 1, 0
  %v1746 = vsel %vm1618, 1, 0
  %v1747 = vsel %vm1619, 1, 0
  %v1748 = vsel %vm1620, 1, 0
  %v1749 = vsel %vm1621, 1, 0
  %v1750 = vsel %vm1622, 1, 0
  %v1751 = vsel %vm1623, 1, 0
  %v1752 = vsel %vm1624, 1, 0
  %v1753 = vsel %vm1625, 1, 0
  %v1754 = vsel %vm1626, 1, 0
  %v1755 = vsel %vm1627, 1, 0
  %v1756 = vsel %vm1628, 1, 0
  %v1757 = vsel %vm1629, 1, 0
  %v1758 = vsel %vm1630, 1, 0
  %v1759 = vsel %vm1631, 1, 0
  %v1760 = vsel %vm1632, 1, 0
  %v1761 = vsel %vm1633, 1, 0
  %v1762 = vsel %vm1634, 1, 0
  %v1763 = vsel %vm1635, 1, 0
  %v1764 = vsel %vm1636, 1, 0
  %v1765 = vsel %vm1637, 1, 0
  %v1766 = vsel %vm1638, 1, 0
  %v1767 = vsel %vm1639, 1, 0
  %v1768 = vsel %vm1640, 1, 0
  %v1769 = vsel %vm1641, 1, 0
  %v1770 = vsel %vm1642, 1, 0
  %v1771 = vsel %vm1643, 1, 0
  %v1772 = vsel %vm1644, 1, 0
  %v1773 = vsel %vm1645, 1, 0
  %v1774 = vsel %vm1646, 1, 0
  %v1775 = vsel %vm1647, 1, 0
  %v1776 = vsel %vm1648, 1, 0
  %v1777 = vsel %vm1649, 1, 0
  %v1778 = vsel %vm1650, 1, 0
  %v1779 = vsel %vm1651, 1, 0
  %v1780 = vsel %vm1652, 1, 0
  %v1781 = vsel %vm1653, 1, 0
  %v1782 = vsel %vm1654, 1, 0
  %v1783 = vsel %vm1655, 1, 0
  %v1784 = vsel %vm1656, 1, 0
  %v1785 = vsel %vm1657, 1, 0
  %v1786 = vsel %vm1658, 1, 0
  %v1787 = vsel %vm1659, 1, 0
  %v1788 = vsel %vm1660, 1, 0
  %v1789 = vsel %vm1661, 1, 0
  %v1790 = vsel %vm1662, 1, 0
  %v1791 = vsel %vm1663, 1, 0
  %v1792 = vsel %vm1664, 1, 0
  %v1793 = vsel %vm1665, 1, 0
  %v1794 = vsel %vm1666, 1, 0
  %v1795 = vsel %vm1667, 1, 0
  %v1796 = vsel %vm1668, 1, 0
  %v1797 = vsel %vm1669, 1, 0
  %v1798 = vsel %vm1670, 1, 0
  %v1799 = vsel %vm1671, 1, 0
  %v1800 = vsel %vm1672, 1, 0
  %v1801 = vsel %vm1673, 1, 0
  %v1802 = vsel %vm1674, 1, 0
  %v1803 = vsel %vm1675, 1, 0
  %v1804 = vsel %vm1676, 1, 0
  %v1805 = vsel %vm1677, 1, 0
  %v1806 = vsel %vm1678, 1, 0
  %v1807 = vsel %vm1679, 1, 0
  %v1808 = vsel %vm1680, 1, 0
  %v1809 = vsel %vm1681, 1, 0
  %v1810 = vsel %vm1682, 1, 0
  %v1811 = vsel %vm1683, 1, 0
  %v1812 = vsel %vm1684, 1, 0
  %v1813 = vsel %vm1685, 1, 0
  %v1814 = vsel %vm1686, 1, 0
  %v1815 = vsel %vm1687, 1, 0
  %v1816 = vsel %vm1688, 1, 0
  %v1817 = vsel %vm1689, 1, 0
  %v1818 = vsel %vm1690, 1, 0
  %v1819 = vsel %vm1691, 1, 0
  %v1820 = vsel %vm1692, 1, 0
  %v1821 = vsel %vm1693, 1, 0
  %v1822 = vsel %vm1694, 1, 0
  %v1823 = vsel %vm1695, 1, 0
  %v1824 = vsel %vm1696, 1, 0
  %v1825 = vsel %vm1697, 1, 0
  %v1826 = vsel %vm1698, 1, 0
  %v1827 = vsel %vm1699, 1, 0
  %v1828 = vsel %vm1700, 1, 0
  %v1829 = vsel %vm1701, 1, 0
  %v1830 = vsel %vm1702, 1, 0
  %v1831 = vsel %vm1703, 1, 0
  %v1832 = vsel %vm1704, 1, 0
  %v1833 = vsel %vm1705, 1, 0
  %v1834 = vsel %vm1706, 1, 0
  %v1835 = vsel %vm1707, 1, 0
  %v1836 = vsel %vm1708, 1, 0
  %v1837 = vsel %vm1709, 1, 0
  %v1838 = vsel %vm1710, 1, 0
  %v1839 = vsel %vm1711, 1, 0
  %v1840 = vsel %vm1712, 1, 0
  %v1841 = vsel %vm1713, 1, 0
  %v1842 = vsel %vm1714, 1, 0
  %v1843 = vsel %vm1715, 1, 0
  %v1844 = vsel %vm1716, 1, 0
  %v1845 = vsel %vm1717, 1, 0
  %v1846 = vsel %vm1718, 1, 0
  %v1847 = vsel %vm1719, 1, 0
  %v1848 = vsel %vm1720, 1, 0
  %v1849 = vsel %vm1721, 1, 0
  %v1850 = vsel %vm1722, 1, 0
  %v1851 = vsel %vm1723, 1, 0
  %v1852 = vsel %vm1724, 1, 0
  %v1853 = vsel %vm1725, 1, 0
  %v1854 = vsel %vm1726, 1, 0
  %v1855 = vsel %vm1727, 1, 0
  %v1856 = vcvt.s32.f32 %v1728
  %v1857 = vcvt.s32.f32 %v1729
  %v1858 = vcvt.s32.f32 %v1730
  %v1859 = vcvt.s32.f32 %v1731
  %v1860 = vcvt.s32.f32 %v1732
  %v1861 = vcvt.s32.f32 %v1733
  %v1862 = vcvt.s32.f32 %v1734
  %v1863 = vcvt.s32.f32 %v1735
  %v1864 = vcvt.s32.f32 %v1736
  %v1865 = vcvt.s32.f32 %v1737
  %v1866 = vcvt.s32.f32 %v1738
  %v1867 = vcvt.s32.f32 %v1739
  %v1868 = vcvt.s32.f32 %v1740
  %v1869 = vcvt.s32.f32 %v1741
  %v1870 = vcvt.s32.f32 %v1742
  %v1871 = vcvt.s32.f32 %v1743
  %v1872 = vcvt.s32.f32 %v1744
  %v1873 = vcvt.s32.f32 %v1745
  %v1874 = vcvt.s32.f32 %v1746
  %v1875 = vcvt.s32.f32 %v1747
  %v1876 = vcvt.s32.f32 %v1748
  %v1877 = vcvt.s32.f32 %v1749
  %v1878 = vcvt.s32.f32 %v1750
  %v1879 = vcvt.s32.f32 %v1751
  %v1880 = vcvt.s32.f32 %v1752
  %v1881 = vcvt.s32.f32 %v1753
  %v1882 = vcvt.s32.f32 %v1754
  %v1883 = vcvt.s32.f32 %v1755
  %v1884 = vcvt.s32.f32 %v1756
  %v1885 = vcvt.s32.f32 %v1757
  %v1886 = vcvt.s32.f32 %v1758
  %v1887 = vcvt.s32.f32 %v1759
  %v1888 = vcvt.s32.f32 %v1760
  %v1889 = vcvt.s32.f32 %v1761
  %v1890 = vcvt.s32.f32 %v1762
  %v1891 = vcvt.s32.f32 %v1763
  %v1892 = vcvt.s32.f32 %v1764
  %v1893 = vcvt.s32.f32 %v1765
  %v1894 = vcvt.s32.f32 %v1766
  %v1895 = vcvt.s32.f32 %v1767
  %v1896 = vcvt.s32.f32 %v1768
  %v1897 = vcvt.s32.f32 %v1769
  %v1898 = vcvt.s32.f32 %v1770
  %v1899 = vcvt.s32.f32 %v1771
  %v1900 = vcvt.s32.f32 %v1772
  %v1901 = vcvt.s32.f32 %v1773
  %v1902 = vcvt.s32.f32 %v1774
  %v1903 = vcvt.s32.f32 %v1775
  %v1904 = vcvt.s32.f32 %v1776
  %v1905 = vcvt.s32.f32 %v1777
  %v1906 = vcvt.s32.f32 %v1778
  %v1907 = vcvt.s32.f32 %v1779
  %v1908 = vcvt.s32.f32 %v1780
  %v1909 = vcvt.s32.f32 %v1781
  %v1910 = vcvt.s32.f32 %v1782
  %v1911 = vcvt.s32.f32 %v1783
  %v1912 = vcvt.s32.f32 %v1784
  %v1913 = vcvt.s32.f32 %v1785
  %v1914 = vcvt.s32.f32 %v1786
  %v1915 = vcvt.s32.f32 %v1787
  %v1916 = vcvt.s32.f32 %v1788
  %v1917 = vcvt.s32.f32 %v1789
  %v1918 = vcvt.s32.f32 %v1790
  %v1919 = vcvt.s32.f32 %v1791
  %v1920 = vcvt.s32.f32 %v1792
  %v1921 = vcvt.s32.f32 %v1793
  %v1922 = vcvt.s32.f32 %v1794
  %v1923 = vcvt.s32.f32 %v1795
  %v1924 = vcvt.s32.f32 %v1796
  %v1925 = vcvt.s32.f32 %v1797
  %v1926 = vcvt.s32.f32 %v1798
  %v1927 = vcvt.s32.f32 %v1799
  %v1928 = vcvt.s32.f32 %v1800
  %v1929 = vcvt.s32.f32 %v1801
  %v1930 = vcvt.s32.f32 %v1802
  %v1931 = vcvt.s32.f32 %v1803
  %v1932 = vcvt.s32.f32 %v1804
  %v1933 = vcvt.s32.f32 %v1805
  %v1934 = vcvt.s32.f32 %v1806
  %v1935 = vcvt.s32.f32 %v1807
  %v1936 = vcvt.s32.f32 %v1808
  %v1937 = vcvt.s32.f32 %v1809
  %v1938 = vcvt.s32.f32 %v1810
  %v1939 = vcvt.s32.f32 %v1811
  %v1940 = vcvt.s32.f32 %v1812
  %v1941 = vcvt.s32.f32 %v1813
  %v1942 = vcvt.s32.f32 %v1814
  %v1943 = vcvt.s32.f32 %v1815
  %v1944 = vcvt.s32.f32 %v1816
  %v1945 = vcvt.s32.f32 %v1817
  %v1946 = vcvt.s32.f32 %v1818
  %v1947 = vcvt.s32.f32 %v1819
  %v1948 = vcvt.s32.f32 %v1820
  %v1949 = vcvt.s32.f32 %v1821
  %v1950 = vcvt.s32.f32 %v1822
  %v1951 = vcvt.s32.f32 %v1823
  %v1952 = vcvt.s32.f32 %v1824
  %v1953 = vcvt.s32.f32 %v1825
  %v1954 = vcvt.s32.f32 %v1826
  %v1955 = vcvt.s32.f32 %v1827
  %v1956 = vcvt.s32.f32 %v1828
  %v1957 = vcvt.s32.f32 %v1829
  %v1958 = vcvt.s32.f32 %v1830
  %v1959 = vcvt.s32.f32 %v1831
  %v1960 = vcvt.s32.f32 %v1832
  %v1961 = vcvt.s32.f32 %v1833
  %v1962 = vcvt.s32.f32 %v1834
  %v1963 = vcvt.s32.f32 %v1835
  %v1964 = vcvt.s32.f32 %v1836
  %v1965 = vcvt.s32.f32 %v1837
  %v1966 = vcvt.s32.f32 %v1838
  %v1967 = vcvt.s32.f32 %v1839
  %v1968 = vcvt.s32.f32 %v1840
  %v1969 = vcvt.s32.f32 %v1841
  %v1970 = vcvt.s32.f32 %v1842
  %v1971 = vcvt.s32.f32 %v1843
  %v1972 = vcvt.s32.f32 %v1844
  %v1973 = vcvt.s32.f32 %v1845
  %v1974 = vcvt.s32.f32 %v1846
  %v1975 = vcvt.s32.f32 %v1847
  %v1976 = vcvt.s32.f32 %v1848
  %v1977 = vcvt.s32.f32 %v1849
  %v1978 = vcvt.s32.f32 %v1850
  %v1979 = vcvt.s32.f32 %v1851
  %v1980 = vcvt.s32.f32 %v1852
  %v1981 = vcvt.s32.f32 %v1853
  %v1982 = vcvt.s32.f32 %v1854
  %v1983 = vcvt.s32.f32 %v1855
  %v1984 = vadd.f32 %v1440, %v1856
  %v1985 = vadd.f32 %v1441, %v1857
  %v1986 = vadd.f32 %v1442, %v1858
  %v1987 = vadd.f32 %v1443, %v1859
  %v1988 = vadd.f32 %v1444, %v1860
  %v1989 = vadd.f32 %v1445, %v1861
  %v1990 = vadd.f32 %v1446, %v1862
  %v1991 = vadd.f32 %v1447, %v1863
  %v1992 = vadd.f32 %v1448, %v1864
  %v1993 = vadd.f32 %v1449, %v1865
  %v1994 = vadd.f32 %v1450, %v1866
  %v1995 = vadd.f32 %v1451, %v1867
  %v1996 = vadd.f32 %v1452, %v1868
  %v1997 = vadd.f32 %v1453, %v1869
  %v1998 = vadd.f32 %v1454, %v1870
  %v1999 = vadd.f32 %v1455, %v1871
  %v2000 = vadd.f32 %v1456, %v1872
  %v2001 = vadd.f32 %v1457, %v1873
  %v2002 = vadd.f32 %v1458, %v1874
  %v2003 = vadd.f32 %v1459, %v1875
  %v2004 = vadd.f32 %v1460, %v1876
  %v2005 = vadd.f32 %v1461, %v1877
  %v2006 = vadd.f32 %v1462, %v1878
  %v2007 = vadd.f32 %v1463, %v1879
  %v2008 = vadd.f32 %v1464, %v1880
  %v2009 = vadd.f32 %v1465, %v1881
  %v2010 = vadd.f32 %v1466, %v1882
  %v2011 = vadd.f32 %v1467, %v1883
  %v2012 = vadd.f32 %v1468, %v1884
  %v2013 = vadd.f32 %v1469, %v1885
  %v2014 = vadd.f32 %v1470, %v1886
  %v2015 = vadd.f32 %v1471, %v1887
  %v2016 = vadd.f32 %v1472, %v1888
  %v2017 = vadd.f32 %v1473, %v1889
  %v2018 = vadd.f32 %v1474, %v1890
  %v2019 = vadd.f32 %v1475, %v1891
  %v2020 = vadd.f32 %v1476, %v1892
  %v2021 = vadd.f32 %v1477, %v1893
  %v2022 = vadd.f32 %v1478, %v1894
  %v2023 = vadd.f32 %v1479, %v1895
  %v2024 = vadd.f32 %v1480, %v1896
  %v2025 = vadd.f32 %v1481, %v1897
  %v2026 = vadd.f32 %v1482, %v1898
  %v2027 = vadd.f32 %v1483, %v1899
  %v2028 = vadd.f32 %v1484, %v1900
  %v2029 = vadd.f32 %v1485, %v1901
  %v2030 = vadd.f32 %v1486, %v1902
  %v2031 = vadd.f32 %v1487, %v1903
  %v2032 = vadd.f32 %v1488, %v1904
  %v2033 = vadd.f32 %v1489, %v1905
  %v2034 = vadd.f32 %v1490, %v1906
  %v2035 = vadd.f32 %v1491, %v1907
  %v2036 = vadd.f32 %v1492, %v1908
  %v2037 = vadd.f32 %v1493, %v1909
  %v2038 = vadd.f32 %v1494, %v1910
  %v2039 = vadd.f32 %v1495, %v1911
  %v2040 = vadd.f32 %v1496, %v1912
  %v2041 = vadd.f32 %v1497, %v1913
  %v2042 = vadd.f32 %v1498, %v1914
  %v2043 = vadd.f32 %v1499, %v1915
  %v2044 = vadd.f32 %v1500, %v1916
  %v2045 = vadd.f32 %v1501, %v1917
  %v2046 = vadd.f32 %v1502, %v1918
  %v2047 = vadd.f32 %v1503, %v1919
  %v2048 = vadd.f32 %v1504, %v1920
  %v2049 = vadd.f32 %v1505, %v1921
  %v2050 = vadd.f32 %v1506, %v1922
  %v2051 = vadd.f32 %v1507, %v1923
  %v2052 = vadd.f32 %v1508, %v1924
  %v2053 = vadd.f32 %v1509, %v1925
  %v2054 = vadd.f32 %v1510, %v1926
  %v2055 = vadd.f32 %v1511, %v1927
  %v2056 = vadd.f32 %v1512, %v1928
  %v2057 = vadd.f32 %v1513, %v1929
  %v2058 = vadd.f32 %v1514, %v1930
  %v2059 = vadd.f32 %v1515, %v1931
  %v2060 = vadd.f32 %v1516, %v1932
  %v2061 = vadd.f32 %v1517, %v1933
  %v2062 = vadd.f32 %v1518, %v1934
  %v2063 = vadd.f32 %v1519, %v1935
  %v2064 = vadd.f32 %v1520, %v1936
  %v2065 = vadd.f32 %v1521, %v1937
  %v2066 = vadd.f32 %v1522, %v1938
  %v2067 = vadd.f32 %v1523, %v1939
  %v2068 = vadd.f32 %v1524, %v1940
  %v2069 = vadd.f32 %v1525, %v1941
  %v2070 = vadd.f32 %v1526, %v1942
  %v2071 = vadd.f32 %v1527, %v1943
  %v2072 = vadd.f32 %v1528, %v1944
  %v2073 = vadd.f32 %v1529, %v1945
  %v2074 = vadd.f32 %v1530, %v1946
  %v2075 = vadd.f32 %v1531, %v1947
  %v2076 = vadd.f32 %v1532, %v1948
  %v2077 = vadd.f32 %v1533, %v1949
  %v2078 = vadd.f32 %v1534, %v1950
  %v2079 = vadd.f32 %v1535, %v1951
  %v2080 = vadd.f32 %v1536, %v1952
  %v2081 = vadd.f32 %v1537, %v1953
  %v2082 = vadd.f32 %v1538, %v1954
  %v2083 = vadd.f32 %v1539, %v1955
  %v2084 = vadd.f32 %v1540, %v1956
  %v2085 = vadd.f32 %v1541, %v1957
  %v2086 = vadd.f32 %v1542, %v1958
  %v2087 = vadd.f32 %v1543, %v1959
  %v2088 = vadd.f32 %v1544, %v1960
  %v2089 = vadd.f32 %v1545, %v1961
  %v2090 = vadd.f32 %v1546, %v1962
  %v2091 = vadd.f32 %v1547, %v1963
  %v2092 = vadd.f32 %v1548, %v1964
  %v2093 = vadd.f32 %v1549, %v1965
  %v2094 = vadd.f32 %v1550, %v1966
  %v2095 = vadd.f32 %v1551, %v1967
  %v2096 = vadd.f32 %v1552, %v1968
  %v2097 = vadd.f32 %v1553, %v1969
  %v2098 = vadd.f32 %v1554, %v1970
  %v2099 = vadd.f32 %v1555, %v1971
  %v2100 = vadd.f32 %v1556, %v1972
  %v2101 = vadd.f32 %v1557, %v1973
  %v2102 = vadd.f32 %v1558, %v1974
  %v2103 = vadd.f32 %v1559, %v1975
  %v2104 = vadd.f32 %v1560, %v1976
  %v2105 = vadd.f32 %v1561, %v1977
  %v2106 = vadd.f32 %v1562, %v1978
  %v2107 = vadd.f32 %v1563, %v1979
  %v2108 = vadd.f32 %v1564, %v1980
  %v2109 = vadd.f32 %v1565, %v1981
  %v2110 = vadd.f32 %v1566, %v1982
  %v2111 = vadd.f32 %v1567, %v1983
  %v2112 = vld [vmem:[%s1] sm:$0xff]
  %v2113 = vld [vmem:[%s1 + $0x8] sm:$0xff]
  %v2114 = vld [vmem:[%s1 + $0x40] sm:$0xff]
  %v2115 = vld [vmem:[%s1 + $0x48] sm:$0xff]
  %v2116 = vld [vmem:[%s1 + $0x80] sm:$0xff]
  %v2117 = vld [vmem:[%s1 + $0x88] sm:$0xff]
  %v2118 = vld [vmem:[%s1 + $0xc0] sm:$0xff]
  %v2119 = vld [vmem:[%s1 + $0xc8] sm:$0xff]
  %v2120 = vadd.s32 %v32, 256
  %v2121 = vadd.s32 %v33, 256
  %v2122 = vadd.s32 %v34, 256
  %v2123 = vadd.s32 %v35, 256
  %v2124 = vadd.s32 %v36, 256
  %v2125 = vadd.s32 %v37, 256
  %v2126 = vadd.s32 %v38, 256
  %v2127 = vadd.s32 %v39, 256
  %v2128 = vadd.s32 %v40, 256
  %v2129 = vadd.s32 %v41, 256
  %v2130 = vadd.s32 %v42, 256
  %v2131 = vadd.s32 %v43, 256
  %v2132 = vadd.s32 %v44, 256
  %v2133 = vadd.s32 %v45, 256
  %v2134 = vadd.s32 %v46, 256
  %v2135 = vadd.s32 %v47, 256
  %v2136 = vadd.s32 %v48, 256
  %v2137 = vadd.s32 %v49, 256
  %v2138 = vadd.s32 %v50, 256
  %v2139 = vadd.s32 %v51, 256
  %v2140 = vadd.s32 %v52, 256
  %v2141 = vadd.s32 %v53, 256
  %v2142 = vadd.s32 %v54, 256
  %v2143 = vadd.s32 %v55, 256
  %v2144 = vadd.s32 %v56, 256
  %v2145 = vadd.s32 %v57, 256
  %v2146 = vadd.s32 %v58, 256
  %v2147 = vadd.s32 %v59, 256
  %v2148 = vadd.s32 %v60, 256
  %v2149 = vadd.s32 %v61, 256
  %v2150 = vadd.s32 %v62, 256
  %v2151 = vadd.s32 %v63, 256
  %vm2152 = vcmp.eq.s32.totalorder %v2120, %v83
  %vm2153 = vcmp.eq.s32.totalorder %v2120, %v87
  %vm2154 = vcmp.eq.s32.totalorder %v2120, %v91
  %vm2155 = vcmp.eq.s32.totalorder %v2120, %v95
  %vm2156 = vcmp.eq.s32.totalorder %v2121, %v83
  %vm2157 = vcmp.eq.s32.totalorder %v2121, %v87
  %vm2158 = vcmp.eq.s32.totalorder %v2121, %v91
  %vm2159 = vcmp.eq.s32.totalorder %v2121, %v95
  %vm2160 = vcmp.eq.s32.totalorder %v2122, %v83
  %vm2161 = vcmp.eq.s32.totalorder %v2122, %v87
  %vm2162 = vcmp.eq.s32.totalorder %v2122, %v91
  %vm2163 = vcmp.eq.s32.totalorder %v2122, %v95
  %vm2164 = vcmp.eq.s32.totalorder %v2123, %v83
  %vm2165 = vcmp.eq.s32.totalorder %v2123, %v87
  %vm2166 = vcmp.eq.s32.totalorder %v2123, %v91
  %vm2167 = vcmp.eq.s32.totalorder %v2123, %v95
  %vm2168 = vcmp.eq.s32.totalorder %v2124, %v83
  %vm2169 = vcmp.eq.s32.totalorder %v2124, %v87
  %vm2170 = vcmp.eq.s32.totalorder %v2124, %v91
  %vm2171 = vcmp.eq.s32.totalorder %v2124, %v95
  %vm2172 = vcmp.eq.s32.totalorder %v2125, %v83
  %vm2173 = vcmp.eq.s32.totalorder %v2125, %v87
  %vm2174 = vcmp.eq.s32.totalorder %v2125, %v91
  %vm2175 = vcmp.eq.s32.totalorder %v2125, %v95
  %vm2176 = vcmp.eq.s32.totalorder %v2126, %v83
  %vm2177 = vcmp.eq.s32.totalorder %v2126, %v87
  %vm2178 = vcmp.eq.s32.totalorder %v2126, %v91
  %vm2179 = vcmp.eq.s32.totalorder %v2126, %v95
  %vm2180 = vcmp.eq.s32.totalorder %v2127, %v83
  %vm2181 = vcmp.eq.s32.totalorder %v2127, %v87
  %vm2182 = vcmp.eq.s32.totalorder %v2127, %v91
  %vm2183 = vcmp.eq.s32.totalorder %v2127, %v95
  %vm2184 = vcmp.eq.s32.totalorder %v2128, %v83
  %vm2185 = vcmp.eq.s32.totalorder %v2128, %v87
  %vm2186 = vcmp.eq.s32.totalorder %v2128, %v91
  %vm2187 = vcmp.eq.s32.totalorder %v2128, %v95
  %vm2188 = vcmp.eq.s32.totalorder %v2129, %v83
  %vm2189 = vcmp.eq.s32.totalorder %v2129, %v87
  %vm2190 = vcmp.eq.s32.totalorder %v2129, %v91
  %vm2191 = vcmp.eq.s32.totalorder %v2129, %v95
  %vm2192 = vcmp.eq.s32.totalorder %v2130, %v83
  %vm2193 = vcmp.eq.s32.totalorder %v2130, %v87
  %vm2194 = vcmp.eq.s32.totalorder %v2130, %v91
  %vm2195 = vcmp.eq.s32.totalorder %v2130, %v95
  %vm2196 = vcmp.eq.s32.totalorder %v2131, %v83
  %vm2197 = vcmp.eq.s32.totalorder %v2131, %v87
  %vm2198 = vcmp.eq.s32.totalorder %v2131, %v91
  %vm2199 = vcmp.eq.s32.totalorder %v2131, %v95
  %vm2200 = vcmp.eq.s32.totalorder %v2132, %v83
  %vm2201 = vcmp.eq.s32.totalorder %v2132, %v87
  %vm2202 = vcmp.eq.s32.totalorder %v2132, %v91
  %vm2203 = vcmp.eq.s32.totalorder %v2132, %v95
  %vm2204 = vcmp.eq.s32.totalorder %v2133, %v83
  %vm2205 = vcmp.eq.s32.totalorder %v2133, %v87
  %vm2206 = vcmp.eq.s32.totalorder %v2133, %v91
  %vm2207 = vcmp.eq.s32.totalorder %v2133, %v95
  %vm2208 = vcmp.eq.s32.totalorder %v2134, %v83
  %vm2209 = vcmp.eq.s32.totalorder %v2134, %v87
  %vm2210 = vcmp.eq.s32.totalorder %v2134, %v91
  %vm2211 = vcmp.eq.s32.totalorder %v2134, %v95
  %vm2212 = vcmp.eq.s32.totalorder %v2135, %v83
  %vm2213 = vcmp.eq.s32.totalorder %v2135, %v87
  %vm2214 = vcmp.eq.s32.totalorder %v2135, %v91
  %vm2215 = vcmp.eq.s32.totalorder %v2135, %v95
  %vm2216 = vcmp.eq.s32.totalorder %v2136, %v83
  %vm2217 = vcmp.eq.s32.totalorder %v2136, %v87
  %vm2218 = vcmp.eq.s32.totalorder %v2136, %v91
  %vm2219 = vcmp.eq.s32.totalorder %v2136, %v95
  %vm2220 = vcmp.eq.s32.totalorder %v2137, %v83
  %vm2221 = vcmp.eq.s32.totalorder %v2137, %v87
  %vm2222 = vcmp.eq.s32.totalorder %v2137, %v91
  %vm2223 = vcmp.eq.s32.totalorder %v2137, %v95
  %vm2224 = vcmp.eq.s32.totalorder %v2138, %v83
  %vm2225 = vcmp.eq.s32.totalorder %v2138, %v87
  %vm2226 = vcmp.eq.s32.totalorder %v2138, %v91
  %vm2227 = vcmp.eq.s32.totalorder %v2138, %v95
  %vm2228 = vcmp.eq.s32.totalorder %v2139, %v83
  %vm2229 = vcmp.eq.s32.totalorder %v2139, %v87
  %vm2230 = vcmp.eq.s32.totalorder %v2139, %v91
  %vm2231 = vcmp.eq.s32.totalorder %v2139, %v95
  %vm2232 = vcmp.eq.s32.totalorder %v2140, %v83
  %vm2233 = vcmp.eq.s32.totalorder %v2140, %v87
  %vm2234 = vcmp.eq.s32.totalorder %v2140, %v91
  %vm2235 = vcmp.eq.s32.totalorder %v2140, %v95
  %vm2236 = vcmp.eq.s32.totalorder %v2141, %v83
  %vm2237 = vcmp.eq.s32.totalorder %v2141, %v87
  %vm2238 = vcmp.eq.s32.totalorder %v2141, %v91
  %vm2239 = vcmp.eq.s32.totalorder %v2141, %v95
  %vm2240 = vcmp.eq.s32.totalorder %v2142, %v83
  %vm2241 = vcmp.eq.s32.totalorder %v2142, %v87
  %vm2242 = vcmp.eq.s32.totalorder %v2142, %v91
  %vm2243 = vcmp.eq.s32.totalorder %v2142, %v95
  %vm2244 = vcmp.eq.s32.totalorder %v2143, %v83
  %vm2245 = vcmp.eq.s32.totalorder %v2143, %v87
  %vm2246 = vcmp.eq.s32.totalorder %v2143, %v91
  %vm2247 = vcmp.eq.s32.totalorder %v2143, %v95
  %vm2248 = vcmp.eq.s32.totalorder %v2144, %v83
  %vm2249 = vcmp.eq.s32.totalorder %v2144, %v87
  %vm2250 = vcmp.eq.s32.totalorder %v2144, %v91
  %vm2251 = vcmp.eq.s32.totalorder %v2144, %v95
  %vm2252 = vcmp.eq.s32.totalorder %v2145, %v83
  %vm2253 = vcmp.eq.s32.totalorder %v2145, %v87
  %vm2254 = vcmp.eq.s32.totalorder %v2145, %v91
  %vm2255 = vcmp.eq.s32.totalorder %v2145, %v95
  %vm2256 = vcmp.eq.s32.totalorder %v2146, %v83
  %vm2257 = vcmp.eq.s32.totalorder %v2146, %v87
  %vm2258 = vcmp.eq.s32.totalorder %v2146, %v91
  %vm2259 = vcmp.eq.s32.totalorder %v2146, %v95
  %vm2260 = vcmp.eq.s32.totalorder %v2147, %v83
  %vm2261 = vcmp.eq.s32.totalorder %v2147, %v87
  %vm2262 = vcmp.eq.s32.totalorder %v2147, %v91
  %vm2263 = vcmp.eq.s32.totalorder %v2147, %v95
  %vm2264 = vcmp.eq.s32.totalorder %v2148, %v83
  %vm2265 = vcmp.eq.s32.totalorder %v2148, %v87
  %vm2266 = vcmp.eq.s32.totalorder %v2148, %v91
  %vm2267 = vcmp.eq.s32.totalorder %v2148, %v95
  %vm2268 = vcmp.eq.s32.totalorder %v2149, %v83
  %vm2269 = vcmp.eq.s32.totalorder %v2149, %v87
  %vm2270 = vcmp.eq.s32.totalorder %v2149, %v91
  %vm2271 = vcmp.eq.s32.totalorder %v2149, %v95
  %vm2272 = vcmp.eq.s32.totalorder %v2150, %v83
  %vm2273 = vcmp.eq.s32.totalorder %v2150, %v87
  %vm2274 = vcmp.eq.s32.totalorder %v2150, %v91
  %vm2275 = vcmp.eq.s32.totalorder %v2150, %v95
  %vm2276 = vcmp.eq.s32.totalorder %v2151, %v83
  %vm2277 = vcmp.eq.s32.totalorder %v2151, %v87
  %vm2278 = vcmp.eq.s32.totalorder %v2151, %v91
  %vm2279 = vcmp.eq.s32.totalorder %v2151, %v95
  %v2280 = vsel %vm2152, 1, 0
  %v2281 = vsel %vm2153, 1, 0
  %v2282 = vsel %vm2154, 1, 0
  %v2283 = vsel %vm2155, 1, 0
  %v2284 = vsel %vm2156, 1, 0
  %v2285 = vsel %vm2157, 1, 0
  %v2286 = vsel %vm2158, 1, 0
  %v2287 = vsel %vm2159, 1, 0
  %v2288 = vsel %vm2160, 1, 0
  %v2289 = vsel %vm2161, 1, 0
  %v2290 = vsel %vm2162, 1, 0
  %v2291 = vsel %vm2163, 1, 0
  %v2292 = vsel %vm2164, 1, 0
  %v2293 = vsel %vm2165, 1, 0
  %v2294 = vsel %vm2166, 1, 0
  %v2295 = vsel %vm2167, 1, 0
  %v2296 = vsel %vm2168, 1, 0
  %v2297 = vsel %vm2169, 1, 0
  %v2298 = vsel %vm2170, 1, 0
  %v2299 = vsel %vm2171, 1, 0
  %v2300 = vsel %vm2172, 1, 0
  %v2301 = vsel %vm2173, 1, 0
  %v2302 = vsel %vm2174, 1, 0
  %v2303 = vsel %vm2175, 1, 0
  %v2304 = vsel %vm2176, 1, 0
  %v2305 = vsel %vm2177, 1, 0
  %v2306 = vsel %vm2178, 1, 0
  %v2307 = vsel %vm2179, 1, 0
  %v2308 = vsel %vm2180, 1, 0
  %v2309 = vsel %vm2181, 1, 0
  %v2310 = vsel %vm2182, 1, 0
  %v2311 = vsel %vm2183, 1, 0
  %v2312 = vsel %vm2184, 1, 0
  %v2313 = vsel %vm2185, 1, 0
  %v2314 = vsel %vm2186, 1, 0
  %v2315 = vsel %vm2187, 1, 0
  %v2316 = vsel %vm2188, 1, 0
  %v2317 = vsel %vm2189, 1, 0
  %v2318 = vsel %vm2190, 1, 0
  %v2319 = vsel %vm2191, 1, 0
  %v2320 = vsel %vm2192, 1, 0
  %v2321 = vsel %vm2193, 1, 0
  %v2322 = vsel %vm2194, 1, 0
  %v2323 = vsel %vm2195, 1, 0
  %v2324 = vsel %vm2196, 1, 0
  %v2325 = vsel %vm2197, 1, 0
  %v2326 = vsel %vm2198, 1, 0
  %v2327 = vsel %vm2199, 1, 0
  %v2328 = vsel %vm2200, 1, 0
  %v2329 = vsel %vm2201, 1, 0
  %v2330 = vsel %vm2202, 1, 0
  %v2331 = vsel %vm2203, 1, 0
  %v2332 = vsel %vm2204, 1, 0
  %v2333 = vsel %vm2205, 1, 0
  %v2334 = vsel %vm2206, 1, 0
  %v2335 = vsel %vm2207, 1, 0
  %v2336 = vsel %vm2208, 1, 0
  %v2337 = vsel %vm2209, 1, 0
  %v2338 = vsel %vm2210, 1, 0
  %v2339 = vsel %vm2211, 1, 0
  %v2340 = vsel %vm2212, 1, 0
  %v2341 = vsel %vm2213, 1, 0
  %v2342 = vsel %vm2214, 1, 0
  %v2343 = vsel %vm2215, 1, 0
  %v2344 = vsel %vm2216, 1, 0
  %v2345 = vsel %vm2217, 1, 0
  %v2346 = vsel %vm2218, 1, 0
  %v2347 = vsel %vm2219, 1, 0
  %v2348 = vsel %vm2220, 1, 0
  %v2349 = vsel %vm2221, 1, 0
  %v2350 = vsel %vm2222, 1, 0
  %v2351 = vsel %vm2223, 1, 0
  %v2352 = vsel %vm2224, 1, 0
  %v2353 = vsel %vm2225, 1, 0
  %v2354 = vsel %vm2226, 1, 0
  %v2355 = vsel %vm2227, 1, 0
  %v2356 = vsel %vm2228, 1, 0
  %v2357 = vsel %vm2229, 1, 0
  %v2358 = vsel %vm2230, 1, 0
  %v2359 = vsel %vm2231, 1, 0
  %v2360 = vsel %vm2232, 1, 0
  %v2361 = vsel %vm2233, 1, 0
  %v2362 = vsel %vm2234, 1, 0
  %v2363 = vsel %vm2235, 1, 0
  %v2364 = vsel %vm2236, 1, 0
  %v2365 = vsel %vm2237, 1, 0
  %v2366 = vsel %vm2238, 1, 0
  %v2367 = vsel %vm2239, 1, 0
  %v2368 = vsel %vm2240, 1, 0
  %v2369 = vsel %vm2241, 1, 0
  %v2370 = vsel %vm2242, 1, 0
  %v2371 = vsel %vm2243, 1, 0
  %v2372 = vsel %vm2244, 1, 0
  %v2373 = vsel %vm2245, 1, 0
  %v2374 = vsel %vm2246, 1, 0
  %v2375 = vsel %vm2247, 1, 0
  %v2376 = vsel %vm2248, 1, 0
  %v2377 = vsel %vm2249, 1, 0
  %v2378 = vsel %vm2250, 1, 0
  %v2379 = vsel %vm2251, 1, 0
  %v2380 = vsel %vm2252, 1, 0
  %v2381 = vsel %vm2253, 1, 0
  %v2382 = vsel %vm2254, 1, 0
  %v2383 = vsel %vm2255, 1, 0
  %v2384 = vsel %vm2256, 1, 0
  %v2385 = vsel %vm2257, 1, 0
  %v2386 = vsel %vm2258, 1, 0
  %v2387 = vsel %vm2259, 1, 0
  %v2388 = vsel %vm2260, 1, 0
  %v2389 = vsel %vm2261, 1, 0
  %v2390 = vsel %vm2262, 1, 0
  %v2391 = vsel %vm2263, 1, 0
  %v2392 = vsel %vm2264, 1, 0
  %v2393 = vsel %vm2265, 1, 0
  %v2394 = vsel %vm2266, 1, 0
  %v2395 = vsel %vm2267, 1, 0
  %v2396 = vsel %vm2268, 1, 0
  %v2397 = vsel %vm2269, 1, 0
  %v2398 = vsel %vm2270, 1, 0
  %v2399 = vsel %vm2271, 1, 0
  %v2400 = vsel %vm2272, 1, 0
  %v2401 = vsel %vm2273, 1, 0
  %v2402 = vsel %vm2274, 1, 0
  %v2403 = vsel %vm2275, 1, 0
  %v2404 = vsel %vm2276, 1, 0
  %v2405 = vsel %vm2277, 1, 0
  %v2406 = vsel %vm2278, 1, 0
  %v2407 = vsel %vm2279, 1, 0
  %v2408 = vcvt.s32.f32 %v2280
  %v2409 = vcvt.s32.f32 %v2281
  %v2410 = vcvt.s32.f32 %v2282
  %v2411 = vcvt.s32.f32 %v2283
  %v2412 = vcvt.s32.f32 %v2284
  %v2413 = vcvt.s32.f32 %v2285
  %v2414 = vcvt.s32.f32 %v2286
  %v2415 = vcvt.s32.f32 %v2287
  %v2416 = vcvt.s32.f32 %v2288
  %v2417 = vcvt.s32.f32 %v2289
  %v2418 = vcvt.s32.f32 %v2290
  %v2419 = vcvt.s32.f32 %v2291
  %v2420 = vcvt.s32.f32 %v2292
  %v2421 = vcvt.s32.f32 %v2293
  %v2422 = vcvt.s32.f32 %v2294
  %v2423 = vcvt.s32.f32 %v2295
  %v2424 = vcvt.s32.f32 %v2296
  %v2425 = vcvt.s32.f32 %v2297
  %v2426 = vcvt.s32.f32 %v2298
  %v2427 = vcvt.s32.f32 %v2299
  %v2428 = vcvt.s32.f32 %v2300
  %v2429 = vcvt.s32.f32 %v2301
  %v2430 = vcvt.s32.f32 %v2302
  %v2431 = vcvt.s32.f32 %v2303
  %v2432 = vcvt.s32.f32 %v2304
  %v2433 = vcvt.s32.f32 %v2305
  %v2434 = vcvt.s32.f32 %v2306
  %v2435 = vcvt.s32.f32 %v2307
  %v2436 = vcvt.s32.f32 %v2308
  %v2437 = vcvt.s32.f32 %v2309
  %v2438 = vcvt.s32.f32 %v2310
  %v2439 = vcvt.s32.f32 %v2311
  %v2440 = vcvt.s32.f32 %v2312
  %v2441 = vcvt.s32.f32 %v2313
  %v2442 = vcvt.s32.f32 %v2314
  %v2443 = vcvt.s32.f32 %v2315
  %v2444 = vcvt.s32.f32 %v2316
  %v2445 = vcvt.s32.f32 %v2317
  %v2446 = vcvt.s32.f32 %v2318
  %v2447 = vcvt.s32.f32 %v2319
  %v2448 = vcvt.s32.f32 %v2320
  %v2449 = vcvt.s32.f32 %v2321
  %v2450 = vcvt.s32.f32 %v2322
  %v2451 = vcvt.s32.f32 %v2323
  %v2452 = vcvt.s32.f32 %v2324
  %v2453 = vcvt.s32.f32 %v2325
  %v2454 = vcvt.s32.f32 %v2326
  %v2455 = vcvt.s32.f32 %v2327
  %v2456 = vcvt.s32.f32 %v2328
  %v2457 = vcvt.s32.f32 %v2329
  %v2458 = vcvt.s32.f32 %v2330
  %v2459 = vcvt.s32.f32 %v2331
  %v2460 = vcvt.s32.f32 %v2332
  %v2461 = vcvt.s32.f32 %v2333
  %v2462 = vcvt.s32.f32 %v2334
  %v2463 = vcvt.s32.f32 %v2335
  %v2464 = vcvt.s32.f32 %v2336
  %v2465 = vcvt.s32.f32 %v2337
  %v2466 = vcvt.s32.f32 %v2338
  %v2467 = vcvt.s32.f32 %v2339
  %v2468 = vcvt.s32.f32 %v2340
  %v2469 = vcvt.s32.f32 %v2341
  %v2470 = vcvt.s32.f32 %v2342
  %v2471 = vcvt.s32.f32 %v2343
  %v2472 = vcvt.s32.f32 %v2344
  %v2473 = vcvt.s32.f32 %v2345
  %v2474 = vcvt.s32.f32 %v2346
  %v2475 = vcvt.s32.f32 %v2347
  %v2476 = vcvt.s32.f32 %v2348
  %v2477 = vcvt.s32.f32 %v2349
  %v2478 = vcvt.s32.f32 %v2350
  %v2479 = vcvt.s32.f32 %v2351
  %v2480 = vcvt.s32.f32 %v2352
  %v2481 = vcvt.s32.f32 %v2353
  %v2482 = vcvt.s32.f32 %v2354
  %v2483 = vcvt.s32.f32 %v2355
  %v2484 = vcvt.s32.f32 %v2356
  %v2485 = vcvt.s32.f32 %v2357
  %v2486 = vcvt.s32.f32 %v2358
  %v2487 = vcvt.s32.f32 %v2359
  %v2488 = vcvt.s32.f32 %v2360
  %v2489 = vcvt.s32.f32 %v2361
  %v2490 = vcvt.s32.f32 %v2362
  %v2491 = vcvt.s32.f32 %v2363
  %v2492 = vcvt.s32.f32 %v2364
  %v2493 = vcvt.s32.f32 %v2365
  %v2494 = vcvt.s32.f32 %v2366
  %v2495 = vcvt.s32.f32 %v2367
  %v2496 = vcvt.s32.f32 %v2368
  %v2497 = vcvt.s32.f32 %v2369
  %v2498 = vcvt.s32.f32 %v2370
  %v2499 = vcvt.s32.f32 %v2371
  %v2500 = vcvt.s32.f32 %v2372
  %v2501 = vcvt.s32.f32 %v2373
  %v2502 = vcvt.s32.f32 %v2374
  %v2503 = vcvt.s32.f32 %v2375
  %v2504 = vcvt.s32.f32 %v2376
  %v2505 = vcvt.s32.f32 %v2377
  %v2506 = vcvt.s32.f32 %v2378
  %v2507 = vcvt.s32.f32 %v2379
  %v2508 = vcvt.s32.f32 %v2380
  %v2509 = vcvt.s32.f32 %v2381
  %v2510 = vcvt.s32.f32 %v2382
  %v2511 = vcvt.s32.f32 %v2383
  %v2512 = vcvt.s32.f32 %v2384
  %v2513 = vcvt.s32.f32 %v2385
  %v2514 = vcvt.s32.f32 %v2386
  %v2515 = vcvt.s32.f32 %v2387
  %v2516 = vcvt.s32.f32 %v2388
  %v2517 = vcvt.s32.f32 %v2389
  %v2518 = vcvt.s32.f32 %v2390
  %v2519 = vcvt.s32.f32 %v2391
  %v2520 = vcvt.s32.f32 %v2392
  %v2521 = vcvt.s32.f32 %v2393
  %v2522 = vcvt.s32.f32 %v2394
  %v2523 = vcvt.s32.f32 %v2395
  %v2524 = vcvt.s32.f32 %v2396
  %v2525 = vcvt.s32.f32 %v2397
  %v2526 = vcvt.s32.f32 %v2398
  %v2527 = vcvt.s32.f32 %v2399
  %v2528 = vcvt.s32.f32 %v2400
  %v2529 = vcvt.s32.f32 %v2401
  %v2530 = vcvt.s32.f32 %v2402
  %v2531 = vcvt.s32.f32 %v2403
  %v2532 = vcvt.s32.f32 %v2404
  %v2533 = vcvt.s32.f32 %v2405
  %v2534 = vcvt.s32.f32 %v2406
  %v2535 = vcvt.s32.f32 %v2407
  %vm2536 = vcmp.eq.s32.totalorder %v2120, %v499
  %vm2537 = vcmp.eq.s32.totalorder %v2120, %v503
  %vm2538 = vcmp.eq.s32.totalorder %v2120, %v507
  %vm2539 = vcmp.eq.s32.totalorder %v2120, %v511
  %vm2540 = vcmp.eq.s32.totalorder %v2121, %v499
  %vm2541 = vcmp.eq.s32.totalorder %v2121, %v503
  %vm2542 = vcmp.eq.s32.totalorder %v2121, %v507
  %vm2543 = vcmp.eq.s32.totalorder %v2121, %v511
  %vm2544 = vcmp.eq.s32.totalorder %v2122, %v499
  %vm2545 = vcmp.eq.s32.totalorder %v2122, %v503
  %vm2546 = vcmp.eq.s32.totalorder %v2122, %v507
  %vm2547 = vcmp.eq.s32.totalorder %v2122, %v511
  %vm2548 = vcmp.eq.s32.totalorder %v2123, %v499
  %vm2549 = vcmp.eq.s32.totalorder %v2123, %v503
  %vm2550 = vcmp.eq.s32.totalorder %v2123, %v507
  %vm2551 = vcmp.eq.s32.totalorder %v2123, %v511
  %vm2552 = vcmp.eq.s32.totalorder %v2124, %v499
  %vm2553 = vcmp.eq.s32.totalorder %v2124, %v503
  %vm2554 = vcmp.eq.s32.totalorder %v2124, %v507
  %vm2555 = vcmp.eq.s32.totalorder %v2124, %v511
  %vm2556 = vcmp.eq.s32.totalorder %v2125, %v499
  %vm2557 = vcmp.eq.s32.totalorder %v2125, %v503
  %vm2558 = vcmp.eq.s32.totalorder %v2125, %v507
  %vm2559 = vcmp.eq.s32.totalorder %v2125, %v511
  %vm2560 = vcmp.eq.s32.totalorder %v2126, %v499
  %vm2561 = vcmp.eq.s32.totalorder %v2126, %v503
  %vm2562 = vcmp.eq.s32.totalorder %v2126, %v507
  %vm2563 = vcmp.eq.s32.totalorder %v2126, %v511
  %vm2564 = vcmp.eq.s32.totalorder %v2127, %v499
  %vm2565 = vcmp.eq.s32.totalorder %v2127, %v503
  %vm2566 = vcmp.eq.s32.totalorder %v2127, %v507
  %vm2567 = vcmp.eq.s32.totalorder %v2127, %v511
  %vm2568 = vcmp.eq.s32.totalorder %v2128, %v499
  %vm2569 = vcmp.eq.s32.totalorder %v2128, %v503
  %vm2570 = vcmp.eq.s32.totalorder %v2128, %v507
  %vm2571 = vcmp.eq.s32.totalorder %v2128, %v511
  %vm2572 = vcmp.eq.s32.totalorder %v2129, %v499
  %vm2573 = vcmp.eq.s32.totalorder %v2129, %v503
  %vm2574 = vcmp.eq.s32.totalorder %v2129, %v507
  %vm2575 = vcmp.eq.s32.totalorder %v2129, %v511
  %vm2576 = vcmp.eq.s32.totalorder %v2130, %v499
  %vm2577 = vcmp.eq.s32.totalorder %v2130, %v503
  %vm2578 = vcmp.eq.s32.totalorder %v2130, %v507
  %vm2579 = vcmp.eq.s32.totalorder %v2130, %v511
  %vm2580 = vcmp.eq.s32.totalorder %v2131, %v499
  %vm2581 = vcmp.eq.s32.totalorder %v2131, %v503
  %vm2582 = vcmp.eq.s32.totalorder %v2131, %v507
  %vm2583 = vcmp.eq.s32.totalorder %v2131, %v511
  %vm2584 = vcmp.eq.s32.totalorder %v2132, %v499
  %vm2585 = vcmp.eq.s32.totalorder %v2132, %v503
  %vm2586 = vcmp.eq.s32.totalorder %v2132, %v507
  %vm2587 = vcmp.eq.s32.totalorder %v2132, %v511
  %vm2588 = vcmp.eq.s32.totalorder %v2133, %v499
  %vm2589 = vcmp.eq.s32.totalorder %v2133, %v503
  %vm2590 = vcmp.eq.s32.totalorder %v2133, %v507
  %vm2591 = vcmp.eq.s32.totalorder %v2133, %v511
  %vm2592 = vcmp.eq.s32.totalorder %v2134, %v499
  %vm2593 = vcmp.eq.s32.totalorder %v2134, %v503
  %vm2594 = vcmp.eq.s32.totalorder %v2134, %v507
  %vm2595 = vcmp.eq.s32.totalorder %v2134, %v511
  %vm2596 = vcmp.eq.s32.totalorder %v2135, %v499
  %vm2597 = vcmp.eq.s32.totalorder %v2135, %v503
  %vm2598 = vcmp.eq.s32.totalorder %v2135, %v507
  %vm2599 = vcmp.eq.s32.totalorder %v2135, %v511
  %vm2600 = vcmp.eq.s32.totalorder %v2136, %v499
  %vm2601 = vcmp.eq.s32.totalorder %v2136, %v503
  %vm2602 = vcmp.eq.s32.totalorder %v2136, %v507
  %vm2603 = vcmp.eq.s32.totalorder %v2136, %v511
  %vm2604 = vcmp.eq.s32.totalorder %v2137, %v499
  %vm2605 = vcmp.eq.s32.totalorder %v2137, %v503
  %vm2606 = vcmp.eq.s32.totalorder %v2137, %v507
  %vm2607 = vcmp.eq.s32.totalorder %v2137, %v511
  %vm2608 = vcmp.eq.s32.totalorder %v2138, %v499
  %vm2609 = vcmp.eq.s32.totalorder %v2138, %v503
  %vm2610 = vcmp.eq.s32.totalorder %v2138, %v507
  %vm2611 = vcmp.eq.s32.totalorder %v2138, %v511
  %vm2612 = vcmp.eq.s32.totalorder %v2139, %v499
  %vm2613 = vcmp.eq.s32.totalorder %v2139, %v503
  %vm2614 = vcmp.eq.s32.totalorder %v2139, %v507
  %vm2615 = vcmp.eq.s32.totalorder %v2139, %v511
  %vm2616 = vcmp.eq.s32.totalorder %v2140, %v499
  %vm2617 = vcmp.eq.s32.totalorder %v2140, %v503
  %vm2618 = vcmp.eq.s32.totalorder %v2140, %v507
  %vm2619 = vcmp.eq.s32.totalorder %v2140, %v511
  %vm2620 = vcmp.eq.s32.totalorder %v2141, %v499
  %vm2621 = vcmp.eq.s32.totalorder %v2141, %v503
  %vm2622 = vcmp.eq.s32.totalorder %v2141, %v507
  %vm2623 = vcmp.eq.s32.totalorder %v2141, %v511
  %vm2624 = vcmp.eq.s32.totalorder %v2142, %v499
  %vm2625 = vcmp.eq.s32.totalorder %v2142, %v503
  %vm2626 = vcmp.eq.s32.totalorder %v2142, %v507
  %vm2627 = vcmp.eq.s32.totalorder %v2142, %v511
  %vm2628 = vcmp.eq.s32.totalorder %v2143, %v499
  %vm2629 = vcmp.eq.s32.totalorder %v2143, %v503
  %vm2630 = vcmp.eq.s32.totalorder %v2143, %v507
  %vm2631 = vcmp.eq.s32.totalorder %v2143, %v511
  %vm2632 = vcmp.eq.s32.totalorder %v2144, %v499
  %vm2633 = vcmp.eq.s32.totalorder %v2144, %v503
  %vm2634 = vcmp.eq.s32.totalorder %v2144, %v507
  %vm2635 = vcmp.eq.s32.totalorder %v2144, %v511
  %vm2636 = vcmp.eq.s32.totalorder %v2145, %v499
  %vm2637 = vcmp.eq.s32.totalorder %v2145, %v503
  %vm2638 = vcmp.eq.s32.totalorder %v2145, %v507
  %vm2639 = vcmp.eq.s32.totalorder %v2145, %v511
  %vm2640 = vcmp.eq.s32.totalorder %v2146, %v499
  %vm2641 = vcmp.eq.s32.totalorder %v2146, %v503
  %vm2642 = vcmp.eq.s32.totalorder %v2146, %v507
  %vm2643 = vcmp.eq.s32.totalorder %v2146, %v511
  %vm2644 = vcmp.eq.s32.totalorder %v2147, %v499
  %vm2645 = vcmp.eq.s32.totalorder %v2147, %v503
  %vm2646 = vcmp.eq.s32.totalorder %v2147, %v507
  %vm2647 = vcmp.eq.s32.totalorder %v2147, %v511
  %vm2648 = vcmp.eq.s32.totalorder %v2148, %v499
  %vm2649 = vcmp.eq.s32.totalorder %v2148, %v503
  %vm2650 = vcmp.eq.s32.totalorder %v2148, %v507
  %vm2651 = vcmp.eq.s32.totalorder %v2148, %v511
  %vm2652 = vcmp.eq.s32.totalorder %v2149, %v499
  %vm2653 = vcmp.eq.s32.totalorder %v2149, %v503
  %vm2654 = vcmp.eq.s32.totalorder %v2149, %v507
  %vm2655 = vcmp.eq.s32.totalorder %v2149, %v511
  %vm2656 = vcmp.eq.s32.totalorder %v2150, %v499
  %vm2657 = vcmp.eq.s32.totalorder %v2150, %v503
  %vm2658 = vcmp.eq.s32.totalorder %v2150, %v507
  %vm2659 = vcmp.eq.s32.totalorder %v2150, %v511
  %vm2660 = vcmp.eq.s32.totalorder %v2151, %v499
  %vm2661 = vcmp.eq.s32.totalorder %v2151, %v503
  %vm2662 = vcmp.eq.s32.totalorder %v2151, %v507
  %vm2663 = vcmp.eq.s32.totalorder %v2151, %v511
  %v2664 = vsel %vm2536, 1, 0
  %v2665 = vsel %vm2537, 1, 0
  %v2666 = vsel %vm2538, 1, 0
  %v2667 = vsel %vm2539, 1, 0
  %v2668 = vsel %vm2540, 1, 0
  %v2669 = vsel %vm2541, 1, 0
  %v2670 = vsel %vm2542, 1, 0
  %v2671 = vsel %vm2543, 1, 0
  %v2672 = vsel %vm2544, 1, 0
  %v2673 = vsel %vm2545, 1, 0
  %v2674 = vsel %vm2546, 1, 0
  %v2675 = vsel %vm2547, 1, 0
  %v2676 = vsel %vm2548, 1, 0
  %v2677 = vsel %vm2549, 1, 0
  %v2678 = vsel %vm2550, 1, 0
  %v2679 = vsel %vm2551, 1, 0
  %v2680 = vsel %vm2552, 1, 0
  %v2681 = vsel %vm2553, 1, 0
  %v2682 = vsel %vm2554, 1, 0
  %v2683 = vsel %vm2555, 1, 0
  %v2684 = vsel %vm2556, 1, 0
  %v2685 = vsel %vm2557, 1, 0
  %v2686 = vsel %vm2558, 1, 0
  %v2687 = vsel %vm2559, 1, 0
  %v2688 = vsel %vm2560, 1, 0
  %v2689 = vsel %vm2561, 1, 0
  %v2690 = vsel %vm2562, 1, 0
  %v2691 = vsel %vm2563, 1, 0
  %v2692 = vsel %vm2564, 1, 0
  %v2693 = vsel %vm2565, 1, 0
  %v2694 = vsel %vm2566, 1, 0
  %v2695 = vsel %vm2567, 1, 0
  %v2696 = vsel %vm2568, 1, 0
  %v2697 = vsel %vm2569, 1, 0
  %v2698 = vsel %vm2570, 1, 0
  %v2699 = vsel %vm2571, 1, 0
  %v2700 = vsel %vm2572, 1, 0
  %v2701 = vsel %vm2573, 1, 0
  %v2702 = vsel %vm2574, 1, 0
  %v2703 = vsel %vm2575, 1, 0
  %v2704 = vsel %vm2576, 1, 0
  %v2705 = vsel %vm2577, 1, 0
  %v2706 = vsel %vm2578, 1, 0
  %v2707 = vsel %vm2579, 1, 0
  %v2708 = vsel %vm2580, 1, 0
  %v2709 = vsel %vm2581, 1, 0
  %v2710 = vsel %vm2582, 1, 0
  %v2711 = vsel %vm2583, 1, 0
  %v2712 = vsel %vm2584, 1, 0
  %v2713 = vsel %vm2585, 1, 0
  %v2714 = vsel %vm2586, 1, 0
  %v2715 = vsel %vm2587, 1, 0
  %v2716 = vsel %vm2588, 1, 0
  %v2717 = vsel %vm2589, 1, 0
  %v2718 = vsel %vm2590, 1, 0
  %v2719 = vsel %vm2591, 1, 0
  %v2720 = vsel %vm2592, 1, 0
  %v2721 = vsel %vm2593, 1, 0
  %v2722 = vsel %vm2594, 1, 0
  %v2723 = vsel %vm2595, 1, 0
  %v2724 = vsel %vm2596, 1, 0
  %v2725 = vsel %vm2597, 1, 0
  %v2726 = vsel %vm2598, 1, 0
  %v2727 = vsel %vm2599, 1, 0
  %v2728 = vsel %vm2600, 1, 0
  %v2729 = vsel %vm2601, 1, 0
  %v2730 = vsel %vm2602, 1, 0
  %v2731 = vsel %vm2603, 1, 0
  %v2732 = vsel %vm2604, 1, 0
  %v2733 = vsel %vm2605, 1, 0
  %v2734 = vsel %vm2606, 1, 0
  %v2735 = vsel %vm2607, 1, 0
  %v2736 = vsel %vm2608, 1, 0
  %v2737 = vsel %vm2609, 1, 0
  %v2738 = vsel %vm2610, 1, 0
  %v2739 = vsel %vm2611, 1, 0
  %v2740 = vsel %vm2612, 1, 0
  %v2741 = vsel %vm2613, 1, 0
  %v2742 = vsel %vm2614, 1, 0
  %v2743 = vsel %vm2615, 1, 0
  %v2744 = vsel %vm2616, 1, 0
  %v2745 = vsel %vm2617, 1, 0
  %v2746 = vsel %vm2618, 1, 0
  %v2747 = vsel %vm2619, 1, 0
  %v2748 = vsel %vm2620, 1, 0
  %v2749 = vsel %vm2621, 1, 0
  %v2750 = vsel %vm2622, 1, 0
  %v2751 = vsel %vm2623, 1, 0
  %v2752 = vsel %vm2624, 1, 0
  %v2753 = vsel %vm2625, 1, 0
  %v2754 = vsel %vm2626, 1, 0
  %v2755 = vsel %vm2627, 1, 0
  %v2756 = vsel %vm2628, 1, 0
  %v2757 = vsel %vm2629, 1, 0
  %v2758 = vsel %vm2630, 1, 0
  %v2759 = vsel %vm2631, 1, 0
  %v2760 = vsel %vm2632, 1, 0
  %v2761 = vsel %vm2633, 1, 0
  %v2762 = vsel %vm2634, 1, 0
  %v2763 = vsel %vm2635, 1, 0
  %v2764 = vsel %vm2636, 1, 0
  %v2765 = vsel %vm2637, 1, 0
  %v2766 = vsel %vm2638, 1, 0
  %v2767 = vsel %vm2639, 1, 0
  %v2768 = vsel %vm2640, 1, 0
  %v2769 = vsel %vm2641, 1, 0
  %v2770 = vsel %vm2642, 1, 0
  %v2771 = vsel %vm2643, 1, 0
  %v2772 = vsel %vm2644, 1, 0
  %v2773 = vsel %vm2645, 1, 0
  %v2774 = vsel %vm2646, 1, 0
  %v2775 = vsel %vm2647, 1, 0
  %v2776 = vsel %vm2648, 1, 0
  %v2777 = vsel %vm2649, 1, 0
  %v2778 = vsel %vm2650, 1, 0
  %v2779 = vsel %vm2651, 1, 0
  %v2780 = vsel %vm2652, 1, 0
  %v2781 = vsel %vm2653, 1, 0
  %v2782 = vsel %vm2654, 1, 0
  %v2783 = vsel %vm2655, 1, 0
  %v2784 = vsel %vm2656, 1, 0
  %v2785 = vsel %vm2657, 1, 0
  %v2786 = vsel %vm2658, 1, 0
  %v2787 = vsel %vm2659, 1, 0
  %v2788 = vsel %vm2660, 1, 0
  %v2789 = vsel %vm2661, 1, 0
  %v2790 = vsel %vm2662, 1, 0
  %v2791 = vsel %vm2663, 1, 0
  %v2792 = vcvt.s32.f32 %v2664
  %v2793 = vcvt.s32.f32 %v2665
  %v2794 = vcvt.s32.f32 %v2666
  %v2795 = vcvt.s32.f32 %v2667
  %v2796 = vcvt.s32.f32 %v2668
  %v2797 = vcvt.s32.f32 %v2669
  %v2798 = vcvt.s32.f32 %v2670
  %v2799 = vcvt.s32.f32 %v2671
  %v2800 = vcvt.s32.f32 %v2672
  %v2801 = vcvt.s32.f32 %v2673
  %v2802 = vcvt.s32.f32 %v2674
  %v2803 = vcvt.s32.f32 %v2675
  %v2804 = vcvt.s32.f32 %v2676
  %v2805 = vcvt.s32.f32 %v2677
  %v2806 = vcvt.s32.f32 %v2678
  %v2807 = vcvt.s32.f32 %v2679
  %v2808 = vcvt.s32.f32 %v2680
  %v2809 = vcvt.s32.f32 %v2681
  %v2810 = vcvt.s32.f32 %v2682
  %v2811 = vcvt.s32.f32 %v2683
  %v2812 = vcvt.s32.f32 %v2684
  %v2813 = vcvt.s32.f32 %v2685
  %v2814 = vcvt.s32.f32 %v2686
  %v2815 = vcvt.s32.f32 %v2687
  %v2816 = vcvt.s32.f32 %v2688
  %v2817 = vcvt.s32.f32 %v2689
  %v2818 = vcvt.s32.f32 %v2690
  %v2819 = vcvt.s32.f32 %v2691
  %v2820 = vcvt.s32.f32 %v2692
  %v2821 = vcvt.s32.f32 %v2693
  %v2822 = vcvt.s32.f32 %v2694
  %v2823 = vcvt.s32.f32 %v2695
  %v2824 = vcvt.s32.f32 %v2696
  %v2825 = vcvt.s32.f32 %v2697
  %v2826 = vcvt.s32.f32 %v2698
  %v2827 = vcvt.s32.f32 %v2699
  %v2828 = vcvt.s32.f32 %v2700
  %v2829 = vcvt.s32.f32 %v2701
  %v2830 = vcvt.s32.f32 %v2702
  %v2831 = vcvt.s32.f32 %v2703
  %v2832 = vcvt.s32.f32 %v2704
  %v2833 = vcvt.s32.f32 %v2705
  %v2834 = vcvt.s32.f32 %v2706
  %v2835 = vcvt.s32.f32 %v2707
  %v2836 = vcvt.s32.f32 %v2708
  %v2837 = vcvt.s32.f32 %v2709
  %v2838 = vcvt.s32.f32 %v2710
  %v2839 = vcvt.s32.f32 %v2711
  %v2840 = vcvt.s32.f32 %v2712
  %v2841 = vcvt.s32.f32 %v2713
  %v2842 = vcvt.s32.f32 %v2714
  %v2843 = vcvt.s32.f32 %v2715
  %v2844 = vcvt.s32.f32 %v2716
  %v2845 = vcvt.s32.f32 %v2717
  %v2846 = vcvt.s32.f32 %v2718
  %v2847 = vcvt.s32.f32 %v2719
  %v2848 = vcvt.s32.f32 %v2720
  %v2849 = vcvt.s32.f32 %v2721
  %v2850 = vcvt.s32.f32 %v2722
  %v2851 = vcvt.s32.f32 %v2723
  %v2852 = vcvt.s32.f32 %v2724
  %v2853 = vcvt.s32.f32 %v2725
  %v2854 = vcvt.s32.f32 %v2726
  %v2855 = vcvt.s32.f32 %v2727
  %v2856 = vcvt.s32.f32 %v2728
  %v2857 = vcvt.s32.f32 %v2729
  %v2858 = vcvt.s32.f32 %v2730
  %v2859 = vcvt.s32.f32 %v2731
  %v2860 = vcvt.s32.f32 %v2732
  %v2861 = vcvt.s32.f32 %v2733
  %v2862 = vcvt.s32.f32 %v2734
  %v2863 = vcvt.s32.f32 %v2735
  %v2864 = vcvt.s32.f32 %v2736
  %v2865 = vcvt.s32.f32 %v2737
  %v2866 = vcvt.s32.f32 %v2738
  %v2867 = vcvt.s32.f32 %v2739
  %v2868 = vcvt.s32.f32 %v2740
  %v2869 = vcvt.s32.f32 %v2741
  %v2870 = vcvt.s32.f32 %v2742
  %v2871 = vcvt.s32.f32 %v2743
  %v2872 = vcvt.s32.f32 %v2744
  %v2873 = vcvt.s32.f32 %v2745
  %v2874 = vcvt.s32.f32 %v2746
  %v2875 = vcvt.s32.f32 %v2747
  %v2876 = vcvt.s32.f32 %v2748
  %v2877 = vcvt.s32.f32 %v2749
  %v2878 = vcvt.s32.f32 %v2750
  %v2879 = vcvt.s32.f32 %v2751
  %v2880 = vcvt.s32.f32 %v2752
  %v2881 = vcvt.s32.f32 %v2753
  %v2882 = vcvt.s32.f32 %v2754
  %v2883 = vcvt.s32.f32 %v2755
  %v2884 = vcvt.s32.f32 %v2756
  %v2885 = vcvt.s32.f32 %v2757
  %v2886 = vcvt.s32.f32 %v2758
  %v2887 = vcvt.s32.f32 %v2759
  %v2888 = vcvt.s32.f32 %v2760
  %v2889 = vcvt.s32.f32 %v2761
  %v2890 = vcvt.s32.f32 %v2762
  %v2891 = vcvt.s32.f32 %v2763
  %v2892 = vcvt.s32.f32 %v2764
  %v2893 = vcvt.s32.f32 %v2765
  %v2894 = vcvt.s32.f32 %v2766
  %v2895 = vcvt.s32.f32 %v2767
  %v2896 = vcvt.s32.f32 %v2768
  %v2897 = vcvt.s32.f32 %v2769
  %v2898 = vcvt.s32.f32 %v2770
  %v2899 = vcvt.s32.f32 %v2771
  %v2900 = vcvt.s32.f32 %v2772
  %v2901 = vcvt.s32.f32 %v2773
  %v2902 = vcvt.s32.f32 %v2774
  %v2903 = vcvt.s32.f32 %v2775
  %v2904 = vcvt.s32.f32 %v2776
  %v2905 = vcvt.s32.f32 %v2777
  %v2906 = vcvt.s32.f32 %v2778
  %v2907 = vcvt.s32.f32 %v2779
  %v2908 = vcvt.s32.f32 %v2780
  %v2909 = vcvt.s32.f32 %v2781
  %v2910 = vcvt.s32.f32 %v2782
  %v2911 = vcvt.s32.f32 %v2783
  %v2912 = vcvt.s32.f32 %v2784
  %v2913 = vcvt.s32.f32 %v2785
  %v2914 = vcvt.s32.f32 %v2786
  %v2915 = vcvt.s32.f32 %v2787
  %v2916 = vcvt.s32.f32 %v2788
  %v2917 = vcvt.s32.f32 %v2789
  %v2918 = vcvt.s32.f32 %v2790
  %v2919 = vcvt.s32.f32 %v2791
  %v2920 = vadd.f32 %v2408, %v2792
  %v2921 = vadd.f32 %v2409, %v2793
  %v2922 = vadd.f32 %v2410, %v2794
  %v2923 = vadd.f32 %v2411, %v2795
  %v2924 = vadd.f32 %v2412, %v2796
  %v2925 = vadd.f32 %v2413, %v2797
  %v2926 = vadd.f32 %v2414, %v2798
  %v2927 = vadd.f32 %v2415, %v2799
  %v2928 = vadd.f32 %v2416, %v2800
  %v2929 = vadd.f32 %v2417, %v2801
  %v2930 = vadd.f32 %v2418, %v2802
  %v2931 = vadd.f32 %v2419, %v2803
  %v2932 = vadd.f32 %v2420, %v2804
  %v2933 = vadd.f32 %v2421, %v2805
  %v2934 = vadd.f32 %v2422, %v2806
  %v2935 = vadd.f32 %v2423, %v2807
  %v2936 = vadd.f32 %v2424, %v2808
  %v2937 = vadd.f32 %v2425, %v2809
  %v2938 = vadd.f32 %v2426, %v2810
  %v2939 = vadd.f32 %v2427, %v2811
  %v2940 = vadd.f32 %v2428, %v2812
  %v2941 = vadd.f32 %v2429, %v2813
  %v2942 = vadd.f32 %v2430, %v2814
  %v2943 = vadd.f32 %v2431, %v2815
  %v2944 = vadd.f32 %v2432, %v2816
  %v2945 = vadd.f32 %v2433, %v2817
  %v2946 = vadd.f32 %v2434, %v2818
  %v2947 = vadd.f32 %v2435, %v2819
  %v2948 = vadd.f32 %v2436, %v2820
  %v2949 = vadd.f32 %v2437, %v2821
  %v2950 = vadd.f32 %v2438, %v2822
  %v2951 = vadd.f32 %v2439, %v2823
  %v2952 = vadd.f32 %v2440, %v2824
  %v2953 = vadd.f32 %v2441, %v2825
  %v2954 = vadd.f32 %v2442, %v2826
  %v2955 = vadd.f32 %v2443, %v2827
  %v2956 = vadd.f32 %v2444, %v2828
  %v2957 = vadd.f32 %v2445, %v2829
  %v2958 = vadd.f32 %v2446, %v2830
  %v2959 = vadd.f32 %v2447, %v2831
  %v2960 = vadd.f32 %v2448, %v2832
  %v2961 = vadd.f32 %v2449, %v2833
  %v2962 = vadd.f32 %v2450, %v2834
  %v2963 = vadd.f32 %v2451, %v2835
  %v2964 = vadd.f32 %v2452, %v2836
  %v2965 = vadd.f32 %v2453, %v2837
  %v2966 = vadd.f32 %v2454, %v2838
  %v2967 = vadd.f32 %v2455, %v2839
  %v2968 = vadd.f32 %v2456, %v2840
  %v2969 = vadd.f32 %v2457, %v2841
  %v2970 = vadd.f32 %v2458, %v2842
  %v2971 = vadd.f32 %v2459, %v2843
  %v2972 = vadd.f32 %v2460, %v2844
  %v2973 = vadd.f32 %v2461, %v2845
  %v2974 = vadd.f32 %v2462, %v2846
  %v2975 = vadd.f32 %v2463, %v2847
  %v2976 = vadd.f32 %v2464, %v2848
  %v2977 = vadd.f32 %v2465, %v2849
  %v2978 = vadd.f32 %v2466, %v2850
  %v2979 = vadd.f32 %v2467, %v2851
  %v2980 = vadd.f32 %v2468, %v2852
  %v2981 = vadd.f32 %v2469, %v2853
  %v2982 = vadd.f32 %v2470, %v2854
  %v2983 = vadd.f32 %v2471, %v2855
  %v2984 = vadd.f32 %v2472, %v2856
  %v2985 = vadd.f32 %v2473, %v2857
  %v2986 = vadd.f32 %v2474, %v2858
  %v2987 = vadd.f32 %v2475, %v2859
  %v2988 = vadd.f32 %v2476, %v2860
  %v2989 = vadd.f32 %v2477, %v2861
  %v2990 = vadd.f32 %v2478, %v2862
  %v2991 = vadd.f32 %v2479, %v2863
  %v2992 = vadd.f32 %v2480, %v2864
  %v2993 = vadd.f32 %v2481, %v2865
  %v2994 = vadd.f32 %v2482, %v2866
  %v2995 = vadd.f32 %v2483, %v2867
  %v2996 = vadd.f32 %v2484, %v2868
  %v2997 = vadd.f32 %v2485, %v2869
  %v2998 = vadd.f32 %v2486, %v2870
  %v2999 = vadd.f32 %v2487, %v2871
  %v3000 = vadd.f32 %v2488, %v2872
  %v3001 = vadd.f32 %v2489, %v2873
  %v3002 = vadd.f32 %v2490, %v2874
  %v3003 = vadd.f32 %v2491, %v2875
  %v3004 = vadd.f32 %v2492, %v2876
  %v3005 = vadd.f32 %v2493, %v2877
  %v3006 = vadd.f32 %v2494, %v2878
  %v3007 = vadd.f32 %v2495, %v2879
  %v3008 = vadd.f32 %v2496, %v2880
  %v3009 = vadd.f32 %v2497, %v2881
  %v3010 = vadd.f32 %v2498, %v2882
  %v3011 = vadd.f32 %v2499, %v2883
  %v3012 = vadd.f32 %v2500, %v2884
  %v3013 = vadd.f32 %v2501, %v2885
  %v3014 = vadd.f32 %v2502, %v2886
  %v3015 = vadd.f32 %v2503, %v2887
  %v3016 = vadd.f32 %v2504, %v2888
  %v3017 = vadd.f32 %v2505, %v2889
  %v3018 = vadd.f32 %v2506, %v2890
  %v3019 = vadd.f32 %v2507, %v2891
  %v3020 = vadd.f32 %v2508, %v2892
  %v3021 = vadd.f32 %v2509, %v2893
  %v3022 = vadd.f32 %v2510, %v2894
  %v3023 = vadd.f32 %v2511, %v2895
  %v3024 = vadd.f32 %v2512, %v2896
  %v3025 = vadd.f32 %v2513, %v2897
  %v3026 = vadd.f32 %v2514, %v2898
  %v3027 = vadd.f32 %v2515, %v2899
  %v3028 = vadd.f32 %v2516, %v2900
  %v3029 = vadd.f32 %v2517, %v2901
  %v3030 = vadd.f32 %v2518, %v2902
  %v3031 = vadd.f32 %v2519, %v2903
  %v3032 = vadd.f32 %v2520, %v2904
  %v3033 = vadd.f32 %v2521, %v2905
  %v3034 = vadd.f32 %v2522, %v2906
  %v3035 = vadd.f32 %v2523, %v2907
  %v3036 = vadd.f32 %v2524, %v2908
  %v3037 = vadd.f32 %v2525, %v2909
  %v3038 = vadd.f32 %v2526, %v2910
  %v3039 = vadd.f32 %v2527, %v2911
  %v3040 = vadd.f32 %v2528, %v2912
  %v3041 = vadd.f32 %v2529, %v2913
  %v3042 = vadd.f32 %v2530, %v2914
  %v3043 = vadd.f32 %v2531, %v2915
  %v3044 = vadd.f32 %v2532, %v2916
  %v3045 = vadd.f32 %v2533, %v2917
  %v3046 = vadd.f32 %v2534, %v2918
  %v3047 = vadd.f32 %v2535, %v2919
  %vm3048 = vcmp.eq.s32.totalorder %v2120, %v1043
  %vm3049 = vcmp.eq.s32.totalorder %v2120, %v1047
  %vm3050 = vcmp.eq.s32.totalorder %v2120, %v1051
  %vm3051 = vcmp.eq.s32.totalorder %v2120, %v1055
  %vm3052 = vcmp.eq.s32.totalorder %v2121, %v1043
  %vm3053 = vcmp.eq.s32.totalorder %v2121, %v1047
  %vm3054 = vcmp.eq.s32.totalorder %v2121, %v1051
  %vm3055 = vcmp.eq.s32.totalorder %v2121, %v1055
  %vm3056 = vcmp.eq.s32.totalorder %v2122, %v1043
  %vm3057 = vcmp.eq.s32.totalorder %v2122, %v1047
  %vm3058 = vcmp.eq.s32.totalorder %v2122, %v1051
  %vm3059 = vcmp.eq.s32.totalorder %v2122, %v1055
  %vm3060 = vcmp.eq.s32.totalorder %v2123, %v1043
  %vm3061 = vcmp.eq.s32.totalorder %v2123, %v1047
  %vm3062 = vcmp.eq.s32.totalorder %v2123, %v1051
  %vm3063 = vcmp.eq.s32.totalorder %v2123, %v1055
  %vm3064 = vcmp.eq.s32.totalorder %v2124, %v1043
  %vm3065 = vcmp.eq.s32.totalorder %v2124, %v1047
  %vm3066 = vcmp.eq.s32.totalorder %v2124, %v1051
  %vm3067 = vcmp.eq.s32.totalorder %v2124, %v1055
  %vm3068 = vcmp.eq.s32.totalorder %v2125, %v1043
  %vm3069 = vcmp.eq.s32.totalorder %v2125, %v1047
  %vm3070 = vcmp.eq.s32.totalorder %v2125, %v1051
  %vm3071 = vcmp.eq.s32.totalorder %v2125, %v1055
  %vm3072 = vcmp.eq.s32.totalorder %v2126, %v1043
  %vm3073 = vcmp.eq.s32.totalorder %v2126, %v1047
  %vm3074 = vcmp.eq.s32.totalorder %v2126, %v1051
  %vm3075 = vcmp.eq.s32.totalorder %v2126, %v1055
  %vm3076 = vcmp.eq.s32.totalorder %v2127, %v1043
  %vm3077 = vcmp.eq.s32.totalorder %v2127, %v1047
  %vm3078 = vcmp.eq.s32.totalorder %v2127, %v1051
  %vm3079 = vcmp.eq.s32.totalorder %v2127, %v1055
  %vm3080 = vcmp.eq.s32.totalorder %v2128, %v1043
  %vm3081 = vcmp.eq.s32.totalorder %v2128, %v1047
  %vm3082 = vcmp.eq.s32.totalorder %v2128, %v1051
  %vm3083 = vcmp.eq.s32.totalorder %v2128, %v1055
  %vm3084 = vcmp.eq.s32.totalorder %v2129, %v1043
  %vm3085 = vcmp.eq.s32.totalorder %v2129, %v1047
  %vm3086 = vcmp.eq.s32.totalorder %v2129, %v1051
  %vm3087 = vcmp.eq.s32.totalorder %v2129, %v1055
  %vm3088 = vcmp.eq.s32.totalorder %v2130, %v1043
  %vm3089 = vcmp.eq.s32.totalorder %v2130, %v1047
  %vm3090 = vcmp.eq.s32.totalorder %v2130, %v1051
  %vm3091 = vcmp.eq.s32.totalorder %v2130, %v1055
  %vm3092 = vcmp.eq.s32.totalorder %v2131, %v1043
  %vm3093 = vcmp.eq.s32.totalorder %v2131, %v1047
  %vm3094 = vcmp.eq.s32.totalorder %v2131, %v1051
  %vm3095 = vcmp.eq.s32.totalorder %v2131, %v1055
  %vm3096 = vcmp.eq.s32.totalorder %v2132, %v1043
  %vm3097 = vcmp.eq.s32.totalorder %v2132, %v1047
  %vm3098 = vcmp.eq.s32.totalorder %v2132, %v1051
  %vm3099 = vcmp.eq.s32.totalorder %v2132, %v1055
  %vm3100 = vcmp.eq.s32.totalorder %v2133, %v1043
  %vm3101 = vcmp.eq.s32.totalorder %v2133, %v1047
  %vm3102 = vcmp.eq.s32.totalorder %v2133, %v1051
  %vm3103 = vcmp.eq.s32.totalorder %v2133, %v1055
  %vm3104 = vcmp.eq.s32.totalorder %v2134, %v1043
  %vm3105 = vcmp.eq.s32.totalorder %v2134, %v1047
  %vm3106 = vcmp.eq.s32.totalorder %v2134, %v1051
  %vm3107 = vcmp.eq.s32.totalorder %v2134, %v1055
  %vm3108 = vcmp.eq.s32.totalorder %v2135, %v1043
  %vm3109 = vcmp.eq.s32.totalorder %v2135, %v1047
  %vm3110 = vcmp.eq.s32.totalorder %v2135, %v1051
  %vm3111 = vcmp.eq.s32.totalorder %v2135, %v1055
  %vm3112 = vcmp.eq.s32.totalorder %v2136, %v1043
  %vm3113 = vcmp.eq.s32.totalorder %v2136, %v1047
  %vm3114 = vcmp.eq.s32.totalorder %v2136, %v1051
  %vm3115 = vcmp.eq.s32.totalorder %v2136, %v1055
  %vm3116 = vcmp.eq.s32.totalorder %v2137, %v1043
  %vm3117 = vcmp.eq.s32.totalorder %v2137, %v1047
  %vm3118 = vcmp.eq.s32.totalorder %v2137, %v1051
  %vm3119 = vcmp.eq.s32.totalorder %v2137, %v1055
  %vm3120 = vcmp.eq.s32.totalorder %v2138, %v1043
  %vm3121 = vcmp.eq.s32.totalorder %v2138, %v1047
  %vm3122 = vcmp.eq.s32.totalorder %v2138, %v1051
  %vm3123 = vcmp.eq.s32.totalorder %v2138, %v1055
  %vm3124 = vcmp.eq.s32.totalorder %v2139, %v1043
  %vm3125 = vcmp.eq.s32.totalorder %v2139, %v1047
  %vm3126 = vcmp.eq.s32.totalorder %v2139, %v1051
  %vm3127 = vcmp.eq.s32.totalorder %v2139, %v1055
  %vm3128 = vcmp.eq.s32.totalorder %v2140, %v1043
  %vm3129 = vcmp.eq.s32.totalorder %v2140, %v1047
  %vm3130 = vcmp.eq.s32.totalorder %v2140, %v1051
  %vm3131 = vcmp.eq.s32.totalorder %v2140, %v1055
  %vm3132 = vcmp.eq.s32.totalorder %v2141, %v1043
  %vm3133 = vcmp.eq.s32.totalorder %v2141, %v1047
  %vm3134 = vcmp.eq.s32.totalorder %v2141, %v1051
  %vm3135 = vcmp.eq.s32.totalorder %v2141, %v1055
  %vm3136 = vcmp.eq.s32.totalorder %v2142, %v1043
  %vm3137 = vcmp.eq.s32.totalorder %v2142, %v1047
  %vm3138 = vcmp.eq.s32.totalorder %v2142, %v1051
  %vm3139 = vcmp.eq.s32.totalorder %v2142, %v1055
  %vm3140 = vcmp.eq.s32.totalorder %v2143, %v1043
  %vm3141 = vcmp.eq.s32.totalorder %v2143, %v1047
  %vm3142 = vcmp.eq.s32.totalorder %v2143, %v1051
  %vm3143 = vcmp.eq.s32.totalorder %v2143, %v1055
  %vm3144 = vcmp.eq.s32.totalorder %v2144, %v1043
  %vm3145 = vcmp.eq.s32.totalorder %v2144, %v1047
  %vm3146 = vcmp.eq.s32.totalorder %v2144, %v1051
  %vm3147 = vcmp.eq.s32.totalorder %v2144, %v1055
  %vm3148 = vcmp.eq.s32.totalorder %v2145, %v1043
  %vm3149 = vcmp.eq.s32.totalorder %v2145, %v1047
  %vm3150 = vcmp.eq.s32.totalorder %v2145, %v1051
  %vm3151 = vcmp.eq.s32.totalorder %v2145, %v1055
  %vm3152 = vcmp.eq.s32.totalorder %v2146, %v1043
  %vm3153 = vcmp.eq.s32.totalorder %v2146, %v1047
  %vm3154 = vcmp.eq.s32.totalorder %v2146, %v1051
  %vm3155 = vcmp.eq.s32.totalorder %v2146, %v1055
  %vm3156 = vcmp.eq.s32.totalorder %v2147, %v1043
  %vm3157 = vcmp.eq.s32.totalorder %v2147, %v1047
  %vm3158 = vcmp.eq.s32.totalorder %v2147, %v1051
  %vm3159 = vcmp.eq.s32.totalorder %v2147, %v1055
  %vm3160 = vcmp.eq.s32.totalorder %v2148, %v1043
  %vm3161 = vcmp.eq.s32.totalorder %v2148, %v1047
  %vm3162 = vcmp.eq.s32.totalorder %v2148, %v1051
  %vm3163 = vcmp.eq.s32.totalorder %v2148, %v1055
  %vm3164 = vcmp.eq.s32.totalorder %v2149, %v1043
  %vm3165 = vcmp.eq.s32.totalorder %v2149, %v1047
  %vm3166 = vcmp.eq.s32.totalorder %v2149, %v1051
  %vm3167 = vcmp.eq.s32.totalorder %v2149, %v1055
  %vm3168 = vcmp.eq.s32.totalorder %v2150, %v1043
  %vm3169 = vcmp.eq.s32.totalorder %v2150, %v1047
  %vm3170 = vcmp.eq.s32.totalorder %v2150, %v1051
  %vm3171 = vcmp.eq.s32.totalorder %v2150, %v1055
  %vm3172 = vcmp.eq.s32.totalorder %v2151, %v1043
  %vm3173 = vcmp.eq.s32.totalorder %v2151, %v1047
  %vm3174 = vcmp.eq.s32.totalorder %v2151, %v1051
  %vm3175 = vcmp.eq.s32.totalorder %v2151, %v1055
  %v3176 = vsel %vm3048, 1, 0
  %v3177 = vsel %vm3049, 1, 0
  %v3178 = vsel %vm3050, 1, 0
  %v3179 = vsel %vm3051, 1, 0
  %v3180 = vsel %vm3052, 1, 0
  %v3181 = vsel %vm3053, 1, 0
  %v3182 = vsel %vm3054, 1, 0
  %v3183 = vsel %vm3055, 1, 0
  %v3184 = vsel %vm3056, 1, 0
  %v3185 = vsel %vm3057, 1, 0
  %v3186 = vsel %vm3058, 1, 0
  %v3187 = vsel %vm3059, 1, 0
  %v3188 = vsel %vm3060, 1, 0
  %v3189 = vsel %vm3061, 1, 0
  %v3190 = vsel %vm3062, 1, 0
  %v3191 = vsel %vm3063, 1, 0
  %v3192 = vsel %vm3064, 1, 0
  %v3193 = vsel %vm3065, 1, 0
  %v3194 = vsel %vm3066, 1, 0
  %v3195 = vsel %vm3067, 1, 0
  %v3196 = vsel %vm3068, 1, 0
  %v3197 = vsel %vm3069, 1, 0
  %v3198 = vsel %vm3070, 1, 0
  %v3199 = vsel %vm3071, 1, 0
  %v3200 = vsel %vm3072, 1, 0
  %v3201 = vsel %vm3073, 1, 0
  %v3202 = vsel %vm3074, 1, 0
  %v3203 = vsel %vm3075, 1, 0
  %v3204 = vsel %vm3076, 1, 0
  %v3205 = vsel %vm3077, 1, 0
  %v3206 = vsel %vm3078, 1, 0
  %v3207 = vsel %vm3079, 1, 0
  %v3208 = vsel %vm3080, 1, 0
  %v3209 = vsel %vm3081, 1, 0
  %v3210 = vsel %vm3082, 1, 0
  %v3211 = vsel %vm3083, 1, 0
  %v3212 = vsel %vm3084, 1, 0
  %v3213 = vsel %vm3085, 1, 0
  %v3214 = vsel %vm3086, 1, 0
  %v3215 = vsel %vm3087, 1, 0
  %v3216 = vsel %vm3088, 1, 0
  %v3217 = vsel %vm3089, 1, 0
  %v3218 = vsel %vm3090, 1, 0
  %v3219 = vsel %vm3091, 1, 0
  %v3220 = vsel %vm3092, 1, 0
  %v3221 = vsel %vm3093, 1, 0
  %v3222 = vsel %vm3094, 1, 0
  %v3223 = vsel %vm3095, 1, 0
  %v3224 = vsel %vm3096, 1, 0
  %v3225 = vsel %vm3097, 1, 0
  %v3226 = vsel %vm3098, 1, 0
  %v3227 = vsel %vm3099, 1, 0
  %v3228 = vsel %vm3100, 1, 0
  %v3229 = vsel %vm3101, 1, 0
  %v3230 = vsel %vm3102, 1, 0
  %v3231 = vsel %vm3103, 1, 0
  %v3232 = vsel %vm3104, 1, 0
  %v3233 = vsel %vm3105, 1, 0
  %v3234 = vsel %vm3106, 1, 0
  %v3235 = vsel %vm3107, 1, 0
  %v3236 = vsel %vm3108, 1, 0
  %v3237 = vsel %vm3109, 1, 0
  %v3238 = vsel %vm3110, 1, 0
  %v3239 = vsel %vm3111, 1, 0
  %v3240 = vsel %vm3112, 1, 0
  %v3241 = vsel %vm3113, 1, 0
  %v3242 = vsel %vm3114, 1, 0
  %v3243 = vsel %vm3115, 1, 0
  %v3244 = vsel %vm3116, 1, 0
  %v3245 = vsel %vm3117, 1, 0
  %v3246 = vsel %vm3118, 1, 0
  %v3247 = vsel %vm3119, 1, 0
  %v3248 = vsel %vm3120, 1, 0
  %v3249 = vsel %vm3121, 1, 0
  %v3250 = vsel %vm3122, 1, 0
  %v3251 = vsel %vm3123, 1, 0
  %v3252 = vsel %vm3124, 1, 0
  %v3253 = vsel %vm3125, 1, 0
  %v3254 = vsel %vm3126, 1, 0
  %v3255 = vsel %vm3127, 1, 0
  %v3256 = vsel %vm3128, 1, 0
  %v3257 = vsel %vm3129, 1, 0
  %v3258 = vsel %vm3130, 1, 0
  %v3259 = vsel %vm3131, 1, 0
  %v3260 = vsel %vm3132, 1, 0
  %v3261 = vsel %vm3133, 1, 0
  %v3262 = vsel %vm3134, 1, 0
  %v3263 = vsel %vm3135, 1, 0
  %v3264 = vsel %vm3136, 1, 0
  %v3265 = vsel %vm3137, 1, 0
  %v3266 = vsel %vm3138, 1, 0
  %v3267 = vsel %vm3139, 1, 0
  %v3268 = vsel %vm3140, 1, 0
  %v3269 = vsel %vm3141, 1, 0
  %v3270 = vsel %vm3142, 1, 0
  %v3271 = vsel %vm3143, 1, 0
  %v3272 = vsel %vm3144, 1, 0
  %v3273 = vsel %vm3145, 1, 0
  %v3274 = vsel %vm3146, 1, 0
  %v3275 = vsel %vm3147, 1, 0
  %v3276 = vsel %vm3148, 1, 0
  %v3277 = vsel %vm3149, 1, 0
  %v3278 = vsel %vm3150, 1, 0
  %v3279 = vsel %vm3151, 1, 0
  %v3280 = vsel %vm3152, 1, 0
  %v3281 = vsel %vm3153, 1, 0
  %v3282 = vsel %vm3154, 1, 0
  %v3283 = vsel %vm3155, 1, 0
  %v3284 = vsel %vm3156, 1, 0
  %v3285 = vsel %vm3157, 1, 0
  %v3286 = vsel %vm3158, 1, 0
  %v3287 = vsel %vm3159, 1, 0
  %v3288 = vsel %vm3160, 1, 0
  %v3289 = vsel %vm3161, 1, 0
  %v3290 = vsel %vm3162, 1, 0
  %v3291 = vsel %vm3163, 1, 0
  %v3292 = vsel %vm3164, 1, 0
  %v3293 = vsel %vm3165, 1, 0
  %v3294 = vsel %vm3166, 1, 0
  %v3295 = vsel %vm3167, 1, 0
  %v3296 = vsel %vm3168, 1, 0
  %v3297 = vsel %vm3169, 1, 0
  %v3298 = vsel %vm3170, 1, 0
  %v3299 = vsel %vm3171, 1, 0
  %v3300 = vsel %vm3172, 1, 0
  %v3301 = vsel %vm3173, 1, 0
  %v3302 = vsel %vm3174, 1, 0
  %v3303 = vsel %vm3175, 1, 0
  %v3304 = vcvt.s32.f32 %v3176
  %v3305 = vcvt.s32.f32 %v3177
  %v3306 = vcvt.s32.f32 %v3178
  %v3307 = vcvt.s32.f32 %v3179
  %v3308 = vcvt.s32.f32 %v3180
  %v3309 = vcvt.s32.f32 %v3181
  %v3310 = vcvt.s32.f32 %v3182
  %v3311 = vcvt.s32.f32 %v3183
  %v3312 = vcvt.s32.f32 %v3184
  %v3313 = vcvt.s32.f32 %v3185
  %v3314 = vcvt.s32.f32 %v3186
  %v3315 = vcvt.s32.f32 %v3187
  %v3316 = vcvt.s32.f32 %v3188
  %v3317 = vcvt.s32.f32 %v3189
  %v3318 = vcvt.s32.f32 %v3190
  %v3319 = vcvt.s32.f32 %v3191
  %v3320 = vcvt.s32.f32 %v3192
  %v3321 = vcvt.s32.f32 %v3193
  %v3322 = vcvt.s32.f32 %v3194
  %v3323 = vcvt.s32.f32 %v3195
  %v3324 = vcvt.s32.f32 %v3196
  %v3325 = vcvt.s32.f32 %v3197
  %v3326 = vcvt.s32.f32 %v3198
  %v3327 = vcvt.s32.f32 %v3199
  %v3328 = vcvt.s32.f32 %v3200
  %v3329 = vcvt.s32.f32 %v3201
  %v3330 = vcvt.s32.f32 %v3202
  %v3331 = vcvt.s32.f32 %v3203
  %v3332 = vcvt.s32.f32 %v3204
  %v3333 = vcvt.s32.f32 %v3205
  %v3334 = vcvt.s32.f32 %v3206
  %v3335 = vcvt.s32.f32 %v3207
  %v3336 = vcvt.s32.f32 %v3208
  %v3337 = vcvt.s32.f32 %v3209
  %v3338 = vcvt.s32.f32 %v3210
  %v3339 = vcvt.s32.f32 %v3211
  %v3340 = vcvt.s32.f32 %v3212
  %v3341 = vcvt.s32.f32 %v3213
  %v3342 = vcvt.s32.f32 %v3214
  %v3343 = vcvt.s32.f32 %v3215
  %v3344 = vcvt.s32.f32 %v3216
  %v3345 = vcvt.s32.f32 %v3217
  %v3346 = vcvt.s32.f32 %v3218
  %v3347 = vcvt.s32.f32 %v3219
  %v3348 = vcvt.s32.f32 %v3220
  %v3349 = vcvt.s32.f32 %v3221
  %v3350 = vcvt.s32.f32 %v3222
  %v3351 = vcvt.s32.f32 %v3223
  %v3352 = vcvt.s32.f32 %v3224
  %v3353 = vcvt.s32.f32 %v3225
  %v3354 = vcvt.s32.f32 %v3226
  %v3355 = vcvt.s32.f32 %v3227
  %v3356 = vcvt.s32.f32 %v3228
  %v3357 = vcvt.s32.f32 %v3229
  %v3358 = vcvt.s32.f32 %v3230
  %v3359 = vcvt.s32.f32 %v3231
  %v3360 = vcvt.s32.f32 %v3232
  %v3361 = vcvt.s32.f32 %v3233
  %v3362 = vcvt.s32.f32 %v3234
  %v3363 = vcvt.s32.f32 %v3235
  %v3364 = vcvt.s32.f32 %v3236
  %v3365 = vcvt.s32.f32 %v3237
  %v3366 = vcvt.s32.f32 %v3238
  %v3367 = vcvt.s32.f32 %v3239
  %v3368 = vcvt.s32.f32 %v3240
  %v3369 = vcvt.s32.f32 %v3241
  %v3370 = vcvt.s32.f32 %v3242
  %v3371 = vcvt.s32.f32 %v3243
  %v3372 = vcvt.s32.f32 %v3244
  %v3373 = vcvt.s32.f32 %v3245
  %v3374 = vcvt.s32.f32 %v3246
  %v3375 = vcvt.s32.f32 %v3247
  %v3376 = vcvt.s32.f32 %v3248
  %v3377 = vcvt.s32.f32 %v3249
  %v3378 = vcvt.s32.f32 %v3250
  %v3379 = vcvt.s32.f32 %v3251
  %v3380 = vcvt.s32.f32 %v3252
  %v3381 = vcvt.s32.f32 %v3253
  %v3382 = vcvt.s32.f32 %v3254
  %v3383 = vcvt.s32.f32 %v3255
  %v3384 = vcvt.s32.f32 %v3256
  %v3385 = vcvt.s32.f32 %v3257
  %v3386 = vcvt.s32.f32 %v3258
  %v3387 = vcvt.s32.f32 %v3259
  %v3388 = vcvt.s32.f32 %v3260
  %v3389 = vcvt.s32.f32 %v3261
  %v3390 = vcvt.s32.f32 %v3262
  %v3391 = vcvt.s32.f32 %v3263
  %v3392 = vcvt.s32.f32 %v3264
  %v3393 = vcvt.s32.f32 %v3265
  %v3394 = vcvt.s32.f32 %v3266
  %v3395 = vcvt.s32.f32 %v3267
  %v3396 = vcvt.s32.f32 %v3268
  %v3397 = vcvt.s32.f32 %v3269
  %v3398 = vcvt.s32.f32 %v3270
  %v3399 = vcvt.s32.f32 %v3271
  %v3400 = vcvt.s32.f32 %v3272
  %v3401 = vcvt.s32.f32 %v3273
  %v3402 = vcvt.s32.f32 %v3274
  %v3403 = vcvt.s32.f32 %v3275
  %v3404 = vcvt.s32.f32 %v3276
  %v3405 = vcvt.s32.f32 %v3277
  %v3406 = vcvt.s32.f32 %v3278
  %v3407 = vcvt.s32.f32 %v3279
  %v3408 = vcvt.s32.f32 %v3280
  %v3409 = vcvt.s32.f32 %v3281
  %v3410 = vcvt.s32.f32 %v3282
  %v3411 = vcvt.s32.f32 %v3283
  %v3412 = vcvt.s32.f32 %v3284
  %v3413 = vcvt.s32.f32 %v3285
  %v3414 = vcvt.s32.f32 %v3286
  %v3415 = vcvt.s32.f32 %v3287
  %v3416 = vcvt.s32.f32 %v3288
  %v3417 = vcvt.s32.f32 %v3289
  %v3418 = vcvt.s32.f32 %v3290
  %v3419 = vcvt.s32.f32 %v3291
  %v3420 = vcvt.s32.f32 %v3292
  %v3421 = vcvt.s32.f32 %v3293
  %v3422 = vcvt.s32.f32 %v3294
  %v3423 = vcvt.s32.f32 %v3295
  %v3424 = vcvt.s32.f32 %v3296
  %v3425 = vcvt.s32.f32 %v3297
  %v3426 = vcvt.s32.f32 %v3298
  %v3427 = vcvt.s32.f32 %v3299
  %v3428 = vcvt.s32.f32 %v3300
  %v3429 = vcvt.s32.f32 %v3301
  %v3430 = vcvt.s32.f32 %v3302
  %v3431 = vcvt.s32.f32 %v3303
  %v3432 = vadd.f32 %v2920, %v3304
  %v3433 = vadd.f32 %v2921, %v3305
  %v3434 = vadd.f32 %v2922, %v3306
  %v3435 = vadd.f32 %v2923, %v3307
  %v3436 = vadd.f32 %v2924, %v3308
  %v3437 = vadd.f32 %v2925, %v3309
  %v3438 = vadd.f32 %v2926, %v3310
  %v3439 = vadd.f32 %v2927, %v3311
  %v3440 = vadd.f32 %v2928, %v3312
  %v3441 = vadd.f32 %v2929, %v3313
  %v3442 = vadd.f32 %v2930, %v3314
  %v3443 = vadd.f32 %v2931, %v3315
  %v3444 = vadd.f32 %v2932, %v3316
  %v3445 = vadd.f32 %v2933, %v3317
  %v3446 = vadd.f32 %v2934, %v3318
  %v3447 = vadd.f32 %v2935, %v3319
  %v3448 = vadd.f32 %v2936, %v3320
  %v3449 = vadd.f32 %v2937, %v3321
  %v3450 = vadd.f32 %v2938, %v3322
  %v3451 = vadd.f32 %v2939, %v3323
  %v3452 = vadd.f32 %v2940, %v3324
  %v3453 = vadd.f32 %v2941, %v3325
  %v3454 = vadd.f32 %v2942, %v3326
  %v3455 = vadd.f32 %v2943, %v3327
  %v3456 = vadd.f32 %v2944, %v3328
  %v3457 = vadd.f32 %v2945, %v3329
  %v3458 = vadd.f32 %v2946, %v3330
  %v3459 = vadd.f32 %v2947, %v3331
  %v3460 = vadd.f32 %v2948, %v3332
  %v3461 = vadd.f32 %v2949, %v3333
  %v3462 = vadd.f32 %v2950, %v3334
  %v3463 = vadd.f32 %v2951, %v3335
  %v3464 = vadd.f32 %v2952, %v3336
  %v3465 = vadd.f32 %v2953, %v3337
  %v3466 = vadd.f32 %v2954, %v3338
  %v3467 = vadd.f32 %v2955, %v3339
  %v3468 = vadd.f32 %v2956, %v3340
  %v3469 = vadd.f32 %v2957, %v3341
  %v3470 = vadd.f32 %v2958, %v3342
  %v3471 = vadd.f32 %v2959, %v3343
  %v3472 = vadd.f32 %v2960, %v3344
  %v3473 = vadd.f32 %v2961, %v3345
  %v3474 = vadd.f32 %v2962, %v3346
  %v3475 = vadd.f32 %v2963, %v3347
  %v3476 = vadd.f32 %v2964, %v3348
  %v3477 = vadd.f32 %v2965, %v3349
  %v3478 = vadd.f32 %v2966, %v3350
  %v3479 = vadd.f32 %v2967, %v3351
  %v3480 = vadd.f32 %v2968, %v3352
  %v3481 = vadd.f32 %v2969, %v3353
  %v3482 = vadd.f32 %v2970, %v3354
  %v3483 = vadd.f32 %v2971, %v3355
  %v3484 = vadd.f32 %v2972, %v3356
  %v3485 = vadd.f32 %v2973, %v3357
  %v3486 = vadd.f32 %v2974, %v3358
  %v3487 = vadd.f32 %v2975, %v3359
  %v3488 = vadd.f32 %v2976, %v3360
  %v3489 = vadd.f32 %v2977, %v3361
  %v3490 = vadd.f32 %v2978, %v3362
  %v3491 = vadd.f32 %v2979, %v3363
  %v3492 = vadd.f32 %v2980, %v3364
  %v3493 = vadd.f32 %v2981, %v3365
  %v3494 = vadd.f32 %v2982, %v3366
  %v3495 = vadd.f32 %v2983, %v3367
  %v3496 = vadd.f32 %v2984, %v3368
  %v3497 = vadd.f32 %v2985, %v3369
  %v3498 = vadd.f32 %v2986, %v3370
  %v3499 = vadd.f32 %v2987, %v3371
  %v3500 = vadd.f32 %v2988, %v3372
  %v3501 = vadd.f32 %v2989, %v3373
  %v3502 = vadd.f32 %v2990, %v3374
  %v3503 = vadd.f32 %v2991, %v3375
  %v3504 = vadd.f32 %v2992, %v3376
  %v3505 = vadd.f32 %v2993, %v3377
  %v3506 = vadd.f32 %v2994, %v3378
  %v3507 = vadd.f32 %v2995, %v3379
  %v3508 = vadd.f32 %v2996, %v3380
  %v3509 = vadd.f32 %v2997, %v3381
  %v3510 = vadd.f32 %v2998, %v3382
  %v3511 = vadd.f32 %v2999, %v3383
  %v3512 = vadd.f32 %v3000, %v3384
  %v3513 = vadd.f32 %v3001, %v3385
  %v3514 = vadd.f32 %v3002, %v3386
  %v3515 = vadd.f32 %v3003, %v3387
  %v3516 = vadd.f32 %v3004, %v3388
  %v3517 = vadd.f32 %v3005, %v3389
  %v3518 = vadd.f32 %v3006, %v3390
  %v3519 = vadd.f32 %v3007, %v3391
  %v3520 = vadd.f32 %v3008, %v3392
  %v3521 = vadd.f32 %v3009, %v3393
  %v3522 = vadd.f32 %v3010, %v3394
  %v3523 = vadd.f32 %v3011, %v3395
  %v3524 = vadd.f32 %v3012, %v3396
  %v3525 = vadd.f32 %v3013, %v3397
  %v3526 = vadd.f32 %v3014, %v3398
  %v3527 = vadd.f32 %v3015, %v3399
  %v3528 = vadd.f32 %v3016, %v3400
  %v3529 = vadd.f32 %v3017, %v3401
  %v3530 = vadd.f32 %v3018, %v3402
  %v3531 = vadd.f32 %v3019, %v3403
  %v3532 = vadd.f32 %v3020, %v3404
  %v3533 = vadd.f32 %v3021, %v3405
  %v3534 = vadd.f32 %v3022, %v3406
  %v3535 = vadd.f32 %v3023, %v3407
  %v3536 = vadd.f32 %v3024, %v3408
  %v3537 = vadd.f32 %v3025, %v3409
  %v3538 = vadd.f32 %v3026, %v3410
  %v3539 = vadd.f32 %v3027, %v3411
  %v3540 = vadd.f32 %v3028, %v3412
  %v3541 = vadd.f32 %v3029, %v3413
  %v3542 = vadd.f32 %v3030, %v3414
  %v3543 = vadd.f32 %v3031, %v3415
  %v3544 = vadd.f32 %v3032, %v3416
  %v3545 = vadd.f32 %v3033, %v3417
  %v3546 = vadd.f32 %v3034, %v3418
  %v3547 = vadd.f32 %v3035, %v3419
  %v3548 = vadd.f32 %v3036, %v3420
  %v3549 = vadd.f32 %v3037, %v3421
  %v3550 = vadd.f32 %v3038, %v3422
  %v3551 = vadd.f32 %v3039, %v3423
  %v3552 = vadd.f32 %v3040, %v3424
  %v3553 = vadd.f32 %v3041, %v3425
  %v3554 = vadd.f32 %v3042, %v3426
  %v3555 = vadd.f32 %v3043, %v3427
  %v3556 = vadd.f32 %v3044, %v3428
  %v3557 = vadd.f32 %v3045, %v3429
  %v3558 = vadd.f32 %v3046, %v3430
  %v3559 = vadd.f32 %v3047, %v3431
  %vm3560 = vcmp.eq.s32.totalorder %v2120, %v1587
  %vm3561 = vcmp.eq.s32.totalorder %v2120, %v1591
  %vm3562 = vcmp.eq.s32.totalorder %v2120, %v1595
  %vm3563 = vcmp.eq.s32.totalorder %v2120, %v1599
  %vm3564 = vcmp.eq.s32.totalorder %v2121, %v1587
  %vm3565 = vcmp.eq.s32.totalorder %v2121, %v1591
  %vm3566 = vcmp.eq.s32.totalorder %v2121, %v1595
  %vm3567 = vcmp.eq.s32.totalorder %v2121, %v1599
  %vm3568 = vcmp.eq.s32.totalorder %v2122, %v1587
  %vm3569 = vcmp.eq.s32.totalorder %v2122, %v1591
  %vm3570 = vcmp.eq.s32.totalorder %v2122, %v1595
  %vm3571 = vcmp.eq.s32.totalorder %v2122, %v1599
  %vm3572 = vcmp.eq.s32.totalorder %v2123, %v1587
  %vm3573 = vcmp.eq.s32.totalorder %v2123, %v1591
  %vm3574 = vcmp.eq.s32.totalorder %v2123, %v1595
  %vm3575 = vcmp.eq.s32.totalorder %v2123, %v1599
  %vm3576 = vcmp.eq.s32.totalorder %v2124, %v1587
  %vm3577 = vcmp.eq.s32.totalorder %v2124, %v1591
  %vm3578 = vcmp.eq.s32.totalorder %v2124, %v1595
  %vm3579 = vcmp.eq.s32.totalorder %v2124, %v1599
  %vm3580 = vcmp.eq.s32.totalorder %v2125, %v1587
  %vm3581 = vcmp.eq.s32.totalorder %v2125, %v1591
  %vm3582 = vcmp.eq.s32.totalorder %v2125, %v1595
  %vm3583 = vcmp.eq.s32.totalorder %v2125, %v1599
  %vm3584 = vcmp.eq.s32.totalorder %v2126, %v1587
  %vm3585 = vcmp.eq.s32.totalorder %v2126, %v1591
  %vm3586 = vcmp.eq.s32.totalorder %v2126, %v1595
  %vm3587 = vcmp.eq.s32.totalorder %v2126, %v1599
  %vm3588 = vcmp.eq.s32.totalorder %v2127, %v1587
  %vm3589 = vcmp.eq.s32.totalorder %v2127, %v1591
  %vm3590 = vcmp.eq.s32.totalorder %v2127, %v1595
  %vm3591 = vcmp.eq.s32.totalorder %v2127, %v1599
  %vm3592 = vcmp.eq.s32.totalorder %v2128, %v1587
  %vm3593 = vcmp.eq.s32.totalorder %v2128, %v1591
  %vm3594 = vcmp.eq.s32.totalorder %v2128, %v1595
  %vm3595 = vcmp.eq.s32.totalorder %v2128, %v1599
  %vm3596 = vcmp.eq.s32.totalorder %v2129, %v1587
  %vm3597 = vcmp.eq.s32.totalorder %v2129, %v1591
  %vm3598 = vcmp.eq.s32.totalorder %v2129, %v1595
  %vm3599 = vcmp.eq.s32.totalorder %v2129, %v1599
  %vm3600 = vcmp.eq.s32.totalorder %v2130, %v1587
  %vm3601 = vcmp.eq.s32.totalorder %v2130, %v1591
  %vm3602 = vcmp.eq.s32.totalorder %v2130, %v1595
  %vm3603 = vcmp.eq.s32.totalorder %v2130, %v1599
  %vm3604 = vcmp.eq.s32.totalorder %v2131, %v1587
  %vm3605 = vcmp.eq.s32.totalorder %v2131, %v1591
  %vm3606 = vcmp.eq.s32.totalorder %v2131, %v1595
  %vm3607 = vcmp.eq.s32.totalorder %v2131, %v1599
  %vm3608 = vcmp.eq.s32.totalorder %v2132, %v1587
  %vm3609 = vcmp.eq.s32.totalorder %v2132, %v1591
  %vm3610 = vcmp.eq.s32.totalorder %v2132, %v1595
  %vm3611 = vcmp.eq.s32.totalorder %v2132, %v1599
  %vm3612 = vcmp.eq.s32.totalorder %v2133, %v1587
  %vm3613 = vcmp.eq.s32.totalorder %v2133, %v1591
  %vm3614 = vcmp.eq.s32.totalorder %v2133, %v1595
  %vm3615 = vcmp.eq.s32.totalorder %v2133, %v1599
  %vm3616 = vcmp.eq.s32.totalorder %v2134, %v1587
  %vm3617 = vcmp.eq.s32.totalorder %v2134, %v1591
  %vm3618 = vcmp.eq.s32.totalorder %v2134, %v1595
  %vm3619 = vcmp.eq.s32.totalorder %v2134, %v1599
  %vm3620 = vcmp.eq.s32.totalorder %v2135, %v1587
  %vm3621 = vcmp.eq.s32.totalorder %v2135, %v1591
  %vm3622 = vcmp.eq.s32.totalorder %v2135, %v1595
  %vm3623 = vcmp.eq.s32.totalorder %v2135, %v1599
  %vm3624 = vcmp.eq.s32.totalorder %v2136, %v1587
  %vm3625 = vcmp.eq.s32.totalorder %v2136, %v1591
  %vm3626 = vcmp.eq.s32.totalorder %v2136, %v1595
  %vm3627 = vcmp.eq.s32.totalorder %v2136, %v1599
  %vm3628 = vcmp.eq.s32.totalorder %v2137, %v1587
  %vm3629 = vcmp.eq.s32.totalorder %v2137, %v1591
  %vm3630 = vcmp.eq.s32.totalorder %v2137, %v1595
  %vm3631 = vcmp.eq.s32.totalorder %v2137, %v1599
  %vm3632 = vcmp.eq.s32.totalorder %v2138, %v1587
  %vm3633 = vcmp.eq.s32.totalorder %v2138, %v1591
  %vm3634 = vcmp.eq.s32.totalorder %v2138, %v1595
  %vm3635 = vcmp.eq.s32.totalorder %v2138, %v1599
  %vm3636 = vcmp.eq.s32.totalorder %v2139, %v1587
  %vm3637 = vcmp.eq.s32.totalorder %v2139, %v1591
  %vm3638 = vcmp.eq.s32.totalorder %v2139, %v1595
  %vm3639 = vcmp.eq.s32.totalorder %v2139, %v1599
  %vm3640 = vcmp.eq.s32.totalorder %v2140, %v1587
  %vm3641 = vcmp.eq.s32.totalorder %v2140, %v1591
  %vm3642 = vcmp.eq.s32.totalorder %v2140, %v1595
  %vm3643 = vcmp.eq.s32.totalorder %v2140, %v1599
  %vm3644 = vcmp.eq.s32.totalorder %v2141, %v1587
  %vm3645 = vcmp.eq.s32.totalorder %v2141, %v1591
  %vm3646 = vcmp.eq.s32.totalorder %v2141, %v1595
  %vm3647 = vcmp.eq.s32.totalorder %v2141, %v1599
  %vm3648 = vcmp.eq.s32.totalorder %v2142, %v1587
  %vm3649 = vcmp.eq.s32.totalorder %v2142, %v1591
  %vm3650 = vcmp.eq.s32.totalorder %v2142, %v1595
  %vm3651 = vcmp.eq.s32.totalorder %v2142, %v1599
  %vm3652 = vcmp.eq.s32.totalorder %v2143, %v1587
  %vm3653 = vcmp.eq.s32.totalorder %v2143, %v1591
  %vm3654 = vcmp.eq.s32.totalorder %v2143, %v1595
  %vm3655 = vcmp.eq.s32.totalorder %v2143, %v1599
  %vm3656 = vcmp.eq.s32.totalorder %v2144, %v1587
  %vm3657 = vcmp.eq.s32.totalorder %v2144, %v1591
  %vm3658 = vcmp.eq.s32.totalorder %v2144, %v1595
  %vm3659 = vcmp.eq.s32.totalorder %v2144, %v1599
  %vm3660 = vcmp.eq.s32.totalorder %v2145, %v1587
  %vm3661 = vcmp.eq.s32.totalorder %v2145, %v1591
  %vm3662 = vcmp.eq.s32.totalorder %v2145, %v1595
  %vm3663 = vcmp.eq.s32.totalorder %v2145, %v1599
  %vm3664 = vcmp.eq.s32.totalorder %v2146, %v1587
  %vm3665 = vcmp.eq.s32.totalorder %v2146, %v1591
  %vm3666 = vcmp.eq.s32.totalorder %v2146, %v1595
  %vm3667 = vcmp.eq.s32.totalorder %v2146, %v1599
  %vm3668 = vcmp.eq.s32.totalorder %v2147, %v1587
  %vm3669 = vcmp.eq.s32.totalorder %v2147, %v1591
  %vm3670 = vcmp.eq.s32.totalorder %v2147, %v1595
  %vm3671 = vcmp.eq.s32.totalorder %v2147, %v1599
  %vm3672 = vcmp.eq.s32.totalorder %v2148, %v1587
  %vm3673 = vcmp.eq.s32.totalorder %v2148, %v1591
  %vm3674 = vcmp.eq.s32.totalorder %v2148, %v1595
  %vm3675 = vcmp.eq.s32.totalorder %v2148, %v1599
  %vm3676 = vcmp.eq.s32.totalorder %v2149, %v1587
  %vm3677 = vcmp.eq.s32.totalorder %v2149, %v1591
  %vm3678 = vcmp.eq.s32.totalorder %v2149, %v1595
  %vm3679 = vcmp.eq.s32.totalorder %v2149, %v1599
  %vm3680 = vcmp.eq.s32.totalorder %v2150, %v1587
  %vm3681 = vcmp.eq.s32.totalorder %v2150, %v1591
  %vm3682 = vcmp.eq.s32.totalorder %v2150, %v1595
  %vm3683 = vcmp.eq.s32.totalorder %v2150, %v1599
  %vm3684 = vcmp.eq.s32.totalorder %v2151, %v1587
  %vm3685 = vcmp.eq.s32.totalorder %v2151, %v1591
  %vm3686 = vcmp.eq.s32.totalorder %v2151, %v1595
  %vm3687 = vcmp.eq.s32.totalorder %v2151, %v1599
  %v3688 = vsel %vm3560, 1, 0
  %v3689 = vsel %vm3561, 1, 0
  %v3690 = vsel %vm3562, 1, 0
  %v3691 = vsel %vm3563, 1, 0
  %v3692 = vsel %vm3564, 1, 0
  %v3693 = vsel %vm3565, 1, 0
  %v3694 = vsel %vm3566, 1, 0
  %v3695 = vsel %vm3567, 1, 0
  %v3696 = vsel %vm3568, 1, 0
  %v3697 = vsel %vm3569, 1, 0
  %v3698 = vsel %vm3570, 1, 0
  %v3699 = vsel %vm3571, 1, 0
  %v3700 = vsel %vm3572, 1, 0
  %v3701 = vsel %vm3573, 1, 0
  %v3702 = vsel %vm3574, 1, 0
  %v3703 = vsel %vm3575, 1, 0
  %v3704 = vsel %vm3576, 1, 0
  %v3705 = vsel %vm3577, 1, 0
  %v3706 = vsel %vm3578, 1, 0
  %v3707 = vsel %vm3579, 1, 0
  %v3708 = vsel %vm3580, 1, 0
  %v3709 = vsel %vm3581, 1, 0
  %v3710 = vsel %vm3582, 1, 0
  %v3711 = vsel %vm3583, 1, 0
  %v3712 = vsel %vm3584, 1, 0
  %v3713 = vsel %vm3585, 1, 0
  %v3714 = vsel %vm3586, 1, 0
  %v3715 = vsel %vm3587, 1, 0
  %v3716 = vsel %vm3588, 1, 0
  %v3717 = vsel %vm3589, 1, 0
  %v3718 = vsel %vm3590, 1, 0
  %v3719 = vsel %vm3591, 1, 0
  %v3720 = vsel %vm3592, 1, 0
  %v3721 = vsel %vm3593, 1, 0
  %v3722 = vsel %vm3594, 1, 0
  %v3723 = vsel %vm3595, 1, 0
  %v3724 = vsel %vm3596, 1, 0
  %v3725 = vsel %vm3597, 1, 0
  %v3726 = vsel %vm3598, 1, 0
  %v3727 = vsel %vm3599, 1, 0
  %v3728 = vsel %vm3600, 1, 0
  %v3729 = vsel %vm3601, 1, 0
  %v3730 = vsel %vm3602, 1, 0
  %v3731 = vsel %vm3603, 1, 0
  %v3732 = vsel %vm3604, 1, 0
  %v3733 = vsel %vm3605, 1, 0
  %v3734 = vsel %vm3606, 1, 0
  %v3735 = vsel %vm3607, 1, 0
  %v3736 = vsel %vm3608, 1, 0
  %v3737 = vsel %vm3609, 1, 0
  %v3738 = vsel %vm3610, 1, 0
  %v3739 = vsel %vm3611, 1, 0
  %v3740 = vsel %vm3612, 1, 0
  %v3741 = vsel %vm3613, 1, 0
  %v3742 = vsel %vm3614, 1, 0
  %v3743 = vsel %vm3615, 1, 0
  %v3744 = vsel %vm3616, 1, 0
  %v3745 = vsel %vm3617, 1, 0
  %v3746 = vsel %vm3618, 1, 0
  %v3747 = vsel %vm3619, 1, 0
  %v3748 = vsel %vm3620, 1, 0
  %v3749 = vsel %vm3621, 1, 0
  %v3750 = vsel %vm3622, 1, 0
  %v3751 = vsel %vm3623, 1, 0
  %v3752 = vsel %vm3624, 1, 0
  %v3753 = vsel %vm3625, 1, 0
  %v3754 = vsel %vm3626, 1, 0
  %v3755 = vsel %vm3627, 1, 0
  %v3756 = vsel %vm3628, 1, 0
  %v3757 = vsel %vm3629, 1, 0
  %v3758 = vsel %vm3630, 1, 0
  %v3759 = vsel %vm3631, 1, 0
  %v3760 = vsel %vm3632, 1, 0
  %v3761 = vsel %vm3633, 1, 0
  %v3762 = vsel %vm3634, 1, 0
  %v3763 = vsel %vm3635, 1, 0
  %v3764 = vsel %vm3636, 1, 0
  %v3765 = vsel %vm3637, 1, 0
  %v3766 = vsel %vm3638, 1, 0
  %v3767 = vsel %vm3639, 1, 0
  %v3768 = vsel %vm3640, 1, 0
  %v3769 = vsel %vm3641, 1, 0
  %v3770 = vsel %vm3642, 1, 0
  %v3771 = vsel %vm3643, 1, 0
  %v3772 = vsel %vm3644, 1, 0
  %v3773 = vsel %vm3645, 1, 0
  %v3774 = vsel %vm3646, 1, 0
  %v3775 = vsel %vm3647, 1, 0
  %v3776 = vsel %vm3648, 1, 0
  %v3777 = vsel %vm3649, 1, 0
  %v3778 = vsel %vm3650, 1, 0
  %v3779 = vsel %vm3651, 1, 0
  %v3780 = vsel %vm3652, 1, 0
  %v3781 = vsel %vm3653, 1, 0
  %v3782 = vsel %vm3654, 1, 0
  %v3783 = vsel %vm3655, 1, 0
  %v3784 = vsel %vm3656, 1, 0
  %v3785 = vsel %vm3657, 1, 0
  %v3786 = vsel %vm3658, 1, 0
  %v3787 = vsel %vm3659, 1, 0
  %v3788 = vsel %vm3660, 1, 0
  %v3789 = vsel %vm3661, 1, 0
  %v3790 = vsel %vm3662, 1, 0
  %v3791 = vsel %vm3663, 1, 0
  %v3792 = vsel %vm3664, 1, 0
  %v3793 = vsel %vm3665, 1, 0
  %v3794 = vsel %vm3666, 1, 0
  %v3795 = vsel %vm3667, 1, 0
  %v3796 = vsel %vm3668, 1, 0
  %v3797 = vsel %vm3669, 1, 0
  %v3798 = vsel %vm3670, 1, 0
  %v3799 = vsel %vm3671, 1, 0
  %v3800 = vsel %vm3672, 1, 0
  %v3801 = vsel %vm3673, 1, 0
  %v3802 = vsel %vm3674, 1, 0
  %v3803 = vsel %vm3675, 1, 0
  %v3804 = vsel %vm3676, 1, 0
  %v3805 = vsel %vm3677, 1, 0
  %v3806 = vsel %vm3678, 1, 0
  %v3807 = vsel %vm3679, 1, 0
  %v3808 = vsel %vm3680, 1, 0
  %v3809 = vsel %vm3681, 1, 0
  %v3810 = vsel %vm3682, 1, 0
  %v3811 = vsel %vm3683, 1, 0
  %v3812 = vsel %vm3684, 1, 0
  %v3813 = vsel %vm3685, 1, 0
  %v3814 = vsel %vm3686, 1, 0
  %v3815 = vsel %vm3687, 1, 0
  %v3816 = vcvt.s32.f32 %v3688
  %v3817 = vcvt.s32.f32 %v3689
  %v3818 = vcvt.s32.f32 %v3690
  %v3819 = vcvt.s32.f32 %v3691
  %v3820 = vcvt.s32.f32 %v3692
  %v3821 = vcvt.s32.f32 %v3693
  %v3822 = vcvt.s32.f32 %v3694
  %v3823 = vcvt.s32.f32 %v3695
  %v3824 = vcvt.s32.f32 %v3696
  %v3825 = vcvt.s32.f32 %v3697
  %v3826 = vcvt.s32.f32 %v3698
  %v3827 = vcvt.s32.f32 %v3699
  %v3828 = vcvt.s32.f32 %v3700
  %v3829 = vcvt.s32.f32 %v3701
  %v3830 = vcvt.s32.f32 %v3702
  %v3831 = vcvt.s32.f32 %v3703
  %v3832 = vcvt.s32.f32 %v3704
  %v3833 = vcvt.s32.f32 %v3705
  %v3834 = vcvt.s32.f32 %v3706
  %v3835 = vcvt.s32.f32 %v3707
  %v3836 = vcvt.s32.f32 %v3708
  %v3837 = vcvt.s32.f32 %v3709
  %v3838 = vcvt.s32.f32 %v3710
  %v3839 = vcvt.s32.f32 %v3711
  %v3840 = vcvt.s32.f32 %v3712
  %v3841 = vcvt.s32.f32 %v3713
  %v3842 = vcvt.s32.f32 %v3714
  %v3843 = vcvt.s32.f32 %v3715
  %v3844 = vcvt.s32.f32 %v3716
  %v3845 = vcvt.s32.f32 %v3717
  %v3846 = vcvt.s32.f32 %v3718
  %v3847 = vcvt.s32.f32 %v3719
  %v3848 = vcvt.s32.f32 %v3720
  %v3849 = vcvt.s32.f32 %v3721
  %v3850 = vcvt.s32.f32 %v3722
  %v3851 = vcvt.s32.f32 %v3723
  %v3852 = vcvt.s32.f32 %v3724
  %v3853 = vcvt.s32.f32 %v3725
  %v3854 = vcvt.s32.f32 %v3726
  %v3855 = vcvt.s32.f32 %v3727
  %v3856 = vcvt.s32.f32 %v3728
  %v3857 = vcvt.s32.f32 %v3729
  %v3858 = vcvt.s32.f32 %v3730
  %v3859 = vcvt.s32.f32 %v3731
  %v3860 = vcvt.s32.f32 %v3732
  %v3861 = vcvt.s32.f32 %v3733
  %v3862 = vcvt.s32.f32 %v3734
  %v3863 = vcvt.s32.f32 %v3735
  %v3864 = vcvt.s32.f32 %v3736
  %v3865 = vcvt.s32.f32 %v3737
  %v3866 = vcvt.s32.f32 %v3738
  %v3867 = vcvt.s32.f32 %v3739
  %v3868 = vcvt.s32.f32 %v3740
  %v3869 = vcvt.s32.f32 %v3741
  %v3870 = vcvt.s32.f32 %v3742
  %v3871 = vcvt.s32.f32 %v3743
  %v3872 = vcvt.s32.f32 %v3744
  %v3873 = vcvt.s32.f32 %v3745
  %v3874 = vcvt.s32.f32 %v3746
  %v3875 = vcvt.s32.f32 %v3747
  %v3876 = vcvt.s32.f32 %v3748
  %v3877 = vcvt.s32.f32 %v3749
  %v3878 = vcvt.s32.f32 %v3750
  %v3879 = vcvt.s32.f32 %v3751
  %v3880 = vcvt.s32.f32 %v3752
  %v3881 = vcvt.s32.f32 %v3753
  %v3882 = vcvt.s32.f32 %v3754
  %v3883 = vcvt.s32.f32 %v3755
  %v3884 = vcvt.s32.f32 %v3756
  %v3885 = vcvt.s32.f32 %v3757
  %v3886 = vcvt.s32.f32 %v3758
  %v3887 = vcvt.s32.f32 %v3759
  %v3888 = vcvt.s32.f32 %v3760
  %v3889 = vcvt.s32.f32 %v3761
  %v3890 = vcvt.s32.f32 %v3762
  %v3891 = vcvt.s32.f32 %v3763
  %v3892 = vcvt.s32.f32 %v3764
  %v3893 = vcvt.s32.f32 %v3765
  %v3894 = vcvt.s32.f32 %v3766
  %v3895 = vcvt.s32.f32 %v3767
  %v3896 = vcvt.s32.f32 %v3768
  %v3897 = vcvt.s32.f32 %v3769
  %v3898 = vcvt.s32.f32 %v3770
  %v3899 = vcvt.s32.f32 %v3771
  %v3900 = vcvt.s32.f32 %v3772
  %v3901 = vcvt.s32.f32 %v3773
  %v3902 = vcvt.s32.f32 %v3774
  %v3903 = vcvt.s32.f32 %v3775
  %v3904 = vcvt.s32.f32 %v3776
  %v3905 = vcvt.s32.f32 %v3777
  %v3906 = vcvt.s32.f32 %v3778
  %v3907 = vcvt.s32.f32 %v3779
  %v3908 = vcvt.s32.f32 %v3780
  %v3909 = vcvt.s32.f32 %v3781
  %v3910 = vcvt.s32.f32 %v3782
  %v3911 = vcvt.s32.f32 %v3783
  %v3912 = vcvt.s32.f32 %v3784
  %v3913 = vcvt.s32.f32 %v3785
  %v3914 = vcvt.s32.f32 %v3786
  %v3915 = vcvt.s32.f32 %v3787
  %v3916 = vcvt.s32.f32 %v3788
  %v3917 = vcvt.s32.f32 %v3789
  %v3918 = vcvt.s32.f32 %v3790
  %v3919 = vcvt.s32.f32 %v3791
  %v3920 = vcvt.s32.f32 %v3792
  %v3921 = vcvt.s32.f32 %v3793
  %v3922 = vcvt.s32.f32 %v3794
  %v3923 = vcvt.s32.f32 %v3795
  %v3924 = vcvt.s32.f32 %v3796
  %v3925 = vcvt.s32.f32 %v3797
  %v3926 = vcvt.s32.f32 %v3798
  %v3927 = vcvt.s32.f32 %v3799
  %v3928 = vcvt.s32.f32 %v3800
  %v3929 = vcvt.s32.f32 %v3801
  %v3930 = vcvt.s32.f32 %v3802
  %v3931 = vcvt.s32.f32 %v3803
  %v3932 = vcvt.s32.f32 %v3804
  %v3933 = vcvt.s32.f32 %v3805
  %v3934 = vcvt.s32.f32 %v3806
  %v3935 = vcvt.s32.f32 %v3807
  %v3936 = vcvt.s32.f32 %v3808
  %v3937 = vcvt.s32.f32 %v3809
  %v3938 = vcvt.s32.f32 %v3810
  %v3939 = vcvt.s32.f32 %v3811
  %v3940 = vcvt.s32.f32 %v3812
  %v3941 = vcvt.s32.f32 %v3813
  %v3942 = vcvt.s32.f32 %v3814
  %v3943 = vcvt.s32.f32 %v3815
  %v3944 = vadd.f32 %v3432, %v3816
  %v3945 = vadd.f32 %v3433, %v3817
  %v3946 = vadd.f32 %v3434, %v3818
  %v3947 = vadd.f32 %v3435, %v3819
  %v3948 = vadd.f32 %v3436, %v3820
  %v3949 = vadd.f32 %v3437, %v3821
  %v3950 = vadd.f32 %v3438, %v3822
  %v3951 = vadd.f32 %v3439, %v3823
  %v3952 = vadd.f32 %v3440, %v3824
  %v3953 = vadd.f32 %v3441, %v3825
  %v3954 = vadd.f32 %v3442, %v3826
  %v3955 = vadd.f32 %v3443, %v3827
  %v3956 = vadd.f32 %v3444, %v3828
  %v3957 = vadd.f32 %v3445, %v3829
  %v3958 = vadd.f32 %v3446, %v3830
  %v3959 = vadd.f32 %v3447, %v3831
  %v3960 = vadd.f32 %v3448, %v3832
  %v3961 = vadd.f32 %v3449, %v3833
  %v3962 = vadd.f32 %v3450, %v3834
  %v3963 = vadd.f32 %v3451, %v3835
  %v3964 = vadd.f32 %v3452, %v3836
  %v3965 = vadd.f32 %v3453, %v3837
  %v3966 = vadd.f32 %v3454, %v3838
  %v3967 = vadd.f32 %v3455, %v3839
  %v3968 = vadd.f32 %v3456, %v3840
  %v3969 = vadd.f32 %v3457, %v3841
  %v3970 = vadd.f32 %v3458, %v3842
  %v3971 = vadd.f32 %v3459, %v3843
  %v3972 = vadd.f32 %v3460, %v3844
  %v3973 = vadd.f32 %v3461, %v3845
  %v3974 = vadd.f32 %v3462, %v3846
  %v3975 = vadd.f32 %v3463, %v3847
  %v3976 = vadd.f32 %v3464, %v3848
  %v3977 = vadd.f32 %v3465, %v3849
  %v3978 = vadd.f32 %v3466, %v3850
  %v3979 = vadd.f32 %v3467, %v3851
  %v3980 = vadd.f32 %v3468, %v3852
  %v3981 = vadd.f32 %v3469, %v3853
  %v3982 = vadd.f32 %v3470, %v3854
  %v3983 = vadd.f32 %v3471, %v3855
  %v3984 = vadd.f32 %v3472, %v3856
  %v3985 = vadd.f32 %v3473, %v3857
  %v3986 = vadd.f32 %v3474, %v3858
  %v3987 = vadd.f32 %v3475, %v3859
  %v3988 = vadd.f32 %v3476, %v3860
  %v3989 = vadd.f32 %v3477, %v3861
  %v3990 = vadd.f32 %v3478, %v3862
  %v3991 = vadd.f32 %v3479, %v3863
  %v3992 = vadd.f32 %v3480, %v3864
  %v3993 = vadd.f32 %v3481, %v3865
  %v3994 = vadd.f32 %v3482, %v3866
  %v3995 = vadd.f32 %v3483, %v3867
  %v3996 = vadd.f32 %v3484, %v3868
  %v3997 = vadd.f32 %v3485, %v3869
  %v3998 = vadd.f32 %v3486, %v3870
  %v3999 = vadd.f32 %v3487, %v3871
  %v4000 = vadd.f32 %v3488, %v3872
  %v4001 = vadd.f32 %v3489, %v3873
  %v4002 = vadd.f32 %v3490, %v3874
  %v4003 = vadd.f32 %v3491, %v3875
  %v4004 = vadd.f32 %v3492, %v3876
  %v4005 = vadd.f32 %v3493, %v3877
  %v4006 = vadd.f32 %v3494, %v3878
  %v4007 = vadd.f32 %v3495, %v3879
  %v4008 = vadd.f32 %v3496, %v3880
  %v4009 = vadd.f32 %v3497, %v3881
  %v4010 = vadd.f32 %v3498, %v3882
  %v4011 = vadd.f32 %v3499, %v3883
  %v4012 = vadd.f32 %v3500, %v3884
  %v4013 = vadd.f32 %v3501, %v3885
  %v4014 = vadd.f32 %v3502, %v3886
  %v4015 = vadd.f32 %v3503, %v3887
  %v4016 = vadd.f32 %v3504, %v3888
  %v4017 = vadd.f32 %v3505, %v3889
  %v4018 = vadd.f32 %v3506, %v3890
  %v4019 = vadd.f32 %v3507, %v3891
  %v4020 = vadd.f32 %v3508, %v3892
  %v4021 = vadd.f32 %v3509, %v3893
  %v4022 = vadd.f32 %v3510, %v3894
  %v4023 = vadd.f32 %v3511, %v3895
  %v4024 = vadd.f32 %v3512, %v3896
  %v4025 = vadd.f32 %v3513, %v3897
  %v4026 = vadd.f32 %v3514, %v3898
  %v4027 = vadd.f32 %v3515, %v3899
  %v4028 = vadd.f32 %v3516, %v3900
  %v4029 = vadd.f32 %v3517, %v3901
  %v4030 = vadd.f32 %v3518, %v3902
  %v4031 = vadd.f32 %v3519, %v3903
  %v4032 = vadd.f32 %v3520, %v3904
  %v4033 = vadd.f32 %v3521, %v3905
  %v4034 = vadd.f32 %v3522, %v3906
  %v4035 = vadd.f32 %v3523, %v3907
  %v4036 = vadd.f32 %v3524, %v3908
  %v4037 = vadd.f32 %v3525, %v3909
  %v4038 = vadd.f32 %v3526, %v3910
  %v4039 = vadd.f32 %v3527, %v3911
  %v4040 = vadd.f32 %v3528, %v3912
  %v4041 = vadd.f32 %v3529, %v3913
  %v4042 = vadd.f32 %v3530, %v3914
  %v4043 = vadd.f32 %v3531, %v3915
  %v4044 = vadd.f32 %v3532, %v3916
  %v4045 = vadd.f32 %v3533, %v3917
  %v4046 = vadd.f32 %v3534, %v3918
  %v4047 = vadd.f32 %v3535, %v3919
  %v4048 = vadd.f32 %v3536, %v3920
  %v4049 = vadd.f32 %v3537, %v3921
  %v4050 = vadd.f32 %v3538, %v3922
  %v4051 = vadd.f32 %v3539, %v3923
  %v4052 = vadd.f32 %v3540, %v3924
  %v4053 = vadd.f32 %v3541, %v3925
  %v4054 = vadd.f32 %v3542, %v3926
  %v4055 = vadd.f32 %v3543, %v3927
  %v4056 = vadd.f32 %v3544, %v3928
  %v4057 = vadd.f32 %v3545, %v3929
  %v4058 = vadd.f32 %v3546, %v3930
  %v4059 = vadd.f32 %v3547, %v3931
  %v4060 = vadd.f32 %v3548, %v3932
  %v4061 = vadd.f32 %v3549, %v3933
  %v4062 = vadd.f32 %v3550, %v3934
  %v4063 = vadd.f32 %v3551, %v3935
  %v4064 = vadd.f32 %v3552, %v3936
  %v4065 = vadd.f32 %v3553, %v3937
  %v4066 = vadd.f32 %v3554, %v3938
  %v4067 = vadd.f32 %v3555, %v3939
  %v4068 = vadd.f32 %v3556, %v3940
  %v4069 = vadd.f32 %v3557, %v3941
  %v4070 = vadd.f32 %v3558, %v3942
  %v4071 = vadd.f32 %v3559, %v3943
  %v4072 = vld [vmem:[%s1 + $0x10] sm:$0xff]
  %v4073 = vld [vmem:[%s1 + $0x18] sm:$0xff]
  %v4074 = vld [vmem:[%s1 + $0x50] sm:$0xff]
  %v4075 = vld [vmem:[%s1 + $0x58] sm:$0xff]
  %v4076 = vld [vmem:[%s1 + $0x90] sm:$0xff]
  %v4077 = vld [vmem:[%s1 + $0x98] sm:$0xff]
  %v4078 = vld [vmem:[%s1 + $0xd0] sm:$0xff]
  %v4079 = vld [vmem:[%s1 + $0xd8] sm:$0xff]
  %4080 = vmatprep.subr.mxu0 %v3945
  %4081 = vmatpush1.msra.mxu0 %v3944
  %4082 = vmatprep.subr.mxu0 %v3949
  %4083 = vmatpush1.msra.mxu0 %v3948
  %4084 = vmatprep.subr.mxu0 %v3953
  %4085 = vmatpush1.msra.mxu0 %v3952
  %4086 = vmatprep.subr.mxu0 %v3957
  %4087 = vmatpush1.msra.mxu0 %v3956
  %4088 = vmatprep.subr.mxu0 %v3961
  %4089 = vmatpush1.msra.mxu0 %v3960
  %4090 = vmatprep.subr.mxu0 %v3965
  %4091 = vmatpush1.msra.mxu0 %v3964
  %4092 = vmatprep.subr.mxu0 %v3969
  %4093 = vmatpush1.msra.mxu0 %v3968
  %4094 = vmatprep.subr.mxu0 %v3973
  %4095 = vmatpush1.msra.mxu0 %v3972
  %4096 = vmatprep.subr.mxu0 %v3977
  %4097 = vmatpush1.msra.mxu0 %v3976
  %4098 = vmatprep.subr.mxu0 %v3981
  %4099 = vmatpush1.msra.mxu0 %v3980
  %4100 = vmatprep.subr.mxu0 %v3985
  %4101 = vmatpush1.msra.mxu0 %v3984
  %4102 = vmatprep.subr.mxu0 %v3989
  %4103 = vmatpush1.msra.mxu0 %v3988
  %4104 = vmatprep.subr.mxu0 %v3993
  %4105 = vmatpush1.msra.mxu0 %v3992
  %4106 = vmatprep.subr.mxu0 %v3997
  %4107 = vmatpush1.msra.mxu0 %v3996
  %4108 = vmatprep.subr.mxu0 %v4001
  %4109 = vmatpush1.msra.mxu0 %v4000
  %4110 = vmatprep.subr.mxu0 %v4005
  %4111 = vmatpush1.msra.mxu0 %v4004
  %4112 = vmatprep.subr.mxu0 %v4009
  %4113 = vmatpush1.msra.mxu0 %v4008
  %4114 = vmatprep.subr.mxu0 %v4013
  %4115 = vmatpush1.msra.mxu0 %v4012
  %4116 = vmatprep.subr.mxu0 %v4017
  %4117 = vmatpush1.msra.mxu0 %v4016
  %4118 = vmatprep.subr.mxu0 %v4021
  %4119 = vmatpush1.msra.mxu0 %v4020
  %4120 = vmatprep.subr.mxu0 %v4025
  %4121 = vmatpush1.msra.mxu0 %v4024
  %4122 = vmatprep.subr.mxu0 %v4029
  %4123 = vmatpush1.msra.mxu0 %v4028
  %4124 = vmatprep.subr.mxu0 %v4033
  %4125 = vmatpush1.msra.mxu0 %v4032
  %4126 = vmatprep.subr.mxu0 %v4037
  %4127 = vmatpush1.msra.mxu0 %v4036
  %4128 = vmatprep.subr.mxu0 %v4041
  %4129 = vmatpush1.msra.mxu0 %v4040
  %4130 = vmatprep.subr.mxu0 %v4045
  %4131 = vmatpush1.msra.mxu0 %v4044
  %4132 = vmatprep.subr.mxu0 %v4049
  %4133 = vmatpush1.msra.mxu0 %v4048
  %4134 = vmatprep.subr.mxu0 %v4053
  %4135 = vmatpush1.msra.mxu0 %v4052
  %4136 = vmatprep.subr.mxu0 %v4057
  %4137 = vmatpush1.msra.mxu0 %v4056
  %4138 = vmatprep.subr.mxu0 %v4061
  %4139 = vmatpush1.msra.mxu0 %v4060
  %4140 = vmatprep.subr.mxu0 %v4065
  %4141 = vmatpush1.msra.mxu0 %v4064
  %4142 = vmatprep.subr.mxu0 %v4069
  %4143 = vmatpush1.msra.mxu0 %v4068
  %4144 = vmatprep.mubr.f32.mxu0 %v4073
  %4145 = vmatmul.mubr.f32.gmra.mrb[0].mxu0 %v4072
  %v4146 = vpop.f32.mrb[0].mxu0
  %v4147 = vadd.f32 0.0, %v4146
  %v4148 = vpop.f32.mrb[0].mxu0
  %v4149 = vadd.f32 0.0, %v4148
  %4150 = vmatprep.mubr.f32.mxu0 %v4075
  %4151 = vmatmul.mubr.f32.gmra.mrb[0].mxu0 %v4074
  %v4152 = vpop.f32.mrb[0].mxu0
  %v4153 = vadd.f32 0.0, %v4152
  %v4154 = vpop.f32.mrb[0].mxu0
  %v4155 = vadd.f32 0.0, %v4154
  %4156 = vmatprep.mubr.f32.mxu0 %v4077
  %4157 = vmatmul.mubr.f32.gmra.mrb[0].mxu0 %v4076
  %v4158 = vpop.f32.mrb[0].mxu0
  %v4159 = vadd.f32 0.0, %v4158
  %v4160 = vpop.f32.mrb[0].mxu0
  %v4161 = vadd.f32 0.0, %v4160
  %4162 = vmatprep.mubr.f32.mxu0 %v4079
  %4163 = vmatmul.mubr.f32.gmra.mrb[0].mxu0 %v4078
  %v4164 = vpop.f32.mrb[0].mxu0
  %v4165 = vadd.f32 0.0, %v4164
  %v4166 = vpop.f32.mrb[0].mxu0
  %v4167 = vadd.f32 0.0, %v4166
  %4168 = vdwg.mxu0
  %4169 = vmatprep.subr.mxu0 %v3947
  %4170 = vmatpush1.msra.mxu0 %v3946
  %4171 = vmatprep.subr.mxu0 %v3951
  %4172 = vmatpush1.msra.mxu0 %v3950
  %4173 = vmatprep.subr.mxu0 %v3955
  %4174 = vmatpush1.msra.mxu0 %v3954
  %4175 = vmatprep.subr.mxu0 %v3959
  %4176 = vmatpush1.msra.mxu0 %v3958
  %4177 = vmatprep.subr.mxu0 %v3963
  %4178 = vmatpush1.msra.mxu0 %v3962
  %4179 = vmatprep.subr.mxu0 %v3967
  %4180 = vmatpush1.msra.mxu0 %v3966
  %4181 = vmatprep.subr.mxu0 %v3971
  %4182 = vmatpush1.msra.mxu0 %v3970
  %4183 = vmatprep.subr.mxu0 %v3975
  %4184 = vmatpush1.msra.mxu0 %v3974
  %4185 = vmatprep.subr.mxu0 %v3979
  %4186 = vmatpush1.msra.mxu0 %v3978
  %4187 = vmatprep.subr.mxu0 %v3983
  %4188 = vmatpush1.msra.mxu0 %v3982
  %4189 = vmatprep.subr.mxu0 %v3987
  %4190 = vmatpush1.msra.mxu0 %v3986
  %4191 = vmatprep.subr.mxu0 %v3991
  %4192 = vmatpush1.msra.mxu0 %v3990
  %4193 = vmatprep.subr.mxu0 %v3995
  %4194 = vmatpush1.msra.mxu0 %v3994
  %4195 = vmatprep.subr.mxu0 %v3999
  %4196 = vmatpush1.msra.mxu0 %v3998
  %4197 = vmatprep.subr.mxu0 %v4003
  %4198 = vmatpush1.msra.mxu0 %v4002
  %4199 = vmatprep.subr.mxu0 %v4007
  %4200 = vmatpush1.msra.mxu0 %v4006
  %4201 = vmatprep.subr.mxu0 %v4011
  %4202 = vmatpush1.msra.mxu0 %v4010
  %4203 = vmatprep.subr.mxu0 %v4015
  %4204 = vmatpush1.msra.mxu0 %v4014
  %4205 = vmatprep.subr.mxu0 %v4019
  %4206 = vmatpush1.msra.mxu0 %v4018
  %4207 = vmatprep.subr.mxu0 %v4023
  %4208 = vmatpush1.msra.mxu0 %v4022
  %4209 = vmatprep.subr.mxu0 %v4027
  %4210 = vmatpush1.msra.mxu0 %v4026
  %4211 = vmatprep.subr.mxu0 %v4031
  %4212 = vmatpush1.msra.mxu0 %v4030
  %4213 = vmatprep.subr.mxu0 %v4035
  %4214 = vmatpush1.msra.mxu0 %v4034
  %4215 = vmatprep.subr.mxu0 %v4039
  %4216 = vmatpush1.msra.mxu0 %v4038
  %4217 = vmatprep.subr.mxu0 %v4043
  %4218 = vmatpush1.msra.mxu0 %v4042
  %4219 = vmatprep.subr.mxu0 %v4047
  %4220 = vmatpush1.msra.mxu0 %v4046
  %4221 = vmatprep.subr.mxu0 %v4051
  %4222 = vmatpush1.msra.mxu0 %v4050
  %4223 = vmatprep.subr.mxu0 %v4055
  %4224 = vmatpush1.msra.mxu0 %v4054
  %4225 = vmatprep.subr.mxu0 %v4059
  %4226 = vmatpush1.msra.mxu0 %v4058
  %4227 = vmatprep.subr.mxu0 %v4063
  %4228 = vmatpush1.msra.mxu0 %v4062
  %4229 = vmatprep.subr.mxu0 %v4067
  %4230 = vmatpush1.msra.mxu0 %v4066
  %4231 = vmatprep.subr.mxu0 %v4071
  %4232 = vmatpush1.msra.mxu0 %v4070
  %4233 = vmatprep.mubr.f32.mxu0 %v4073
  %4234 = vmatmul.mubr.f32.gmra.mrb[0].mxu0 %v4072
  %v4235 = vpop.f32.mrb[0].mxu0
  %v4236 = vadd.f32 0.0, %v4235
  %v4237 = vpop.f32.mrb[0].mxu0
  %v4238 = vadd.f32 0.0, %v4237
  %4239 = vmatprep.mubr.f32.mxu0 %v4075
  %4240 = vmatmul.mubr.f32.gmra.mrb[0].mxu0 %v4074
  %v4241 = vpop.f32.mrb[0].mxu0
  %v4242 = vadd.f32 0.0, %v4241
  %v4243 = vpop.f32.mrb[0].mxu0
  %v4244 = vadd.f32 0.0, %v4243
  %4245 = vmatprep.mubr.f32.mxu0 %v4077
  %4246 = vmatmul.mubr.f32.gmra.mrb[0].mxu0 %v4076
  %v4247 = vpop.f32.mrb[0].mxu0
  %v4248 = vadd.f32 0.0, %v4247
  %v4249 = vpop.f32.mrb[0].mxu0
  %v4250 = vadd.f32 0.0, %v4249
  %4251 = vmatprep.mubr.f32.mxu0 %v4079
  %4252 = vmatmul.mubr.f32.gmra.mrb[0].mxu0 %v4078
  %v4253 = vpop.f32.mrb[0].mxu0
  %v4254 = vadd.f32 0.0, %v4253
  %v4255 = vpop.f32.mrb[0].mxu0
  %v4256 = vadd.f32 0.0, %v4255
  %4257 = vdwg.mxu0
  %4258 = vmatprep.subr.mxu0 %v1985
  %4259 = vmatpush1.msra.mxu0 %v1984
  %4260 = vmatprep.subr.mxu0 %v1989
  %4261 = vmatpush1.msra.mxu0 %v1988
  %4262 = vmatprep.subr.mxu0 %v1993
  %4263 = vmatpush1.msra.mxu0 %v1992
  %4264 = vmatprep.subr.mxu0 %v1997
  %4265 = vmatpush1.msra.mxu0 %v1996
  %4266 = vmatprep.subr.mxu0 %v2001
  %4267 = vmatpush1.msra.mxu0 %v2000
  %4268 = vmatprep.subr.mxu0 %v2005
  %4269 = vmatpush1.msra.mxu0 %v2004
  %4270 = vmatprep.subr.mxu0 %v2009
  %4271 = vmatpush1.msra.mxu0 %v2008
  %4272 = vmatprep.subr.mxu0 %v2013
  %4273 = vmatpush1.msra.mxu0 %v2012
  %4274 = vmatprep.subr.mxu0 %v2017
  %4275 = vmatpush1.msra.mxu0 %v2016
  %4276 = vmatprep.subr.mxu0 %v2021
  %4277 = vmatpush1.msra.mxu0 %v2020
  %4278 = vmatprep.subr.mxu0 %v2025
  %4279 = vmatpush1.msra.mxu0 %v2024
  %4280 = vmatprep.subr.mxu0 %v2029
  %4281 = vmatpush1.msra.mxu0 %v2028
  %4282 = vmatprep.subr.mxu0 %v2033
  %4283 = vmatpush1.msra.mxu0 %v2032
  %4284 = vmatprep.subr.mxu0 %v2037
  %4285 = vmatpush1.msra.mxu0 %v2036
  %4286 = vmatprep.subr.mxu0 %v2041
  %4287 = vmatpush1.msra.mxu0 %v2040
  %4288 = vmatprep.subr.mxu0 %v2045
  %4289 = vmatpush1.msra.mxu0 %v2044
  %4290 = vmatprep.subr.mxu0 %v2049
  %4291 = vmatpush1.msra.mxu0 %v2048
  %4292 = vmatprep.subr.mxu0 %v2053
  %4293 = vmatpush1.msra.mxu0 %v2052
  %4294 = vmatprep.subr.mxu0 %v2057
  %4295 = vmatpush1.msra.mxu0 %v2056
  %4296 = vmatprep.subr.mxu0 %v2061
  %4297 = vmatpush1.msra.mxu0 %v2060
  %4298 = vmatprep.subr.mxu0 %v2065
  %4299 = vmatpush1.msra.mxu0 %v2064
  %4300 = vmatprep.subr.mxu0 %v2069
  %4301 = vmatpush1.msra.mxu0 %v2068
  %4302 = vmatprep.subr.mxu0 %v2073
  %4303 = vmatpush1.msra.mxu0 %v2072
  %4304 = vmatprep.subr.mxu0 %v2077
  %4305 = vmatpush1.msra.mxu0 %v2076
  %4306 = vmatprep.subr.mxu0 %v2081
  %4307 = vmatpush1.msra.mxu0 %v2080
  %4308 = vmatprep.subr.mxu0 %v2085
  %4309 = vmatpush1.msra.mxu0 %v2084
  %4310 = vmatprep.subr.mxu0 %v2089
  %4311 = vmatpush1.msra.mxu0 %v2088
  %4312 = vmatprep.subr.mxu0 %v2093
  %4313 = vmatpush1.msra.mxu0 %v2092
  %4314 = vmatprep.subr.mxu0 %v2097
  %4315 = vmatpush1.msra.mxu0 %v2096
  %4316 = vmatprep.subr.mxu0 %v2101
  %4317 = vmatpush1.msra.mxu0 %v2100
  %4318 = vmatprep.subr.mxu0 %v2105
  %4319 = vmatpush1.msra.mxu0 %v2104
  %4320 = vmatprep.subr.mxu0 %v2109
  %4321 = vmatpush1.msra.mxu0 %v2108
  %4322 = vmatprep.mubr.f32.mxu0 %v2113
  %4323 = vmatmul.mubr.f32.gmra.mrb[0].mxu0 %v2112
  %v4324 = vpop.f32.mrb[0].mxu0
  %v4325 = vadd.f32 %v4147, %v4324
  %v4326 = vpop.f32.mrb[0].mxu0
  %v4327 = vadd.f32 %v4149, %v4326
  %4328 = vmatprep.mubr.f32.mxu0 %v2115
  %4329 = vmatmul.mubr.f32.gmra.mrb[0].mxu0 %v2114
  %v4330 = vpop.f32.mrb[0].mxu0
  %v4331 = vadd.f32 %v4153, %v4330
  %v4332 = vpop.f32.mrb[0].mxu0
  %v4333 = vadd.f32 %v4155, %v4332
  %4334 = vmatprep.mubr.f32.mxu0 %v2117
  %4335 = vmatmul.mubr.f32.gmra.mrb[0].mxu0 %v2116
  %v4336 = vpop.f32.mrb[0].mxu0
  %v4337 = vadd.f32 %v4159, %v4336
  %v4338 = vpop.f32.mrb[0].mxu0
  %v4339 = vadd.f32 %v4161, %v4338
  %4340 = vmatprep.mubr.f32.mxu0 %v2119
  %4341 = vmatmul.mubr.f32.gmra.mrb[0].mxu0 %v2118
  %v4342 = vpop.f32.mrb[0].mxu0
  %v4343 = vadd.f32 %v4165, %v4342
  %v4344 = vpop.f32.mrb[0].mxu0
  %v4345 = vadd.f32 %v4167, %v4344
  %4346 = vdwg.mxu0
  %4347 = vmatprep.subr.mxu0 %v1987
  %4348 = vmatpush1.msra.mxu0 %v1986
  %4349 = vmatprep.subr.mxu0 %v1991
  %4350 = vmatpush1.msra.mxu0 %v1990
  %4351 = vmatprep.subr.mxu0 %v1995
  %4352 = vmatpush1.msra.mxu0 %v1994
  %4353 = vmatprep.subr.mxu0 %v1999
  %4354 = vmatpush1.msra.mxu0 %v1998
  %4355 = vmatprep.subr.mxu0 %v2003
  %4356 = vmatpush1.msra.mxu0 %v2002
  %4357 = vmatprep.subr.mxu0 %v2007
  %4358 = vmatpush1.msra.mxu0 %v2006
  %4359 = vmatprep.subr.mxu0 %v2011
  %4360 = vmatpush1.msra.mxu0 %v2010
  %4361 = vmatprep.subr.mxu0 %v2015
  %4362 = vmatpush1.msra.mxu0 %v2014
  %4363 = vmatprep.subr.mxu0 %v2019
  %4364 = vmatpush1.msra.mxu0 %v2018
  %4365 = vmatprep.subr.mxu0 %v2023
  %4366 = vmatpush1.msra.mxu0 %v2022
  %4367 = vmatprep.subr.mxu0 %v2027
  %4368 = vmatpush1.msra.mxu0 %v2026
  %4369 = vmatprep.subr.mxu0 %v2031
  %4370 = vmatpush1.msra.mxu0 %v2030
  %4371 = vmatprep.subr.mxu0 %v2035
  %4372 = vmatpush1.msra.mxu0 %v2034
  %4373 = vmatprep.subr.mxu0 %v2039
  %4374 = vmatpush1.msra.mxu0 %v2038
  %4375 = vmatprep.subr.mxu0 %v2043
  %4376 = vmatpush1.msra.mxu0 %v2042
  %4377 = vmatprep.subr.mxu0 %v2047
  %4378 = vmatpush1.msra.mxu0 %v2046
  %4379 = vmatprep.subr.mxu0 %v2051
  %4380 = vmatpush1.msra.mxu0 %v2050
  %4381 = vmatprep.subr.mxu0 %v2055
  %4382 = vmatpush1.msra.mxu0 %v2054
  %4383 = vmatprep.subr.mxu0 %v2059
  %4384 = vmatpush1.msra.mxu0 %v2058
  %4385 = vmatprep.subr.mxu0 %v2063
  %4386 = vmatpush1.msra.mxu0 %v2062
  %4387 = vmatprep.subr.mxu0 %v2067
  %4388 = vmatpush1.msra.mxu0 %v2066
  %4389 = vmatprep.subr.mxu0 %v2071
  %4390 = vmatpush1.msra.mxu0 %v2070
  %4391 = vmatprep.subr.mxu0 %v2075
  %4392 = vmatpush1.msra.mxu0 %v2074
  %4393 = vmatprep.subr.mxu0 %v2079
  %4394 = vmatpush1.msra.mxu0 %v2078
  %4395 = vmatprep.subr.mxu0 %v2083
  %4396 = vmatpush1.msra.mxu0 %v2082
  %4397 = vmatprep.subr.mxu0 %v2087
  %4398 = vmatpush1.msra.mxu0 %v2086
  %4399 = vmatprep.subr.mxu0 %v2091
  %4400 = vmatpush1.msra.mxu0 %v2090
  %4401 = vmatprep.subr.mxu0 %v2095
  %4402 = vmatpush1.msra.mxu0 %v2094
  %4403 = vmatprep.subr.mxu0 %v2099
  %4404 = vmatpush1.msra.mxu0 %v2098
  %4405 = vmatprep.subr.mxu0 %v2103
  %4406 = vmatpush1.msra.mxu0 %v2102
  %4407 = vmatprep.subr.mxu0 %v2107
  %4408 = vmatpush1.msra.mxu0 %v2106
  %4409 = vmatprep.subr.mxu0 %v2111
  %4410 = vmatpush1.msra.mxu0 %v2110
  %4411 = vmatprep.mubr.f32.mxu0 %v2113
  %4412 = vmatmul.mubr.f32.gmra.mrb[0].mxu0 %v2112
  %v4413 = vpop.f32.mrb[0].mxu0
  %v4414 = vadd.f32 %v4236, %v4413
  %v4415 = vpop.f32.mrb[0].mxu0
  %v4416 = vadd.f32 %v4238, %v4415
  %4417 = vmatprep.mubr.f32.mxu0 %v2115
  %4418 = vmatmul.mubr.f32.gmra.mrb[0].mxu0 %v2114
  %v4419 = vpop.f32.mrb[0].mxu0
  %v4420 = vadd.f32 %v4242, %v4419
  %v4421 = vpop.f32.mrb[0].mxu0
  %v4422 = vadd.f32 %v4244, %v4421
  %4423 = vmatprep.mubr.f32.mxu0 %v2117
  %4424 = vmatmul.mubr.f32.gmra.mrb[0].mxu0 %v2116
  %v4425 = vpop.f32.mrb[0].mxu0
  %v4426 = vadd.f32 %v4248, %v4425
  %v4427 = vpop.f32.mrb[0].mxu0
  %v4428 = vadd.f32 %v4250, %v4427
  %4429 = vmatprep.mubr.f32.mxu0 %v2119
  %4430 = vmatmul.mubr.f32.gmra.mrb[0].mxu0 %v2118
  %v4431 = vpop.f32.mrb[0].mxu0
  %v4432 = vadd.f32 %v4254, %v4431
  %v4433 = vpop.f32.mrb[0].mxu0
  %v4434 = vadd.f32 %v4256, %v4433
  %4435 = vdwg.mxu0
  %v4436 = vadd.s32 %v32, 512
  %v4437 = vadd.s32 %v33, 512
  %v4438 = vadd.s32 %v34, 512
  %v4439 = vadd.s32 %v35, 512
  %v4440 = vadd.s32 %v36, 512
  %v4441 = vadd.s32 %v37, 512
  %v4442 = vadd.s32 %v38, 512
  %v4443 = vadd.s32 %v39, 512
  %v4444 = vadd.s32 %v40, 512
  %v4445 = vadd.s32 %v41, 512
  %v4446 = vadd.s32 %v42, 512
  %v4447 = vadd.s32 %v43, 512
  %v4448 = vadd.s32 %v44, 512
  %v4449 = vadd.s32 %v45, 512
  %v4450 = vadd.s32 %v46, 512
  %v4451 = vadd.s32 %v47, 512
  %v4452 = vadd.s32 %v48, 512
  %v4453 = vadd.s32 %v49, 512
  %v4454 = vadd.s32 %v50, 512
  %v4455 = vadd.s32 %v51, 512
  %v4456 = vadd.s32 %v52, 512
  %v4457 = vadd.s32 %v53, 512
  %v4458 = vadd.s32 %v54, 512
  %v4459 = vadd.s32 %v55, 512
  %v4460 = vadd.s32 %v56, 512
  %v4461 = vadd.s32 %v57, 512
  %v4462 = vadd.s32 %v58, 512
  %v4463 = vadd.s32 %v59, 512
  %v4464 = vadd.s32 %v60, 512
  %v4465 = vadd.s32 %v61, 512
  %v4466 = vadd.s32 %v62, 512
  %v4467 = vadd.s32 %v63, 512
  %vm4468 = vcmp.eq.s32.totalorder %v4436, %v83
  %vm4469 = vcmp.eq.s32.totalorder %v4436, %v87
  %vm4470 = vcmp.eq.s32.totalorder %v4436, %v91
  %vm4471 = vcmp.eq.s32.totalorder %v4436, %v95
  %vm4472 = vcmp.eq.s32.totalorder %v4437, %v83
  %vm4473 = vcmp.eq.s32.totalorder %v4437, %v87
  %vm4474 = vcmp.eq.s32.totalorder %v4437, %v91
  %vm4475 = vcmp.eq.s32.totalorder %v4437, %v95
  %vm4476 = vcmp.eq.s32.totalorder %v4438, %v83
  %vm4477 = vcmp.eq.s32.totalorder %v4438, %v87
  %vm4478 = vcmp.eq.s32.totalorder %v4438, %v91
  %vm4479 = vcmp.eq.s32.totalorder %v4438, %v95
  %vm4480 = vcmp.eq.s32.totalorder %v4439, %v83
  %vm4481 = vcmp.eq.s32.totalorder %v4439, %v87
  %vm4482 = vcmp.eq.s32.totalorder %v4439, %v91
  %vm4483 = vcmp.eq.s32.totalorder %v4439, %v95
  %vm4484 = vcmp.eq.s32.totalorder %v4440, %v83
  %vm4485 = vcmp.eq.s32.totalorder %v4440, %v87
  %vm4486 = vcmp.eq.s32.totalorder %v4440, %v91
  %vm4487 = vcmp.eq.s32.totalorder %v4440, %v95
  %vm4488 = vcmp.eq.s32.totalorder %v4441, %v83
  %vm4489 = vcmp.eq.s32.totalorder %v4441, %v87
  %vm4490 = vcmp.eq.s32.totalorder %v4441, %v91
  %vm4491 = vcmp.eq.s32.totalorder %v4441, %v95
  %vm4492 = vcmp.eq.s32.totalorder %v4442, %v83
  %vm4493 = vcmp.eq.s32.totalorder %v4442, %v87
  %vm4494 = vcmp.eq.s32.totalorder %v4442, %v91
  %vm4495 = vcmp.eq.s32.totalorder %v4442, %v95
  %vm4496 = vcmp.eq.s32.totalorder %v4443, %v83
  %vm4497 = vcmp.eq.s32.totalorder %v4443, %v87
  %vm4498 = vcmp.eq.s32.totalorder %v4443, %v91
  %vm4499 = vcmp.eq.s32.totalorder %v4443, %v95
  %vm4500 = vcmp.eq.s32.totalorder %v4444, %v83
  %vm4501 = vcmp.eq.s32.totalorder %v4444, %v87
  %vm4502 = vcmp.eq.s32.totalorder %v4444, %v91
  %vm4503 = vcmp.eq.s32.totalorder %v4444, %v95
  %vm4504 = vcmp.eq.s32.totalorder %v4445, %v83
  %vm4505 = vcmp.eq.s32.totalorder %v4445, %v87
  %vm4506 = vcmp.eq.s32.totalorder %v4445, %v91
  %vm4507 = vcmp.eq.s32.totalorder %v4445, %v95
  %vm4508 = vcmp.eq.s32.totalorder %v4446, %v83
  %vm4509 = vcmp.eq.s32.totalorder %v4446, %v87
  %vm4510 = vcmp.eq.s32.totalorder %v4446, %v91
  %vm4511 = vcmp.eq.s32.totalorder %v4446, %v95
  %vm4512 = vcmp.eq.s32.totalorder %v4447, %v83
  %vm4513 = vcmp.eq.s32.totalorder %v4447, %v87
  %vm4514 = vcmp.eq.s32.totalorder %v4447, %v91
  %vm4515 = vcmp.eq.s32.totalorder %v4447, %v95
  %vm4516 = vcmp.eq.s32.totalorder %v4448, %v83
  %vm4517 = vcmp.eq.s32.totalorder %v4448, %v87
  %vm4518 = vcmp.eq.s32.totalorder %v4448, %v91
  %vm4519 = vcmp.eq.s32.totalorder %v4448, %v95
  %vm4520 = vcmp.eq.s32.totalorder %v4449, %v83
  %vm4521 = vcmp.eq.s32.totalorder %v4449, %v87
  %vm4522 = vcmp.eq.s32.totalorder %v4449, %v91
  %vm4523 = vcmp.eq.s32.totalorder %v4449, %v95
  %vm4524 = vcmp.eq.s32.totalorder %v4450, %v83
  %vm4525 = vcmp.eq.s32.totalorder %v4450, %v87
  %vm4526 = vcmp.eq.s32.totalorder %v4450, %v91
  %vm4527 = vcmp.eq.s32.totalorder %v4450, %v95
  %vm4528 = vcmp.eq.s32.totalorder %v4451, %v83
  %vm4529 = vcmp.eq.s32.totalorder %v4451, %v87
  %vm4530 = vcmp.eq.s32.totalorder %v4451, %v91
  %vm4531 = vcmp.eq.s32.totalorder %v4451, %v95
  %vm4532 = vcmp.eq.s32.totalorder %v4452, %v83
  %vm4533 = vcmp.eq.s32.totalorder %v4452, %v87
  %vm4534 = vcmp.eq.s32.totalorder %v4452, %v91
  %vm4535 = vcmp.eq.s32.totalorder %v4452, %v95
  %vm4536 = vcmp.eq.s32.totalorder %v4453, %v83
  %vm4537 = vcmp.eq.s32.totalorder %v4453, %v87
  %vm4538 = vcmp.eq.s32.totalorder %v4453, %v91
  %vm4539 = vcmp.eq.s32.totalorder %v4453, %v95
  %vm4540 = vcmp.eq.s32.totalorder %v4454, %v83
  %vm4541 = vcmp.eq.s32.totalorder %v4454, %v87
  %vm4542 = vcmp.eq.s32.totalorder %v4454, %v91
  %vm4543 = vcmp.eq.s32.totalorder %v4454, %v95
  %vm4544 = vcmp.eq.s32.totalorder %v4455, %v83
  %vm4545 = vcmp.eq.s32.totalorder %v4455, %v87
  %vm4546 = vcmp.eq.s32.totalorder %v4455, %v91
  %vm4547 = vcmp.eq.s32.totalorder %v4455, %v95
  %vm4548 = vcmp.eq.s32.totalorder %v4456, %v83
  %vm4549 = vcmp.eq.s32.totalorder %v4456, %v87
  %vm4550 = vcmp.eq.s32.totalorder %v4456, %v91
  %vm4551 = vcmp.eq.s32.totalorder %v4456, %v95
  %vm4552 = vcmp.eq.s32.totalorder %v4457, %v83
  %vm4553 = vcmp.eq.s32.totalorder %v4457, %v87
  %vm4554 = vcmp.eq.s32.totalorder %v4457, %v91
  %vm4555 = vcmp.eq.s32.totalorder %v4457, %v95
  %vm4556 = vcmp.eq.s32.totalorder %v4458, %v83
  %vm4557 = vcmp.eq.s32.totalorder %v4458, %v87
  %vm4558 = vcmp.eq.s32.totalorder %v4458, %v91
  %vm4559 = vcmp.eq.s32.totalorder %v4458, %v95
  %vm4560 = vcmp.eq.s32.totalorder %v4459, %v83
  %vm4561 = vcmp.eq.s32.totalorder %v4459, %v87
  %vm4562 = vcmp.eq.s32.totalorder %v4459, %v91
  %vm4563 = vcmp.eq.s32.totalorder %v4459, %v95
  %vm4564 = vcmp.eq.s32.totalorder %v4460, %v83
  %vm4565 = vcmp.eq.s32.totalorder %v4460, %v87
  %vm4566 = vcmp.eq.s32.totalorder %v4460, %v91
  %vm4567 = vcmp.eq.s32.totalorder %v4460, %v95
  %vm4568 = vcmp.eq.s32.totalorder %v4461, %v83
  %vm4569 = vcmp.eq.s32.totalorder %v4461, %v87
  %vm4570 = vcmp.eq.s32.totalorder %v4461, %v91
  %vm4571 = vcmp.eq.s32.totalorder %v4461, %v95
  %vm4572 = vcmp.eq.s32.totalorder %v4462, %v83
  %vm4573 = vcmp.eq.s32.totalorder %v4462, %v87
  %vm4574 = vcmp.eq.s32.totalorder %v4462, %v91
  %vm4575 = vcmp.eq.s32.totalorder %v4462, %v95
  %vm4576 = vcmp.eq.s32.totalorder %v4463, %v83
  %vm4577 = vcmp.eq.s32.totalorder %v4463, %v87
  %vm4578 = vcmp.eq.s32.totalorder %v4463, %v91
  %vm4579 = vcmp.eq.s32.totalorder %v4463, %v95
  %vm4580 = vcmp.eq.s32.totalorder %v4464, %v83
  %vm4581 = vcmp.eq.s32.totalorder %v4464, %v87
  %vm4582 = vcmp.eq.s32.totalorder %v4464, %v91
  %vm4583 = vcmp.eq.s32.totalorder %v4464, %v95
  %vm4584 = vcmp.eq.s32.totalorder %v4465, %v83
  %vm4585 = vcmp.eq.s32.totalorder %v4465, %v87
  %vm4586 = vcmp.eq.s32.totalorder %v4465, %v91
  %vm4587 = vcmp.eq.s32.totalorder %v4465, %v95
  %vm4588 = vcmp.eq.s32.totalorder %v4466, %v83
  %vm4589 = vcmp.eq.s32.totalorder %v4466, %v87
  %vm4590 = vcmp.eq.s32.totalorder %v4466, %v91
  %vm4591 = vcmp.eq.s32.totalorder %v4466, %v95
  %vm4592 = vcmp.eq.s32.totalorder %v4467, %v83
  %vm4593 = vcmp.eq.s32.totalorder %v4467, %v87
  %vm4594 = vcmp.eq.s32.totalorder %v4467, %v91
  %vm4595 = vcmp.eq.s32.totalorder %v4467, %v95
  %v4596 = vsel %vm4468, 1, 0
  %v4597 = vsel %vm4469, 1, 0
  %v4598 = vsel %vm4470, 1, 0
  %v4599 = vsel %vm4471, 1, 0
  %v4600 = vsel %vm4472, 1, 0
  %v4601 = vsel %vm4473, 1, 0
  %v4602 = vsel %vm4474, 1, 0
  %v4603 = vsel %vm4475, 1, 0
  %v4604 = vsel %vm4476, 1, 0
  %v4605 = vsel %vm4477, 1, 0
  %v4606 = vsel %vm4478, 1, 0
  %v4607 = vsel %vm4479, 1, 0
  %v4608 = vsel %vm4480, 1, 0
  %v4609 = vsel %vm4481, 1, 0
  %v4610 = vsel %vm4482, 1, 0
  %v4611 = vsel %vm4483, 1, 0
  %v4612 = vsel %vm4484, 1, 0
  %v4613 = vsel %vm4485, 1, 0
  %v4614 = vsel %vm4486, 1, 0
  %v4615 = vsel %vm4487, 1, 0
  %v4616 = vsel %vm4488, 1, 0
  %v4617 = vsel %vm4489, 1, 0
  %v4618 = vsel %vm4490, 1, 0
  %v4619 = vsel %vm4491, 1, 0
  %v4620 = vsel %vm4492, 1, 0
  %v4621 = vsel %vm4493, 1, 0
  %v4622 = vsel %vm4494, 1, 0
  %v4623 = vsel %vm4495, 1, 0
  %v4624 = vsel %vm4496, 1, 0
  %v4625 = vsel %vm4497, 1, 0
  %v4626 = vsel %vm4498, 1, 0
  %v4627 = vsel %vm4499, 1, 0
  %v4628 = vsel %vm4500, 1, 0
  %v4629 = vsel %vm4501, 1, 0
  %v4630 = vsel %vm4502, 1, 0
  %v4631 = vsel %vm4503, 1, 0
  %v4632 = vsel %vm4504, 1, 0
  %v4633 = vsel %vm4505, 1, 0
  %v4634 = vsel %vm4506, 1, 0
  %v4635 = vsel %vm4507, 1, 0
  %v4636 = vsel %vm4508, 1, 0
  %v4637 = vsel %vm4509, 1, 0
  %v4638 = vsel %vm4510, 1, 0
  %v4639 = vsel %vm4511, 1, 0
  %v4640 = vsel %vm4512, 1, 0
  %v4641 = vsel %vm4513, 1, 0
  %v4642 = vsel %vm4514, 1, 0
  %v4643 = vsel %vm4515, 1, 0
  %v4644 = vsel %vm4516, 1, 0
  %v4645 = vsel %vm4517, 1, 0
  %v4646 = vsel %vm4518, 1, 0
  %v4647 = vsel %vm4519, 1, 0
  %v4648 = vsel %vm4520, 1, 0
  %v4649 = vsel %vm4521, 1, 0
  %v4650 = vsel %vm4522, 1, 0
  %v4651 = vsel %vm4523, 1, 0
  %v4652 = vsel %vm4524, 1, 0
  %v4653 = vsel %vm4525, 1, 0
  %v4654 = vsel %vm4526, 1, 0
  %v4655 = vsel %vm4527, 1, 0
  %v4656 = vsel %vm4528, 1, 0
  %v4657 = vsel %vm4529, 1, 0
  %v4658 = vsel %vm4530, 1, 0
  %v4659 = vsel %vm4531, 1, 0
  %v4660 = vsel %vm4532, 1, 0
  %v4661 = vsel %vm4533, 1, 0
  %v4662 = vsel %vm4534, 1, 0
  %v4663 = vsel %vm4535, 1, 0
  %v4664 = vsel %vm4536, 1, 0
  %v4665 = vsel %vm4537, 1, 0
  %v4666 = vsel %vm4538, 1, 0
  %v4667 = vsel %vm4539, 1, 0
  %v4668 = vsel %vm4540, 1, 0
  %v4669 = vsel %vm4541, 1, 0
  %v4670 = vsel %vm4542, 1, 0
  %v4671 = vsel %vm4543, 1, 0
  %v4672 = vsel %vm4544, 1, 0
  %v4673 = vsel %vm4545, 1, 0
  %v4674 = vsel %vm4546, 1, 0
  %v4675 = vsel %vm4547, 1, 0
  %v4676 = vsel %vm4548, 1, 0
  %v4677 = vsel %vm4549, 1, 0
  %v4678 = vsel %vm4550, 1, 0
  %v4679 = vsel %vm4551, 1, 0
  %v4680 = vsel %vm4552, 1, 0
  %v4681 = vsel %vm4553, 1, 0
  %v4682 = vsel %vm4554, 1, 0
  %v4683 = vsel %vm4555, 1, 0
  %v4684 = vsel %vm4556, 1, 0
  %v4685 = vsel %vm4557, 1, 0
  %v4686 = vsel %vm4558, 1, 0
  %v4687 = vsel %vm4559, 1, 0
  %v4688 = vsel %vm4560, 1, 0
  %v4689 = vsel %vm4561, 1, 0
  %v4690 = vsel %vm4562, 1, 0
  %v4691 = vsel %vm4563, 1, 0
  %v4692 = vsel %vm4564, 1, 0
  %v4693 = vsel %vm4565, 1, 0
  %v4694 = vsel %vm4566, 1, 0
  %v4695 = vsel %vm4567, 1, 0
  %v4696 = vsel %vm4568, 1, 0
  %v4697 = vsel %vm4569, 1, 0
  %v4698 = vsel %vm4570, 1, 0
  %v4699 = vsel %vm4571, 1, 0
  %v4700 = vsel %vm4572, 1, 0
  %v4701 = vsel %vm4573, 1, 0
  %v4702 = vsel %vm4574, 1, 0
  %v4703 = vsel %vm4575, 1, 0
  %v4704 = vsel %vm4576, 1, 0
  %v4705 = vsel %vm4577, 1, 0
  %v4706 = vsel %vm4578, 1, 0
  %v4707 = vsel %vm4579, 1, 0
  %v4708 = vsel %vm4580, 1, 0
  %v4709 = vsel %vm4581, 1, 0
  %v4710 = vsel %vm4582, 1, 0
  %v4711 = vsel %vm4583, 1, 0
  %v4712 = vsel %vm4584, 1, 0
  %v4713 = vsel %vm4585, 1, 0
  %v4714 = vsel %vm4586, 1, 0
  %v4715 = vsel %vm4587, 1, 0
  %v4716 = vsel %vm4588, 1, 0
  %v4717 = vsel %vm4589, 1, 0
  %v4718 = vsel %vm4590, 1, 0
  %v4719 = vsel %vm4591, 1, 0
  %v4720 = vsel %vm4592, 1, 0
  %v4721 = vsel %vm4593, 1, 0
  %v4722 = vsel %vm4594, 1, 0
  %v4723 = vsel %vm4595, 1, 0
  %v4724 = vcvt.s32.f32 %v4596
  %v4725 = vcvt.s32.f32 %v4597
  %v4726 = vcvt.s32.f32 %v4598
  %v4727 = vcvt.s32.f32 %v4599
  %v4728 = vcvt.s32.f32 %v4600
  %v4729 = vcvt.s32.f32 %v4601
  %v4730 = vcvt.s32.f32 %v4602
  %v4731 = vcvt.s32.f32 %v4603
  %v4732 = vcvt.s32.f32 %v4604
  %v4733 = vcvt.s32.f32 %v4605
  %v4734 = vcvt.s32.f32 %v4606
  %v4735 = vcvt.s32.f32 %v4607
  %v4736 = vcvt.s32.f32 %v4608
  %v4737 = vcvt.s32.f32 %v4609
  %v4738 = vcvt.s32.f32 %v4610
  %v4739 = vcvt.s32.f32 %v4611
  %v4740 = vcvt.s32.f32 %v4612
  %v4741 = vcvt.s32.f32 %v4613
  %v4742 = vcvt.s32.f32 %v4614
  %v4743 = vcvt.s32.f32 %v4615
  %v4744 = vcvt.s32.f32 %v4616
  %v4745 = vcvt.s32.f32 %v4617
  %v4746 = vcvt.s32.f32 %v4618
  %v4747 = vcvt.s32.f32 %v4619
  %v4748 = vcvt.s32.f32 %v4620
  %v4749 = vcvt.s32.f32 %v4621
  %v4750 = vcvt.s32.f32 %v4622
  %v4751 = vcvt.s32.f32 %v4623
  %v4752 = vcvt.s32.f32 %v4624
  %v4753 = vcvt.s32.f32 %v4625
  %v4754 = vcvt.s32.f32 %v4626
  %v4755 = vcvt.s32.f32 %v4627
  %v4756 = vcvt.s32.f32 %v4628
  %v4757 = vcvt.s32.f32 %v4629
  %v4758 = vcvt.s32.f32 %v4630
  %v4759 = vcvt.s32.f32 %v4631
  %v4760 = vcvt.s32.f32 %v4632
  %v4761 = vcvt.s32.f32 %v4633
  %v4762 = vcvt.s32.f32 %v4634
  %v4763 = vcvt.s32.f32 %v4635
  %v4764 = vcvt.s32.f32 %v4636
  %v4765 = vcvt.s32.f32 %v4637
  %v4766 = vcvt.s32.f32 %v4638
  %v4767 = vcvt.s32.f32 %v4639
  %v4768 = vcvt.s32.f32 %v4640
  %v4769 = vcvt.s32.f32 %v4641
  %v4770 = vcvt.s32.f32 %v4642
  %v4771 = vcvt.s32.f32 %v4643
  %v4772 = vcvt.s32.f32 %v4644
  %v4773 = vcvt.s32.f32 %v4645
  %v4774 = vcvt.s32.f32 %v4646
  %v4775 = vcvt.s32.f32 %v4647
  %v4776 = vcvt.s32.f32 %v4648
  %v4777 = vcvt.s32.f32 %v4649
  %v4778 = vcvt.s32.f32 %v4650
  %v4779 = vcvt.s32.f32 %v4651
  %v4780 = vcvt.s32.f32 %v4652
  %v4781 = vcvt.s32.f32 %v4653
  %v4782 = vcvt.s32.f32 %v4654
  %v4783 = vcvt.s32.f32 %v4655
  %v4784 = vcvt.s32.f32 %v4656
  %v4785 = vcvt.s32.f32 %v4657
  %v4786 = vcvt.s32.f32 %v4658
  %v4787 = vcvt.s32.f32 %v4659
  %v4788 = vcvt.s32.f32 %v4660
  %v4789 = vcvt.s32.f32 %v4661
  %v4790 = vcvt.s32.f32 %v4662
  %v4791 = vcvt.s32.f32 %v4663
  %v4792 = vcvt.s32.f32 %v4664
  %v4793 = vcvt.s32.f32 %v4665
  %v4794 = vcvt.s32.f32 %v4666
  %v4795 = vcvt.s32.f32 %v4667
  %v4796 = vcvt.s32.f32 %v4668
  %v4797 = vcvt.s32.f32 %v4669
  %v4798 = vcvt.s32.f32 %v4670
  %v4799 = vcvt.s32.f32 %v4671
  %v4800 = vcvt.s32.f32 %v4672
  %v4801 = vcvt.s32.f32 %v4673
  %v4802 = vcvt.s32.f32 %v4674
  %v4803 = vcvt.s32.f32 %v4675
  %v4804 = vcvt.s32.f32 %v4676
  %v4805 = vcvt.s32.f32 %v4677
  %v4806 = vcvt.s32.f32 %v4678
  %v4807 = vcvt.s32.f32 %v4679
  %v4808 = vcvt.s32.f32 %v4680
  %v4809 = vcvt.s32.f32 %v4681
  %v4810 = vcvt.s32.f32 %v4682
  %v4811 = vcvt.s32.f32 %v4683
  %v4812 = vcvt.s32.f32 %v4684
  %v4813 = vcvt.s32.f32 %v4685
  %v4814 = vcvt.s32.f32 %v4686
  %v4815 = vcvt.s32.f32 %v4687
  %v4816 = vcvt.s32.f32 %v4688
  %v4817 = vcvt.s32.f32 %v4689
  %v4818 = vcvt.s32.f32 %v4690
  %v4819 = vcvt.s32.f32 %v4691
  %v4820 = vcvt.s32.f32 %v4692
  %v4821 = vcvt.s32.f32 %v4693
  %v4822 = vcvt.s32.f32 %v4694
  %v4823 = vcvt.s32.f32 %v4695
  %v4824 = vcvt.s32.f32 %v4696
  %v4825 = vcvt.s32.f32 %v4697
  %v4826 = vcvt.s32.f32 %v4698
  %v4827 = vcvt.s32.f32 %v4699
  %v4828 = vcvt.s32.f32 %v4700
  %v4829 = vcvt.s32.f32 %v4701
  %v4830 = vcvt.s32.f32 %v4702
  %v4831 = vcvt.s32.f32 %v4703
  %v4832 = vcvt.s32.f32 %v4704
  %v4833 = vcvt.s32.f32 %v4705
  %v4834 = vcvt.s32.f32 %v4706
  %v4835 = vcvt.s32.f32 %v4707
  %v4836 = vcvt.s32.f32 %v4708
  %v4837 = vcvt.s32.f32 %v4709
  %v4838 = vcvt.s32.f32 %v4710
  %v4839 = vcvt.s32.f32 %v4711
  %v4840 = vcvt.s32.f32 %v4712
  %v4841 = vcvt.s32.f32 %v4713
  %v4842 = vcvt.s32.f32 %v4714
  %v4843 = vcvt.s32.f32 %v4715
  %v4844 = vcvt.s32.f32 %v4716
  %v4845 = vcvt.s32.f32 %v4717
  %v4846 = vcvt.s32.f32 %v4718
  %v4847 = vcvt.s32.f32 %v4719
  %v4848 = vcvt.s32.f32 %v4720
  %v4849 = vcvt.s32.f32 %v4721
  %v4850 = vcvt.s32.f32 %v4722
  %v4851 = vcvt.s32.f32 %v4723
  %vm4852 = vcmp.eq.s32.totalorder %v4436, %v499
  %vm4853 = vcmp.eq.s32.totalorder %v4436, %v503
  %vm4854 = vcmp.eq.s32.totalorder %v4436, %v507
  %vm4855 = vcmp.eq.s32.totalorder %v4436, %v511
  %vm4856 = vcmp.eq.s32.totalorder %v4437, %v499
  %vm4857 = vcmp.eq.s32.totalorder %v4437, %v503
  %vm4858 = vcmp.eq.s32.totalorder %v4437, %v507
  %vm4859 = vcmp.eq.s32.totalorder %v4437, %v511
  %vm4860 = vcmp.eq.s32.totalorder %v4438, %v499
  %vm4861 = vcmp.eq.s32.totalorder %v4438, %v503
  %vm4862 = vcmp.eq.s32.totalorder %v4438, %v507
  %vm4863 = vcmp.eq.s32.totalorder %v4438, %v511
  %vm4864 = vcmp.eq.s32.totalorder %v4439, %v499
  %vm4865 = vcmp.eq.s32.totalorder %v4439, %v503
  %vm4866 = vcmp.eq.s32.totalorder %v4439, %v507
  %vm4867 = vcmp.eq.s32.totalorder %v4439, %v511
  %vm4868 = vcmp.eq.s32.totalorder %v4440, %v499
  %vm4869 = vcmp.eq.s32.totalorder %v4440, %v503
  %vm4870 = vcmp.eq.s32.totalorder %v4440, %v507
  %vm4871 = vcmp.eq.s32.totalorder %v4440, %v511
  %vm4872 = vcmp.eq.s32.totalorder %v4441, %v499
  %vm4873 = vcmp.eq.s32.totalorder %v4441, %v503
  %vm4874 = vcmp.eq.s32.totalorder %v4441, %v507
  %vm4875 = vcmp.eq.s32.totalorder %v4441, %v511
  %vm4876 = vcmp.eq.s32.totalorder %v4442, %v499
  %vm4877 = vcmp.eq.s32.totalorder %v4442, %v503
  %vm4878 = vcmp.eq.s32.totalorder %v4442, %v507
  %vm4879 = vcmp.eq.s32.totalorder %v4442, %v511
  %vm4880 = vcmp.eq.s32.totalorder %v4443, %v499
  %vm4881 = vcmp.eq.s32.totalorder %v4443, %v503
  %vm4882 = vcmp.eq.s32.totalorder %v4443, %v507
  %vm4883 = vcmp.eq.s32.totalorder %v4443, %v511
  %vm4884 = vcmp.eq.s32.totalorder %v4444, %v499
  %vm4885 = vcmp.eq.s32.totalorder %v4444, %v503
  %vm4886 = vcmp.eq.s32.totalorder %v4444, %v507
  %vm4887 = vcmp.eq.s32.totalorder %v4444, %v511
  %vm4888 = vcmp.eq.s32.totalorder %v4445, %v499
  %vm4889 = vcmp.eq.s32.totalorder %v4445, %v503
  %vm4890 = vcmp.eq.s32.totalorder %v4445, %v507
  %vm4891 = vcmp.eq.s32.totalorder %v4445, %v511
  %vm4892 = vcmp.eq.s32.totalorder %v4446, %v499
  %vm4893 = vcmp.eq.s32.totalorder %v4446, %v503
  %vm4894 = vcmp.eq.s32.totalorder %v4446, %v507
  %vm4895 = vcmp.eq.s32.totalorder %v4446, %v511
  %vm4896 = vcmp.eq.s32.totalorder %v4447, %v499
  %vm4897 = vcmp.eq.s32.totalorder %v4447, %v503
  %vm4898 = vcmp.eq.s32.totalorder %v4447, %v507
  %vm4899 = vcmp.eq.s32.totalorder %v4447, %v511
  %vm4900 = vcmp.eq.s32.totalorder %v4448, %v499
  %vm4901 = vcmp.eq.s32.totalorder %v4448, %v503
  %vm4902 = vcmp.eq.s32.totalorder %v4448, %v507
  %vm4903 = vcmp.eq.s32.totalorder %v4448, %v511
  %vm4904 = vcmp.eq.s32.totalorder %v4449, %v499
  %vm4905 = vcmp.eq.s32.totalorder %v4449, %v503
  %vm4906 = vcmp.eq.s32.totalorder %v4449, %v507
  %vm4907 = vcmp.eq.s32.totalorder %v4449, %v511
  %vm4908 = vcmp.eq.s32.totalorder %v4450, %v499
  %vm4909 = vcmp.eq.s32.totalorder %v4450, %v503
  %vm4910 = vcmp.eq.s32.totalorder %v4450, %v507
  %vm4911 = vcmp.eq.s32.totalorder %v4450, %v511
  %vm4912 = vcmp.eq.s32.totalorder %v4451, %v499
  %vm4913 = vcmp.eq.s32.totalorder %v4451, %v503
  %vm4914 = vcmp.eq.s32.totalorder %v4451, %v507
  %vm4915 = vcmp.eq.s32.totalorder %v4451, %v511
  %vm4916 = vcmp.eq.s32.totalorder %v4452, %v499
  %vm4917 = vcmp.eq.s32.totalorder %v4452, %v503
  %vm4918 = vcmp.eq.s32.totalorder %v4452, %v507
  %vm4919 = vcmp.eq.s32.totalorder %v4452, %v511
  %vm4920 = vcmp.eq.s32.totalorder %v4453, %v499
  %vm4921 = vcmp.eq.s32.totalorder %v4453, %v503
  %vm4922 = vcmp.eq.s32.totalorder %v4453, %v507
  %vm4923 = vcmp.eq.s32.totalorder %v4453, %v511
  %vm4924 = vcmp.eq.s32.totalorder %v4454, %v499
  %vm4925 = vcmp.eq.s32.totalorder %v4454, %v503
  %vm4926 = vcmp.eq.s32.totalorder %v4454, %v507
  %vm4927 = vcmp.eq.s32.totalorder %v4454, %v511
  %vm4928 = vcmp.eq.s32.totalorder %v4455, %v499
  %vm4929 = vcmp.eq.s32.totalorder %v4455, %v503
  %vm4930 = vcmp.eq.s32.totalorder %v4455, %v507
  %vm4931 = vcmp.eq.s32.totalorder %v4455, %v511
  %vm4932 = vcmp.eq.s32.totalorder %v4456, %v499
  %vm4933 = vcmp.eq.s32.totalorder %v4456, %v503
  %vm4934 = vcmp.eq.s32.totalorder %v4456, %v507
  %vm4935 = vcmp.eq.s32.totalorder %v4456, %v511
  %vm4936 = vcmp.eq.s32.totalorder %v4457, %v499
  %vm4937 = vcmp.eq.s32.totalorder %v4457, %v503
  %vm4938 = vcmp.eq.s32.totalorder %v4457, %v507
  %vm4939 = vcmp.eq.s32.totalorder %v4457, %v511
  %vm4940 = vcmp.eq.s32.totalorder %v4458, %v499
  %vm4941 = vcmp.eq.s32.totalorder %v4458, %v503
  %vm4942 = vcmp.eq.s32.totalorder %v4458, %v507
  %vm4943 = vcmp.eq.s32.totalorder %v4458, %v511
  %vm4944 = vcmp.eq.s32.totalorder %v4459, %v499
  %vm4945 = vcmp.eq.s32.totalorder %v4459, %v503
  %vm4946 = vcmp.eq.s32.totalorder %v4459, %v507
  %vm4947 = vcmp.eq.s32.totalorder %v4459, %v511
  %vm4948 = vcmp.eq.s32.totalorder %v4460, %v499
  %vm4949 = vcmp.eq.s32.totalorder %v4460, %v503
  %vm4950 = vcmp.eq.s32.totalorder %v4460, %v507
  %vm4951 = vcmp.eq.s32.totalorder %v4460, %v511
  %vm4952 = vcmp.eq.s32.totalorder %v4461, %v499
  %vm4953 = vcmp.eq.s32.totalorder %v4461, %v503
  %vm4954 = vcmp.eq.s32.totalorder %v4461, %v507
  %vm4955 = vcmp.eq.s32.totalorder %v4461, %v511
  %vm4956 = vcmp.eq.s32.totalorder %v4462, %v499
  %vm4957 = vcmp.eq.s32.totalorder %v4462, %v503
  %vm4958 = vcmp.eq.s32.totalorder %v4462, %v507
  %vm4959 = vcmp.eq.s32.totalorder %v4462, %v511
  %vm4960 = vcmp.eq.s32.totalorder %v4463, %v499
  %vm4961 = vcmp.eq.s32.totalorder %v4463, %v503
  %vm4962 = vcmp.eq.s32.totalorder %v4463, %v507
  %vm4963 = vcmp.eq.s32.totalorder %v4463, %v511
  %vm4964 = vcmp.eq.s32.totalorder %v4464, %v499
  %vm4965 = vcmp.eq.s32.totalorder %v4464, %v503
  %vm4966 = vcmp.eq.s32.totalorder %v4464, %v507
  %vm4967 = vcmp.eq.s32.totalorder %v4464, %v511
  %vm4968 = vcmp.eq.s32.totalorder %v4465, %v499
  %vm4969 = vcmp.eq.s32.totalorder %v4465, %v503
  %vm4970 = vcmp.eq.s32.totalorder %v4465, %v507
  %vm4971 = vcmp.eq.s32.totalorder %v4465, %v511
  %vm4972 = vcmp.eq.s32.totalorder %v4466, %v499
  %vm4973 = vcmp.eq.s32.totalorder %v4466, %v503
  %vm4974 = vcmp.eq.s32.totalorder %v4466, %v507
  %vm4975 = vcmp.eq.s32.totalorder %v4466, %v511
  %vm4976 = vcmp.eq.s32.totalorder %v4467, %v499
  %vm4977 = vcmp.eq.s32.totalorder %v4467, %v503
  %vm4978 = vcmp.eq.s32.totalorder %v4467, %v507
  %vm4979 = vcmp.eq.s32.totalorder %v4467, %v511
  %v4980 = vsel %vm4852, 1, 0
  %v4981 = vsel %vm4853, 1, 0
  %v4982 = vsel %vm4854, 1, 0
  %v4983 = vsel %vm4855, 1, 0
  %v4984 = vsel %vm4856, 1, 0
  %v4985 = vsel %vm4857, 1, 0
  %v4986 = vsel %vm4858, 1, 0
  %v4987 = vsel %vm4859, 1, 0
  %v4988 = vsel %vm4860, 1, 0
  %v4989 = vsel %vm4861, 1, 0
  %v4990 = vsel %vm4862, 1, 0
  %v4991 = vsel %vm4863, 1, 0
  %v4992 = vsel %vm4864, 1, 0
  %v4993 = vsel %vm4865, 1, 0
  %v4994 = vsel %vm4866, 1, 0
  %v4995 = vsel %vm4867, 1, 0
  %v4996 = vsel %vm4868, 1, 0
  %v4997 = vsel %vm4869, 1, 0
  %v4998 = vsel %vm4870, 1, 0
  %v4999 = vsel %vm4871, 1, 0
  %v5000 = vsel %vm4872, 1, 0
  %v5001 = vsel %vm4873, 1, 0
  %v5002 = vsel %vm4874, 1, 0
  %v5003 = vsel %vm4875, 1, 0
  %v5004 = vsel %vm4876, 1, 0
  %v5005 = vsel %vm4877, 1, 0
  %v5006 = vsel %vm4878, 1, 0
  %v5007 = vsel %vm4879, 1, 0
  %v5008 = vsel %vm4880, 1, 0
  %v5009 = vsel %vm4881, 1, 0
  %v5010 = vsel %vm4882, 1, 0
  %v5011 = vsel %vm4883, 1, 0
  %v5012 = vsel %vm4884, 1, 0
  %v5013 = vsel %vm4885, 1, 0
  %v5014 = vsel %vm4886, 1, 0
  %v5015 = vsel %vm4887, 1, 0
  %v5016 = vsel %vm4888, 1, 0
  %v5017 = vsel %vm4889, 1, 0
  %v5018 = vsel %vm4890, 1, 0
  %v5019 = vsel %vm4891, 1, 0
  %v5020 = vsel %vm4892, 1, 0
  %v5021 = vsel %vm4893, 1, 0
  %v5022 = vsel %vm4894, 1, 0
  %v5023 = vsel %vm4895, 1, 0
  %v5024 = vsel %vm4896, 1, 0
  %v5025 = vsel %vm4897, 1, 0
  %v5026 = vsel %vm4898, 1, 0
  %v5027 = vsel %vm4899, 1, 0
  %v5028 = vsel %vm4900, 1, 0
  %v5029 = vsel %vm4901, 1, 0
  %v5030 = vsel %vm4902, 1, 0
  %v5031 = vsel %vm4903, 1, 0
  %v5032 = vsel %vm4904, 1, 0
  %v5033 = vsel %vm4905, 1, 0
  %v5034 = vsel %vm4906, 1, 0
  %v5035 = vsel %vm4907, 1, 0
  %v5036 = vsel %vm4908, 1, 0
  %v5037 = vsel %vm4909, 1, 0
  %v5038 = vsel %vm4910, 1, 0
  %v5039 = vsel %vm4911, 1, 0
  %v5040 = vsel %vm4912, 1, 0
  %v5041 = vsel %vm4913, 1, 0
  %v5042 = vsel %vm4914, 1, 0
  %v5043 = vsel %vm4915, 1, 0
  %v5044 = vsel %vm4916, 1, 0
  %v5045 = vsel %vm4917, 1, 0
  %v5046 = vsel %vm4918, 1, 0
  %v5047 = vsel %vm4919, 1, 0
  %v5048 = vsel %vm4920, 1, 0
  %v5049 = vsel %vm4921, 1, 0
  %v5050 = vsel %vm4922, 1, 0
  %v5051 = vsel %vm4923, 1, 0
  %v5052 = vsel %vm4924, 1, 0
  %v5053 = vsel %vm4925, 1, 0
  %v5054 = vsel %vm4926, 1, 0
  %v5055 = vsel %vm4927, 1, 0
  %v5056 = vsel %vm4928, 1, 0
  %v5057 = vsel %vm4929, 1, 0
  %v5058 = vsel %vm4930, 1, 0
  %v5059 = vsel %vm4931, 1, 0
  %v5060 = vsel %vm4932, 1, 0
  %v5061 = vsel %vm4933, 1, 0
  %v5062 = vsel %vm4934, 1, 0
  %v5063 = vsel %vm4935, 1, 0
  %v5064 = vsel %vm4936, 1, 0
  %v5065 = vsel %vm4937, 1, 0
  %v5066 = vsel %vm4938, 1, 0
  %v5067 = vsel %vm4939, 1, 0
  %v5068 = vsel %vm4940, 1, 0
  %v5069 = vsel %vm4941, 1, 0
  %v5070 = vsel %vm4942, 1, 0
  %v5071 = vsel %vm4943, 1, 0
  %v5072 = vsel %vm4944, 1, 0
  %v5073 = vsel %vm4945, 1, 0
  %v5074 = vsel %vm4946, 1, 0
  %v5075 = vsel %vm4947, 1, 0
  %v5076 = vsel %vm4948, 1, 0
  %v5077 = vsel %vm4949, 1, 0
  %v5078 = vsel %vm4950, 1, 0
  %v5079 = vsel %vm4951, 1, 0
  %v5080 = vsel %vm4952, 1, 0
  %v5081 = vsel %vm4953, 1, 0
  %v5082 = vsel %vm4954, 1, 0
  %v5083 = vsel %vm4955, 1, 0
  %v5084 = vsel %vm4956, 1, 0
  %v5085 = vsel %vm4957, 1, 0
  %v5086 = vsel %vm4958, 1, 0
  %v5087 = vsel %vm4959, 1, 0
  %v5088 = vsel %vm4960, 1, 0
  %v5089 = vsel %vm4961, 1, 0
  %v5090 = vsel %vm4962, 1, 0
  %v5091 = vsel %vm4963, 1, 0
  %v5092 = vsel %vm4964, 1, 0
  %v5093 = vsel %vm4965, 1, 0
  %v5094 = vsel %vm4966, 1, 0
  %v5095 = vsel %vm4967, 1, 0
  %v5096 = vsel %vm4968, 1, 0
  %v5097 = vsel %vm4969, 1, 0
  %v5098 = vsel %vm4970, 1, 0
  %v5099 = vsel %vm4971, 1, 0
  %v5100 = vsel %vm4972, 1, 0
  %v5101 = vsel %vm4973, 1, 0
  %v5102 = vsel %vm4974, 1, 0
  %v5103 = vsel %vm4975, 1, 0
  %v5104 = vsel %vm4976, 1, 0
  %v5105 = vsel %vm4977, 1, 0
  %v5106 = vsel %vm4978, 1, 0
  %v5107 = vsel %vm4979, 1, 0
  %v5108 = vcvt.s32.f32 %v4980
  %v5109 = vcvt.s32.f32 %v4981
  %v5110 = vcvt.s32.f32 %v4982
  %v5111 = vcvt.s32.f32 %v4983
  %v5112 = vcvt.s32.f32 %v4984
  %v5113 = vcvt.s32.f32 %v4985
  %v5114 = vcvt.s32.f32 %v4986
  %v5115 = vcvt.s32.f32 %v4987
  %v5116 = vcvt.s32.f32 %v4988
  %v5117 = vcvt.s32.f32 %v4989
  %v5118 = vcvt.s32.f32 %v4990
  %v5119 = vcvt.s32.f32 %v4991
  %v5120 = vcvt.s32.f32 %v4992
  %v5121 = vcvt.s32.f32 %v4993
  %v5122 = vcvt.s32.f32 %v4994
  %v5123 = vcvt.s32.f32 %v4995
  %v5124 = vcvt.s32.f32 %v4996
  %v5125 = vcvt.s32.f32 %v4997
  %v5126 = vcvt.s32.f32 %v4998
  %v5127 = vcvt.s32.f32 %v4999
  %v5128 = vcvt.s32.f32 %v5000
  %v5129 = vcvt.s32.f32 %v5001
  %v5130 = vcvt.s32.f32 %v5002
  %v5131 = vcvt.s32.f32 %v5003
  %v5132 = vcvt.s32.f32 %v5004
  %v5133 = vcvt.s32.f32 %v5005
  %v5134 = vcvt.s32.f32 %v5006
  %v5135 = vcvt.s32.f32 %v5007
  %v5136 = vcvt.s32.f32 %v5008
  %v5137 = vcvt.s32.f32 %v5009
  %v5138 = vcvt.s32.f32 %v5010
  %v5139 = vcvt.s32.f32 %v5011
  %v5140 = vcvt.s32.f32 %v5012
  %v5141 = vcvt.s32.f32 %v5013
  %v5142 = vcvt.s32.f32 %v5014
  %v5143 = vcvt.s32.f32 %v5015
  %v5144 = vcvt.s32.f32 %v5016
  %v5145 = vcvt.s32.f32 %v5017
  %v5146 = vcvt.s32.f32 %v5018
  %v5147 = vcvt.s32.f32 %v5019
  %v5148 = vcvt.s32.f32 %v5020
  %v5149 = vcvt.s32.f32 %v5021
  %v5150 = vcvt.s32.f32 %v5022
  %v5151 = vcvt.s32.f32 %v5023
  %v5152 = vcvt.s32.f32 %v5024
  %v5153 = vcvt.s32.f32 %v5025
  %v5154 = vcvt.s32.f32 %v5026
  %v5155 = vcvt.s32.f32 %v5027
  %v5156 = vcvt.s32.f32 %v5028
  %v5157 = vcvt.s32.f32 %v5029
  %v5158 = vcvt.s32.f32 %v5030
  %v5159 = vcvt.s32.f32 %v5031
  %v5160 = vcvt.s32.f32 %v5032
  %v5161 = vcvt.s32.f32 %v5033
  %v5162 = vcvt.s32.f32 %v5034
  %v5163 = vcvt.s32.f32 %v5035
  %v5164 = vcvt.s32.f32 %v5036
  %v5165 = vcvt.s32.f32 %v5037
  %v5166 = vcvt.s32.f32 %v5038
  %v5167 = vcvt.s32.f32 %v5039
  %v5168 = vcvt.s32.f32 %v5040
  %v5169 = vcvt.s32.f32 %v5041
  %v5170 = vcvt.s32.f32 %v5042
  %v5171 = vcvt.s32.f32 %v5043
  %v5172 = vcvt.s32.f32 %v5044
  %v5173 = vcvt.s32.f32 %v5045
  %v5174 = vcvt.s32.f32 %v5046
  %v5175 = vcvt.s32.f32 %v5047
  %v5176 = vcvt.s32.f32 %v5048
  %v5177 = vcvt.s32.f32 %v5049
  %v5178 = vcvt.s32.f32 %v5050
  %v5179 = vcvt.s32.f32 %v5051
  %v5180 = vcvt.s32.f32 %v5052
  %v5181 = vcvt.s32.f32 %v5053
  %v5182 = vcvt.s32.f32 %v5054
  %v5183 = vcvt.s32.f32 %v5055
  %v5184 = vcvt.s32.f32 %v5056
  %v5185 = vcvt.s32.f32 %v5057
  %v5186 = vcvt.s32.f32 %v5058
  %v5187 = vcvt.s32.f32 %v5059
  %v5188 = vcvt.s32.f32 %v5060
  %v5189 = vcvt.s32.f32 %v5061
  %v5190 = vcvt.s32.f32 %v5062
  %v5191 = vcvt.s32.f32 %v5063
  %v5192 = vcvt.s32.f32 %v5064
  %v5193 = vcvt.s32.f32 %v5065
  %v5194 = vcvt.s32.f32 %v5066
  %v5195 = vcvt.s32.f32 %v5067
  %v5196 = vcvt.s32.f32 %v5068
  %v5197 = vcvt.s32.f32 %v5069
  %v5198 = vcvt.s32.f32 %v5070
  %v5199 = vcvt.s32.f32 %v5071
  %v5200 = vcvt.s32.f32 %v5072
  %v5201 = vcvt.s32.f32 %v5073
  %v5202 = vcvt.s32.f32 %v5074
  %v5203 = vcvt.s32.f32 %v5075
  %v5204 = vcvt.s32.f32 %v5076
  %v5205 = vcvt.s32.f32 %v5077
  %v5206 = vcvt.s32.f32 %v5078
  %v5207 = vcvt.s32.f32 %v5079
  %v5208 = vcvt.s32.f32 %v5080
  %v5209 = vcvt.s32.f32 %v5081
  %v5210 = vcvt.s32.f32 %v5082
  %v5211 = vcvt.s32.f32 %v5083
  %v5212 = vcvt.s32.f32 %v5084
  %v5213 = vcvt.s32.f32 %v5085
  %v5214 = vcvt.s32.f32 %v5086
  %v5215 = vcvt.s32.f32 %v5087
  %v5216 = vcvt.s32.f32 %v5088
  %v5217 = vcvt.s32.f32 %v5089
  %v5218 = vcvt.s32.f32 %v5090
  %v5219 = vcvt.s32.f32 %v5091
  %v5220 = vcvt.s32.f32 %v5092
  %v5221 = vcvt.s32.f32 %v5093
  %v5222 = vcvt.s32.f32 %v5094
  %v5223 = vcvt.s32.f32 %v5095
  %v5224 = vcvt.s32.f32 %v5096
  %v5225 = vcvt.s32.f32 %v5097
  %v5226 = vcvt.s32.f32 %v5098
  %v5227 = vcvt.s32.f32 %v5099
  %v5228 = vcvt.s32.f32 %v5100
  %v5229 = vcvt.s32.f32 %v5101
  %v5230 = vcvt.s32.f32 %v5102
  %v5231 = vcvt.s32.f32 %v5103
  %v5232 = vcvt.s32.f32 %v5104
  %v5233 = vcvt.s32.f32 %v5105
  %v5234 = vcvt.s32.f32 %v5106
  %v5235 = vcvt.s32.f32 %v5107
  %v5236 = vadd.f32 %v4724, %v5108
  %v5237 = vadd.f32 %v4725, %v5109
  %v5238 = vadd.f32 %v4726, %v5110
  %v5239 = vadd.f32 %v4727, %v5111
  %v5240 = vadd.f32 %v4728, %v5112
  %v5241 = vadd.f32 %v4729, %v5113
  %v5242 = vadd.f32 %v4730, %v5114
  %v5243 = vadd.f32 %v4731, %v5115
  %v5244 = vadd.f32 %v4732, %v5116
  %v5245 = vadd.f32 %v4733, %v5117
  %v5246 = vadd.f32 %v4734, %v5118
  %v5247 = vadd.f32 %v4735, %v5119
  %v5248 = vadd.f32 %v4736, %v5120
  %v5249 = vadd.f32 %v4737, %v5121
  %v5250 = vadd.f32 %v4738, %v5122
  %v5251 = vadd.f32 %v4739, %v5123
  %v5252 = vadd.f32 %v4740, %v5124
  %v5253 = vadd.f32 %v4741, %v5125
  %v5254 = vadd.f32 %v4742, %v5126
  %v5255 = vadd.f32 %v4743, %v5127
  %v5256 = vadd.f32 %v4744, %v5128
  %v5257 = vadd.f32 %v4745, %v5129
  %v5258 = vadd.f32 %v4746, %v5130
  %v5259 = vadd.f32 %v4747, %v5131
  %v5260 = vadd.f32 %v4748, %v5132
  %v5261 = vadd.f32 %v4749, %v5133
  %v5262 = vadd.f32 %v4750, %v5134
  %v5263 = vadd.f32 %v4751, %v5135
  %v5264 = vadd.f32 %v4752, %v5136
  %v5265 = vadd.f32 %v4753, %v5137
  %v5266 = vadd.f32 %v4754, %v5138
  %v5267 = vadd.f32 %v4755, %v5139
  %v5268 = vadd.f32 %v4756, %v5140
  %v5269 = vadd.f32 %v4757, %v5141
  %v5270 = vadd.f32 %v4758, %v5142
  %v5271 = vadd.f32 %v4759, %v5143
  %v5272 = vadd.f32 %v4760, %v5144
  %v5273 = vadd.f32 %v4761, %v5145
  %v5274 = vadd.f32 %v4762, %v5146
  %v5275 = vadd.f32 %v4763, %v5147
  %v5276 = vadd.f32 %v4764, %v5148
  %v5277 = vadd.f32 %v4765, %v5149
  %v5278 = vadd.f32 %v4766, %v5150
  %v5279 = vadd.f32 %v4767, %v5151
  %v5280 = vadd.f32 %v4768, %v5152
  %v5281 = vadd.f32 %v4769, %v5153
  %v5282 = vadd.f32 %v4770, %v5154
  %v5283 = vadd.f32 %v4771, %v5155
  %v5284 = vadd.f32 %v4772, %v5156
  %v5285 = vadd.f32 %v4773, %v5157
  %v5286 = vadd.f32 %v4774, %v5158
  %v5287 = vadd.f32 %v4775, %v5159
  %v5288 = vadd.f32 %v4776, %v5160
  %v5289 = vadd.f32 %v4777, %v5161
  %v5290 = vadd.f32 %v4778, %v5162
  %v5291 = vadd.f32 %v4779, %v5163
  %v5292 = vadd.f32 %v4780, %v5164
  %v5293 = vadd.f32 %v4781, %v5165
  %v5294 = vadd.f32 %v4782, %v5166
  %v5295 = vadd.f32 %v4783, %v5167
  %v5296 = vadd.f32 %v4784, %v5168
  %v5297 = vadd.f32 %v4785, %v5169
  %v5298 = vadd.f32 %v4786, %v5170
  %v5299 = vadd.f32 %v4787, %v5171
  %v5300 = vadd.f32 %v4788, %v5172
  %v5301 = vadd.f32 %v4789, %v5173
  %v5302 = vadd.f32 %v4790, %v5174
  %v5303 = vadd.f32 %v4791, %v5175
  %v5304 = vadd.f32 %v4792, %v5176
  %v5305 = vadd.f32 %v4793, %v5177
  %v5306 = vadd.f32 %v4794, %v5178
  %v5307 = vadd.f32 %v4795, %v5179
  %v5308 = vadd.f32 %v4796, %v5180
  %v5309 = vadd.f32 %v4797, %v5181
  %v5310 = vadd.f32 %v4798, %v5182
  %v5311 = vadd.f32 %v4799, %v5183
  %v5312 = vadd.f32 %v4800, %v5184
  %v5313 = vadd.f32 %v4801, %v5185
  %v5314 = vadd.f32 %v4802, %v5186
  %v5315 = vadd.f32 %v4803, %v5187
  %v5316 = vadd.f32 %v4804, %v5188
  %v5317 = vadd.f32 %v4805, %v5189
  %v5318 = vadd.f32 %v4806, %v5190
  %v5319 = vadd.f32 %v4807, %v5191
  %v5320 = vadd.f32 %v4808, %v5192
  %v5321 = vadd.f32 %v4809, %v5193
  %v5322 = vadd.f32 %v4810, %v5194
  %v5323 = vadd.f32 %v4811, %v5195
  %v5324 = vadd.f32 %v4812, %v5196
  %v5325 = vadd.f32 %v4813, %v5197
  %v5326 = vadd.f32 %v4814, %v5198
  %v5327 = vadd.f32 %v4815, %v5199
  %v5328 = vadd.f32 %v4816, %v5200
  %v5329 = vadd.f32 %v4817, %v5201
  %v5330 = vadd.f32 %v4818, %v5202
  %v5331 = vadd.f32 %v4819, %v5203
  %v5332 = vadd.f32 %v4820, %v5204
  %v5333 = vadd.f32 %v4821, %v5205
  %v5334 = vadd.f32 %v4822, %v5206
  %v5335 = vadd.f32 %v4823, %v5207
  %v5336 = vadd.f32 %v4824, %v5208
  %v5337 = vadd.f32 %v4825, %v5209
  %v5338 = vadd.f32 %v4826, %v5210
  %v5339 = vadd.f32 %v4827, %v5211
  %v5340 = vadd.f32 %v4828, %v5212
  %v5341 = vadd.f32 %v4829, %v5213
  %v5342 = vadd.f32 %v4830, %v5214
  %v5343 = vadd.f32 %v4831, %v5215
  %v5344 = vadd.f32 %v4832, %v5216
  %v5345 = vadd.f32 %v4833, %v5217
  %v5346 = vadd.f32 %v4834, %v5218
  %v5347 = vadd.f32 %v4835, %v5219
  %v5348 = vadd.f32 %v4836, %v5220
  %v5349 = vadd.f32 %v4837, %v5221
  %v5350 = vadd.f32 %v4838, %v5222
  %v5351 = vadd.f32 %v4839, %v5223
  %v5352 = vadd.f32 %v4840, %v5224
  %v5353 = vadd.f32 %v4841, %v5225
  %v5354 = vadd.f32 %v4842, %v5226
  %v5355 = vadd.f32 %v4843, %v5227
  %v5356 = vadd.f32 %v4844, %v5228
  %v5357 = vadd.f32 %v4845, %v5229
  %v5358 = vadd.f32 %v4846, %v5230
  %v5359 = vadd.f32 %v4847, %v5231
  %v5360 = vadd.f32 %v4848, %v5232
  %v5361 = vadd.f32 %v4849, %v5233
  %v5362 = vadd.f32 %v4850, %v5234
  %v5363 = vadd.f32 %v4851, %v5235
  %vm5364 = vcmp.eq.s32.totalorder %v4436, %v1043
  %vm5365 = vcmp.eq.s32.totalorder %v4436, %v1047
  %vm5366 = vcmp.eq.s32.totalorder %v4436, %v1051
  %vm5367 = vcmp.eq.s32.totalorder %v4436, %v1055
  %vm5368 = vcmp.eq.s32.totalorder %v4437, %v1043
  %vm5369 = vcmp.eq.s32.totalorder %v4437, %v1047
  %vm5370 = vcmp.eq.s32.totalorder %v4437, %v1051
  %vm5371 = vcmp.eq.s32.totalorder %v4437, %v1055
  %vm5372 = vcmp.eq.s32.totalorder %v4438, %v1043
  %vm5373 = vcmp.eq.s32.totalorder %v4438, %v1047
  %vm5374 = vcmp.eq.s32.totalorder %v4438, %v1051
  %vm5375 = vcmp.eq.s32.totalorder %v4438, %v1055
  %vm5376 = vcmp.eq.s32.totalorder %v4439, %v1043
  %vm5377 = vcmp.eq.s32.totalorder %v4439, %v1047
  %vm5378 = vcmp.eq.s32.totalorder %v4439, %v1051
  %vm5379 = vcmp.eq.s32.totalorder %v4439, %v1055
  %vm5380 = vcmp.eq.s32.totalorder %v4440, %v1043
  %vm5381 = vcmp.eq.s32.totalorder %v4440, %v1047
  %vm5382 = vcmp.eq.s32.totalorder %v4440, %v1051
  %vm5383 = vcmp.eq.s32.totalorder %v4440, %v1055
  %vm5384 = vcmp.eq.s32.totalorder %v4441, %v1043
  %vm5385 = vcmp.eq.s32.totalorder %v4441, %v1047
  %vm5386 = vcmp.eq.s32.totalorder %v4441, %v1051
  %vm5387 = vcmp.eq.s32.totalorder %v4441, %v1055
  %vm5388 = vcmp.eq.s32.totalorder %v4442, %v1043
  %vm5389 = vcmp.eq.s32.totalorder %v4442, %v1047
  %vm5390 = vcmp.eq.s32.totalorder %v4442, %v1051
  %vm5391 = vcmp.eq.s32.totalorder %v4442, %v1055
  %vm5392 = vcmp.eq.s32.totalorder %v4443, %v1043
  %vm5393 = vcmp.eq.s32.totalorder %v4443, %v1047
  %vm5394 = vcmp.eq.s32.totalorder %v4443, %v1051
  %vm5395 = vcmp.eq.s32.totalorder %v4443, %v1055
  %vm5396 = vcmp.eq.s32.totalorder %v4444, %v1043
  %vm5397 = vcmp.eq.s32.totalorder %v4444, %v1047
  %vm5398 = vcmp.eq.s32.totalorder %v4444, %v1051
  %vm5399 = vcmp.eq.s32.totalorder %v4444, %v1055
  %vm5400 = vcmp.eq.s32.totalorder %v4445, %v1043
  %vm5401 = vcmp.eq.s32.totalorder %v4445, %v1047
  %vm5402 = vcmp.eq.s32.totalorder %v4445, %v1051
  %vm5403 = vcmp.eq.s32.totalorder %v4445, %v1055
  %vm5404 = vcmp.eq.s32.totalorder %v4446, %v1043
  %vm5405 = vcmp.eq.s32.totalorder %v4446, %v1047
  %vm5406 = vcmp.eq.s32.totalorder %v4446, %v1051
  %vm5407 = vcmp.eq.s32.totalorder %v4446, %v1055
  %vm5408 = vcmp.eq.s32.totalorder %v4447, %v1043
  %vm5409 = vcmp.eq.s32.totalorder %v4447, %v1047
  %vm5410 = vcmp.eq.s32.totalorder %v4447, %v1051
  %vm5411 = vcmp.eq.s32.totalorder %v4447, %v1055
  %vm5412 = vcmp.eq.s32.totalorder %v4448, %v1043
  %vm5413 = vcmp.eq.s32.totalorder %v4448, %v1047
  %vm5414 = vcmp.eq.s32.totalorder %v4448, %v1051
  %vm5415 = vcmp.eq.s32.totalorder %v4448, %v1055
  %vm5416 = vcmp.eq.s32.totalorder %v4449, %v1043
  %vm5417 = vcmp.eq.s32.totalorder %v4449, %v1047
  %vm5418 = vcmp.eq.s32.totalorder %v4449, %v1051
  %vm5419 = vcmp.eq.s32.totalorder %v4449, %v1055
  %vm5420 = vcmp.eq.s32.totalorder %v4450, %v1043
  %vm5421 = vcmp.eq.s32.totalorder %v4450, %v1047
  %vm5422 = vcmp.eq.s32.totalorder %v4450, %v1051
  %vm5423 = vcmp.eq.s32.totalorder %v4450, %v1055
  %vm5424 = vcmp.eq.s32.totalorder %v4451, %v1043
  %vm5425 = vcmp.eq.s32.totalorder %v4451, %v1047
  %vm5426 = vcmp.eq.s32.totalorder %v4451, %v1051
  %vm5427 = vcmp.eq.s32.totalorder %v4451, %v1055
  %vm5428 = vcmp.eq.s32.totalorder %v4452, %v1043
  %vm5429 = vcmp.eq.s32.totalorder %v4452, %v1047
  %vm5430 = vcmp.eq.s32.totalorder %v4452, %v1051
  %vm5431 = vcmp.eq.s32.totalorder %v4452, %v1055
  %vm5432 = vcmp.eq.s32.totalorder %v4453, %v1043
  %vm5433 = vcmp.eq.s32.totalorder %v4453, %v1047
  %vm5434 = vcmp.eq.s32.totalorder %v4453, %v1051
  %vm5435 = vcmp.eq.s32.totalorder %v4453, %v1055
  %vm5436 = vcmp.eq.s32.totalorder %v4454, %v1043
  %vm5437 = vcmp.eq.s32.totalorder %v4454, %v1047
  %vm5438 = vcmp.eq.s32.totalorder %v4454, %v1051
  %vm5439 = vcmp.eq.s32.totalorder %v4454, %v1055
  %vm5440 = vcmp.eq.s32.totalorder %v4455, %v1043
  %vm5441 = vcmp.eq.s32.totalorder %v4455, %v1047
  %vm5442 = vcmp.eq.s32.totalorder %v4455, %v1051
  %vm5443 = vcmp.eq.s32.totalorder %v4455, %v1055
  %vm5444 = vcmp.eq.s32.totalorder %v4456, %v1043
  %vm5445 = vcmp.eq.s32.totalorder %v4456, %v1047
  %vm5446 = vcmp.eq.s32.totalorder %v4456, %v1051
  %vm5447 = vcmp.eq.s32.totalorder %v4456, %v1055
  %vm5448 = vcmp.eq.s32.totalorder %v4457, %v1043
  %vm5449 = vcmp.eq.s32.totalorder %v4457, %v1047
  %vm5450 = vcmp.eq.s32.totalorder %v4457, %v1051
  %vm5451 = vcmp.eq.s32.totalorder %v4457, %v1055
  %vm5452 = vcmp.eq.s32.totalorder %v4458, %v1043
  %vm5453 = vcmp.eq.s32.totalorder %v4458, %v1047
  %vm5454 = vcmp.eq.s32.totalorder %v4458, %v1051
  %vm5455 = vcmp.eq.s32.totalorder %v4458, %v1055
  %vm5456 = vcmp.eq.s32.totalorder %v4459, %v1043
  %vm5457 = vcmp.eq.s32.totalorder %v4459, %v1047
  %vm5458 = vcmp.eq.s32.totalorder %v4459, %v1051
  %vm5459 = vcmp.eq.s32.totalorder %v4459, %v1055
  %vm5460 = vcmp.eq.s32.totalorder %v4460, %v1043
  %vm5461 = vcmp.eq.s32.totalorder %v4460, %v1047
  %vm5462 = vcmp.eq.s32.totalorder %v4460, %v1051
  %vm5463 = vcmp.eq.s32.totalorder %v4460, %v1055
  %vm5464 = vcmp.eq.s32.totalorder %v4461, %v1043
  %vm5465 = vcmp.eq.s32.totalorder %v4461, %v1047
  %vm5466 = vcmp.eq.s32.totalorder %v4461, %v1051
  %vm5467 = vcmp.eq.s32.totalorder %v4461, %v1055
  %vm5468 = vcmp.eq.s32.totalorder %v4462, %v1043
  %vm5469 = vcmp.eq.s32.totalorder %v4462, %v1047
  %vm5470 = vcmp.eq.s32.totalorder %v4462, %v1051
  %vm5471 = vcmp.eq.s32.totalorder %v4462, %v1055
  %vm5472 = vcmp.eq.s32.totalorder %v4463, %v1043
  %vm5473 = vcmp.eq.s32.totalorder %v4463, %v1047
  %vm5474 = vcmp.eq.s32.totalorder %v4463, %v1051
  %vm5475 = vcmp.eq.s32.totalorder %v4463, %v1055
  %vm5476 = vcmp.eq.s32.totalorder %v4464, %v1043
  %vm5477 = vcmp.eq.s32.totalorder %v4464, %v1047
  %vm5478 = vcmp.eq.s32.totalorder %v4464, %v1051
  %vm5479 = vcmp.eq.s32.totalorder %v4464, %v1055
  %vm5480 = vcmp.eq.s32.totalorder %v4465, %v1043
  %vm5481 = vcmp.eq.s32.totalorder %v4465, %v1047
  %vm5482 = vcmp.eq.s32.totalorder %v4465, %v1051
  %vm5483 = vcmp.eq.s32.totalorder %v4465, %v1055
  %vm5484 = vcmp.eq.s32.totalorder %v4466, %v1043
  %vm5485 = vcmp.eq.s32.totalorder %v4466, %v1047
  %vm5486 = vcmp.eq.s32.totalorder %v4466, %v1051
  %vm5487 = vcmp.eq.s32.totalorder %v4466, %v1055
  %vm5488 = vcmp.eq.s32.totalorder %v4467, %v1043
  %vm5489 = vcmp.eq.s32.totalorder %v4467, %v1047
  %vm5490 = vcmp.eq.s32.totalorder %v4467, %v1051
  %vm5491 = vcmp.eq.s32.totalorder %v4467, %v1055
  %v5492 = vsel %vm5364, 1, 0
  %v5493 = vsel %vm5365, 1, 0
  %v5494 = vsel %vm5366, 1, 0
  %v5495 = vsel %vm5367, 1, 0
  %v5496 = vsel %vm5368, 1, 0
  %v5497 = vsel %vm5369, 1, 0
  %v5498 = vsel %vm5370, 1, 0
  %v5499 = vsel %vm5371, 1, 0
  %v5500 = vsel %vm5372, 1, 0
  %v5501 = vsel %vm5373, 1, 0
  %v5502 = vsel %vm5374, 1, 0
  %v5503 = vsel %vm5375, 1, 0
  %v5504 = vsel %vm5376, 1, 0
  %v5505 = vsel %vm5377, 1, 0
  %v5506 = vsel %vm5378, 1, 0
  %v5507 = vsel %vm5379, 1, 0
  %v5508 = vsel %vm5380, 1, 0
  %v5509 = vsel %vm5381, 1, 0
  %v5510 = vsel %vm5382, 1, 0
  %v5511 = vsel %vm5383, 1, 0
  %v5512 = vsel %vm5384, 1, 0
  %v5513 = vsel %vm5385, 1, 0
  %v5514 = vsel %vm5386, 1, 0
  %v5515 = vsel %vm5387, 1, 0
  %v5516 = vsel %vm5388, 1, 0
  %v5517 = vsel %vm5389, 1, 0
  %v5518 = vsel %vm5390, 1, 0
  %v5519 = vsel %vm5391, 1, 0
  %v5520 = vsel %vm5392, 1, 0
  %v5521 = vsel %vm5393, 1, 0
  %v5522 = vsel %vm5394, 1, 0
  %v5523 = vsel %vm5395, 1, 0
  %v5524 = vsel %vm5396, 1, 0
  %v5525 = vsel %vm5397, 1, 0
  %v5526 = vsel %vm5398, 1, 0
  %v5527 = vsel %vm5399, 1, 0
  %v5528 = vsel %vm5400, 1, 0
  %v5529 = vsel %vm5401, 1, 0
  %v5530 = vsel %vm5402, 1, 0
  %v5531 = vsel %vm5403, 1, 0
  %v5532 = vsel %vm5404, 1, 0
  %v5533 = vsel %vm5405, 1, 0
  %v5534 = vsel %vm5406, 1, 0
  %v5535 = vsel %vm5407, 1, 0
  %v5536 = vsel %vm5408, 1, 0
  %v5537 = vsel %vm5409, 1, 0
  %v5538 = vsel %vm5410, 1, 0
  %v5539 = vsel %vm5411, 1, 0
  %v5540 = vsel %vm5412, 1, 0
  %v5541 = vsel %vm5413, 1, 0
  %v5542 = vsel %vm5414, 1, 0
  %v5543 = vsel %vm5415, 1, 0
  %v5544 = vsel %vm5416, 1, 0
  %v5545 = vsel %vm5417, 1, 0
  %v5546 = vsel %vm5418, 1, 0
  %v5547 = vsel %vm5419, 1, 0
  %v5548 = vsel %vm5420, 1, 0
  %v5549 = vsel %vm5421, 1, 0
  %v5550 = vsel %vm5422, 1, 0
  %v5551 = vsel %vm5423, 1, 0
  %v5552 = vsel %vm5424, 1, 0
  %v5553 = vsel %vm5425, 1, 0
  %v5554 = vsel %vm5426, 1, 0
  %v5555 = vsel %vm5427, 1, 0
  %v5556 = vsel %vm5428, 1, 0
  %v5557 = vsel %vm5429, 1, 0
  %v5558 = vsel %vm5430, 1, 0
  %v5559 = vsel %vm5431, 1, 0
  %v5560 = vsel %vm5432, 1, 0
  %v5561 = vsel %vm5433, 1, 0
  %v5562 = vsel %vm5434, 1, 0
  %v5563 = vsel %vm5435, 1, 0
  %v5564 = vsel %vm5436, 1, 0
  %v5565 = vsel %vm5437, 1, 0
  %v5566 = vsel %vm5438, 1, 0
  %v5567 = vsel %vm5439, 1, 0
  %v5568 = vsel %vm5440, 1, 0
  %v5569 = vsel %vm5441, 1, 0
  %v5570 = vsel %vm5442, 1, 0
  %v5571 = vsel %vm5443, 1, 0
  %v5572 = vsel %vm5444, 1, 0
  %v5573 = vsel %vm5445, 1, 0
  %v5574 = vsel %vm5446, 1, 0
  %v5575 = vsel %vm5447, 1, 0
  %v5576 = vsel %vm5448, 1, 0
  %v5577 = vsel %vm5449, 1, 0
  %v5578 = vsel %vm5450, 1, 0
  %v5579 = vsel %vm5451, 1, 0
  %v5580 = vsel %vm5452, 1, 0
  %v5581 = vsel %vm5453, 1, 0
  %v5582 = vsel %vm5454, 1, 0
  %v5583 = vsel %vm5455, 1, 0
  %v5584 = vsel %vm5456, 1, 0
  %v5585 = vsel %vm5457, 1, 0
  %v5586 = vsel %vm5458, 1, 0
  %v5587 = vsel %vm5459, 1, 0
  %v5588 = vsel %vm5460, 1, 0
  %v5589 = vsel %vm5461, 1, 0
  %v5590 = vsel %vm5462, 1, 0
  %v5591 = vsel %vm5463, 1, 0
  %v5592 = vsel %vm5464, 1, 0
  %v5593 = vsel %vm5465, 1, 0
  %v5594 = vsel %vm5466, 1, 0
  %v5595 = vsel %vm5467, 1, 0
  %v5596 = vsel %vm5468, 1, 0
  %v5597 = vsel %vm5469, 1, 0
  %v5598 = vsel %vm5470, 1, 0
  %v5599 = vsel %vm5471, 1, 0
  %v5600 = vsel %vm5472, 1, 0
  %v5601 = vsel %vm5473, 1, 0
  %v5602 = vsel %vm5474, 1, 0
  %v5603 = vsel %vm5475, 1, 0
  %v5604 = vsel %vm5476, 1, 0
  %v5605 = vsel %vm5477, 1, 0
  %v5606 = vsel %vm5478, 1, 0
  %v5607 = vsel %vm5479, 1, 0
  %v5608 = vsel %vm5480, 1, 0
  %v5609 = vsel %vm5481, 1, 0
  %v5610 = vsel %vm5482, 1, 0
  %v5611 = vsel %vm5483, 1, 0
  %v5612 = vsel %vm5484, 1, 0
  %v5613 = vsel %vm5485, 1, 0
  %v5614 = vsel %vm5486, 1, 0
  %v5615 = vsel %vm5487, 1, 0
  %v5616 = vsel %vm5488, 1, 0
  %v5617 = vsel %vm5489, 1, 0
  %v5618 = vsel %vm5490, 1, 0
  %v5619 = vsel %vm5491, 1, 0
  %v5620 = vcvt.s32.f32 %v5492
  %v5621 = vcvt.s32.f32 %v5493
  %v5622 = vcvt.s32.f32 %v5494
  %v5623 = vcvt.s32.f32 %v5495
  %v5624 = vcvt.s32.f32 %v5496
  %v5625 = vcvt.s32.f32 %v5497
  %v5626 = vcvt.s32.f32 %v5498
  %v5627 = vcvt.s32.f32 %v5499
  %v5628 = vcvt.s32.f32 %v5500
  %v5629 = vcvt.s32.f32 %v5501
  %v5630 = vcvt.s32.f32 %v5502
  %v5631 = vcvt.s32.f32 %v5503
  %v5632 = vcvt.s32.f32 %v5504
  %v5633 = vcvt.s32.f32 %v5505
  %v5634 = vcvt.s32.f32 %v5506
  %v5635 = vcvt.s32.f32 %v5507
  %v5636 = vcvt.s32.f32 %v5508
  %v5637 = vcvt.s32.f32 %v5509
  %v5638 = vcvt.s32.f32 %v5510
  %v5639 = vcvt.s32.f32 %v5511
  %v5640 = vcvt.s32.f32 %v5512
  %v5641 = vcvt.s32.f32 %v5513
  %v5642 = vcvt.s32.f32 %v5514
  %v5643 = vcvt.s32.f32 %v5515
  %v5644 = vcvt.s32.f32 %v5516
  %v5645 = vcvt.s32.f32 %v5517
  %v5646 = vcvt.s32.f32 %v5518
  %v5647 = vcvt.s32.f32 %v5519
  %v5648 = vcvt.s32.f32 %v5520
  %v5649 = vcvt.s32.f32 %v5521
  %v5650 = vcvt.s32.f32 %v5522
  %v5651 = vcvt.s32.f32 %v5523
  %v5652 = vcvt.s32.f32 %v5524
  %v5653 = vcvt.s32.f32 %v5525
  %v5654 = vcvt.s32.f32 %v5526
  %v5655 = vcvt.s32.f32 %v5527
  %v5656 = vcvt.s32.f32 %v5528
  %v5657 = vcvt.s32.f32 %v5529
  %v5658 = vcvt.s32.f32 %v5530
  %v5659 = vcvt.s32.f32 %v5531
  %v5660 = vcvt.s32.f32 %v5532
  %v5661 = vcvt.s32.f32 %v5533
  %v5662 = vcvt.s32.f32 %v5534
  %v5663 = vcvt.s32.f32 %v5535
  %v5664 = vcvt.s32.f32 %v5536
  %v5665 = vcvt.s32.f32 %v5537
  %v5666 = vcvt.s32.f32 %v5538
  %v5667 = vcvt.s32.f32 %v5539
  %v5668 = vcvt.s32.f32 %v5540
  %v5669 = vcvt.s32.f32 %v5541
  %v5670 = vcvt.s32.f32 %v5542
  %v5671 = vcvt.s32.f32 %v5543
  %v5672 = vcvt.s32.f32 %v5544
  %v5673 = vcvt.s32.f32 %v5545
  %v5674 = vcvt.s32.f32 %v5546
  %v5675 = vcvt.s32.f32 %v5547
  %v5676 = vcvt.s32.f32 %v5548
  %v5677 = vcvt.s32.f32 %v5549
  %v5678 = vcvt.s32.f32 %v5550
  %v5679 = vcvt.s32.f32 %v5551
  %v5680 = vcvt.s32.f32 %v5552
  %v5681 = vcvt.s32.f32 %v5553
  %v5682 = vcvt.s32.f32 %v5554
  %v5683 = vcvt.s32.f32 %v5555
  %v5684 = vcvt.s32.f32 %v5556
  %v5685 = vcvt.s32.f32 %v5557
  %v5686 = vcvt.s32.f32 %v5558
  %v5687 = vcvt.s32.f32 %v5559
  %v5688 = vcvt.s32.f32 %v5560
  %v5689 = vcvt.s32.f32 %v5561
  %v5690 = vcvt.s32.f32 %v5562
  %v5691 = vcvt.s32.f32 %v5563
  %v5692 = vcvt.s32.f32 %v5564
  %v5693 = vcvt.s32.f32 %v5565
  %v5694 = vcvt.s32.f32 %v5566
  %v5695 = vcvt.s32.f32 %v5567
  %v5696 = vcvt.s32.f32 %v5568
  %v5697 = vcvt.s32.f32 %v5569
  %v5698 = vcvt.s32.f32 %v5570
  %v5699 = vcvt.s32.f32 %v5571
  %v5700 = vcvt.s32.f32 %v5572
  %v5701 = vcvt.s32.f32 %v5573
  %v5702 = vcvt.s32.f32 %v5574
  %v5703 = vcvt.s32.f32 %v5575
  %v5704 = vcvt.s32.f32 %v5576
  %v5705 = vcvt.s32.f32 %v5577
  %v5706 = vcvt.s32.f32 %v5578
  %v5707 = vcvt.s32.f32 %v5579
  %v5708 = vcvt.s32.f32 %v5580
  %v5709 = vcvt.s32.f32 %v5581
  %v5710 = vcvt.s32.f32 %v5582
  %v5711 = vcvt.s32.f32 %v5583
  %v5712 = vcvt.s32.f32 %v5584
  %v5713 = vcvt.s32.f32 %v5585
  %v5714 = vcvt.s32.f32 %v5586
  %v5715 = vcvt.s32.f32 %v5587
  %v5716 = vcvt.s32.f32 %v5588
  %v5717 = vcvt.s32.f32 %v5589
  %v5718 = vcvt.s32.f32 %v5590
  %v5719 = vcvt.s32.f32 %v5591
  %v5720 = vcvt.s32.f32 %v5592
  %v5721 = vcvt.s32.f32 %v5593
  %v5722 = vcvt.s32.f32 %v5594
  %v5723 = vcvt.s32.f32 %v5595
  %v5724 = vcvt.s32.f32 %v5596
  %v5725 = vcvt.s32.f32 %v5597
  %v5726 = vcvt.s32.f32 %v5598
  %v5727 = vcvt.s32.f32 %v5599
  %v5728 = vcvt.s32.f32 %v5600
  %v5729 = vcvt.s32.f32 %v5601
  %v5730 = vcvt.s32.f32 %v5602
  %v5731 = vcvt.s32.f32 %v5603
  %v5732 = vcvt.s32.f32 %v5604
  %v5733 = vcvt.s32.f32 %v5605
  %v5734 = vcvt.s32.f32 %v5606
  %v5735 = vcvt.s32.f32 %v5607
  %v5736 = vcvt.s32.f32 %v5608
  %v5737 = vcvt.s32.f32 %v5609
  %v5738 = vcvt.s32.f32 %v5610
  %v5739 = vcvt.s32.f32 %v5611
  %v5740 = vcvt.s32.f32 %v5612
  %v5741 = vcvt.s32.f32 %v5613
  %v5742 = vcvt.s32.f32 %v5614
  %v5743 = vcvt.s32.f32 %v5615
  %v5744 = vcvt.s32.f32 %v5616
  %v5745 = vcvt.s32.f32 %v5617
  %v5746 = vcvt.s32.f32 %v5618
  %v5747 = vcvt.s32.f32 %v5619
  %v5748 = vadd.f32 %v5236, %v5620
  %v5749 = vadd.f32 %v5237, %v5621
  %v5750 = vadd.f32 %v5238, %v5622
  %v5751 = vadd.f32 %v5239, %v5623
  %v5752 = vadd.f32 %v5240, %v5624
  %v5753 = vadd.f32 %v5241, %v5625
  %v5754 = vadd.f32 %v5242, %v5626
  %v5755 = vadd.f32 %v5243, %v5627
  %v5756 = vadd.f32 %v5244, %v5628
  %v5757 = vadd.f32 %v5245, %v5629
  %v5758 = vadd.f32 %v5246, %v5630
  %v5759 = vadd.f32 %v5247, %v5631
  %v5760 = vadd.f32 %v5248, %v5632
  %v5761 = vadd.f32 %v5249, %v5633
  %v5762 = vadd.f32 %v5250, %v5634
  %v5763 = vadd.f32 %v5251, %v5635
  %v5764 = vadd.f32 %v5252, %v5636
  %v5765 = vadd.f32 %v5253, %v5637
  %v5766 = vadd.f32 %v5254, %v5638
  %v5767 = vadd.f32 %v5255, %v5639
  %v5768 = vadd.f32 %v5256, %v5640
  %v5769 = vadd.f32 %v5257, %v5641
  %v5770 = vadd.f32 %v5258, %v5642
  %v5771 = vadd.f32 %v5259, %v5643
  %v5772 = vadd.f32 %v5260, %v5644
  %v5773 = vadd.f32 %v5261, %v5645
  %v5774 = vadd.f32 %v5262, %v5646
  %v5775 = vadd.f32 %v5263, %v5647
  %v5776 = vadd.f32 %v5264, %v5648
  %v5777 = vadd.f32 %v5265, %v5649
  %v5778 = vadd.f32 %v5266, %v5650
  %v5779 = vadd.f32 %v5267, %v5651
  %v5780 = vadd.f32 %v5268, %v5652
  %v5781 = vadd.f32 %v5269, %v5653
  %v5782 = vadd.f32 %v5270, %v5654
  %v5783 = vadd.f32 %v5271, %v5655
  %v5784 = vadd.f32 %v5272, %v5656
  %v5785 = vadd.f32 %v5273, %v5657
  %v5786 = vadd.f32 %v5274, %v5658
  %v5787 = vadd.f32 %v5275, %v5659
  %v5788 = vadd.f32 %v5276, %v5660
  %v5789 = vadd.f32 %v5277, %v5661
  %v5790 = vadd.f32 %v5278, %v5662
  %v5791 = vadd.f32 %v5279, %v5663
  %v5792 = vadd.f32 %v5280, %v5664
  %v5793 = vadd.f32 %v5281, %v5665
  %v5794 = vadd.f32 %v5282, %v5666
  %v5795 = vadd.f32 %v5283, %v5667
  %v5796 = vadd.f32 %v5284, %v5668
  %v5797 = vadd.f32 %v5285, %v5669
  %v5798 = vadd.f32 %v5286, %v5670
  %v5799 = vadd.f32 %v5287, %v5671
  %v5800 = vadd.f32 %v5288, %v5672
  %v5801 = vadd.f32 %v5289, %v5673
  %v5802 = vadd.f32 %v5290, %v5674
  %v5803 = vadd.f32 %v5291, %v5675
  %v5804 = vadd.f32 %v5292, %v5676
  %v5805 = vadd.f32 %v5293, %v5677
  %v5806 = vadd.f32 %v5294, %v5678
  %v5807 = vadd.f32 %v5295, %v5679
  %v5808 = vadd.f32 %v5296, %v5680
  %v5809 = vadd.f32 %v5297, %v5681
  %v5810 = vadd.f32 %v5298, %v5682
  %v5811 = vadd.f32 %v5299, %v5683
  %v5812 = vadd.f32 %v5300, %v5684
  %v5813 = vadd.f32 %v5301, %v5685
  %v5814 = vadd.f32 %v5302, %v5686
  %v5815 = vadd.f32 %v5303, %v5687
  %v5816 = vadd.f32 %v5304, %v5688
  %v5817 = vadd.f32 %v5305, %v5689
  %v5818 = vadd.f32 %v5306, %v5690
  %v5819 = vadd.f32 %v5307, %v5691
  %v5820 = vadd.f32 %v5308, %v5692
  %v5821 = vadd.f32 %v5309, %v5693
  %v5822 = vadd.f32 %v5310, %v5694
  %v5823 = vadd.f32 %v5311, %v5695
  %v5824 = vadd.f32 %v5312, %v5696
  %v5825 = vadd.f32 %v5313, %v5697
  %v5826 = vadd.f32 %v5314, %v5698
  %v5827 = vadd.f32 %v5315, %v5699
  %v5828 = vadd.f32 %v5316, %v5700
  %v5829 = vadd.f32 %v5317, %v5701
  %v5830 = vadd.f32 %v5318, %v5702
  %v5831 = vadd.f32 %v5319, %v5703
  %v5832 = vadd.f32 %v5320, %v5704
  %v5833 = vadd.f32 %v5321, %v5705
  %v5834 = vadd.f32 %v5322, %v5706
  %v5835 = vadd.f32 %v5323, %v5707
  %v5836 = vadd.f32 %v5324, %v5708
  %v5837 = vadd.f32 %v5325, %v5709
  %v5838 = vadd.f32 %v5326, %v5710
  %v5839 = vadd.f32 %v5327, %v5711
  %v5840 = vadd.f32 %v5328, %v5712
  %v5841 = vadd.f32 %v5329, %v5713
  %v5842 = vadd.f32 %v5330, %v5714
  %v5843 = vadd.f32 %v5331, %v5715
  %v5844 = vadd.f32 %v5332, %v5716
  %v5845 = vadd.f32 %v5333, %v5717
  %v5846 = vadd.f32 %v5334, %v5718
  %v5847 = vadd.f32 %v5335, %v5719
  %v5848 = vadd.f32 %v5336, %v5720
  %v5849 = vadd.f32 %v5337, %v5721
  %v5850 = vadd.f32 %v5338, %v5722
  %v5851 = vadd.f32 %v5339, %v5723
  %v5852 = vadd.f32 %v5340, %v5724
  %v5853 = vadd.f32 %v5341, %v5725
  %v5854 = vadd.f32 %v5342, %v5726
  %v5855 = vadd.f32 %v5343, %v5727
  %v5856 = vadd.f32 %v5344, %v5728
  %v5857 = vadd.f32 %v5345, %v5729
  %v5858 = vadd.f32 %v5346, %v5730
  %v5859 = vadd.f32 %v5347, %v5731
  %v5860 = vadd.f32 %v5348, %v5732
  %v5861 = vadd.f32 %v5349, %v5733
  %v5862 = vadd.f32 %v5350, %v5734
  %v5863 = vadd.f32 %v5351, %v5735
  %v5864 = vadd.f32 %v5352, %v5736
  %v5865 = vadd.f32 %v5353, %v5737
  %v5866 = vadd.f32 %v5354, %v5738
  %v5867 = vadd.f32 %v5355, %v5739
  %v5868 = vadd.f32 %v5356, %v5740
  %v5869 = vadd.f32 %v5357, %v5741
  %v5870 = vadd.f32 %v5358, %v5742
  %v5871 = vadd.f32 %v5359, %v5743
  %v5872 = vadd.f32 %v5360, %v5744
  %v5873 = vadd.f32 %v5361, %v5745
  %v5874 = vadd.f32 %v5362, %v5746
  %v5875 = vadd.f32 %v5363, %v5747
  %vm5876 = vcmp.eq.s32.totalorder %v4436, %v1587
  %vm5877 = vcmp.eq.s32.totalorder %v4436, %v1591
  %vm5878 = vcmp.eq.s32.totalorder %v4436, %v1595
  %vm5879 = vcmp.eq.s32.totalorder %v4436, %v1599
  %vm5880 = vcmp.eq.s32.totalorder %v4437, %v1587
  %vm5881 = vcmp.eq.s32.totalorder %v4437, %v1591
  %vm5882 = vcmp.eq.s32.totalorder %v4437, %v1595
  %vm5883 = vcmp.eq.s32.totalorder %v4437, %v1599
  %vm5884 = vcmp.eq.s32.totalorder %v4438, %v1587
  %vm5885 = vcmp.eq.s32.totalorder %v4438, %v1591
  %vm5886 = vcmp.eq.s32.totalorder %v4438, %v1595
  %vm5887 = vcmp.eq.s32.totalorder %v4438, %v1599
  %vm5888 = vcmp.eq.s32.totalorder %v4439, %v1587
  %vm5889 = vcmp.eq.s32.totalorder %v4439, %v1591
  %vm5890 = vcmp.eq.s32.totalorder %v4439, %v1595
  %vm5891 = vcmp.eq.s32.totalorder %v4439, %v1599
  %vm5892 = vcmp.eq.s32.totalorder %v4440, %v1587
  %vm5893 = vcmp.eq.s32.totalorder %v4440, %v1591
  %vm5894 = vcmp.eq.s32.totalorder %v4440, %v1595
  %vm5895 = vcmp.eq.s32.totalorder %v4440, %v1599
  %vm5896 = vcmp.eq.s32.totalorder %v4441, %v1587
  %vm5897 = vcmp.eq.s32.totalorder %v4441, %v1591
  %vm5898 = vcmp.eq.s32.totalorder %v4441, %v1595
  %vm5899 = vcmp.eq.s32.totalorder %v4441, %v1599
  %vm5900 = vcmp.eq.s32.totalorder %v4442, %v1587
  %vm5901 = vcmp.eq.s32.totalorder %v4442, %v1591
  %vm5902 = vcmp.eq.s32.totalorder %v4442, %v1595
  %vm5903 = vcmp.eq.s32.totalorder %v4442, %v1599
  %vm5904 = vcmp.eq.s32.totalorder %v4443, %v1587
  %vm5905 = vcmp.eq.s32.totalorder %v4443, %v1591
  %vm5906 = vcmp.eq.s32.totalorder %v4443, %v1595
  %vm5907 = vcmp.eq.s32.totalorder %v4443, %v1599
  %vm5908 = vcmp.eq.s32.totalorder %v4444, %v1587
  %vm5909 = vcmp.eq.s32.totalorder %v4444, %v1591
  %vm5910 = vcmp.eq.s32.totalorder %v4444, %v1595
  %vm5911 = vcmp.eq.s32.totalorder %v4444, %v1599
  %vm5912 = vcmp.eq.s32.totalorder %v4445, %v1587
  %vm5913 = vcmp.eq.s32.totalorder %v4445, %v1591
  %vm5914 = vcmp.eq.s32.totalorder %v4445, %v1595
  %vm5915 = vcmp.eq.s32.totalorder %v4445, %v1599
  %vm5916 = vcmp.eq.s32.totalorder %v4446, %v1587
  %vm5917 = vcmp.eq.s32.totalorder %v4446, %v1591
  %vm5918 = vcmp.eq.s32.totalorder %v4446, %v1595
  %vm5919 = vcmp.eq.s32.totalorder %v4446, %v1599
  %vm5920 = vcmp.eq.s32.totalorder %v4447, %v1587
  %vm5921 = vcmp.eq.s32.totalorder %v4447, %v1591
  %vm5922 = vcmp.eq.s32.totalorder %v4447, %v1595
  %vm5923 = vcmp.eq.s32.totalorder %v4447, %v1599
  %vm5924 = vcmp.eq.s32.totalorder %v4448, %v1587
  %vm5925 = vcmp.eq.s32.totalorder %v4448, %v1591
  %vm5926 = vcmp.eq.s32.totalorder %v4448, %v1595
  %vm5927 = vcmp.eq.s32.totalorder %v4448, %v1599
  %vm5928 = vcmp.eq.s32.totalorder %v4449, %v1587
  %vm5929 = vcmp.eq.s32.totalorder %v4449, %v1591
  %vm5930 = vcmp.eq.s32.totalorder %v4449, %v1595
  %vm5931 = vcmp.eq.s32.totalorder %v4449, %v1599
  %vm5932 = vcmp.eq.s32.totalorder %v4450, %v1587
  %vm5933 = vcmp.eq.s32.totalorder %v4450, %v1591
  %vm5934 = vcmp.eq.s32.totalorder %v4450, %v1595
  %vm5935 = vcmp.eq.s32.totalorder %v4450, %v1599
  %vm5936 = vcmp.eq.s32.totalorder %v4451, %v1587
  %vm5937 = vcmp.eq.s32.totalorder %v4451, %v1591
  %vm5938 = vcmp.eq.s32.totalorder %v4451, %v1595
  %vm5939 = vcmp.eq.s32.totalorder %v4451, %v1599
  %vm5940 = vcmp.eq.s32.totalorder %v4452, %v1587
  %vm5941 = vcmp.eq.s32.totalorder %v4452, %v1591
  %vm5942 = vcmp.eq.s32.totalorder %v4452, %v1595
  %vm5943 = vcmp.eq.s32.totalorder %v4452, %v1599
  %vm5944 = vcmp.eq.s32.totalorder %v4453, %v1587
  %vm5945 = vcmp.eq.s32.totalorder %v4453, %v1591
  %vm5946 = vcmp.eq.s32.totalorder %v4453, %v1595
  %vm5947 = vcmp.eq.s32.totalorder %v4453, %v1599
  %vm5948 = vcmp.eq.s32.totalorder %v4454, %v1587
  %vm5949 = vcmp.eq.s32.totalorder %v4454, %v1591
  %vm5950 = vcmp.eq.s32.totalorder %v4454, %v1595
  %vm5951 = vcmp.eq.s32.totalorder %v4454, %v1599
  %vm5952 = vcmp.eq.s32.totalorder %v4455, %v1587
  %vm5953 = vcmp.eq.s32.totalorder %v4455, %v1591
  %vm5954 = vcmp.eq.s32.totalorder %v4455, %v1595
  %vm5955 = vcmp.eq.s32.totalorder %v4455, %v1599
  %vm5956 = vcmp.eq.s32.totalorder %v4456, %v1587
  %vm5957 = vcmp.eq.s32.totalorder %v4456, %v1591
  %vm5958 = vcmp.eq.s32.totalorder %v4456, %v1595
  %vm5959 = vcmp.eq.s32.totalorder %v4456, %v1599
  %vm5960 = vcmp.eq.s32.totalorder %v4457, %v1587
  %vm5961 = vcmp.eq.s32.totalorder %v4457, %v1591
  %vm5962 = vcmp.eq.s32.totalorder %v4457, %v1595
  %vm5963 = vcmp.eq.s32.totalorder %v4457, %v1599
  %vm5964 = vcmp.eq.s32.totalorder %v4458, %v1587
  %vm5965 = vcmp.eq.s32.totalorder %v4458, %v1591
  %vm5966 = vcmp.eq.s32.totalorder %v4458, %v1595
  %vm5967 = vcmp.eq.s32.totalorder %v4458, %v1599
  %vm5968 = vcmp.eq.s32.totalorder %v4459, %v1587
  %vm5969 = vcmp.eq.s32.totalorder %v4459, %v1591
  %vm5970 = vcmp.eq.s32.totalorder %v4459, %v1595
  %vm5971 = vcmp.eq.s32.totalorder %v4459, %v1599
  %vm5972 = vcmp.eq.s32.totalorder %v4460, %v1587
  %vm5973 = vcmp.eq.s32.totalorder %v4460, %v1591
  %vm5974 = vcmp.eq.s32.totalorder %v4460, %v1595
  %vm5975 = vcmp.eq.s32.totalorder %v4460, %v1599
  %vm5976 = vcmp.eq.s32.totalorder %v4461, %v1587
  %vm5977 = vcmp.eq.s32.totalorder %v4461, %v1591
  %vm5978 = vcmp.eq.s32.totalorder %v4461, %v1595
  %vm5979 = vcmp.eq.s32.totalorder %v4461, %v1599
  %vm5980 = vcmp.eq.s32.totalorder %v4462, %v1587
  %vm5981 = vcmp.eq.s32.totalorder %v4462, %v1591
  %vm5982 = vcmp.eq.s32.totalorder %v4462, %v1595
  %vm5983 = vcmp.eq.s32.totalorder %v4462, %v1599
  %vm5984 = vcmp.eq.s32.totalorder %v4463, %v1587
  %vm5985 = vcmp.eq.s32.totalorder %v4463, %v1591
  %vm5986 = vcmp.eq.s32.totalorder %v4463, %v1595
  %vm5987 = vcmp.eq.s32.totalorder %v4463, %v1599
  %vm5988 = vcmp.eq.s32.totalorder %v4464, %v1587
  %vm5989 = vcmp.eq.s32.totalorder %v4464, %v1591
  %vm5990 = vcmp.eq.s32.totalorder %v4464, %v1595
  %vm5991 = vcmp.eq.s32.totalorder %v4464, %v1599
  %vm5992 = vcmp.eq.s32.totalorder %v4465, %v1587
  %vm5993 = vcmp.eq.s32.totalorder %v4465, %v1591
  %vm5994 = vcmp.eq.s32.totalorder %v4465, %v1595
  %vm5995 = vcmp.eq.s32.totalorder %v4465, %v1599
  %vm5996 = vcmp.eq.s32.totalorder %v4466, %v1587
  %vm5997 = vcmp.eq.s32.totalorder %v4466, %v1591
  %vm5998 = vcmp.eq.s32.totalorder %v4466, %v1595
  %vm5999 = vcmp.eq.s32.totalorder %v4466, %v1599
  %vm6000 = vcmp.eq.s32.totalorder %v4467, %v1587
  %vm6001 = vcmp.eq.s32.totalorder %v4467, %v1591
  %vm6002 = vcmp.eq.s32.totalorder %v4467, %v1595
  %vm6003 = vcmp.eq.s32.totalorder %v4467, %v1599
  %v6004 = vsel %vm5876, 1, 0
  %v6005 = vsel %vm5877, 1, 0
  %v6006 = vsel %vm5878, 1, 0
  %v6007 = vsel %vm5879, 1, 0
  %v6008 = vsel %vm5880, 1, 0
  %v6009 = vsel %vm5881, 1, 0
  %v6010 = vsel %vm5882, 1, 0
  %v6011 = vsel %vm5883, 1, 0
  %v6012 = vsel %vm5884, 1, 0
  %v6013 = vsel %vm5885, 1, 0
  %v6014 = vsel %vm5886, 1, 0
  %v6015 = vsel %vm5887, 1, 0
  %v6016 = vsel %vm5888, 1, 0
  %v6017 = vsel %vm5889, 1, 0
  %v6018 = vsel %vm5890, 1, 0
  %v6019 = vsel %vm5891, 1, 0
  %v6020 = vsel %vm5892, 1, 0
  %v6021 = vsel %vm5893, 1, 0
  %v6022 = vsel %vm5894, 1, 0
  %v6023 = vsel %vm5895, 1, 0
  %v6024 = vsel %vm5896, 1, 0
  %v6025 = vsel %vm5897, 1, 0
  %v6026 = vsel %vm5898, 1, 0
  %v6027 = vsel %vm5899, 1, 0
  %v6028 = vsel %vm5900, 1, 0
  %v6029 = vsel %vm5901, 1, 0
  %v6030 = vsel %vm5902, 1, 0
  %v6031 = vsel %vm5903, 1, 0
  %v6032 = vsel %vm5904, 1, 0
  %v6033 = vsel %vm5905, 1, 0
  %v6034 = vsel %vm5906, 1, 0
  %v6035 = vsel %vm5907, 1, 0
  %v6036 = vsel %vm5908, 1, 0
  %v6037 = vsel %vm5909, 1, 0
  %v6038 = vsel %vm5910, 1, 0
  %v6039 = vsel %vm5911, 1, 0
  %v6040 = vsel %vm5912, 1, 0
  %v6041 = vsel %vm5913, 1, 0
  %v6042 = vsel %vm5914, 1, 0
  %v6043 = vsel %vm5915, 1, 0
  %v6044 = vsel %vm5916, 1, 0
  %v6045 = vsel %vm5917, 1, 0
  %v6046 = vsel %vm5918, 1, 0
  %v6047 = vsel %vm5919, 1, 0
  %v6048 = vsel %vm5920, 1, 0
  %v6049 = vsel %vm5921, 1, 0
  %v6050 = vsel %vm5922, 1, 0
  %v6051 = vsel %vm5923, 1, 0
  %v6052 = vsel %vm5924, 1, 0
  %v6053 = vsel %vm5925, 1, 0
  %v6054 = vsel %vm5926, 1, 0
  %v6055 = vsel %vm5927, 1, 0
  %v6056 = vsel %vm5928, 1, 0
  %v6057 = vsel %vm5929, 1, 0
  %v6058 = vsel %vm5930, 1, 0
  %v6059 = vsel %vm5931, 1, 0
  %v6060 = vsel %vm5932, 1, 0
  %v6061 = vsel %vm5933, 1, 0
  %v6062 = vsel %vm5934, 1, 0
  %v6063 = vsel %vm5935, 1, 0
  %v6064 = vsel %vm5936, 1, 0
  %v6065 = vsel %vm5937, 1, 0
  %v6066 = vsel %vm5938, 1, 0
  %v6067 = vsel %vm5939, 1, 0
  %v6068 = vsel %vm5940, 1, 0
  %v6069 = vsel %vm5941, 1, 0
  %v6070 = vsel %vm5942, 1, 0
  %v6071 = vsel %vm5943, 1, 0
  %v6072 = vsel %vm5944, 1, 0
  %v6073 = vsel %vm5945, 1, 0
  %v6074 = vsel %vm5946, 1, 0
  %v6075 = vsel %vm5947, 1, 0
  %v6076 = vsel %vm5948, 1, 0
  %v6077 = vsel %vm5949, 1, 0
  %v6078 = vsel %vm5950, 1, 0
  %v6079 = vsel %vm5951, 1, 0
  %v6080 = vsel %vm5952, 1, 0
  %v6081 = vsel %vm5953, 1, 0
  %v6082 = vsel %vm5954, 1, 0
  %v6083 = vsel %vm5955, 1, 0
  %v6084 = vsel %vm5956, 1, 0
  %v6085 = vsel %vm5957, 1, 0
  %v6086 = vsel %vm5958, 1, 0
  %v6087 = vsel %vm5959, 1, 0
  %v6088 = vsel %vm5960, 1, 0
  %v6089 = vsel %vm5961, 1, 0
  %v6090 = vsel %vm5962, 1, 0
  %v6091 = vsel %vm5963, 1, 0
  %v6092 = vsel %vm5964, 1, 0
  %v6093 = vsel %vm5965, 1, 0
  %v6094 = vsel %vm5966, 1, 0
  %v6095 = vsel %vm5967, 1, 0
  %v6096 = vsel %vm5968, 1, 0
  %v6097 = vsel %vm5969, 1, 0
  %v6098 = vsel %vm5970, 1, 0
  %v6099 = vsel %vm5971, 1, 0
  %v6100 = vsel %vm5972, 1, 0
  %v6101 = vsel %vm5973, 1, 0
  %v6102 = vsel %vm5974, 1, 0
  %v6103 = vsel %vm5975, 1, 0
  %v6104 = vsel %vm5976, 1, 0
  %v6105 = vsel %vm5977, 1, 0
  %v6106 = vsel %vm5978, 1, 0
  %v6107 = vsel %vm5979, 1, 0
  %v6108 = vsel %vm5980, 1, 0
  %v6109 = vsel %vm5981, 1, 0
  %v6110 = vsel %vm5982, 1, 0
  %v6111 = vsel %vm5983, 1, 0
  %v6112 = vsel %vm5984, 1, 0
  %v6113 = vsel %vm5985, 1, 0
  %v6114 = vsel %vm5986, 1, 0
  %v6115 = vsel %vm5987, 1, 0
  %v6116 = vsel %vm5988, 1, 0
  %v6117 = vsel %vm5989, 1, 0
  %v6118 = vsel %vm5990, 1, 0
  %v6119 = vsel %vm5991, 1, 0
  %v6120 = vsel %vm5992, 1, 0
  %v6121 = vsel %vm5993, 1, 0
  %v6122 = vsel %vm5994, 1, 0
  %v6123 = vsel %vm5995, 1, 0
  %v6124 = vsel %vm5996, 1, 0
  %v6125 = vsel %vm5997, 1, 0
  %v6126 = vsel %vm5998, 1, 0
  %v6127 = vsel %vm5999, 1, 0
  %v6128 = vsel %vm6000, 1, 0
  %v6129 = vsel %vm6001, 1, 0
  %v6130 = vsel %vm6002, 1, 0
  %v6131 = vsel %vm6003, 1, 0
  %v6132 = vcvt.s32.f32 %v6004
  %v6133 = vcvt.s32.f32 %v6005
  %v6134 = vcvt.s32.f32 %v6006
  %v6135 = vcvt.s32.f32 %v6007
  %v6136 = vcvt.s32.f32 %v6008
  %v6137 = vcvt.s32.f32 %v6009
  %v6138 = vcvt.s32.f32 %v6010
  %v6139 = vcvt.s32.f32 %v6011
  %v6140 = vcvt.s32.f32 %v6012
  %v6141 = vcvt.s32.f32 %v6013
  %v6142 = vcvt.s32.f32 %v6014
  %v6143 = vcvt.s32.f32 %v6015
  %v6144 = vcvt.s32.f32 %v6016
  %v6145 = vcvt.s32.f32 %v6017
  %v6146 = vcvt.s32.f32 %v6018
  %v6147 = vcvt.s32.f32 %v6019
  %v6148 = vcvt.s32.f32 %v6020
  %v6149 = vcvt.s32.f32 %v6021
  %v6150 = vcvt.s32.f32 %v6022
  %v6151 = vcvt.s32.f32 %v6023
  %v6152 = vcvt.s32.f32 %v6024
  %v6153 = vcvt.s32.f32 %v6025
  %v6154 = vcvt.s32.f32 %v6026
  %v6155 = vcvt.s32.f32 %v6027
  %v6156 = vcvt.s32.f32 %v6028
  %v6157 = vcvt.s32.f32 %v6029
  %v6158 = vcvt.s32.f32 %v6030
  %v6159 = vcvt.s32.f32 %v6031
  %v6160 = vcvt.s32.f32 %v6032
  %v6161 = vcvt.s32.f32 %v6033
  %v6162 = vcvt.s32.f32 %v6034
  %v6163 = vcvt.s32.f32 %v6035
  %v6164 = vcvt.s32.f32 %v6036
  %v6165 = vcvt.s32.f32 %v6037
  %v6166 = vcvt.s32.f32 %v6038
  %v6167 = vcvt.s32.f32 %v6039
  %v6168 = vcvt.s32.f32 %v6040
  %v6169 = vcvt.s32.f32 %v6041
  %v6170 = vcvt.s32.f32 %v6042
  %v6171 = vcvt.s32.f32 %v6043
  %v6172 = vcvt.s32.f32 %v6044
  %v6173 = vcvt.s32.f32 %v6045
  %v6174 = vcvt.s32.f32 %v6046
  %v6175 = vcvt.s32.f32 %v6047
  %v6176 = vcvt.s32.f32 %v6048
  %v6177 = vcvt.s32.f32 %v6049
  %v6178 = vcvt.s32.f32 %v6050
  %v6179 = vcvt.s32.f32 %v6051
  %v6180 = vcvt.s32.f32 %v6052
  %v6181 = vcvt.s32.f32 %v6053
  %v6182 = vcvt.s32.f32 %v6054
  %v6183 = vcvt.s32.f32 %v6055
  %v6184 = vcvt.s32.f32 %v6056
  %v6185 = vcvt.s32.f32 %v6057
  %v6186 = vcvt.s32.f32 %v6058
  %v6187 = vcvt.s32.f32 %v6059
  %v6188 = vcvt.s32.f32 %v6060
  %v6189 = vcvt.s32.f32 %v6061
  %v6190 = vcvt.s32.f32 %v6062
  %v6191 = vcvt.s32.f32 %v6063
  %v6192 = vcvt.s32.f32 %v6064
  %v6193 = vcvt.s32.f32 %v6065
  %v6194 = vcvt.s32.f32 %v6066
  %v6195 = vcvt.s32.f32 %v6067
  %v6196 = vcvt.s32.f32 %v6068
  %v6197 = vcvt.s32.f32 %v6069
  %v6198 = vcvt.s32.f32 %v6070
  %v6199 = vcvt.s32.f32 %v6071
  %v6200 = vcvt.s32.f32 %v6072
  %v6201 = vcvt.s32.f32 %v6073
  %v6202 = vcvt.s32.f32 %v6074
  %v6203 = vcvt.s32.f32 %v6075
  %v6204 = vcvt.s32.f32 %v6076
  %v6205 = vcvt.s32.f32 %v6077
  %v6206 = vcvt.s32.f32 %v6078
  %v6207 = vcvt.s32.f32 %v6079
  %v6208 = vcvt.s32.f32 %v6080
  %v6209 = vcvt.s32.f32 %v6081
  %v6210 = vcvt.s32.f32 %v6082
  %v6211 = vcvt.s32.f32 %v6083
  %v6212 = vcvt.s32.f32 %v6084
  %v6213 = vcvt.s32.f32 %v6085
  %v6214 = vcvt.s32.f32 %v6086
  %v6215 = vcvt.s32.f32 %v6087
  %v6216 = vcvt.s32.f32 %v6088
  %v6217 = vcvt.s32.f32 %v6089
  %v6218 = vcvt.s32.f32 %v6090
  %v6219 = vcvt.s32.f32 %v6091
  %v6220 = vcvt.s32.f32 %v6092
  %v6221 = vcvt.s32.f32 %v6093
  %v6222 = vcvt.s32.f32 %v6094
  %v6223 = vcvt.s32.f32 %v6095
  %v6224 = vcvt.s32.f32 %v6096
  %v6225 = vcvt.s32.f32 %v6097
  %v6226 = vcvt.s32.f32 %v6098
  %v6227 = vcvt.s32.f32 %v6099
  %v6228 = vcvt.s32.f32 %v6100
  %v6229 = vcvt.s32.f32 %v6101
  %v6230 = vcvt.s32.f32 %v6102
  %v6231 = vcvt.s32.f32 %v6103
  %v6232 = vcvt.s32.f32 %v6104
  %v6233 = vcvt.s32.f32 %v6105
  %v6234 = vcvt.s32.f32 %v6106
  %v6235 = vcvt.s32.f32 %v6107
  %v6236 = vcvt.s32.f32 %v6108
  %v6237 = vcvt.s32.f32 %v6109
  %v6238 = vcvt.s32.f32 %v6110
  %v6239 = vcvt.s32.f32 %v6111
  %v6240 = vcvt.s32.f32 %v6112
  %v6241 = vcvt.s32.f32 %v6113
  %v6242 = vcvt.s32.f32 %v6114
  %v6243 = vcvt.s32.f32 %v6115
  %v6244 = vcvt.s32.f32 %v6116
  %v6245 = vcvt.s32.f32 %v6117
  %v6246 = vcvt.s32.f32 %v6118
  %v6247 = vcvt.s32.f32 %v6119
  %v6248 = vcvt.s32.f32 %v6120
  %v6249 = vcvt.s32.f32 %v6121
  %v6250 = vcvt.s32.f32 %v6122
  %v6251 = vcvt.s32.f32 %v6123
  %v6252 = vcvt.s32.f32 %v6124
  %v6253 = vcvt.s32.f32 %v6125
  %v6254 = vcvt.s32.f32 %v6126
  %v6255 = vcvt.s32.f32 %v6127
  %v6256 = vcvt.s32.f32 %v6128
  %v6257 = vcvt.s32.f32 %v6129
  %v6258 = vcvt.s32.f32 %v6130
  %v6259 = vcvt.s32.f32 %v6131
  %v6260 = vadd.f32 %v5748, %v6132
  %v6261 = vadd.f32 %v5749, %v6133
  %v6262 = vadd.f32 %v5750, %v6134
  %v6263 = vadd.f32 %v5751, %v6135
  %v6264 = vadd.f32 %v5752, %v6136
  %v6265 = vadd.f32 %v5753, %v6137
  %v6266 = vadd.f32 %v5754, %v6138
  %v6267 = vadd.f32 %v5755, %v6139
  %v6268 = vadd.f32 %v5756, %v6140
  %v6269 = vadd.f32 %v5757, %v6141
  %v6270 = vadd.f32 %v5758, %v6142
  %v6271 = vadd.f32 %v5759, %v6143
  %v6272 = vadd.f32 %v5760, %v6144
  %v6273 = vadd.f32 %v5761, %v6145
  %v6274 = vadd.f32 %v5762, %v6146
  %v6275 = vadd.f32 %v5763, %v6147
  %v6276 = vadd.f32 %v5764, %v6148
  %v6277 = vadd.f32 %v5765, %v6149
  %v6278 = vadd.f32 %v5766, %v6150
  %v6279 = vadd.f32 %v5767, %v6151
  %v6280 = vadd.f32 %v5768, %v6152
  %v6281 = vadd.f32 %v5769, %v6153
  %v6282 = vadd.f32 %v5770, %v6154
  %v6283 = vadd.f32 %v5771, %v6155
  %v6284 = vadd.f32 %v5772, %v6156
  %v6285 = vadd.f32 %v5773, %v6157
  %v6286 = vadd.f32 %v5774, %v6158
  %v6287 = vadd.f32 %v5775, %v6159
  %v6288 = vadd.f32 %v5776, %v6160
  %v6289 = vadd.f32 %v5777, %v6161
  %v6290 = vadd.f32 %v5778, %v6162
  %v6291 = vadd.f32 %v5779, %v6163
  %v6292 = vadd.f32 %v5780, %v6164
  %v6293 = vadd.f32 %v5781, %v6165
  %v6294 = vadd.f32 %v5782, %v6166
  %v6295 = vadd.f32 %v5783, %v6167
  %v6296 = vadd.f32 %v5784, %v6168
  %v6297 = vadd.f32 %v5785, %v6169
  %v6298 = vadd.f32 %v5786, %v6170
  %v6299 = vadd.f32 %v5787, %v6171
  %v6300 = vadd.f32 %v5788, %v6172
  %v6301 = vadd.f32 %v5789, %v6173
  %v6302 = vadd.f32 %v5790, %v6174
  %v6303 = vadd.f32 %v5791, %v6175
  %v6304 = vadd.f32 %v5792, %v6176
  %v6305 = vadd.f32 %v5793, %v6177
  %v6306 = vadd.f32 %v5794, %v6178
  %v6307 = vadd.f32 %v5795, %v6179
  %v6308 = vadd.f32 %v5796, %v6180
  %v6309 = vadd.f32 %v5797, %v6181
  %v6310 = vadd.f32 %v5798, %v6182
  %v6311 = vadd.f32 %v5799, %v6183
  %v6312 = vadd.f32 %v5800, %v6184
  %v6313 = vadd.f32 %v5801, %v6185
  %v6314 = vadd.f32 %v5802, %v6186
  %v6315 = vadd.f32 %v5803, %v6187
  %v6316 = vadd.f32 %v5804, %v6188
  %v6317 = vadd.f32 %v5805, %v6189
  %v6318 = vadd.f32 %v5806, %v6190
  %v6319 = vadd.f32 %v5807, %v6191
  %v6320 = vadd.f32 %v5808, %v6192
  %v6321 = vadd.f32 %v5809, %v6193
  %v6322 = vadd.f32 %v5810, %v6194
  %v6323 = vadd.f32 %v5811, %v6195
  %v6324 = vadd.f32 %v5812, %v6196
  %v6325 = vadd.f32 %v5813, %v6197
  %v6326 = vadd.f32 %v5814, %v6198
  %v6327 = vadd.f32 %v5815, %v6199
  %v6328 = vadd.f32 %v5816, %v6200
  %v6329 = vadd.f32 %v5817, %v6201
  %v6330 = vadd.f32 %v5818, %v6202
  %v6331 = vadd.f32 %v5819, %v6203
  %v6332 = vadd.f32 %v5820, %v6204
  %v6333 = vadd.f32 %v5821, %v6205
  %v6334 = vadd.f32 %v5822, %v6206
  %v6335 = vadd.f32 %v5823, %v6207
  %v6336 = vadd.f32 %v5824, %v6208
  %v6337 = vadd.f32 %v5825, %v6209
  %v6338 = vadd.f32 %v5826, %v6210
  %v6339 = vadd.f32 %v5827, %v6211
  %v6340 = vadd.f32 %v5828, %v6212
  %v6341 = vadd.f32 %v5829, %v6213
  %v6342 = vadd.f32 %v5830, %v6214
  %v6343 = vadd.f32 %v5831, %v6215
  %v6344 = vadd.f32 %v5832, %v6216
  %v6345 = vadd.f32 %v5833, %v6217
  %v6346 = vadd.f32 %v5834, %v6218
  %v6347 = vadd.f32 %v5835, %v6219
  %v6348 = vadd.f32 %v5836, %v6220
  %v6349 = vadd.f32 %v5837, %v6221
  %v6350 = vadd.f32 %v5838, %v6222
  %v6351 = vadd.f32 %v5839, %v6223
  %v6352 = vadd.f32 %v5840, %v6224
  %v6353 = vadd.f32 %v5841, %v6225
  %v6354 = vadd.f32 %v5842, %v6226
  %v6355 = vadd.f32 %v5843, %v6227
  %v6356 = vadd.f32 %v5844, %v6228
  %v6357 = vadd.f32 %v5845, %v6229
  %v6358 = vadd.f32 %v5846, %v6230
  %v6359 = vadd.f32 %v5847, %v6231
  %v6360 = vadd.f32 %v5848, %v6232
  %v6361 = vadd.f32 %v5849, %v6233
  %v6362 = vadd.f32 %v5850, %v6234
  %v6363 = vadd.f32 %v5851, %v6235
  %v6364 = vadd.f32 %v5852, %v6236
  %v6365 = vadd.f32 %v5853, %v6237
  %v6366 = vadd.f32 %v5854, %v6238
  %v6367 = vadd.f32 %v5855, %v6239
  %v6368 = vadd.f32 %v5856, %v6240
  %v6369 = vadd.f32 %v5857, %v6241
  %v6370 = vadd.f32 %v5858, %v6242
  %v6371 = vadd.f32 %v5859, %v6243
  %v6372 = vadd.f32 %v5860, %v6244
  %v6373 = vadd.f32 %v5861, %v6245
  %v6374 = vadd.f32 %v5862, %v6246
  %v6375 = vadd.f32 %v5863, %v6247
  %v6376 = vadd.f32 %v5864, %v6248
  %v6377 = vadd.f32 %v5865, %v6249
  %v6378 = vadd.f32 %v5866, %v6250
  %v6379 = vadd.f32 %v5867, %v6251
  %v6380 = vadd.f32 %v5868, %v6252
  %v6381 = vadd.f32 %v5869, %v6253
  %v6382 = vadd.f32 %v5870, %v6254
  %v6383 = vadd.f32 %v5871, %v6255
  %v6384 = vadd.f32 %v5872, %v6256
  %v6385 = vadd.f32 %v5873, %v6257
  %v6386 = vadd.f32 %v5874, %v6258
  %v6387 = vadd.f32 %v5875, %v6259
  %v6388 = vld [vmem:[%s1 + $0x20] sm:$0xff]
  %v6389 = vld [vmem:[%s1 + $0x28] sm:$0xff]
  %v6390 = vld [vmem:[%s1 + $0x60] sm:$0xff]
  %v6391 = vld [vmem:[%s1 + $0x68] sm:$0xff]
  %v6392 = vld [vmem:[%s1 + $0xa0] sm:$0xff]
  %v6393 = vld [vmem:[%s1 + $0xa8] sm:$0xff]
  %v6394 = vld [vmem:[%s1 + $0xe0] sm:$0xff]
  %v6395 = vld [vmem:[%s1 + $0xe8] sm:$0xff]
  %6396 = vmatprep.subr.mxu0 %v6261
  %6397 = vmatpush1.msra.mxu0 %v6260
  %6398 = vmatprep.subr.mxu0 %v6265
  %6399 = vmatpush1.msra.mxu0 %v6264
  %6400 = vmatprep.subr.mxu0 %v6269
  %6401 = vmatpush1.msra.mxu0 %v6268
  %6402 = vmatprep.subr.mxu0 %v6273
  %6403 = vmatpush1.msra.mxu0 %v6272
  %6404 = vmatprep.subr.mxu0 %v6277
  %6405 = vmatpush1.msra.mxu0 %v6276
  %6406 = vmatprep.subr.mxu0 %v6281
  %6407 = vmatpush1.msra.mxu0 %v6280
  %6408 = vmatprep.subr.mxu0 %v6285
  %6409 = vmatpush1.msra.mxu0 %v6284
  %6410 = vmatprep.subr.mxu0 %v6289
  %6411 = vmatpush1.msra.mxu0 %v6288
  %6412 = vmatprep.subr.mxu0 %v6293
  %6413 = vmatpush1.msra.mxu0 %v6292
  %6414 = vmatprep.subr.mxu0 %v6297
  %6415 = vmatpush1.msra.mxu0 %v6296
  %6416 = vmatprep.subr.mxu0 %v6301
  %6417 = vmatpush1.msra.mxu0 %v6300
  %6418 = vmatprep.subr.mxu0 %v6305
  %6419 = vmatpush1.msra.mxu0 %v6304
  %6420 = vmatprep.subr.mxu0 %v6309
  %6421 = vmatpush1.msra.mxu0 %v6308
  %6422 = vmatprep.subr.mxu0 %v6313
  %6423 = vmatpush1.msra.mxu0 %v6312
  %6424 = vmatprep.subr.mxu0 %v6317
  %6425 = vmatpush1.msra.mxu0 %v6316
  %6426 = vmatprep.subr.mxu0 %v6321
  %6427 = vmatpush1.msra.mxu0 %v6320
  %6428 = vmatprep.subr.mxu0 %v6325
  %6429 = vmatpush1.msra.mxu0 %v6324
  %6430 = vmatprep.subr.mxu0 %v6329
  %6431 = vmatpush1.msra.mxu0 %v6328
  %6432 = vmatprep.subr.mxu0 %v6333
  %6433 = vmatpush1.msra.mxu0 %v6332
  %6434 = vmatprep.subr.mxu0 %v6337
  %6435 = vmatpush1.msra.mxu0 %v6336
  %6436 = vmatprep.subr.mxu0 %v6341
  %6437 = vmatpush1.msra.mxu0 %v6340
  %6438 = vmatprep.subr.mxu0 %v6345
  %6439 = vmatpush1.msra.mxu0 %v6344
  %6440 = vmatprep.subr.mxu0 %v6349
  %6441 = vmatpush1.msra.mxu0 %v6348
  %6442 = vmatprep.subr.mxu0 %v6353
  %6443 = vmatpush1.msra.mxu0 %v6352
  %6444 = vmatprep.subr.mxu0 %v6357
  %6445 = vmatpush1.msra.mxu0 %v6356
  %6446 = vmatprep.subr.mxu0 %v6361
  %6447 = vmatpush1.msra.mxu0 %v6360
  %6448 = vmatprep.subr.mxu0 %v6365
  %6449 = vmatpush1.msra.mxu0 %v6364
  %6450 = vmatprep.subr.mxu0 %v6369
  %6451 = vmatpush1.msra.mxu0 %v6368
  %6452 = vmatprep.subr.mxu0 %v6373
  %6453 = vmatpush1.msra.mxu0 %v6372
  %6454 = vmatprep.subr.mxu0 %v6377
  %6455 = vmatpush1.msra.mxu0 %v6376
  %6456 = vmatprep.subr.mxu0 %v6381
  %6457 = vmatpush1.msra.mxu0 %v6380
  %6458 = vmatprep.subr.mxu0 %v6385
  %6459 = vmatpush1.msra.mxu0 %v6384
  %6460 = vmatprep.mubr.f32.mxu0 %v6389
  %6461 = vmatmul.mubr.f32.gmra.mrb[0].mxu0 %v6388
  %v6462 = vpop.f32.mrb[0].mxu0
  %v6463 = vadd.f32 0.0, %v6462
  %v6464 = vpop.f32.mrb[0].mxu0
  %v6465 = vadd.f32 0.0, %v6464
  %6466 = vmatprep.mubr.f32.mxu0 %v6391
  %6467 = vmatmul.mubr.f32.gmra.mrb[0].mxu0 %v6390
  %v6468 = vpop.f32.mrb[0].mxu0
  %v6469 = vadd.f32 0.0, %v6468
  %v6470 = vpop.f32.mrb[0].mxu0
  %v6471 = vadd.f32 0.0, %v6470
  %6472 = vmatprep.mubr.f32.mxu0 %v6393
  %6473 = vmatmul.mubr.f32.gmra.mrb[0].mxu0 %v6392
  %v6474 = vpop.f32.mrb[0].mxu0
  %v6475 = vadd.f32 0.0, %v6474
  %v6476 = vpop.f32.mrb[0].mxu0
  %v6477 = vadd.f32 0.0, %v6476
  %6478 = vmatprep.mubr.f32.mxu0 %v6395
  %6479 = vmatmul.mubr.f32.gmra.mrb[0].mxu0 %v6394
  %v6480 = vpop.f32.mrb[0].mxu0
  %v6481 = vadd.f32 0.0, %v6480
  %v6482 = vpop.f32.mrb[0].mxu0
  %v6483 = vadd.f32 0.0, %v6482
  %6484 = vdwg.mxu0
  %6485 = vmatprep.subr.mxu0 %v6263
  %6486 = vmatpush1.msra.mxu0 %v6262
  %6487 = vmatprep.subr.mxu0 %v6267
  %6488 = vmatpush1.msra.mxu0 %v6266
  %6489 = vmatprep.subr.mxu0 %v6271
  %6490 = vmatpush1.msra.mxu0 %v6270
  %6491 = vmatprep.subr.mxu0 %v6275
  %6492 = vmatpush1.msra.mxu0 %v6274
  %6493 = vmatprep.subr.mxu0 %v6279
  %6494 = vmatpush1.msra.mxu0 %v6278
  %6495 = vmatprep.subr.mxu0 %v6283
  %6496 = vmatpush1.msra.mxu0 %v6282
  %6497 = vmatprep.subr.mxu0 %v6287
  %6498 = vmatpush1.msra.mxu0 %v6286
  %6499 = vmatprep.subr.mxu0 %v6291
  %6500 = vmatpush1.msra.mxu0 %v6290
  %6501 = vmatprep.subr.mxu0 %v6295
  %6502 = vmatpush1.msra.mxu0 %v6294
  %6503 = vmatprep.subr.mxu0 %v6299
  %6504 = vmatpush1.msra.mxu0 %v6298
  %6505 = vmatprep.subr.mxu0 %v6303
  %6506 = vmatpush1.msra.mxu0 %v6302
  %6507 = vmatprep.subr.mxu0 %v6307
  %6508 = vmatpush1.msra.mxu0 %v6306
  %6509 = vmatprep.subr.mxu0 %v6311
  %6510 = vmatpush1.msra.mxu0 %v6310
  %6511 = vmatprep.subr.mxu0 %v6315
  %6512 = vmatpush1.msra.mxu0 %v6314
  %6513 = vmatprep.subr.mxu0 %v6319
  %6514 = vmatpush1.msra.mxu0 %v6318
  %6515 = vmatprep.subr.mxu0 %v6323
  %6516 = vmatpush1.msra.mxu0 %v6322
  %6517 = vmatprep.subr.mxu0 %v6327
  %6518 = vmatpush1.msra.mxu0 %v6326
  %6519 = vmatprep.subr.mxu0 %v6331
  %6520 = vmatpush1.msra.mxu0 %v6330
  %6521 = vmatprep.subr.mxu0 %v6335
  %6522 = vmatpush1.msra.mxu0 %v6334
  %6523 = vmatprep.subr.mxu0 %v6339
  %6524 = vmatpush1.msra.mxu0 %v6338
  %6525 = vmatprep.subr.mxu0 %v6343
  %6526 = vmatpush1.msra.mxu0 %v6342
  %6527 = vmatprep.subr.mxu0 %v6347
  %6528 = vmatpush1.msra.mxu0 %v6346
  %6529 = vmatprep.subr.mxu0 %v6351
  %6530 = vmatpush1.msra.mxu0 %v6350
  %6531 = vmatprep.subr.mxu0 %v6355
  %6532 = vmatpush1.msra.mxu0 %v6354
  %6533 = vmatprep.subr.mxu0 %v6359
  %6534 = vmatpush1.msra.mxu0 %v6358
  %6535 = vmatprep.subr.mxu0 %v6363
  %6536 = vmatpush1.msra.mxu0 %v6362
  %6537 = vmatprep.subr.mxu0 %v6367
  %6538 = vmatpush1.msra.mxu0 %v6366
  %6539 = vmatprep.subr.mxu0 %v6371
  %6540 = vmatpush1.msra.mxu0 %v6370
  %6541 = vmatprep.subr.mxu0 %v6375
  %6542 = vmatpush1.msra.mxu0 %v6374
  %6543 = vmatprep.subr.mxu0 %v6379
  %6544 = vmatpush1.msra.mxu0 %v6378
  %6545 = vmatprep.subr.mxu0 %v6383
  %6546 = vmatpush1.msra.mxu0 %v6382
  %6547 = vmatprep.subr.mxu0 %v6387
  %6548 = vmatpush1.msra.mxu0 %v6386
  %6549 = vmatprep.mubr.f32.mxu0 %v6389
  %6550 = vmatmul.mubr.f32.gmra.mrb[0].mxu0 %v6388
  %v6551 = vpop.f32.mrb[0].mxu0
  %v6552 = vadd.f32 0.0, %v6551
  %v6553 = vpop.f32.mrb[0].mxu0
  %v6554 = vadd.f32 0.0, %v6553
  %6555 = vmatprep.mubr.f32.mxu0 %v6391
  %6556 = vmatmul.mubr.f32.gmra.mrb[0].mxu0 %v6390
  %v6557 = vpop.f32.mrb[0].mxu0
  %v6558 = vadd.f32 0.0, %v6557
  %v6559 = vpop.f32.mrb[0].mxu0
  %v6560 = vadd.f32 0.0, %v6559
  %6561 = vmatprep.mubr.f32.mxu0 %v6393
  %6562 = vmatmul.mubr.f32.gmra.mrb[0].mxu0 %v6392
  %v6563 = vpop.f32.mrb[0].mxu0
  %v6564 = vadd.f32 0.0, %v6563
  %v6565 = vpop.f32.mrb[0].mxu0
  %v6566 = vadd.f32 0.0, %v6565
  %6567 = vmatprep.mubr.f32.mxu0 %v6395
  %6568 = vmatmul.mubr.f32.gmra.mrb[0].mxu0 %v6394
  %v6569 = vpop.f32.mrb[0].mxu0
  %v6570 = vadd.f32 0.0, %v6569
  %v6571 = vpop.f32.mrb[0].mxu0
  %v6572 = vadd.f32 0.0, %v6571
  %6573 = vdwg.mxu0
  %v6574 = vadd.f32 %v4325, %v6463
  %v6575 = vadd.f32 %v4327, %v6465
  %v6576 = vadd.f32 %v4414, %v6552
  %v6577 = vadd.f32 %v4416, %v6554
  %v6578 = vadd.f32 %v4331, %v6469
  %v6579 = vadd.f32 %v4333, %v6471
  %v6580 = vadd.f32 %v4420, %v6558
  %v6581 = vadd.f32 %v4422, %v6560
  %v6582 = vadd.f32 %v4337, %v6475
  %v6583 = vadd.f32 %v4339, %v6477
  %v6584 = vadd.f32 %v4426, %v6564
  %v6585 = vadd.f32 %v4428, %v6566
  %v6586 = vadd.f32 %v4343, %v6481
  %v6587 = vadd.f32 %v4345, %v6483
  %v6588 = vadd.f32 %v4432, %v6570
  %v6589 = vadd.f32 %v4434, %v6572
  %v6590 = vadd.s32 %v32, 768
  %v6591 = vadd.s32 %v33, 768
  %v6592 = vadd.s32 %v34, 768
  %v6593 = vadd.s32 %v35, 768
  %v6594 = vadd.s32 %v36, 768
  %v6595 = vadd.s32 %v37, 768
  %v6596 = vadd.s32 %v38, 768
  %v6597 = vadd.s32 %v39, 768
  %v6598 = vadd.s32 %v40, 768
  %v6599 = vadd.s32 %v41, 768
  %v6600 = vadd.s32 %v42, 768
  %v6601 = vadd.s32 %v43, 768
  %v6602 = vadd.s32 %v44, 768
  %v6603 = vadd.s32 %v45, 768
  %v6604 = vadd.s32 %v46, 768
  %v6605 = vadd.s32 %v47, 768
  %v6606 = vadd.s32 %v48, 768
  %v6607 = vadd.s32 %v49, 768
  %v6608 = vadd.s32 %v50, 768
  %v6609 = vadd.s32 %v51, 768
  %v6610 = vadd.s32 %v52, 768
  %v6611 = vadd.s32 %v53, 768
  %v6612 = vadd.s32 %v54, 768
  %v6613 = vadd.s32 %v55, 768
  %v6614 = vadd.s32 %v56, 768
  %v6615 = vadd.s32 %v57, 768
  %v6616 = vadd.s32 %v58, 768
  %v6617 = vadd.s32 %v59, 768
  %v6618 = vadd.s32 %v60, 768
  %v6619 = vadd.s32 %v61, 768
  %v6620 = vadd.s32 %v62, 768
  %v6621 = vadd.s32 %v63, 768
  %vm6622 = vcmp.eq.s32.totalorder %v6590, %v83
  %vm6623 = vcmp.eq.s32.totalorder %v6590, %v87
  %vm6624 = vcmp.eq.s32.totalorder %v6590, %v91
  %vm6625 = vcmp.eq.s32.totalorder %v6590, %v95
  %vm6626 = vcmp.eq.s32.totalorder %v6591, %v83
  %vm6627 = vcmp.eq.s32.totalorder %v6591, %v87
  %vm6628 = vcmp.eq.s32.totalorder %v6591, %v91
  %vm6629 = vcmp.eq.s32.totalorder %v6591, %v95
  %vm6630 = vcmp.eq.s32.totalorder %v6592, %v83
  %vm6631 = vcmp.eq.s32.totalorder %v6592, %v87
  %vm6632 = vcmp.eq.s32.totalorder %v6592, %v91
  %vm6633 = vcmp.eq.s32.totalorder %v6592, %v95
  %vm6634 = vcmp.eq.s32.totalorder %v6593, %v83
  %vm6635 = vcmp.eq.s32.totalorder %v6593, %v87
  %vm6636 = vcmp.eq.s32.totalorder %v6593, %v91
  %vm6637 = vcmp.eq.s32.totalorder %v6593, %v95
  %vm6638 = vcmp.eq.s32.totalorder %v6594, %v83
  %vm6639 = vcmp.eq.s32.totalorder %v6594, %v87
  %vm6640 = vcmp.eq.s32.totalorder %v6594, %v91
  %vm6641 = vcmp.eq.s32.totalorder %v6594, %v95
  %vm6642 = vcmp.eq.s32.totalorder %v6595, %v83
  %vm6643 = vcmp.eq.s32.totalorder %v6595, %v87
  %vm6644 = vcmp.eq.s32.totalorder %v6595, %v91
  %vm6645 = vcmp.eq.s32.totalorder %v6595, %v95
  %vm6646 = vcmp.eq.s32.totalorder %v6596, %v83
  %vm6647 = vcmp.eq.s32.totalorder %v6596, %v87
  %vm6648 = vcmp.eq.s32.totalorder %v6596, %v91
  %vm6649 = vcmp.eq.s32.totalorder %v6596, %v95
  %vm6650 = vcmp.eq.s32.totalorder %v6597, %v83
  %vm6651 = vcmp.eq.s32.totalorder %v6597, %v87
  %vm6652 = vcmp.eq.s32.totalorder %v6597, %v91
  %vm6653 = vcmp.eq.s32.totalorder %v6597, %v95
  %vm6654 = vcmp.eq.s32.totalorder %v6598, %v83
  %vm6655 = vcmp.eq.s32.totalorder %v6598, %v87
  %vm6656 = vcmp.eq.s32.totalorder %v6598, %v91
  %vm6657 = vcmp.eq.s32.totalorder %v6598, %v95
  %vm6658 = vcmp.eq.s32.totalorder %v6599, %v83
  %vm6659 = vcmp.eq.s32.totalorder %v6599, %v87
  %vm6660 = vcmp.eq.s32.totalorder %v6599, %v91
  %vm6661 = vcmp.eq.s32.totalorder %v6599, %v95
  %vm6662 = vcmp.eq.s32.totalorder %v6600, %v83
  %vm6663 = vcmp.eq.s32.totalorder %v6600, %v87
  %vm6664 = vcmp.eq.s32.totalorder %v6600, %v91
  %vm6665 = vcmp.eq.s32.totalorder %v6600, %v95
  %vm6666 = vcmp.eq.s32.totalorder %v6601, %v83
  %vm6667 = vcmp.eq.s32.totalorder %v6601, %v87
  %vm6668 = vcmp.eq.s32.totalorder %v6601, %v91
  %vm6669 = vcmp.eq.s32.totalorder %v6601, %v95
  %vm6670 = vcmp.eq.s32.totalorder %v6602, %v83
  %vm6671 = vcmp.eq.s32.totalorder %v6602, %v87
  %vm6672 = vcmp.eq.s32.totalorder %v6602, %v91
  %vm6673 = vcmp.eq.s32.totalorder %v6602, %v95
  %vm6674 = vcmp.eq.s32.totalorder %v6603, %v83
  %vm6675 = vcmp.eq.s32.totalorder %v6603, %v87
  %vm6676 = vcmp.eq.s32.totalorder %v6603, %v91
  %vm6677 = vcmp.eq.s32.totalorder %v6603, %v95
  %vm6678 = vcmp.eq.s32.totalorder %v6604, %v83
  %vm6679 = vcmp.eq.s32.totalorder %v6604, %v87
  %vm6680 = vcmp.eq.s32.totalorder %v6604, %v91
  %vm6681 = vcmp.eq.s32.totalorder %v6604, %v95
  %vm6682 = vcmp.eq.s32.totalorder %v6605, %v83
  %vm6683 = vcmp.eq.s32.totalorder %v6605, %v87
  %vm6684 = vcmp.eq.s32.totalorder %v6605, %v91
  %vm6685 = vcmp.eq.s32.totalorder %v6605, %v95
  %vm6686 = vcmp.eq.s32.totalorder %v6606, %v83
  %vm6687 = vcmp.eq.s32.totalorder %v6606, %v87
  %vm6688 = vcmp.eq.s32.totalorder %v6606, %v91
  %vm6689 = vcmp.eq.s32.totalorder %v6606, %v95
  %vm6690 = vcmp.eq.s32.totalorder %v6607, %v83
  %vm6691 = vcmp.eq.s32.totalorder %v6607, %v87
  %vm6692 = vcmp.eq.s32.totalorder %v6607, %v91
  %vm6693 = vcmp.eq.s32.totalorder %v6607, %v95
  %vm6694 = vcmp.eq.s32.totalorder %v6608, %v83
  %vm6695 = vcmp.eq.s32.totalorder %v6608, %v87
  %vm6696 = vcmp.eq.s32.totalorder %v6608, %v91
  %vm6697 = vcmp.eq.s32.totalorder %v6608, %v95
  %vm6698 = vcmp.eq.s32.totalorder %v6609, %v83
  %vm6699 = vcmp.eq.s32.totalorder %v6609, %v87
  %vm6700 = vcmp.eq.s32.totalorder %v6609, %v91
  %vm6701 = vcmp.eq.s32.totalorder %v6609, %v95
  %vm6702 = vcmp.eq.s32.totalorder %v6610, %v83
  %vm6703 = vcmp.eq.s32.totalorder %v6610, %v87
  %vm6704 = vcmp.eq.s32.totalorder %v6610, %v91
  %vm6705 = vcmp.eq.s32.totalorder %v6610, %v95
  %vm6706 = vcmp.eq.s32.totalorder %v6611, %v83
  %vm6707 = vcmp.eq.s32.totalorder %v6611, %v87
  %vm6708 = vcmp.eq.s32.totalorder %v6611, %v91
  %vm6709 = vcmp.eq.s32.totalorder %v6611, %v95
  %vm6710 = vcmp.eq.s32.totalorder %v6612, %v83
  %vm6711 = vcmp.eq.s32.totalorder %v6612, %v87
  %vm6712 = vcmp.eq.s32.totalorder %v6612, %v91
  %vm6713 = vcmp.eq.s32.totalorder %v6612, %v95
  %vm6714 = vcmp.eq.s32.totalorder %v6613, %v83
  %vm6715 = vcmp.eq.s32.totalorder %v6613, %v87
  %vm6716 = vcmp.eq.s32.totalorder %v6613, %v91
  %vm6717 = vcmp.eq.s32.totalorder %v6613, %v95
  %vm6718 = vcmp.eq.s32.totalorder %v6614, %v83
  %vm6719 = vcmp.eq.s32.totalorder %v6614, %v87
  %vm6720 = vcmp.eq.s32.totalorder %v6614, %v91
  %vm6721 = vcmp.eq.s32.totalorder %v6614, %v95
  %vm6722 = vcmp.eq.s32.totalorder %v6615, %v83
  %vm6723 = vcmp.eq.s32.totalorder %v6615, %v87
  %vm6724 = vcmp.eq.s32.totalorder %v6615, %v91
  %vm6725 = vcmp.eq.s32.totalorder %v6615, %v95
  %vm6726 = vcmp.eq.s32.totalorder %v6616, %v83
  %vm6727 = vcmp.eq.s32.totalorder %v6616, %v87
  %vm6728 = vcmp.eq.s32.totalorder %v6616, %v91
  %vm6729 = vcmp.eq.s32.totalorder %v6616, %v95
  %vm6730 = vcmp.eq.s32.totalorder %v6617, %v83
  %vm6731 = vcmp.eq.s32.totalorder %v6617, %v87
  %vm6732 = vcmp.eq.s32.totalorder %v6617, %v91
  %vm6733 = vcmp.eq.s32.totalorder %v6617, %v95
  %vm6734 = vcmp.eq.s32.totalorder %v6618, %v83
  %vm6735 = vcmp.eq.s32.totalorder %v6618, %v87
  %vm6736 = vcmp.eq.s32.totalorder %v6618, %v91
  %vm6737 = vcmp.eq.s32.totalorder %v6618, %v95
  %vm6738 = vcmp.eq.s32.totalorder %v6619, %v83
  %vm6739 = vcmp.eq.s32.totalorder %v6619, %v87
  %vm6740 = vcmp.eq.s32.totalorder %v6619, %v91
  %vm6741 = vcmp.eq.s32.totalorder %v6619, %v95
  %vm6742 = vcmp.eq.s32.totalorder %v6620, %v83
  %vm6743 = vcmp.eq.s32.totalorder %v6620, %v87
  %vm6744 = vcmp.eq.s32.totalorder %v6620, %v91
  %vm6745 = vcmp.eq.s32.totalorder %v6620, %v95
  %vm6746 = vcmp.eq.s32.totalorder %v6621, %v83
  %vm6747 = vcmp.eq.s32.totalorder %v6621, %v87
  %vm6748 = vcmp.eq.s32.totalorder %v6621, %v91
  %vm6749 = vcmp.eq.s32.totalorder %v6621, %v95
  %v6750 = vsel %vm6622, 1, 0
  %v6751 = vsel %vm6623, 1, 0
  %v6752 = vsel %vm6624, 1, 0
  %v6753 = vsel %vm6625, 1, 0
  %v6754 = vsel %vm6626, 1, 0
  %v6755 = vsel %vm6627, 1, 0
  %v6756 = vsel %vm6628, 1, 0
  %v6757 = vsel %vm6629, 1, 0
  %v6758 = vsel %vm6630, 1, 0
  %v6759 = vsel %vm6631, 1, 0
  %v6760 = vsel %vm6632, 1, 0
  %v6761 = vsel %vm6633, 1, 0
  %v6762 = vsel %vm6634, 1, 0
  %v6763 = vsel %vm6635, 1, 0
  %v6764 = vsel %vm6636, 1, 0
  %v6765 = vsel %vm6637, 1, 0
  %v6766 = vsel %vm6638, 1, 0
  %v6767 = vsel %vm6639, 1, 0
  %v6768 = vsel %vm6640, 1, 0
  %v6769 = vsel %vm6641, 1, 0
  %v6770 = vsel %vm6642, 1, 0
  %v6771 = vsel %vm6643, 1, 0
  %v6772 = vsel %vm6644, 1, 0
  %v6773 = vsel %vm6645, 1, 0
  %v6774 = vsel %vm6646, 1, 0
  %v6775 = vsel %vm6647, 1, 0
  %v6776 = vsel %vm6648, 1, 0
  %v6777 = vsel %vm6649, 1, 0
  %v6778 = vsel %vm6650, 1, 0
  %v6779 = vsel %vm6651, 1, 0
  %v6780 = vsel %vm6652, 1, 0
  %v6781 = vsel %vm6653, 1, 0
  %v6782 = vsel %vm6654, 1, 0
  %v6783 = vsel %vm6655, 1, 0
  %v6784 = vsel %vm6656, 1, 0
  %v6785 = vsel %vm6657, 1, 0
  %v6786 = vsel %vm6658, 1, 0
  %v6787 = vsel %vm6659, 1, 0
  %v6788 = vsel %vm6660, 1, 0
  %v6789 = vsel %vm6661, 1, 0
  %v6790 = vsel %vm6662, 1, 0
  %v6791 = vsel %vm6663, 1, 0
  %v6792 = vsel %vm6664, 1, 0
  %v6793 = vsel %vm6665, 1, 0
  %v6794 = vsel %vm6666, 1, 0
  %v6795 = vsel %vm6667, 1, 0
  %v6796 = vsel %vm6668, 1, 0
  %v6797 = vsel %vm6669, 1, 0
  %v6798 = vsel %vm6670, 1, 0
  %v6799 = vsel %vm6671, 1, 0
  %v6800 = vsel %vm6672, 1, 0
  %v6801 = vsel %vm6673, 1, 0
  %v6802 = vsel %vm6674, 1, 0
  %v6803 = vsel %vm6675, 1, 0
  %v6804 = vsel %vm6676, 1, 0
  %v6805 = vsel %vm6677, 1, 0
  %v6806 = vsel %vm6678, 1, 0
  %v6807 = vsel %vm6679, 1, 0
  %v6808 = vsel %vm6680, 1, 0
  %v6809 = vsel %vm6681, 1, 0
  %v6810 = vsel %vm6682, 1, 0
  %v6811 = vsel %vm6683, 1, 0
  %v6812 = vsel %vm6684, 1, 0
  %v6813 = vsel %vm6685, 1, 0
  %v6814 = vsel %vm6686, 1, 0
  %v6815 = vsel %vm6687, 1, 0
  %v6816 = vsel %vm6688, 1, 0
  %v6817 = vsel %vm6689, 1, 0
  %v6818 = vsel %vm6690, 1, 0
  %v6819 = vsel %vm6691, 1, 0
  %v6820 = vsel %vm6692, 1, 0
  %v6821 = vsel %vm6693, 1, 0
  %v6822 = vsel %vm6694, 1, 0
  %v6823 = vsel %vm6695, 1, 0
  %v6824 = vsel %vm6696, 1, 0
  %v6825 = vsel %vm6697, 1, 0
  %v6826 = vsel %vm6698, 1, 0
  %v6827 = vsel %vm6699, 1, 0
  %v6828 = vsel %vm6700, 1, 0
  %v6829 = vsel %vm6701, 1, 0
  %v6830 = vsel %vm6702, 1, 0
  %v6831 = vsel %vm6703, 1, 0
  %v6832 = vsel %vm6704, 1, 0
  %v6833 = vsel %vm6705, 1, 0
  %v6834 = vsel %vm6706, 1, 0
  %v6835 = vsel %vm6707, 1, 0
  %v6836 = vsel %vm6708, 1, 0
  %v6837 = vsel %vm6709, 1, 0
  %v6838 = vsel %vm6710, 1, 0
  %v6839 = vsel %vm6711, 1, 0
  %v6840 = vsel %vm6712, 1, 0
  %v6841 = vsel %vm6713, 1, 0
  %v6842 = vsel %vm6714, 1, 0
  %v6843 = vsel %vm6715, 1, 0
  %v6844 = vsel %vm6716, 1, 0
  %v6845 = vsel %vm6717, 1, 0
  %v6846 = vsel %vm6718, 1, 0
  %v6847 = vsel %vm6719, 1, 0
  %v6848 = vsel %vm6720, 1, 0
  %v6849 = vsel %vm6721, 1, 0
  %v6850 = vsel %vm6722, 1, 0
  %v6851 = vsel %vm6723, 1, 0
  %v6852 = vsel %vm6724, 1, 0
  %v6853 = vsel %vm6725, 1, 0
  %v6854 = vsel %vm6726, 1, 0
  %v6855 = vsel %vm6727, 1, 0
  %v6856 = vsel %vm6728, 1, 0
  %v6857 = vsel %vm6729, 1, 0
  %v6858 = vsel %vm6730, 1, 0
  %v6859 = vsel %vm6731, 1, 0
  %v6860 = vsel %vm6732, 1, 0
  %v6861 = vsel %vm6733, 1, 0
  %v6862 = vsel %vm6734, 1, 0
  %v6863 = vsel %vm6735, 1, 0
  %v6864 = vsel %vm6736, 1, 0
  %v6865 = vsel %vm6737, 1, 0
  %v6866 = vsel %vm6738, 1, 0
  %v6867 = vsel %vm6739, 1, 0
  %v6868 = vsel %vm6740, 1, 0
  %v6869 = vsel %vm6741, 1, 0
  %v6870 = vsel %vm6742, 1, 0
  %v6871 = vsel %vm6743, 1, 0
  %v6872 = vsel %vm6744, 1, 0
  %v6873 = vsel %vm6745, 1, 0
  %v6874 = vsel %vm6746, 1, 0
  %v6875 = vsel %vm6747, 1, 0
  %v6876 = vsel %vm6748, 1, 0
  %v6877 = vsel %vm6749, 1, 0
  %v6878 = vcvt.s32.f32 %v6750
  %v6879 = vcvt.s32.f32 %v6751
  %v6880 = vcvt.s32.f32 %v6752
  %v6881 = vcvt.s32.f32 %v6753
  %v6882 = vcvt.s32.f32 %v6754
  %v6883 = vcvt.s32.f32 %v6755
  %v6884 = vcvt.s32.f32 %v6756
  %v6885 = vcvt.s32.f32 %v6757
  %v6886 = vcvt.s32.f32 %v6758
  %v6887 = vcvt.s32.f32 %v6759
  %v6888 = vcvt.s32.f32 %v6760
  %v6889 = vcvt.s32.f32 %v6761
  %v6890 = vcvt.s32.f32 %v6762
  %v6891 = vcvt.s32.f32 %v6763
  %v6892 = vcvt.s32.f32 %v6764
  %v6893 = vcvt.s32.f32 %v6765
  %v6894 = vcvt.s32.f32 %v6766
  %v6895 = vcvt.s32.f32 %v6767
  %v6896 = vcvt.s32.f32 %v6768
  %v6897 = vcvt.s32.f32 %v6769
  %v6898 = vcvt.s32.f32 %v6770
  %v6899 = vcvt.s32.f32 %v6771
  %v6900 = vcvt.s32.f32 %v6772
  %v6901 = vcvt.s32.f32 %v6773
  %v6902 = vcvt.s32.f32 %v6774
  %v6903 = vcvt.s32.f32 %v6775
  %v6904 = vcvt.s32.f32 %v6776
  %v6905 = vcvt.s32.f32 %v6777
  %v6906 = vcvt.s32.f32 %v6778
  %v6907 = vcvt.s32.f32 %v6779
  %v6908 = vcvt.s32.f32 %v6780
  %v6909 = vcvt.s32.f32 %v6781
  %v6910 = vcvt.s32.f32 %v6782
  %v6911 = vcvt.s32.f32 %v6783
  %v6912 = vcvt.s32.f32 %v6784
  %v6913 = vcvt.s32.f32 %v6785
  %v6914 = vcvt.s32.f32 %v6786
  %v6915 = vcvt.s32.f32 %v6787
  %v6916 = vcvt.s32.f32 %v6788
  %v6917 = vcvt.s32.f32 %v6789
  %v6918 = vcvt.s32.f32 %v6790
  %v6919 = vcvt.s32.f32 %v6791
  %v6920 = vcvt.s32.f32 %v6792
  %v6921 = vcvt.s32.f32 %v6793
  %v6922 = vcvt.s32.f32 %v6794
  %v6923 = vcvt.s32.f32 %v6795
  %v6924 = vcvt.s32.f32 %v6796
  %v6925 = vcvt.s32.f32 %v6797
  %v6926 = vcvt.s32.f32 %v6798
  %v6927 = vcvt.s32.f32 %v6799
  %v6928 = vcvt.s32.f32 %v6800
  %v6929 = vcvt.s32.f32 %v6801
  %v6930 = vcvt.s32.f32 %v6802
  %v6931 = vcvt.s32.f32 %v6803
  %v6932 = vcvt.s32.f32 %v6804
  %v6933 = vcvt.s32.f32 %v6805
  %v6934 = vcvt.s32.f32 %v6806
  %v6935 = vcvt.s32.f32 %v6807
  %v6936 = vcvt.s32.f32 %v6808
  %v6937 = vcvt.s32.f32 %v6809
  %v6938 = vcvt.s32.f32 %v6810
  %v6939 = vcvt.s32.f32 %v6811
  %v6940 = vcvt.s32.f32 %v6812
  %v6941 = vcvt.s32.f32 %v6813
  %v6942 = vcvt.s32.f32 %v6814
  %v6943 = vcvt.s32.f32 %v6815
  %v6944 = vcvt.s32.f32 %v6816
  %v6945 = vcvt.s32.f32 %v6817
  %v6946 = vcvt.s32.f32 %v6818
  %v6947 = vcvt.s32.f32 %v6819
  %v6948 = vcvt.s32.f32 %v6820
  %v6949 = vcvt.s32.f32 %v6821
  %v6950 = vcvt.s32.f32 %v6822
  %v6951 = vcvt.s32.f32 %v6823
  %v6952 = vcvt.s32.f32 %v6824
  %v6953 = vcvt.s32.f32 %v6825
  %v6954 = vcvt.s32.f32 %v6826
  %v6955 = vcvt.s32.f32 %v6827
  %v6956 = vcvt.s32.f32 %v6828
  %v6957 = vcvt.s32.f32 %v6829
  %v6958 = vcvt.s32.f32 %v6830
  %v6959 = vcvt.s32.f32 %v6831
  %v6960 = vcvt.s32.f32 %v6832
  %v6961 = vcvt.s32.f32 %v6833
  %v6962 = vcvt.s32.f32 %v6834
  %v6963 = vcvt.s32.f32 %v6835
  %v6964 = vcvt.s32.f32 %v6836
  %v6965 = vcvt.s32.f32 %v6837
  %v6966 = vcvt.s32.f32 %v6838
  %v6967 = vcvt.s32.f32 %v6839
  %v6968 = vcvt.s32.f32 %v6840
  %v6969 = vcvt.s32.f32 %v6841
  %v6970 = vcvt.s32.f32 %v6842
  %v6971 = vcvt.s32.f32 %v6843
  %v6972 = vcvt.s32.f32 %v6844
  %v6973 = vcvt.s32.f32 %v6845
  %v6974 = vcvt.s32.f32 %v6846
  %v6975 = vcvt.s32.f32 %v6847
  %v6976 = vcvt.s32.f32 %v6848
  %v6977 = vcvt.s32.f32 %v6849
  %v6978 = vcvt.s32.f32 %v6850
  %v6979 = vcvt.s32.f32 %v6851
  %v6980 = vcvt.s32.f32 %v6852
  %v6981 = vcvt.s32.f32 %v6853
  %v6982 = vcvt.s32.f32 %v6854
  %v6983 = vcvt.s32.f32 %v6855
  %v6984 = vcvt.s32.f32 %v6856
  %v6985 = vcvt.s32.f32 %v6857
  %v6986 = vcvt.s32.f32 %v6858
  %v6987 = vcvt.s32.f32 %v6859
  %v6988 = vcvt.s32.f32 %v6860
  %v6989 = vcvt.s32.f32 %v6861
  %v6990 = vcvt.s32.f32 %v6862
  %v6991 = vcvt.s32.f32 %v6863
  %v6992 = vcvt.s32.f32 %v6864
  %v6993 = vcvt.s32.f32 %v6865
  %v6994 = vcvt.s32.f32 %v6866
  %v6995 = vcvt.s32.f32 %v6867
  %v6996 = vcvt.s32.f32 %v6868
  %v6997 = vcvt.s32.f32 %v6869
  %v6998 = vcvt.s32.f32 %v6870
  %v6999 = vcvt.s32.f32 %v6871
  %v7000 = vcvt.s32.f32 %v6872
  %v7001 = vcvt.s32.f32 %v6873
  %v7002 = vcvt.s32.f32 %v6874
  %v7003 = vcvt.s32.f32 %v6875
  %v7004 = vcvt.s32.f32 %v6876
  %v7005 = vcvt.s32.f32 %v6877
  %vm7006 = vcmp.eq.s32.totalorder %v6590, %v499
  %vm7007 = vcmp.eq.s32.totalorder %v6590, %v503
  %vm7008 = vcmp.eq.s32.totalorder %v6590, %v507
  %vm7009 = vcmp.eq.s32.totalorder %v6590, %v511
  %vm7010 = vcmp.eq.s32.totalorder %v6591, %v499
  %vm7011 = vcmp.eq.s32.totalorder %v6591, %v503
  %vm7012 = vcmp.eq.s32.totalorder %v6591, %v507
  %vm7013 = vcmp.eq.s32.totalorder %v6591, %v511
  %vm7014 = vcmp.eq.s32.totalorder %v6592, %v499
  %vm7015 = vcmp.eq.s32.totalorder %v6592, %v503
  %vm7016 = vcmp.eq.s32.totalorder %v6592, %v507
  %vm7017 = vcmp.eq.s32.totalorder %v6592, %v511
  %vm7018 = vcmp.eq.s32.totalorder %v6593, %v499
  %vm7019 = vcmp.eq.s32.totalorder %v6593, %v503
  %vm7020 = vcmp.eq.s32.totalorder %v6593, %v507
  %vm7021 = vcmp.eq.s32.totalorder %v6593, %v511
  %vm7022 = vcmp.eq.s32.totalorder %v6594, %v499
  %vm7023 = vcmp.eq.s32.totalorder %v6594, %v503
  %vm7024 = vcmp.eq.s32.totalorder %v6594, %v507
  %vm7025 = vcmp.eq.s32.totalorder %v6594, %v511
  %vm7026 = vcmp.eq.s32.totalorder %v6595, %v499
  %vm7027 = vcmp.eq.s32.totalorder %v6595, %v503
  %vm7028 = vcmp.eq.s32.totalorder %v6595, %v507
  %vm7029 = vcmp.eq.s32.totalorder %v6595, %v511
  %vm7030 = vcmp.eq.s32.totalorder %v6596, %v499
  %vm7031 = vcmp.eq.s32.totalorder %v6596, %v503
  %vm7032 = vcmp.eq.s32.totalorder %v6596, %v507
  %vm7033 = vcmp.eq.s32.totalorder %v6596, %v511
  %vm7034 = vcmp.eq.s32.totalorder %v6597, %v499
  %vm7035 = vcmp.eq.s32.totalorder %v6597, %v503
  %vm7036 = vcmp.eq.s32.totalorder %v6597, %v507
  %vm7037 = vcmp.eq.s32.totalorder %v6597, %v511
  %vm7038 = vcmp.eq.s32.totalorder %v6598, %v499
  %vm7039 = vcmp.eq.s32.totalorder %v6598, %v503
  %vm7040 = vcmp.eq.s32.totalorder %v6598, %v507
  %vm7041 = vcmp.eq.s32.totalorder %v6598, %v511
  %vm7042 = vcmp.eq.s32.totalorder %v6599, %v499
  %vm7043 = vcmp.eq.s32.totalorder %v6599, %v503
  %vm7044 = vcmp.eq.s32.totalorder %v6599, %v507
  %vm7045 = vcmp.eq.s32.totalorder %v6599, %v511
  %vm7046 = vcmp.eq.s32.totalorder %v6600, %v499
  %vm7047 = vcmp.eq.s32.totalorder %v6600, %v503
  %vm7048 = vcmp.eq.s32.totalorder %v6600, %v507
  %vm7049 = vcmp.eq.s32.totalorder %v6600, %v511
  %vm7050 = vcmp.eq.s32.totalorder %v6601, %v499
  %vm7051 = vcmp.eq.s32.totalorder %v6601, %v503
  %vm7052 = vcmp.eq.s32.totalorder %v6601, %v507
  %vm7053 = vcmp.eq.s32.totalorder %v6601, %v511
  %vm7054 = vcmp.eq.s32.totalorder %v6602, %v499
  %vm7055 = vcmp.eq.s32.totalorder %v6602, %v503
  %vm7056 = vcmp.eq.s32.totalorder %v6602, %v507
  %vm7057 = vcmp.eq.s32.totalorder %v6602, %v511
  %vm7058 = vcmp.eq.s32.totalorder %v6603, %v499
  %vm7059 = vcmp.eq.s32.totalorder %v6603, %v503
  %vm7060 = vcmp.eq.s32.totalorder %v6603, %v507
  %vm7061 = vcmp.eq.s32.totalorder %v6603, %v511
  %vm7062 = vcmp.eq.s32.totalorder %v6604, %v499
  %vm7063 = vcmp.eq.s32.totalorder %v6604, %v503
  %vm7064 = vcmp.eq.s32.totalorder %v6604, %v507
  %vm7065 = vcmp.eq.s32.totalorder %v6604, %v511
  %vm7066 = vcmp.eq.s32.totalorder %v6605, %v499
  %vm7067 = vcmp.eq.s32.totalorder %v6605, %v503
  %vm7068 = vcmp.eq.s32.totalorder %v6605, %v507
  %vm7069 = vcmp.eq.s32.totalorder %v6605, %v511
  %vm7070 = vcmp.eq.s32.totalorder %v6606, %v499
  %vm7071 = vcmp.eq.s32.totalorder %v6606, %v503
  %vm7072 = vcmp.eq.s32.totalorder %v6606, %v507
  %vm7073 = vcmp.eq.s32.totalorder %v6606, %v511
  %vm7074 = vcmp.eq.s32.totalorder %v6607, %v499
  %vm7075 = vcmp.eq.s32.totalorder %v6607, %v503
  %vm7076 = vcmp.eq.s32.totalorder %v6607, %v507
  %vm7077 = vcmp.eq.s32.totalorder %v6607, %v511
  %vm7078 = vcmp.eq.s32.totalorder %v6608, %v499
  %vm7079 = vcmp.eq.s32.totalorder %v6608, %v503
  %vm7080 = vcmp.eq.s32.totalorder %v6608, %v507
  %vm7081 = vcmp.eq.s32.totalorder %v6608, %v511
  %vm7082 = vcmp.eq.s32.totalorder %v6609, %v499
  %vm7083 = vcmp.eq.s32.totalorder %v6609, %v503
  %vm7084 = vcmp.eq.s32.totalorder %v6609, %v507
  %vm7085 = vcmp.eq.s32.totalorder %v6609, %v511
  %vm7086 = vcmp.eq.s32.totalorder %v6610, %v499
  %vm7087 = vcmp.eq.s32.totalorder %v6610, %v503
  %vm7088 = vcmp.eq.s32.totalorder %v6610, %v507
  %vm7089 = vcmp.eq.s32.totalorder %v6610, %v511
  %vm7090 = vcmp.eq.s32.totalorder %v6611, %v499
  %vm7091 = vcmp.eq.s32.totalorder %v6611, %v503
  %vm7092 = vcmp.eq.s32.totalorder %v6611, %v507
  %vm7093 = vcmp.eq.s32.totalorder %v6611, %v511
  %vm7094 = vcmp.eq.s32.totalorder %v6612, %v499
  %vm7095 = vcmp.eq.s32.totalorder %v6612, %v503
  %vm7096 = vcmp.eq.s32.totalorder %v6612, %v507
  %vm7097 = vcmp.eq.s32.totalorder %v6612, %v511
  %vm7098 = vcmp.eq.s32.totalorder %v6613, %v499
  %vm7099 = vcmp.eq.s32.totalorder %v6613, %v503
  %vm7100 = vcmp.eq.s32.totalorder %v6613, %v507
  %vm7101 = vcmp.eq.s32.totalorder %v6613, %v511
  %vm7102 = vcmp.eq.s32.totalorder %v6614, %v499
  %vm7103 = vcmp.eq.s32.totalorder %v6614, %v503
  %vm7104 = vcmp.eq.s32.totalorder %v6614, %v507
  %vm7105 = vcmp.eq.s32.totalorder %v6614, %v511
  %vm7106 = vcmp.eq.s32.totalorder %v6615, %v499
  %vm7107 = vcmp.eq.s32.totalorder %v6615, %v503
  %vm7108 = vcmp.eq.s32.totalorder %v6615, %v507
  %vm7109 = vcmp.eq.s32.totalorder %v6615, %v511
  %vm7110 = vcmp.eq.s32.totalorder %v6616, %v499
  %vm7111 = vcmp.eq.s32.totalorder %v6616, %v503
  %vm7112 = vcmp.eq.s32.totalorder %v6616, %v507
  %vm7113 = vcmp.eq.s32.totalorder %v6616, %v511
  %vm7114 = vcmp.eq.s32.totalorder %v6617, %v499
  %vm7115 = vcmp.eq.s32.totalorder %v6617, %v503
  %vm7116 = vcmp.eq.s32.totalorder %v6617, %v507
  %vm7117 = vcmp.eq.s32.totalorder %v6617, %v511
  %vm7118 = vcmp.eq.s32.totalorder %v6618, %v499
  %vm7119 = vcmp.eq.s32.totalorder %v6618, %v503
  %vm7120 = vcmp.eq.s32.totalorder %v6618, %v507
  %vm7121 = vcmp.eq.s32.totalorder %v6618, %v511
  %vm7122 = vcmp.eq.s32.totalorder %v6619, %v499
  %vm7123 = vcmp.eq.s32.totalorder %v6619, %v503
  %vm7124 = vcmp.eq.s32.totalorder %v6619, %v507
  %vm7125 = vcmp.eq.s32.totalorder %v6619, %v511
  %vm7126 = vcmp.eq.s32.totalorder %v6620, %v499
  %vm7127 = vcmp.eq.s32.totalorder %v6620, %v503
  %vm7128 = vcmp.eq.s32.totalorder %v6620, %v507
  %vm7129 = vcmp.eq.s32.totalorder %v6620, %v511
  %vm7130 = vcmp.eq.s32.totalorder %v6621, %v499
  %vm7131 = vcmp.eq.s32.totalorder %v6621, %v503
  %vm7132 = vcmp.eq.s32.totalorder %v6621, %v507
  %vm7133 = vcmp.eq.s32.totalorder %v6621, %v511
  %v7134 = vsel %vm7006, 1, 0
  %v7135 = vsel %vm7007, 1, 0
  %v7136 = vsel %vm7008, 1, 0
  %v7137 = vsel %vm7009, 1, 0
  %v7138 = vsel %vm7010, 1, 0
  %v7139 = vsel %vm7011, 1, 0
  %v7140 = vsel %vm7012, 1, 0
  %v7141 = vsel %vm7013, 1, 0
  %v7142 = vsel %vm7014, 1, 0
  %v7143 = vsel %vm7015, 1, 0
  %v7144 = vsel %vm7016, 1, 0
  %v7145 = vsel %vm7017, 1, 0
  %v7146 = vsel %vm7018, 1, 0
  %v7147 = vsel %vm7019, 1, 0
  %v7148 = vsel %vm7020, 1, 0
  %v7149 = vsel %vm7021, 1, 0
  %v7150 = vsel %vm7022, 1, 0
  %v7151 = vsel %vm7023, 1, 0
  %v7152 = vsel %vm7024, 1, 0
  %v7153 = vsel %vm7025, 1, 0
  %v7154 = vsel %vm7026, 1, 0
  %v7155 = vsel %vm7027, 1, 0
  %v7156 = vsel %vm7028, 1, 0
  %v7157 = vsel %vm7029, 1, 0
  %v7158 = vsel %vm7030, 1, 0
  %v7159 = vsel %vm7031, 1, 0
  %v7160 = vsel %vm7032, 1, 0
  %v7161 = vsel %vm7033, 1, 0
  %v7162 = vsel %vm7034, 1, 0
  %v7163 = vsel %vm7035, 1, 0
  %v7164 = vsel %vm7036, 1, 0
  %v7165 = vsel %vm7037, 1, 0
  %v7166 = vsel %vm7038, 1, 0
  %v7167 = vsel %vm7039, 1, 0
  %v7168 = vsel %vm7040, 1, 0
  %v7169 = vsel %vm7041, 1, 0
  %v7170 = vsel %vm7042, 1, 0
  %v7171 = vsel %vm7043, 1, 0
  %v7172 = vsel %vm7044, 1, 0
  %v7173 = vsel %vm7045, 1, 0
  %v7174 = vsel %vm7046, 1, 0
  %v7175 = vsel %vm7047, 1, 0
  %v7176 = vsel %vm7048, 1, 0
  %v7177 = vsel %vm7049, 1, 0
  %v7178 = vsel %vm7050, 1, 0
  %v7179 = vsel %vm7051, 1, 0
  %v7180 = vsel %vm7052, 1, 0
  %v7181 = vsel %vm7053, 1, 0
  %v7182 = vsel %vm7054, 1, 0
  %v7183 = vsel %vm7055, 1, 0
  %v7184 = vsel %vm7056, 1, 0
  %v7185 = vsel %vm7057, 1, 0
  %v7186 = vsel %vm7058, 1, 0
  %v7187 = vsel %vm7059, 1, 0
  %v7188 = vsel %vm7060, 1, 0
  %v7189 = vsel %vm7061, 1, 0
  %v7190 = vsel %vm7062, 1, 0
  %v7191 = vsel %vm7063, 1, 0
  %v7192 = vsel %vm7064, 1, 0
  %v7193 = vsel %vm7065, 1, 0
  %v7194 = vsel %vm7066, 1, 0
  %v7195 = vsel %vm7067, 1, 0
  %v7196 = vsel %vm7068, 1, 0
  %v7197 = vsel %vm7069, 1, 0
  %v7198 = vsel %vm7070, 1, 0
  %v7199 = vsel %vm7071, 1, 0
  %v7200 = vsel %vm7072, 1, 0
  %v7201 = vsel %vm7073, 1, 0
  %v7202 = vsel %vm7074, 1, 0
  %v7203 = vsel %vm7075, 1, 0
  %v7204 = vsel %vm7076, 1, 0
  %v7205 = vsel %vm7077, 1, 0
  %v7206 = vsel %vm7078, 1, 0
  %v7207 = vsel %vm7079, 1, 0
  %v7208 = vsel %vm7080, 1, 0
  %v7209 = vsel %vm7081, 1, 0
  %v7210 = vsel %vm7082, 1, 0
  %v7211 = vsel %vm7083, 1, 0
  %v7212 = vsel %vm7084, 1, 0
  %v7213 = vsel %vm7085, 1, 0
  %v7214 = vsel %vm7086, 1, 0
  %v7215 = vsel %vm7087, 1, 0
  %v7216 = vsel %vm7088, 1, 0
  %v7217 = vsel %vm7089, 1, 0
  %v7218 = vsel %vm7090, 1, 0
  %v7219 = vsel %vm7091, 1, 0
  %v7220 = vsel %vm7092, 1, 0
  %v7221 = vsel %vm7093, 1, 0
  %v7222 = vsel %vm7094, 1, 0
  %v7223 = vsel %vm7095, 1, 0
  %v7224 = vsel %vm7096, 1, 0
  %v7225 = vsel %vm7097, 1, 0
  %v7226 = vsel %vm7098, 1, 0
  %v7227 = vsel %vm7099, 1, 0
  %v7228 = vsel %vm7100, 1, 0
  %v7229 = vsel %vm7101, 1, 0
  %v7230 = vsel %vm7102, 1, 0
  %v7231 = vsel %vm7103, 1, 0
  %v7232 = vsel %vm7104, 1, 0
  %v7233 = vsel %vm7105, 1, 0
  %v7234 = vsel %vm7106, 1, 0
  %v7235 = vsel %vm7107, 1, 0
  %v7236 = vsel %vm7108, 1, 0
  %v7237 = vsel %vm7109, 1, 0
  %v7238 = vsel %vm7110, 1, 0
  %v7239 = vsel %vm7111, 1, 0
  %v7240 = vsel %vm7112, 1, 0
  %v7241 = vsel %vm7113, 1, 0
  %v7242 = vsel %vm7114, 1, 0
  %v7243 = vsel %vm7115, 1, 0
  %v7244 = vsel %vm7116, 1, 0
  %v7245 = vsel %vm7117, 1, 0
  %v7246 = vsel %vm7118, 1, 0
  %v7247 = vsel %vm7119, 1, 0
  %v7248 = vsel %vm7120, 1, 0
  %v7249 = vsel %vm7121, 1, 0
  %v7250 = vsel %vm7122, 1, 0
  %v7251 = vsel %vm7123, 1, 0
  %v7252 = vsel %vm7124, 1, 0
  %v7253 = vsel %vm7125, 1, 0
  %v7254 = vsel %vm7126, 1, 0
  %v7255 = vsel %vm7127, 1, 0
  %v7256 = vsel %vm7128, 1, 0
  %v7257 = vsel %vm7129, 1, 0
  %v7258 = vsel %vm7130, 1, 0
  %v7259 = vsel %vm7131, 1, 0
  %v7260 = vsel %vm7132, 1, 0
  %v7261 = vsel %vm7133, 1, 0
  %v7262 = vcvt.s32.f32 %v7134
  %v7263 = vcvt.s32.f32 %v7135
  %v7264 = vcvt.s32.f32 %v7136
  %v7265 = vcvt.s32.f32 %v7137
  %v7266 = vcvt.s32.f32 %v7138
  %v7267 = vcvt.s32.f32 %v7139
  %v7268 = vcvt.s32.f32 %v7140
  %v7269 = vcvt.s32.f32 %v7141
  %v7270 = vcvt.s32.f32 %v7142
  %v7271 = vcvt.s32.f32 %v7143
  %v7272 = vcvt.s32.f32 %v7144
  %v7273 = vcvt.s32.f32 %v7145
  %v7274 = vcvt.s32.f32 %v7146
  %v7275 = vcvt.s32.f32 %v7147
  %v7276 = vcvt.s32.f32 %v7148
  %v7277 = vcvt.s32.f32 %v7149
  %v7278 = vcvt.s32.f32 %v7150
  %v7279 = vcvt.s32.f32 %v7151
  %v7280 = vcvt.s32.f32 %v7152
  %v7281 = vcvt.s32.f32 %v7153
  %v7282 = vcvt.s32.f32 %v7154
  %v7283 = vcvt.s32.f32 %v7155
  %v7284 = vcvt.s32.f32 %v7156
  %v7285 = vcvt.s32.f32 %v7157
  %v7286 = vcvt.s32.f32 %v7158
  %v7287 = vcvt.s32.f32 %v7159
  %v7288 = vcvt.s32.f32 %v7160
  %v7289 = vcvt.s32.f32 %v7161
  %v7290 = vcvt.s32.f32 %v7162
  %v7291 = vcvt.s32.f32 %v7163
  %v7292 = vcvt.s32.f32 %v7164
  %v7293 = vcvt.s32.f32 %v7165
  %v7294 = vcvt.s32.f32 %v7166
  %v7295 = vcvt.s32.f32 %v7167
  %v7296 = vcvt.s32.f32 %v7168
  %v7297 = vcvt.s32.f32 %v7169
  %v7298 = vcvt.s32.f32 %v7170
  %v7299 = vcvt.s32.f32 %v7171
  %v7300 = vcvt.s32.f32 %v7172
  %v7301 = vcvt.s32.f32 %v7173
  %v7302 = vcvt.s32.f32 %v7174
  %v7303 = vcvt.s32.f32 %v7175
  %v7304 = vcvt.s32.f32 %v7176
  %v7305 = vcvt.s32.f32 %v7177
  %v7306 = vcvt.s32.f32 %v7178
  %v7307 = vcvt.s32.f32 %v7179
  %v7308 = vcvt.s32.f32 %v7180
  %v7309 = vcvt.s32.f32 %v7181
  %v7310 = vcvt.s32.f32 %v7182
  %v7311 = vcvt.s32.f32 %v7183
  %v7312 = vcvt.s32.f32 %v7184
  %v7313 = vcvt.s32.f32 %v7185
  %v7314 = vcvt.s32.f32 %v7186
  %v7315 = vcvt.s32.f32 %v7187
  %v7316 = vcvt.s32.f32 %v7188
  %v7317 = vcvt.s32.f32 %v7189
  %v7318 = vcvt.s32.f32 %v7190
  %v7319 = vcvt.s32.f32 %v7191
  %v7320 = vcvt.s32.f32 %v7192
  %v7321 = vcvt.s32.f32 %v7193
  %v7322 = vcvt.s32.f32 %v7194
  %v7323 = vcvt.s32.f32 %v7195
  %v7324 = vcvt.s32.f32 %v7196
  %v7325 = vcvt.s32.f32 %v7197
  %v7326 = vcvt.s32.f32 %v7198
  %v7327 = vcvt.s32.f32 %v7199
  %v7328 = vcvt.s32.f32 %v7200
  %v7329 = vcvt.s32.f32 %v7201
  %v7330 = vcvt.s32.f32 %v7202
  %v7331 = vcvt.s32.f32 %v7203
  %v7332 = vcvt.s32.f32 %v7204
  %v7333 = vcvt.s32.f32 %v7205
  %v7334 = vcvt.s32.f32 %v7206
  %v7335 = vcvt.s32.f32 %v7207
  %v7336 = vcvt.s32.f32 %v7208
  %v7337 = vcvt.s32.f32 %v7209
  %v7338 = vcvt.s32.f32 %v7210
  %v7339 = vcvt.s32.f32 %v7211
  %v7340 = vcvt.s32.f32 %v7212
  %v7341 = vcvt.s32.f32 %v7213
  %v7342 = vcvt.s32.f32 %v7214
  %v7343 = vcvt.s32.f32 %v7215
  %v7344 = vcvt.s32.f32 %v7216
  %v7345 = vcvt.s32.f32 %v7217
  %v7346 = vcvt.s32.f32 %v7218
  %v7347 = vcvt.s32.f32 %v7219
  %v7348 = vcvt.s32.f32 %v7220
  %v7349 = vcvt.s32.f32 %v7221
  %v7350 = vcvt.s32.f32 %v7222
  %v7351 = vcvt.s32.f32 %v7223
  %v7352 = vcvt.s32.f32 %v7224
  %v7353 = vcvt.s32.f32 %v7225
  %v7354 = vcvt.s32.f32 %v7226
  %v7355 = vcvt.s32.f32 %v7227
  %v7356 = vcvt.s32.f32 %v7228
  %v7357 = vcvt.s32.f32 %v7229
  %v7358 = vcvt.s32.f32 %v7230
  %v7359 = vcvt.s32.f32 %v7231
  %v7360 = vcvt.s32.f32 %v7232
  %v7361 = vcvt.s32.f32 %v7233
  %v7362 = vcvt.s32.f32 %v7234
  %v7363 = vcvt.s32.f32 %v7235
  %v7364 = vcvt.s32.f32 %v7236
  %v7365 = vcvt.s32.f32 %v7237
  %v7366 = vcvt.s32.f32 %v7238
  %v7367 = vcvt.s32.f32 %v7239
  %v7368 = vcvt.s32.f32 %v7240
  %v7369 = vcvt.s32.f32 %v7241
  %v7370 = vcvt.s32.f32 %v7242
  %v7371 = vcvt.s32.f32 %v7243
  %v7372 = vcvt.s32.f32 %v7244
  %v7373 = vcvt.s32.f32 %v7245
  %v7374 = vcvt.s32.f32 %v7246
  %v7375 = vcvt.s32.f32 %v7247
  %v7376 = vcvt.s32.f32 %v7248
  %v7377 = vcvt.s32.f32 %v7249
  %v7378 = vcvt.s32.f32 %v7250
  %v7379 = vcvt.s32.f32 %v7251
  %v7380 = vcvt.s32.f32 %v7252
  %v7381 = vcvt.s32.f32 %v7253
  %v7382 = vcvt.s32.f32 %v7254
  %v7383 = vcvt.s32.f32 %v7255
  %v7384 = vcvt.s32.f32 %v7256
  %v7385 = vcvt.s32.f32 %v7257
  %v7386 = vcvt.s32.f32 %v7258
  %v7387 = vcvt.s32.f32 %v7259
  %v7388 = vcvt.s32.f32 %v7260
  %v7389 = vcvt.s32.f32 %v7261
  %v7390 = vadd.f32 %v6878, %v7262
  %v7391 = vadd.f32 %v6879, %v7263
  %v7392 = vadd.f32 %v6880, %v7264
  %v7393 = vadd.f32 %v6881, %v7265
  %v7394 = vadd.f32 %v6882, %v7266
  %v7395 = vadd.f32 %v6883, %v7267
  %v7396 = vadd.f32 %v6884, %v7268
  %v7397 = vadd.f32 %v6885, %v7269
  %v7398 = vadd.f32 %v6886, %v7270
  %v7399 = vadd.f32 %v6887, %v7271
  %v7400 = vadd.f32 %v6888, %v7272
  %v7401 = vadd.f32 %v6889, %v7273
  %v7402 = vadd.f32 %v6890, %v7274
  %v7403 = vadd.f32 %v6891, %v7275
  %v7404 = vadd.f32 %v6892, %v7276
  %v7405 = vadd.f32 %v6893, %v7277
  %v7406 = vadd.f32 %v6894, %v7278
  %v7407 = vadd.f32 %v6895, %v7279
  %v7408 = vadd.f32 %v6896, %v7280
  %v7409 = vadd.f32 %v6897, %v7281
  %v7410 = vadd.f32 %v6898, %v7282
  %v7411 = vadd.f32 %v6899, %v7283
  %v7412 = vadd.f32 %v6900, %v7284
  %v7413 = vadd.f32 %v6901, %v7285
  %v7414 = vadd.f32 %v6902, %v7286
  %v7415 = vadd.f32 %v6903, %v7287
  %v7416 = vadd.f32 %v6904, %v7288
  %v7417 = vadd.f32 %v6905, %v7289
  %v7418 = vadd.f32 %v6906, %v7290
  %v7419 = vadd.f32 %v6907, %v7291
  %v7420 = vadd.f32 %v6908, %v7292
  %v7421 = vadd.f32 %v6909, %v7293
  %v7422 = vadd.f32 %v6910, %v7294
  %v7423 = vadd.f32 %v6911, %v7295
  %v7424 = vadd.f32 %v6912, %v7296
  %v7425 = vadd.f32 %v6913, %v7297
  %v7426 = vadd.f32 %v6914, %v7298
  %v7427 = vadd.f32 %v6915, %v7299
  %v7428 = vadd.f32 %v6916, %v7300
  %v7429 = vadd.f32 %v6917, %v7301
  %v7430 = vadd.f32 %v6918, %v7302
  %v7431 = vadd.f32 %v6919, %v7303
  %v7432 = vadd.f32 %v6920, %v7304
  %v7433 = vadd.f32 %v6921, %v7305
  %v7434 = vadd.f32 %v6922, %v7306
  %v7435 = vadd.f32 %v6923, %v7307
  %v7436 = vadd.f32 %v6924, %v7308
  %v7437 = vadd.f32 %v6925, %v7309
  %v7438 = vadd.f32 %v6926, %v7310
  %v7439 = vadd.f32 %v6927, %v7311
  %v7440 = vadd.f32 %v6928, %v7312
  %v7441 = vadd.f32 %v6929, %v7313
  %v7442 = vadd.f32 %v6930, %v7314
  %v7443 = vadd.f32 %v6931, %v7315
  %v7444 = vadd.f32 %v6932, %v7316
  %v7445 = vadd.f32 %v6933, %v7317
  %v7446 = vadd.f32 %v6934, %v7318
  %v7447 = vadd.f32 %v6935, %v7319
  %v7448 = vadd.f32 %v6936, %v7320
  %v7449 = vadd.f32 %v6937, %v7321
  %v7450 = vadd.f32 %v6938, %v7322
  %v7451 = vadd.f32 %v6939, %v7323
  %v7452 = vadd.f32 %v6940, %v7324
  %v7453 = vadd.f32 %v6941, %v7325
  %v7454 = vadd.f32 %v6942, %v7326
  %v7455 = vadd.f32 %v6943, %v7327
  %v7456 = vadd.f32 %v6944, %v7328
  %v7457 = vadd.f32 %v6945, %v7329
  %v7458 = vadd.f32 %v6946, %v7330
  %v7459 = vadd.f32 %v6947, %v7331
  %v7460 = vadd.f32 %v6948, %v7332
  %v7461 = vadd.f32 %v6949, %v7333
  %v7462 = vadd.f32 %v6950, %v7334
  %v7463 = vadd.f32 %v6951, %v7335
  %v7464 = vadd.f32 %v6952, %v7336
  %v7465 = vadd.f32 %v6953, %v7337
  %v7466 = vadd.f32 %v6954, %v7338
  %v7467 = vadd.f32 %v6955, %v7339
  %v7468 = vadd.f32 %v6956, %v7340
  %v7469 = vadd.f32 %v6957, %v7341
  %v7470 = vadd.f32 %v6958, %v7342
  %v7471 = vadd.f32 %v6959, %v7343
  %v7472 = vadd.f32 %v6960, %v7344
  %v7473 = vadd.f32 %v6961, %v7345
  %v7474 = vadd.f32 %v6962, %v7346
  %v7475 = vadd.f32 %v6963, %v7347
  %v7476 = vadd.f32 %v6964, %v7348
  %v7477 = vadd.f32 %v6965, %v7349
  %v7478 = vadd.f32 %v6966, %v7350
  %v7479 = vadd.f32 %v6967, %v7351
  %v7480 = vadd.f32 %v6968, %v7352
  %v7481 = vadd.f32 %v6969, %v7353
  %v7482 = vadd.f32 %v6970, %v7354
  %v7483 = vadd.f32 %v6971, %v7355
  %v7484 = vadd.f32 %v6972, %v7356
  %v7485 = vadd.f32 %v6973, %v7357
  %v7486 = vadd.f32 %v6974, %v7358
  %v7487 = vadd.f32 %v6975, %v7359
  %v7488 = vadd.f32 %v6976, %v7360
  %v7489 = vadd.f32 %v6977, %v7361
  %v7490 = vadd.f32 %v6978, %v7362
  %v7491 = vadd.f32 %v6979, %v7363
  %v7492 = vadd.f32 %v6980, %v7364
  %v7493 = vadd.f32 %v6981, %v7365
  %v7494 = vadd.f32 %v6982, %v7366
  %v7495 = vadd.f32 %v6983, %v7367
  %v7496 = vadd.f32 %v6984, %v7368
  %v7497 = vadd.f32 %v6985, %v7369
  %v7498 = vadd.f32 %v6986, %v7370
  %v7499 = vadd.f32 %v6987, %v7371
  %v7500 = vadd.f32 %v6988, %v7372
  %v7501 = vadd.f32 %v6989, %v7373
  %v7502 = vadd.f32 %v6990, %v7374
  %v7503 = vadd.f32 %v6991, %v7375
  %v7504 = vadd.f32 %v6992, %v7376
  %v7505 = vadd.f32 %v6993, %v7377
  %v7506 = vadd.f32 %v6994, %v7378
  %v7507 = vadd.f32 %v6995, %v7379
  %v7508 = vadd.f32 %v6996, %v7380
  %v7509 = vadd.f32 %v6997, %v7381
  %v7510 = vadd.f32 %v6998, %v7382
  %v7511 = vadd.f32 %v6999, %v7383
  %v7512 = vadd.f32 %v7000, %v7384
  %v7513 = vadd.f32 %v7001, %v7385
  %v7514 = vadd.f32 %v7002, %v7386
  %v7515 = vadd.f32 %v7003, %v7387
  %v7516 = vadd.f32 %v7004, %v7388
  %v7517 = vadd.f32 %v7005, %v7389
  %vm7518 = vcmp.eq.s32.totalorder %v6590, %v1043
  %vm7519 = vcmp.eq.s32.totalorder %v6590, %v1047
  %vm7520 = vcmp.eq.s32.totalorder %v6590, %v1051
  %vm7521 = vcmp.eq.s32.totalorder %v6590, %v1055
  %vm7522 = vcmp.eq.s32.totalorder %v6591, %v1043
  %vm7523 = vcmp.eq.s32.totalorder %v6591, %v1047
  %vm7524 = vcmp.eq.s32.totalorder %v6591, %v1051
  %vm7525 = vcmp.eq.s32.totalorder %v6591, %v1055
  %vm7526 = vcmp.eq.s32.totalorder %v6592, %v1043
  %vm7527 = vcmp.eq.s32.totalorder %v6592, %v1047
  %vm7528 = vcmp.eq.s32.totalorder %v6592, %v1051
  %vm7529 = vcmp.eq.s32.totalorder %v6592, %v1055
  %vm7530 = vcmp.eq.s32.totalorder %v6593, %v1043
  %vm7531 = vcmp.eq.s32.totalorder %v6593, %v1047
  %vm7532 = vcmp.eq.s32.totalorder %v6593, %v1051
  %vm7533 = vcmp.eq.s32.totalorder %v6593, %v1055
  %vm7534 = vcmp.eq.s32.totalorder %v6594, %v1043
  %vm7535 = vcmp.eq.s32.totalorder %v6594, %v1047
  %vm7536 = vcmp.eq.s32.totalorder %v6594, %v1051
  %vm7537 = vcmp.eq.s32.totalorder %v6594, %v1055
  %vm7538 = vcmp.eq.s32.totalorder %v6595, %v1043
  %vm7539 = vcmp.eq.s32.totalorder %v6595, %v1047
  %vm7540 = vcmp.eq.s32.totalorder %v6595, %v1051
  %vm7541 = vcmp.eq.s32.totalorder %v6595, %v1055
  %vm7542 = vcmp.eq.s32.totalorder %v6596, %v1043
  %vm7543 = vcmp.eq.s32.totalorder %v6596, %v1047
  %vm7544 = vcmp.eq.s32.totalorder %v6596, %v1051
  %vm7545 = vcmp.eq.s32.totalorder %v6596, %v1055
  %vm7546 = vcmp.eq.s32.totalorder %v6597, %v1043
  %vm7547 = vcmp.eq.s32.totalorder %v6597, %v1047
  %vm7548 = vcmp.eq.s32.totalorder %v6597, %v1051
  %vm7549 = vcmp.eq.s32.totalorder %v6597, %v1055
  %vm7550 = vcmp.eq.s32.totalorder %v6598, %v1043
  %vm7551 = vcmp.eq.s32.totalorder %v6598, %v1047
  %vm7552 = vcmp.eq.s32.totalorder %v6598, %v1051
  %vm7553 = vcmp.eq.s32.totalorder %v6598, %v1055
  %vm7554 = vcmp.eq.s32.totalorder %v6599, %v1043
  %vm7555 = vcmp.eq.s32.totalorder %v6599, %v1047
  %vm7556 = vcmp.eq.s32.totalorder %v6599, %v1051
  %vm7557 = vcmp.eq.s32.totalorder %v6599, %v1055
  %vm7558 = vcmp.eq.s32.totalorder %v6600, %v1043
  %vm7559 = vcmp.eq.s32.totalorder %v6600, %v1047
  %vm7560 = vcmp.eq.s32.totalorder %v6600, %v1051
  %vm7561 = vcmp.eq.s32.totalorder %v6600, %v1055
  %vm7562 = vcmp.eq.s32.totalorder %v6601, %v1043
  %vm7563 = vcmp.eq.s32.totalorder %v6601, %v1047
  %vm7564 = vcmp.eq.s32.totalorder %v6601, %v1051
  %vm7565 = vcmp.eq.s32.totalorder %v6601, %v1055
  %vm7566 = vcmp.eq.s32.totalorder %v6602, %v1043
  %vm7567 = vcmp.eq.s32.totalorder %v6602, %v1047
  %vm7568 = vcmp.eq.s32.totalorder %v6602, %v1051
  %vm7569 = vcmp.eq.s32.totalorder %v6602, %v1055
  %vm7570 = vcmp.eq.s32.totalorder %v6603, %v1043
  %vm7571 = vcmp.eq.s32.totalorder %v6603, %v1047
  %vm7572 = vcmp.eq.s32.totalorder %v6603, %v1051
  %vm7573 = vcmp.eq.s32.totalorder %v6603, %v1055
  %vm7574 = vcmp.eq.s32.totalorder %v6604, %v1043
  %vm7575 = vcmp.eq.s32.totalorder %v6604, %v1047
  %vm7576 = vcmp.eq.s32.totalorder %v6604, %v1051
  %vm7577 = vcmp.eq.s32.totalorder %v6604, %v1055
  %vm7578 = vcmp.eq.s32.totalorder %v6605, %v1043
  %vm7579 = vcmp.eq.s32.totalorder %v6605, %v1047
  %vm7580 = vcmp.eq.s32.totalorder %v6605, %v1051
  %vm7581 = vcmp.eq.s32.totalorder %v6605, %v1055
  %vm7582 = vcmp.eq.s32.totalorder %v6606, %v1043
  %vm7583 = vcmp.eq.s32.totalorder %v6606, %v1047
  %vm7584 = vcmp.eq.s32.totalorder %v6606, %v1051
  %vm7585 = vcmp.eq.s32.totalorder %v6606, %v1055
  %vm7586 = vcmp.eq.s32.totalorder %v6607, %v1043
  %vm7587 = vcmp.eq.s32.totalorder %v6607, %v1047
  %vm7588 = vcmp.eq.s32.totalorder %v6607, %v1051
  %vm7589 = vcmp.eq.s32.totalorder %v6607, %v1055
  %vm7590 = vcmp.eq.s32.totalorder %v6608, %v1043
  %vm7591 = vcmp.eq.s32.totalorder %v6608, %v1047
  %vm7592 = vcmp.eq.s32.totalorder %v6608, %v1051
  %vm7593 = vcmp.eq.s32.totalorder %v6608, %v1055
  %vm7594 = vcmp.eq.s32.totalorder %v6609, %v1043
  %vm7595 = vcmp.eq.s32.totalorder %v6609, %v1047
  %vm7596 = vcmp.eq.s32.totalorder %v6609, %v1051
  %vm7597 = vcmp.eq.s32.totalorder %v6609, %v1055
  %vm7598 = vcmp.eq.s32.totalorder %v6610, %v1043
  %vm7599 = vcmp.eq.s32.totalorder %v6610, %v1047
  %vm7600 = vcmp.eq.s32.totalorder %v6610, %v1051
  %vm7601 = vcmp.eq.s32.totalorder %v6610, %v1055
  %vm7602 = vcmp.eq.s32.totalorder %v6611, %v1043
  %vm7603 = vcmp.eq.s32.totalorder %v6611, %v1047
  %vm7604 = vcmp.eq.s32.totalorder %v6611, %v1051
  %vm7605 = vcmp.eq.s32.totalorder %v6611, %v1055
  %vm7606 = vcmp.eq.s32.totalorder %v6612, %v1043
  %vm7607 = vcmp.eq.s32.totalorder %v6612, %v1047
  %vm7608 = vcmp.eq.s32.totalorder %v6612, %v1051
  %vm7609 = vcmp.eq.s32.totalorder %v6612, %v1055
  %vm7610 = vcmp.eq.s32.totalorder %v6613, %v1043
  %vm7611 = vcmp.eq.s32.totalorder %v6613, %v1047
  %vm7612 = vcmp.eq.s32.totalorder %v6613, %v1051
  %vm7613 = vcmp.eq.s32.totalorder %v6613, %v1055
  %vm7614 = vcmp.eq.s32.totalorder %v6614, %v1043
  %vm7615 = vcmp.eq.s32.totalorder %v6614, %v1047
  %vm7616 = vcmp.eq.s32.totalorder %v6614, %v1051
  %vm7617 = vcmp.eq.s32.totalorder %v6614, %v1055
  %vm7618 = vcmp.eq.s32.totalorder %v6615, %v1043
  %vm7619 = vcmp.eq.s32.totalorder %v6615, %v1047
  %vm7620 = vcmp.eq.s32.totalorder %v6615, %v1051
  %vm7621 = vcmp.eq.s32.totalorder %v6615, %v1055
  %vm7622 = vcmp.eq.s32.totalorder %v6616, %v1043
  %vm7623 = vcmp.eq.s32.totalorder %v6616, %v1047
  %vm7624 = vcmp.eq.s32.totalorder %v6616, %v1051
  %vm7625 = vcmp.eq.s32.totalorder %v6616, %v1055
  %vm7626 = vcmp.eq.s32.totalorder %v6617, %v1043
  %vm7627 = vcmp.eq.s32.totalorder %v6617, %v1047
  %vm7628 = vcmp.eq.s32.totalorder %v6617, %v1051
  %vm7629 = vcmp.eq.s32.totalorder %v6617, %v1055
  %vm7630 = vcmp.eq.s32.totalorder %v6618, %v1043
  %vm7631 = vcmp.eq.s32.totalorder %v6618, %v1047
  %vm7632 = vcmp.eq.s32.totalorder %v6618, %v1051
  %vm7633 = vcmp.eq.s32.totalorder %v6618, %v1055
  %vm7634 = vcmp.eq.s32.totalorder %v6619, %v1043
  %vm7635 = vcmp.eq.s32.totalorder %v6619, %v1047
  %vm7636 = vcmp.eq.s32.totalorder %v6619, %v1051
  %vm7637 = vcmp.eq.s32.totalorder %v6619, %v1055
  %vm7638 = vcmp.eq.s32.totalorder %v6620, %v1043
  %vm7639 = vcmp.eq.s32.totalorder %v6620, %v1047
  %vm7640 = vcmp.eq.s32.totalorder %v6620, %v1051
  %vm7641 = vcmp.eq.s32.totalorder %v6620, %v1055
  %vm7642 = vcmp.eq.s32.totalorder %v6621, %v1043
  %vm7643 = vcmp.eq.s32.totalorder %v6621, %v1047
  %vm7644 = vcmp.eq.s32.totalorder %v6621, %v1051
  %vm7645 = vcmp.eq.s32.totalorder %v6621, %v1055
  %v7646 = vsel %vm7518, 1, 0
  %v7647 = vsel %vm7519, 1, 0
  %v7648 = vsel %vm7520, 1, 0
  %v7649 = vsel %vm7521, 1, 0
  %v7650 = vsel %vm7522, 1, 0
  %v7651 = vsel %vm7523, 1, 0
  %v7652 = vsel %vm7524, 1, 0
  %v7653 = vsel %vm7525, 1, 0
  %v7654 = vsel %vm7526, 1, 0
  %v7655 = vsel %vm7527, 1, 0
  %v7656 = vsel %vm7528, 1, 0
  %v7657 = vsel %vm7529, 1, 0
  %v7658 = vsel %vm7530, 1, 0
  %v7659 = vsel %vm7531, 1, 0
  %v7660 = vsel %vm7532, 1, 0
  %v7661 = vsel %vm7533, 1, 0
  %v7662 = vsel %vm7534, 1, 0
  %v7663 = vsel %vm7535, 1, 0
  %v7664 = vsel %vm7536, 1, 0
  %v7665 = vsel %vm7537, 1, 0
  %v7666 = vsel %vm7538, 1, 0
  %v7667 = vsel %vm7539, 1, 0
  %v7668 = vsel %vm7540, 1, 0
  %v7669 = vsel %vm7541, 1, 0
  %v7670 = vsel %vm7542, 1, 0
  %v7671 = vsel %vm7543, 1, 0
  %v7672 = vsel %vm7544, 1, 0
  %v7673 = vsel %vm7545, 1, 0
  %v7674 = vsel %vm7546, 1, 0
  %v7675 = vsel %vm7547, 1, 0
  %v7676 = vsel %vm7548, 1, 0
  %v7677 = vsel %vm7549, 1, 0
  %v7678 = vsel %vm7550, 1, 0
  %v7679 = vsel %vm7551, 1, 0
  %v7680 = vsel %vm7552, 1, 0
  %v7681 = vsel %vm7553, 1, 0
  %v7682 = vsel %vm7554, 1, 0
  %v7683 = vsel %vm7555, 1, 0
  %v7684 = vsel %vm7556, 1, 0
  %v7685 = vsel %vm7557, 1, 0
  %v7686 = vsel %vm7558, 1, 0
  %v7687 = vsel %vm7559, 1, 0
  %v7688 = vsel %vm7560, 1, 0
  %v7689 = vsel %vm7561, 1, 0
  %v7690 = vsel %vm7562, 1, 0
  %v7691 = vsel %vm7563, 1, 0
  %v7692 = vsel %vm7564, 1, 0
  %v7693 = vsel %vm7565, 1, 0
  %v7694 = vsel %vm7566, 1, 0
  %v7695 = vsel %vm7567, 1, 0
  %v7696 = vsel %vm7568, 1, 0
  %v7697 = vsel %vm7569, 1, 0
  %v7698 = vsel %vm7570, 1, 0
  %v7699 = vsel %vm7571, 1, 0
  %v7700 = vsel %vm7572, 1, 0
  %v7701 = vsel %vm7573, 1, 0
  %v7702 = vsel %vm7574, 1, 0
  %v7703 = vsel %vm7575, 1, 0
  %v7704 = vsel %vm7576, 1, 0
  %v7705 = vsel %vm7577, 1, 0
  %v7706 = vsel %vm7578, 1, 0
  %v7707 = vsel %vm7579, 1, 0
  %v7708 = vsel %vm7580, 1, 0
  %v7709 = vsel %vm7581, 1, 0
  %v7710 = vsel %vm7582, 1, 0
  %v7711 = vsel %vm7583, 1, 0
  %v7712 = vsel %vm7584, 1, 0
  %v7713 = vsel %vm7585, 1, 0
  %v7714 = vsel %vm7586, 1, 0
  %v7715 = vsel %vm7587, 1, 0
  %v7716 = vsel %vm7588, 1, 0
  %v7717 = vsel %vm7589, 1, 0
  %v7718 = vsel %vm7590, 1, 0
  %v7719 = vsel %vm7591, 1, 0
  %v7720 = vsel %vm7592, 1, 0
  %v7721 = vsel %vm7593, 1, 0
  %v7722 = vsel %vm7594, 1, 0
  %v7723 = vsel %vm7595, 1, 0
  %v7724 = vsel %vm7596, 1, 0
  %v7725 = vsel %vm7597, 1, 0
  %v7726 = vsel %vm7598, 1, 0
  %v7727 = vsel %vm7599, 1, 0
  %v7728 = vsel %vm7600, 1, 0
  %v7729 = vsel %vm7601, 1, 0
  %v7730 = vsel %vm7602, 1, 0
  %v7731 = vsel %vm7603, 1, 0
  %v7732 = vsel %vm7604, 1, 0
  %v7733 = vsel %vm7605, 1, 0
  %v7734 = vsel %vm7606, 1, 0
  %v7735 = vsel %vm7607, 1, 0
  %v7736 = vsel %vm7608, 1, 0
  %v7737 = vsel %vm7609, 1, 0
  %v7738 = vsel %vm7610, 1, 0
  %v7739 = vsel %vm7611, 1, 0
  %v7740 = vsel %vm7612, 1, 0
  %v7741 = vsel %vm7613, 1, 0
  %v7742 = vsel %vm7614, 1, 0
  %v7743 = vsel %vm7615, 1, 0
  %v7744 = vsel %vm7616, 1, 0
  %v7745 = vsel %vm7617, 1, 0
  %v7746 = vsel %vm7618, 1, 0
  %v7747 = vsel %vm7619, 1, 0
  %v7748 = vsel %vm7620, 1, 0
  %v7749 = vsel %vm7621, 1, 0
  %v7750 = vsel %vm7622, 1, 0
  %v7751 = vsel %vm7623, 1, 0
  %v7752 = vsel %vm7624, 1, 0
  %v7753 = vsel %vm7625, 1, 0
  %v7754 = vsel %vm7626, 1, 0
  %v7755 = vsel %vm7627, 1, 0
  %v7756 = vsel %vm7628, 1, 0
  %v7757 = vsel %vm7629, 1, 0
  %v7758 = vsel %vm7630, 1, 0
  %v7759 = vsel %vm7631, 1, 0
  %v7760 = vsel %vm7632, 1, 0
  %v7761 = vsel %vm7633, 1, 0
  %v7762 = vsel %vm7634, 1, 0
  %v7763 = vsel %vm7635, 1, 0
  %v7764 = vsel %vm7636, 1, 0
  %v7765 = vsel %vm7637, 1, 0
  %v7766 = vsel %vm7638, 1, 0
  %v7767 = vsel %vm7639, 1, 0
  %v7768 = vsel %vm7640, 1, 0
  %v7769 = vsel %vm7641, 1, 0
  %v7770 = vsel %vm7642, 1, 0
  %v7771 = vsel %vm7643, 1, 0
  %v7772 = vsel %vm7644, 1, 0
  %v7773 = vsel %vm7645, 1, 0
  %v7774 = vcvt.s32.f32 %v7646
  %v7775 = vcvt.s32.f32 %v7647
  %v7776 = vcvt.s32.f32 %v7648
  %v7777 = vcvt.s32.f32 %v7649
  %v7778 = vcvt.s32.f32 %v7650
  %v7779 = vcvt.s32.f32 %v7651
  %v7780 = vcvt.s32.f32 %v7652
  %v7781 = vcvt.s32.f32 %v7653
  %v7782 = vcvt.s32.f32 %v7654
  %v7783 = vcvt.s32.f32 %v7655
  %v7784 = vcvt.s32.f32 %v7656
  %v7785 = vcvt.s32.f32 %v7657
  %v7786 = vcvt.s32.f32 %v7658
  %v7787 = vcvt.s32.f32 %v7659
  %v7788 = vcvt.s32.f32 %v7660
  %v7789 = vcvt.s32.f32 %v7661
  %v7790 = vcvt.s32.f32 %v7662
  %v7791 = vcvt.s32.f32 %v7663
  %v7792 = vcvt.s32.f32 %v7664
  %v7793 = vcvt.s32.f32 %v7665
  %v7794 = vcvt.s32.f32 %v7666
  %v7795 = vcvt.s32.f32 %v7667
  %v7796 = vcvt.s32.f32 %v7668
  %v7797 = vcvt.s32.f32 %v7669
  %v7798 = vcvt.s32.f32 %v7670
  %v7799 = vcvt.s32.f32 %v7671
  %v7800 = vcvt.s32.f32 %v7672
  %v7801 = vcvt.s32.f32 %v7673
  %v7802 = vcvt.s32.f32 %v7674
  %v7803 = vcvt.s32.f32 %v7675
  %v7804 = vcvt.s32.f32 %v7676
  %v7805 = vcvt.s32.f32 %v7677
  %v7806 = vcvt.s32.f32 %v7678
  %v7807 = vcvt.s32.f32 %v7679
  %v7808 = vcvt.s32.f32 %v7680
  %v7809 = vcvt.s32.f32 %v7681
  %v7810 = vcvt.s32.f32 %v7682
  %v7811 = vcvt.s32.f32 %v7683
  %v7812 = vcvt.s32.f32 %v7684
  %v7813 = vcvt.s32.f32 %v7685
  %v7814 = vcvt.s32.f32 %v7686
  %v7815 = vcvt.s32.f32 %v7687
  %v7816 = vcvt.s32.f32 %v7688
  %v7817 = vcvt.s32.f32 %v7689
  %v7818 = vcvt.s32.f32 %v7690
  %v7819 = vcvt.s32.f32 %v7691
  %v7820 = vcvt.s32.f32 %v7692
  %v7821 = vcvt.s32.f32 %v7693
  %v7822 = vcvt.s32.f32 %v7694
  %v7823 = vcvt.s32.f32 %v7695
  %v7824 = vcvt.s32.f32 %v7696
  %v7825 = vcvt.s32.f32 %v7697
  %v7826 = vcvt.s32.f32 %v7698
  %v7827 = vcvt.s32.f32 %v7699
  %v7828 = vcvt.s32.f32 %v7700
  %v7829 = vcvt.s32.f32 %v7701
  %v7830 = vcvt.s32.f32 %v7702
  %v7831 = vcvt.s32.f32 %v7703
  %v7832 = vcvt.s32.f32 %v7704
  %v7833 = vcvt.s32.f32 %v7705
  %v7834 = vcvt.s32.f32 %v7706
  %v7835 = vcvt.s32.f32 %v7707
  %v7836 = vcvt.s32.f32 %v7708
  %v7837 = vcvt.s32.f32 %v7709
  %v7838 = vcvt.s32.f32 %v7710
  %v7839 = vcvt.s32.f32 %v7711
  %v7840 = vcvt.s32.f32 %v7712
  %v7841 = vcvt.s32.f32 %v7713
  %v7842 = vcvt.s32.f32 %v7714
  %v7843 = vcvt.s32.f32 %v7715
  %v7844 = vcvt.s32.f32 %v7716
  %v7845 = vcvt.s32.f32 %v7717
  %v7846 = vcvt.s32.f32 %v7718
  %v7847 = vcvt.s32.f32 %v7719
  %v7848 = vcvt.s32.f32 %v7720
  %v7849 = vcvt.s32.f32 %v7721
  %v7850 = vcvt.s32.f32 %v7722
  %v7851 = vcvt.s32.f32 %v7723
  %v7852 = vcvt.s32.f32 %v7724
  %v7853 = vcvt.s32.f32 %v7725
  %v7854 = vcvt.s32.f32 %v7726
  %v7855 = vcvt.s32.f32 %v7727
  %v7856 = vcvt.s32.f32 %v7728
  %v7857 = vcvt.s32.f32 %v7729
  %v7858 = vcvt.s32.f32 %v7730
  %v7859 = vcvt.s32.f32 %v7731
  %v7860 = vcvt.s32.f32 %v7732
  %v7861 = vcvt.s32.f32 %v7733
  %v7862 = vcvt.s32.f32 %v7734
  %v7863 = vcvt.s32.f32 %v7735
  %v7864 = vcvt.s32.f32 %v7736
  %v7865 = vcvt.s32.f32 %v7737
  %v7866 = vcvt.s32.f32 %v7738
  %v7867 = vcvt.s32.f32 %v7739
  %v7868 = vcvt.s32.f32 %v7740
  %v7869 = vcvt.s32.f32 %v7741
  %v7870 = vcvt.s32.f32 %v7742
  %v7871 = vcvt.s32.f32 %v7743
  %v7872 = vcvt.s32.f32 %v7744
  %v7873 = vcvt.s32.f32 %v7745
  %v7874 = vcvt.s32.f32 %v7746
  %v7875 = vcvt.s32.f32 %v7747
  %v7876 = vcvt.s32.f32 %v7748
  %v7877 = vcvt.s32.f32 %v7749
  %v7878 = vcvt.s32.f32 %v7750
  %v7879 = vcvt.s32.f32 %v7751
  %v7880 = vcvt.s32.f32 %v7752
  %v7881 = vcvt.s32.f32 %v7753
  %v7882 = vcvt.s32.f32 %v7754
  %v7883 = vcvt.s32.f32 %v7755
  %v7884 = vcvt.s32.f32 %v7756
  %v7885 = vcvt.s32.f32 %v7757
  %v7886 = vcvt.s32.f32 %v7758
  %v7887 = vcvt.s32.f32 %v7759
  %v7888 = vcvt.s32.f32 %v7760
  %v7889 = vcvt.s32.f32 %v7761
  %v7890 = vcvt.s32.f32 %v7762
  %v7891 = vcvt.s32.f32 %v7763
  %v7892 = vcvt.s32.f32 %v7764
  %v7893 = vcvt.s32.f32 %v7765
  %v7894 = vcvt.s32.f32 %v7766
  %v7895 = vcvt.s32.f32 %v7767
  %v7896 = vcvt.s32.f32 %v7768
  %v7897 = vcvt.s32.f32 %v7769
  %v7898 = vcvt.s32.f32 %v7770
  %v7899 = vcvt.s32.f32 %v7771
  %v7900 = vcvt.s32.f32 %v7772
  %v7901 = vcvt.s32.f32 %v7773
  %v7902 = vadd.f32 %v7390, %v7774
  %v7903 = vadd.f32 %v7391, %v7775
  %v7904 = vadd.f32 %v7392, %v7776
  %v7905 = vadd.f32 %v7393, %v7777
  %v7906 = vadd.f32 %v7394, %v7778
  %v7907 = vadd.f32 %v7395, %v7779
  %v7908 = vadd.f32 %v7396, %v7780
  %v7909 = vadd.f32 %v7397, %v7781
  %v7910 = vadd.f32 %v7398, %v7782
  %v7911 = vadd.f32 %v7399, %v7783
  %v7912 = vadd.f32 %v7400, %v7784
  %v7913 = vadd.f32 %v7401, %v7785
  %v7914 = vadd.f32 %v7402, %v7786
  %v7915 = vadd.f32 %v7403, %v7787
  %v7916 = vadd.f32 %v7404, %v7788
  %v7917 = vadd.f32 %v7405, %v7789
  %v7918 = vadd.f32 %v7406, %v7790
  %v7919 = vadd.f32 %v7407, %v7791
  %v7920 = vadd.f32 %v7408, %v7792
  %v7921 = vadd.f32 %v7409, %v7793
  %v7922 = vadd.f32 %v7410, %v7794
  %v7923 = vadd.f32 %v7411, %v7795
  %v7924 = vadd.f32 %v7412, %v7796
  %v7925 = vadd.f32 %v7413, %v7797
  %v7926 = vadd.f32 %v7414, %v7798
  %v7927 = vadd.f32 %v7415, %v7799
  %v7928 = vadd.f32 %v7416, %v7800
  %v7929 = vadd.f32 %v7417, %v7801
  %v7930 = vadd.f32 %v7418, %v7802
  %v7931 = vadd.f32 %v7419, %v7803
  %v7932 = vadd.f32 %v7420, %v7804
  %v7933 = vadd.f32 %v7421, %v7805
  %v7934 = vadd.f32 %v7422, %v7806
  %v7935 = vadd.f32 %v7423, %v7807
  %v7936 = vadd.f32 %v7424, %v7808
  %v7937 = vadd.f32 %v7425, %v7809
  %v7938 = vadd.f32 %v7426, %v7810
  %v7939 = vadd.f32 %v7427, %v7811
  %v7940 = vadd.f32 %v7428, %v7812
  %v7941 = vadd.f32 %v7429, %v7813
  %v7942 = vadd.f32 %v7430, %v7814
  %v7943 = vadd.f32 %v7431, %v7815
  %v7944 = vadd.f32 %v7432, %v7816
  %v7945 = vadd.f32 %v7433, %v7817
  %v7946 = vadd.f32 %v7434, %v7818
  %v7947 = vadd.f32 %v7435, %v7819
  %v7948 = vadd.f32 %v7436, %v7820
  %v7949 = vadd.f32 %v7437, %v7821
  %v7950 = vadd.f32 %v7438, %v7822
  %v7951 = vadd.f32 %v7439, %v7823
  %v7952 = vadd.f32 %v7440, %v7824
  %v7953 = vadd.f32 %v7441, %v7825
  %v7954 = vadd.f32 %v7442, %v7826
  %v7955 = vadd.f32 %v7443, %v7827
  %v7956 = vadd.f32 %v7444, %v7828
  %v7957 = vadd.f32 %v7445, %v7829
  %v7958 = vadd.f32 %v7446, %v7830
  %v7959 = vadd.f32 %v7447, %v7831
  %v7960 = vadd.f32 %v7448, %v7832
  %v7961 = vadd.f32 %v7449, %v7833
  %v7962 = vadd.f32 %v7450, %v7834
  %v7963 = vadd.f32 %v7451, %v7835
  %v7964 = vadd.f32 %v7452, %v7836
  %v7965 = vadd.f32 %v7453, %v7837
  %v7966 = vadd.f32 %v7454, %v7838
  %v7967 = vadd.f32 %v7455, %v7839
  %v7968 = vadd.f32 %v7456, %v7840
  %v7969 = vadd.f32 %v7457, %v7841
  %v7970 = vadd.f32 %v7458, %v7842
  %v7971 = vadd.f32 %v7459, %v7843
  %v7972 = vadd.f32 %v7460, %v7844
  %v7973 = vadd.f32 %v7461, %v7845
  %v7974 = vadd.f32 %v7462, %v7846
  %v7975 = vadd.f32 %v7463, %v7847
  %v7976 = vadd.f32 %v7464, %v7848
  %v7977 = vadd.f32 %v7465, %v7849
  %v7978 = vadd.f32 %v7466, %v7850
  %v7979 = vadd.f32 %v7467, %v7851
  %v7980 = vadd.f32 %v7468, %v7852
  %v7981 = vadd.f32 %v7469, %v7853
  %v7982 = vadd.f32 %v7470, %v7854
  %v7983 = vadd.f32 %v7471, %v7855
  %v7984 = vadd.f32 %v7472, %v7856
  %v7985 = vadd.f32 %v7473, %v7857
  %v7986 = vadd.f32 %v7474, %v7858
  %v7987 = vadd.f32 %v7475, %v7859
  %v7988 = vadd.f32 %v7476, %v7860
  %v7989 = vadd.f32 %v7477, %v7861
  %v7990 = vadd.f32 %v7478, %v7862
  %v7991 = vadd.f32 %v7479, %v7863
  %v7992 = vadd.f32 %v7480, %v7864
  %v7993 = vadd.f32 %v7481, %v7865
  %v7994 = vadd.f32 %v7482, %v7866
  %v7995 = vadd.f32 %v7483, %v7867
  %v7996 = vadd.f32 %v7484, %v7868
  %v7997 = vadd.f32 %v7485, %v7869
  %v7998 = vadd.f32 %v7486, %v7870
  %v7999 = vadd.f32 %v7487, %v7871
  %v8000 = vadd.f32 %v7488, %v7872
  %v8001 = vadd.f32 %v7489, %v7873
  %v8002 = vadd.f32 %v7490, %v7874
  %v8003 = vadd.f32 %v7491, %v7875
  %v8004 = vadd.f32 %v7492, %v7876
  %v8005 = vadd.f32 %v7493, %v7877
  %v8006 = vadd.f32 %v7494, %v7878
  %v8007 = vadd.f32 %v7495, %v7879
  %v8008 = vadd.f32 %v7496, %v7880
  %v8009 = vadd.f32 %v7497, %v7881
  %v8010 = vadd.f32 %v7498, %v7882
  %v8011 = vadd.f32 %v7499, %v7883
  %v8012 = vadd.f32 %v7500, %v7884
  %v8013 = vadd.f32 %v7501, %v7885
  %v8014 = vadd.f32 %v7502, %v7886
  %v8015 = vadd.f32 %v7503, %v7887
  %v8016 = vadd.f32 %v7504, %v7888
  %v8017 = vadd.f32 %v7505, %v7889
  %v8018 = vadd.f32 %v7506, %v7890
  %v8019 = vadd.f32 %v7507, %v7891
  %v8020 = vadd.f32 %v7508, %v7892
  %v8021 = vadd.f32 %v7509, %v7893
  %v8022 = vadd.f32 %v7510, %v7894
  %v8023 = vadd.f32 %v7511, %v7895
  %v8024 = vadd.f32 %v7512, %v7896
  %v8025 = vadd.f32 %v7513, %v7897
  %v8026 = vadd.f32 %v7514, %v7898
  %v8027 = vadd.f32 %v7515, %v7899
  %v8028 = vadd.f32 %v7516, %v7900
  %v8029 = vadd.f32 %v7517, %v7901
  %vm8030 = vcmp.eq.s32.totalorder %v6590, %v1587
  %vm8031 = vcmp.eq.s32.totalorder %v6590, %v1591
  %vm8032 = vcmp.eq.s32.totalorder %v6590, %v1595
  %vm8033 = vcmp.eq.s32.totalorder %v6590, %v1599
  %vm8034 = vcmp.eq.s32.totalorder %v6591, %v1587
  %vm8035 = vcmp.eq.s32.totalorder %v6591, %v1591
  %vm8036 = vcmp.eq.s32.totalorder %v6591, %v1595
  %vm8037 = vcmp.eq.s32.totalorder %v6591, %v1599
  %vm8038 = vcmp.eq.s32.totalorder %v6592, %v1587
  %vm8039 = vcmp.eq.s32.totalorder %v6592, %v1591
  %vm8040 = vcmp.eq.s32.totalorder %v6592, %v1595
  %vm8041 = vcmp.eq.s32.totalorder %v6592, %v1599
  %vm8042 = vcmp.eq.s32.totalorder %v6593, %v1587
  %vm8043 = vcmp.eq.s32.totalorder %v6593, %v1591
  %vm8044 = vcmp.eq.s32.totalorder %v6593, %v1595
  %vm8045 = vcmp.eq.s32.totalorder %v6593, %v1599
  %vm8046 = vcmp.eq.s32.totalorder %v6594, %v1587
  %vm8047 = vcmp.eq.s32.totalorder %v6594, %v1591
  %vm8048 = vcmp.eq.s32.totalorder %v6594, %v1595
  %vm8049 = vcmp.eq.s32.totalorder %v6594, %v1599
  %vm8050 = vcmp.eq.s32.totalorder %v6595, %v1587
  %vm8051 = vcmp.eq.s32.totalorder %v6595, %v1591
  %vm8052 = vcmp.eq.s32.totalorder %v6595, %v1595
  %vm8053 = vcmp.eq.s32.totalorder %v6595, %v1599
  %vm8054 = vcmp.eq.s32.totalorder %v6596, %v1587
  %vm8055 = vcmp.eq.s32.totalorder %v6596, %v1591
  %vm8056 = vcmp.eq.s32.totalorder %v6596, %v1595
  %vm8057 = vcmp.eq.s32.totalorder %v6596, %v1599
  %vm8058 = vcmp.eq.s32.totalorder %v6597, %v1587
  %vm8059 = vcmp.eq.s32.totalorder %v6597, %v1591
  %vm8060 = vcmp.eq.s32.totalorder %v6597, %v1595
  %vm8061 = vcmp.eq.s32.totalorder %v6597, %v1599
  %vm8062 = vcmp.eq.s32.totalorder %v6598, %v1587
  %vm8063 = vcmp.eq.s32.totalorder %v6598, %v1591
  %vm8064 = vcmp.eq.s32.totalorder %v6598, %v1595
  %vm8065 = vcmp.eq.s32.totalorder %v6598, %v1599
  %vm8066 = vcmp.eq.s32.totalorder %v6599, %v1587
  %vm8067 = vcmp.eq.s32.totalorder %v6599, %v1591
  %vm8068 = vcmp.eq.s32.totalorder %v6599, %v1595
  %vm8069 = vcmp.eq.s32.totalorder %v6599, %v1599
  %vm8070 = vcmp.eq.s32.totalorder %v6600, %v1587
  %vm8071 = vcmp.eq.s32.totalorder %v6600, %v1591
  %vm8072 = vcmp.eq.s32.totalorder %v6600, %v1595
  %vm8073 = vcmp.eq.s32.totalorder %v6600, %v1599
  %vm8074 = vcmp.eq.s32.totalorder %v6601, %v1587
  %vm8075 = vcmp.eq.s32.totalorder %v6601, %v1591
  %vm8076 = vcmp.eq.s32.totalorder %v6601, %v1595
  %vm8077 = vcmp.eq.s32.totalorder %v6601, %v1599
  %vm8078 = vcmp.eq.s32.totalorder %v6602, %v1587
  %vm8079 = vcmp.eq.s32.totalorder %v6602, %v1591
  %vm8080 = vcmp.eq.s32.totalorder %v6602, %v1595
  %vm8081 = vcmp.eq.s32.totalorder %v6602, %v1599
  %vm8082 = vcmp.eq.s32.totalorder %v6603, %v1587
  %vm8083 = vcmp.eq.s32.totalorder %v6603, %v1591
  %vm8084 = vcmp.eq.s32.totalorder %v6603, %v1595
  %vm8085 = vcmp.eq.s32.totalorder %v6603, %v1599
  %vm8086 = vcmp.eq.s32.totalorder %v6604, %v1587
  %vm8087 = vcmp.eq.s32.totalorder %v6604, %v1591
  %vm8088 = vcmp.eq.s32.totalorder %v6604, %v1595
  %vm8089 = vcmp.eq.s32.totalorder %v6604, %v1599
  %vm8090 = vcmp.eq.s32.totalorder %v6605, %v1587
  %vm8091 = vcmp.eq.s32.totalorder %v6605, %v1591
  %vm8092 = vcmp.eq.s32.totalorder %v6605, %v1595
  %vm8093 = vcmp.eq.s32.totalorder %v6605, %v1599
  %vm8094 = vcmp.eq.s32.totalorder %v6606, %v1587
  %vm8095 = vcmp.eq.s32.totalorder %v6606, %v1591
  %vm8096 = vcmp.eq.s32.totalorder %v6606, %v1595
  %vm8097 = vcmp.eq.s32.totalorder %v6606, %v1599
  %vm8098 = vcmp.eq.s32.totalorder %v6607, %v1587
  %vm8099 = vcmp.eq.s32.totalorder %v6607, %v1591
  %vm8100 = vcmp.eq.s32.totalorder %v6607, %v1595
  %vm8101 = vcmp.eq.s32.totalorder %v6607, %v1599
  %vm8102 = vcmp.eq.s32.totalorder %v6608, %v1587
  %vm8103 = vcmp.eq.s32.totalorder %v6608, %v1591
  %vm8104 = vcmp.eq.s32.totalorder %v6608, %v1595
  %vm8105 = vcmp.eq.s32.totalorder %v6608, %v1599
  %vm8106 = vcmp.eq.s32.totalorder %v6609, %v1587
  %vm8107 = vcmp.eq.s32.totalorder %v6609, %v1591
  %vm8108 = vcmp.eq.s32.totalorder %v6609, %v1595
  %vm8109 = vcmp.eq.s32.totalorder %v6609, %v1599
  %vm8110 = vcmp.eq.s32.totalorder %v6610, %v1587
  %vm8111 = vcmp.eq.s32.totalorder %v6610, %v1591
  %vm8112 = vcmp.eq.s32.totalorder %v6610, %v1595
  %vm8113 = vcmp.eq.s32.totalorder %v6610, %v1599
  %vm8114 = vcmp.eq.s32.totalorder %v6611, %v1587
  %vm8115 = vcmp.eq.s32.totalorder %v6611, %v1591
  %vm8116 = vcmp.eq.s32.totalorder %v6611, %v1595
  %vm8117 = vcmp.eq.s32.totalorder %v6611, %v1599
  %vm8118 = vcmp.eq.s32.totalorder %v6612, %v1587
  %vm8119 = vcmp.eq.s32.totalorder %v6612, %v1591
  %vm8120 = vcmp.eq.s32.totalorder %v6612, %v1595
  %vm8121 = vcmp.eq.s32.totalorder %v6612, %v1599
  %vm8122 = vcmp.eq.s32.totalorder %v6613, %v1587
  %vm8123 = vcmp.eq.s32.totalorder %v6613, %v1591
  %vm8124 = vcmp.eq.s32.totalorder %v6613, %v1595
  %vm8125 = vcmp.eq.s32.totalorder %v6613, %v1599
  %vm8126 = vcmp.eq.s32.totalorder %v6614, %v1587
  %vm8127 = vcmp.eq.s32.totalorder %v6614, %v1591
  %vm8128 = vcmp.eq.s32.totalorder %v6614, %v1595
  %vm8129 = vcmp.eq.s32.totalorder %v6614, %v1599
  %vm8130 = vcmp.eq.s32.totalorder %v6615, %v1587
  %vm8131 = vcmp.eq.s32.totalorder %v6615, %v1591
  %vm8132 = vcmp.eq.s32.totalorder %v6615, %v1595
  %vm8133 = vcmp.eq.s32.totalorder %v6615, %v1599
  %vm8134 = vcmp.eq.s32.totalorder %v6616, %v1587
  %vm8135 = vcmp.eq.s32.totalorder %v6616, %v1591
  %vm8136 = vcmp.eq.s32.totalorder %v6616, %v1595
  %vm8137 = vcmp.eq.s32.totalorder %v6616, %v1599
  %vm8138 = vcmp.eq.s32.totalorder %v6617, %v1587
  %vm8139 = vcmp.eq.s32.totalorder %v6617, %v1591
  %vm8140 = vcmp.eq.s32.totalorder %v6617, %v1595
  %vm8141 = vcmp.eq.s32.totalorder %v6617, %v1599
  %vm8142 = vcmp.eq.s32.totalorder %v6618, %v1587
  %vm8143 = vcmp.eq.s32.totalorder %v6618, %v1591
  %vm8144 = vcmp.eq.s32.totalorder %v6618, %v1595
  %vm8145 = vcmp.eq.s32.totalorder %v6618, %v1599
  %vm8146 = vcmp.eq.s32.totalorder %v6619, %v1587
  %vm8147 = vcmp.eq.s32.totalorder %v6619, %v1591
  %vm8148 = vcmp.eq.s32.totalorder %v6619, %v1595
  %vm8149 = vcmp.eq.s32.totalorder %v6619, %v1599
  %vm8150 = vcmp.eq.s32.totalorder %v6620, %v1587
  %vm8151 = vcmp.eq.s32.totalorder %v6620, %v1591
  %vm8152 = vcmp.eq.s32.totalorder %v6620, %v1595
  %vm8153 = vcmp.eq.s32.totalorder %v6620, %v1599
  %vm8154 = vcmp.eq.s32.totalorder %v6621, %v1587
  %vm8155 = vcmp.eq.s32.totalorder %v6621, %v1591
  %vm8156 = vcmp.eq.s32.totalorder %v6621, %v1595
  %vm8157 = vcmp.eq.s32.totalorder %v6621, %v1599
  %v8158 = vsel %vm8030, 1, 0
  %v8159 = vsel %vm8031, 1, 0
  %v8160 = vsel %vm8032, 1, 0
  %v8161 = vsel %vm8033, 1, 0
  %v8162 = vsel %vm8034, 1, 0
  %v8163 = vsel %vm8035, 1, 0
  %v8164 = vsel %vm8036, 1, 0
  %v8165 = vsel %vm8037, 1, 0
  %v8166 = vsel %vm8038, 1, 0
  %v8167 = vsel %vm8039, 1, 0
  %v8168 = vsel %vm8040, 1, 0
  %v8169 = vsel %vm8041, 1, 0
  %v8170 = vsel %vm8042, 1, 0
  %v8171 = vsel %vm8043, 1, 0
  %v8172 = vsel %vm8044, 1, 0
  %v8173 = vsel %vm8045, 1, 0
  %v8174 = vsel %vm8046, 1, 0
  %v8175 = vsel %vm8047, 1, 0
  %v8176 = vsel %vm8048, 1, 0
  %v8177 = vsel %vm8049, 1, 0
  %v8178 = vsel %vm8050, 1, 0
  %v8179 = vsel %vm8051, 1, 0
  %v8180 = vsel %vm8052, 1, 0
  %v8181 = vsel %vm8053, 1, 0
  %v8182 = vsel %vm8054, 1, 0
  %v8183 = vsel %vm8055, 1, 0
  %v8184 = vsel %vm8056, 1, 0
  %v8185 = vsel %vm8057, 1, 0
  %v8186 = vsel %vm8058, 1, 0
  %v8187 = vsel %vm8059, 1, 0
  %v8188 = vsel %vm8060, 1, 0
  %v8189 = vsel %vm8061, 1, 0
  %v8190 = vsel %vm8062, 1, 0
  %v8191 = vsel %vm8063, 1, 0
  %v8192 = vsel %vm8064, 1, 0
  %v8193 = vsel %vm8065, 1, 0
  %v8194 = vsel %vm8066, 1, 0
  %v8195 = vsel %vm8067, 1, 0
  %v8196 = vsel %vm8068, 1, 0
  %v8197 = vsel %vm8069, 1, 0
  %v8198 = vsel %vm8070, 1, 0
  %v8199 = vsel %vm8071, 1, 0
  %v8200 = vsel %vm8072, 1, 0
  %v8201 = vsel %vm8073, 1, 0
  %v8202 = vsel %vm8074, 1, 0
  %v8203 = vsel %vm8075, 1, 0
  %v8204 = vsel %vm8076, 1, 0
  %v8205 = vsel %vm8077, 1, 0
  %v8206 = vsel %vm8078, 1, 0
  %v8207 = vsel %vm8079, 1, 0
  %v8208 = vsel %vm8080, 1, 0
  %v8209 = vsel %vm8081, 1, 0
  %v8210 = vsel %vm8082, 1, 0
  %v8211 = vsel %vm8083, 1, 0
  %v8212 = vsel %vm8084, 1, 0
  %v8213 = vsel %vm8085, 1, 0
  %v8214 = vsel %vm8086, 1, 0
  %v8215 = vsel %vm8087, 1, 0
  %v8216 = vsel %vm8088, 1, 0
  %v8217 = vsel %vm8089, 1, 0
  %v8218 = vsel %vm8090, 1, 0
  %v8219 = vsel %vm8091, 1, 0
  %v8220 = vsel %vm8092, 1, 0
  %v8221 = vsel %vm8093, 1, 0
  %v8222 = vsel %vm8094, 1, 0
  %v8223 = vsel %vm8095, 1, 0
  %v8224 = vsel %vm8096, 1, 0
  %v8225 = vsel %vm8097, 1, 0
  %v8226 = vsel %vm8098, 1, 0
  %v8227 = vsel %vm8099, 1, 0
  %v8228 = vsel %vm8100, 1, 0
  %v8229 = vsel %vm8101, 1, 0
  %v8230 = vsel %vm8102, 1, 0
  %v8231 = vsel %vm8103, 1, 0
  %v8232 = vsel %vm8104, 1, 0
  %v8233 = vsel %vm8105, 1, 0
  %v8234 = vsel %vm8106, 1, 0
  %v8235 = vsel %vm8107, 1, 0
  %v8236 = vsel %vm8108, 1, 0
  %v8237 = vsel %vm8109, 1, 0
  %v8238 = vsel %vm8110, 1, 0
  %v8239 = vsel %vm8111, 1, 0
  %v8240 = vsel %vm8112, 1, 0
  %v8241 = vsel %vm8113, 1, 0
  %v8242 = vsel %vm8114, 1, 0
  %v8243 = vsel %vm8115, 1, 0
  %v8244 = vsel %vm8116, 1, 0
  %v8245 = vsel %vm8117, 1, 0
  %v8246 = vsel %vm8118, 1, 0
  %v8247 = vsel %vm8119, 1, 0
  %v8248 = vsel %vm8120, 1, 0
  %v8249 = vsel %vm8121, 1, 0
  %v8250 = vsel %vm8122, 1, 0
  %v8251 = vsel %vm8123, 1, 0
  %v8252 = vsel %vm8124, 1, 0
  %v8253 = vsel %vm8125, 1, 0
  %v8254 = vsel %vm8126, 1, 0
  %v8255 = vsel %vm8127, 1, 0
  %v8256 = vsel %vm8128, 1, 0
  %v8257 = vsel %vm8129, 1, 0
  %v8258 = vsel %vm8130, 1, 0
  %v8259 = vsel %vm8131, 1, 0
  %v8260 = vsel %vm8132, 1, 0
  %v8261 = vsel %vm8133, 1, 0
  %v8262 = vsel %vm8134, 1, 0
  %v8263 = vsel %vm8135, 1, 0
  %v8264 = vsel %vm8136, 1, 0
  %v8265 = vsel %vm8137, 1, 0
  %v8266 = vsel %vm8138, 1, 0
  %v8267 = vsel %vm8139, 1, 0
  %v8268 = vsel %vm8140, 1, 0
  %v8269 = vsel %vm8141, 1, 0
  %v8270 = vsel %vm8142, 1, 0
  %v8271 = vsel %vm8143, 1, 0
  %v8272 = vsel %vm8144, 1, 0
  %v8273 = vsel %vm8145, 1, 0
  %v8274 = vsel %vm8146, 1, 0
  %v8275 = vsel %vm8147, 1, 0
  %v8276 = vsel %vm8148, 1, 0
  %v8277 = vsel %vm8149, 1, 0
  %v8278 = vsel %vm8150, 1, 0
  %v8279 = vsel %vm8151, 1, 0
  %v8280 = vsel %vm8152, 1, 0
  %v8281 = vsel %vm8153, 1, 0
  %v8282 = vsel %vm8154, 1, 0
  %v8283 = vsel %vm8155, 1, 0
  %v8284 = vsel %vm8156, 1, 0
  %v8285 = vsel %vm8157, 1, 0
  %v8286 = vcvt.s32.f32 %v8158
  %v8287 = vcvt.s32.f32 %v8159
  %v8288 = vcvt.s32.f32 %v8160
  %v8289 = vcvt.s32.f32 %v8161
  %v8290 = vcvt.s32.f32 %v8162
  %v8291 = vcvt.s32.f32 %v8163
  %v8292 = vcvt.s32.f32 %v8164
  %v8293 = vcvt.s32.f32 %v8165
  %v8294 = vcvt.s32.f32 %v8166
  %v8295 = vcvt.s32.f32 %v8167
  %v8296 = vcvt.s32.f32 %v8168
  %v8297 = vcvt.s32.f32 %v8169
  %v8298 = vcvt.s32.f32 %v8170
  %v8299 = vcvt.s32.f32 %v8171
  %v8300 = vcvt.s32.f32 %v8172
  %v8301 = vcvt.s32.f32 %v8173
  %v8302 = vcvt.s32.f32 %v8174
  %v8303 = vcvt.s32.f32 %v8175
  %v8304 = vcvt.s32.f32 %v8176
  %v8305 = vcvt.s32.f32 %v8177
  %v8306 = vcvt.s32.f32 %v8178
  %v8307 = vcvt.s32.f32 %v8179
  %v8308 = vcvt.s32.f32 %v8180
  %v8309 = vcvt.s32.f32 %v8181
  %v8310 = vcvt.s32.f32 %v8182
  %v8311 = vcvt.s32.f32 %v8183
  %v8312 = vcvt.s32.f32 %v8184
  %v8313 = vcvt.s32.f32 %v8185
  %v8314 = vcvt.s32.f32 %v8186
  %v8315 = vcvt.s32.f32 %v8187
  %v8316 = vcvt.s32.f32 %v8188
  %v8317 = vcvt.s32.f32 %v8189
  %v8318 = vcvt.s32.f32 %v8190
  %v8319 = vcvt.s32.f32 %v8191
  %v8320 = vcvt.s32.f32 %v8192
  %v8321 = vcvt.s32.f32 %v8193
  %v8322 = vcvt.s32.f32 %v8194
  %v8323 = vcvt.s32.f32 %v8195
  %v8324 = vcvt.s32.f32 %v8196
  %v8325 = vcvt.s32.f32 %v8197
  %v8326 = vcvt.s32.f32 %v8198
  %v8327 = vcvt.s32.f32 %v8199
  %v8328 = vcvt.s32.f32 %v8200
  %v8329 = vcvt.s32.f32 %v8201
  %v8330 = vcvt.s32.f32 %v8202
  %v8331 = vcvt.s32.f32 %v8203
  %v8332 = vcvt.s32.f32 %v8204
  %v8333 = vcvt.s32.f32 %v8205
  %v8334 = vcvt.s32.f32 %v8206
  %v8335 = vcvt.s32.f32 %v8207
  %v8336 = vcvt.s32.f32 %v8208
  %v8337 = vcvt.s32.f32 %v8209
  %v8338 = vcvt.s32.f32 %v8210
  %v8339 = vcvt.s32.f32 %v8211
  %v8340 = vcvt.s32.f32 %v8212
  %v8341 = vcvt.s32.f32 %v8213
  %v8342 = vcvt.s32.f32 %v8214
  %v8343 = vcvt.s32.f32 %v8215
  %v8344 = vcvt.s32.f32 %v8216
  %v8345 = vcvt.s32.f32 %v8217
  %v8346 = vcvt.s32.f32 %v8218
  %v8347 = vcvt.s32.f32 %v8219
  %v8348 = vcvt.s32.f32 %v8220
  %v8349 = vcvt.s32.f32 %v8221
  %v8350 = vcvt.s32.f32 %v8222
  %v8351 = vcvt.s32.f32 %v8223
  %v8352 = vcvt.s32.f32 %v8224
  %v8353 = vcvt.s32.f32 %v8225
  %v8354 = vcvt.s32.f32 %v8226
  %v8355 = vcvt.s32.f32 %v8227
  %v8356 = vcvt.s32.f32 %v8228
  %v8357 = vcvt.s32.f32 %v8229
  %v8358 = vcvt.s32.f32 %v8230
  %v8359 = vcvt.s32.f32 %v8231
  %v8360 = vcvt.s32.f32 %v8232
  %v8361 = vcvt.s32.f32 %v8233
  %v8362 = vcvt.s32.f32 %v8234
  %v8363 = vcvt.s32.f32 %v8235
  %v8364 = vcvt.s32.f32 %v8236
  %v8365 = vcvt.s32.f32 %v8237
  %v8366 = vcvt.s32.f32 %v8238
  %v8367 = vcvt.s32.f32 %v8239
  %v8368 = vcvt.s32.f32 %v8240
  %v8369 = vcvt.s32.f32 %v8241
  %v8370 = vcvt.s32.f32 %v8242
  %v8371 = vcvt.s32.f32 %v8243
  %v8372 = vcvt.s32.f32 %v8244
  %v8373 = vcvt.s32.f32 %v8245
  %v8374 = vcvt.s32.f32 %v8246
  %v8375 = vcvt.s32.f32 %v8247
  %v8376 = vcvt.s32.f32 %v8248
  %v8377 = vcvt.s32.f32 %v8249
  %v8378 = vcvt.s32.f32 %v8250
  %v8379 = vcvt.s32.f32 %v8251
  %v8380 = vcvt.s32.f32 %v8252
  %v8381 = vcvt.s32.f32 %v8253
  %v8382 = vcvt.s32.f32 %v8254
  %v8383 = vcvt.s32.f32 %v8255
  %v8384 = vcvt.s32.f32 %v8256
  %v8385 = vcvt.s32.f32 %v8257
  %v8386 = vcvt.s32.f32 %v8258
  %v8387 = vcvt.s32.f32 %v8259
  %v8388 = vcvt.s32.f32 %v8260
  %v8389 = vcvt.s32.f32 %v8261
  %v8390 = vcvt.s32.f32 %v8262
  %v8391 = vcvt.s32.f32 %v8263
  %v8392 = vcvt.s32.f32 %v8264
  %v8393 = vcvt.s32.f32 %v8265
  %v8394 = vcvt.s32.f32 %v8266
  %v8395 = vcvt.s32.f32 %v8267
  %v8396 = vcvt.s32.f32 %v8268
  %v8397 = vcvt.s32.f32 %v8269
  %v8398 = vcvt.s32.f32 %v8270
  %v8399 = vcvt.s32.f32 %v8271
  %v8400 = vcvt.s32.f32 %v8272
  %v8401 = vcvt.s32.f32 %v8273
  %v8402 = vcvt.s32.f32 %v8274
  %v8403 = vcvt.s32.f32 %v8275
  %v8404 = vcvt.s32.f32 %v8276
  %v8405 = vcvt.s32.f32 %v8277
  %v8406 = vcvt.s32.f32 %v8278
  %v8407 = vcvt.s32.f32 %v8279
  %v8408 = vcvt.s32.f32 %v8280
  %v8409 = vcvt.s32.f32 %v8281
  %v8410 = vcvt.s32.f32 %v8282
  %v8411 = vcvt.s32.f32 %v8283
  %v8412 = vcvt.s32.f32 %v8284
  %v8413 = vcvt.s32.f32 %v8285
  %v8414 = vadd.f32 %v7902, %v8286
  %v8415 = vadd.f32 %v7903, %v8287
  %v8416 = vadd.f32 %v7904, %v8288
  %v8417 = vadd.f32 %v7905, %v8289
  %v8418 = vadd.f32 %v7906, %v8290
  %v8419 = vadd.f32 %v7907, %v8291
  %v8420 = vadd.f32 %v7908, %v8292
  %v8421 = vadd.f32 %v7909, %v8293
  %v8422 = vadd.f32 %v7910, %v8294
  %v8423 = vadd.f32 %v7911, %v8295
  %v8424 = vadd.f32 %v7912, %v8296
  %v8425 = vadd.f32 %v7913, %v8297
  %v8426 = vadd.f32 %v7914, %v8298
  %v8427 = vadd.f32 %v7915, %v8299
  %v8428 = vadd.f32 %v7916, %v8300
  %v8429 = vadd.f32 %v7917, %v8301
  %v8430 = vadd.f32 %v7918, %v8302
  %v8431 = vadd.f32 %v7919, %v8303
  %v8432 = vadd.f32 %v7920, %v8304
  %v8433 = vadd.f32 %v7921, %v8305
  %v8434 = vadd.f32 %v7922, %v8306
  %v8435 = vadd.f32 %v7923, %v8307
  %v8436 = vadd.f32 %v7924, %v8308
  %v8437 = vadd.f32 %v7925, %v8309
  %v8438 = vadd.f32 %v7926, %v8310
  %v8439 = vadd.f32 %v7927, %v8311
  %v8440 = vadd.f32 %v7928, %v8312
  %v8441 = vadd.f32 %v7929, %v8313
  %v8442 = vadd.f32 %v7930, %v8314
  %v8443 = vadd.f32 %v7931, %v8315
  %v8444 = vadd.f32 %v7932, %v8316
  %v8445 = vadd.f32 %v7933, %v8317
  %v8446 = vadd.f32 %v7934, %v8318
  %v8447 = vadd.f32 %v7935, %v8319
  %v8448 = vadd.f32 %v7936, %v8320
  %v8449 = vadd.f32 %v7937, %v8321
  %v8450 = vadd.f32 %v7938, %v8322
  %v8451 = vadd.f32 %v7939, %v8323
  %v8452 = vadd.f32 %v7940, %v8324
  %v8453 = vadd.f32 %v7941, %v8325
  %v8454 = vadd.f32 %v7942, %v8326
  %v8455 = vadd.f32 %v7943, %v8327
  %v8456 = vadd.f32 %v7944, %v8328
  %v8457 = vadd.f32 %v7945, %v8329
  %v8458 = vadd.f32 %v7946, %v8330
  %v8459 = vadd.f32 %v7947, %v8331
  %v8460 = vadd.f32 %v7948, %v8332
  %v8461 = vadd.f32 %v7949, %v8333
  %v8462 = vadd.f32 %v7950, %v8334
  %v8463 = vadd.f32 %v7951, %v8335
  %v8464 = vadd.f32 %v7952, %v8336
  %v8465 = vadd.f32 %v7953, %v8337
  %v8466 = vadd.f32 %v7954, %v8338
  %v8467 = vadd.f32 %v7955, %v8339
  %v8468 = vadd.f32 %v7956, %v8340
  %v8469 = vadd.f32 %v7957, %v8341
  %v8470 = vadd.f32 %v7958, %v8342
  %v8471 = vadd.f32 %v7959, %v8343
  %v8472 = vadd.f32 %v7960, %v8344
  %v8473 = vadd.f32 %v7961, %v8345
  %v8474 = vadd.f32 %v7962, %v8346
  %v8475 = vadd.f32 %v7963, %v8347
  %v8476 = vadd.f32 %v7964, %v8348
  %v8477 = vadd.f32 %v7965, %v8349
  %v8478 = vadd.f32 %v7966, %v8350
  %v8479 = vadd.f32 %v7967, %v8351
  %v8480 = vadd.f32 %v7968, %v8352
  %v8481 = vadd.f32 %v7969, %v8353
  %v8482 = vadd.f32 %v7970, %v8354
  %v8483 = vadd.f32 %v7971, %v8355
  %v8484 = vadd.f32 %v7972, %v8356
  %v8485 = vadd.f32 %v7973, %v8357
  %v8486 = vadd.f32 %v7974, %v8358
  %v8487 = vadd.f32 %v7975, %v8359
  %v8488 = vadd.f32 %v7976, %v8360
  %v8489 = vadd.f32 %v7977, %v8361
  %v8490 = vadd.f32 %v7978, %v8362
  %v8491 = vadd.f32 %v7979, %v8363
  %v8492 = vadd.f32 %v7980, %v8364
  %v8493 = vadd.f32 %v7981, %v8365
  %v8494 = vadd.f32 %v7982, %v8366
  %v8495 = vadd.f32 %v7983, %v8367
  %v8496 = vadd.f32 %v7984, %v8368
  %v8497 = vadd.f32 %v7985, %v8369
  %v8498 = vadd.f32 %v7986, %v8370
  %v8499 = vadd.f32 %v7987, %v8371
  %v8500 = vadd.f32 %v7988, %v8372
  %v8501 = vadd.f32 %v7989, %v8373
  %v8502 = vadd.f32 %v7990, %v8374
  %v8503 = vadd.f32 %v7991, %v8375
  %v8504 = vadd.f32 %v7992, %v8376
  %v8505 = vadd.f32 %v7993, %v8377
  %v8506 = vadd.f32 %v7994, %v8378
  %v8507 = vadd.f32 %v7995, %v8379
  %v8508 = vadd.f32 %v7996, %v8380
  %v8509 = vadd.f32 %v7997, %v8381
  %v8510 = vadd.f32 %v7998, %v8382
  %v8511 = vadd.f32 %v7999, %v8383
  %v8512 = vadd.f32 %v8000, %v8384
  %v8513 = vadd.f32 %v8001, %v8385
  %v8514 = vadd.f32 %v8002, %v8386
  %v8515 = vadd.f32 %v8003, %v8387
  %v8516 = vadd.f32 %v8004, %v8388
  %v8517 = vadd.f32 %v8005, %v8389
  %v8518 = vadd.f32 %v8006, %v8390
  %v8519 = vadd.f32 %v8007, %v8391
  %v8520 = vadd.f32 %v8008, %v8392
  %v8521 = vadd.f32 %v8009, %v8393
  %v8522 = vadd.f32 %v8010, %v8394
  %v8523 = vadd.f32 %v8011, %v8395
  %v8524 = vadd.f32 %v8012, %v8396
  %v8525 = vadd.f32 %v8013, %v8397
  %v8526 = vadd.f32 %v8014, %v8398
  %v8527 = vadd.f32 %v8015, %v8399
  %v8528 = vadd.f32 %v8016, %v8400
  %v8529 = vadd.f32 %v8017, %v8401
  %v8530 = vadd.f32 %v8018, %v8402
  %v8531 = vadd.f32 %v8019, %v8403
  %v8532 = vadd.f32 %v8020, %v8404
  %v8533 = vadd.f32 %v8021, %v8405
  %v8534 = vadd.f32 %v8022, %v8406
  %v8535 = vadd.f32 %v8023, %v8407
  %v8536 = vadd.f32 %v8024, %v8408
  %v8537 = vadd.f32 %v8025, %v8409
  %v8538 = vadd.f32 %v8026, %v8410
  %v8539 = vadd.f32 %v8027, %v8411
  %v8540 = vadd.f32 %v8028, %v8412
  %v8541 = vadd.f32 %v8029, %v8413
  %v8542 = vld [vmem:[%s1 + $0x30] sm:$0xff]
  %v8543 = vld [vmem:[%s1 + $0x38] sm:$0xff]
  %v8544 = vld [vmem:[%s1 + $0x70] sm:$0xff]
  %v8545 = vld [vmem:[%s1 + $0x78] sm:$0xff]
  %v8546 = vld [vmem:[%s1 + $0xb0] sm:$0xff]
  %v8547 = vld [vmem:[%s1 + $0xb8] sm:$0xff]
  %v8548 = vld [vmem:[%s1 + $0xf0] sm:$0xff]
  %v8549 = vld [vmem:[%s1 + $0xf8] sm:$0xff]
  %8550 = vmatprep.subr.mxu0 %v8415
  %8551 = vmatpush1.msra.mxu0 %v8414
  %8552 = vmatprep.subr.mxu0 %v8419
  %8553 = vmatpush1.msra.mxu0 %v8418
  %8554 = vmatprep.subr.mxu0 %v8423
  %8555 = vmatpush1.msra.mxu0 %v8422
  %8556 = vmatprep.subr.mxu0 %v8427
  %8557 = vmatpush1.msra.mxu0 %v8426
  %8558 = vmatprep.subr.mxu0 %v8431
  %8559 = vmatpush1.msra.mxu0 %v8430
  %8560 = vmatprep.subr.mxu0 %v8435
  %8561 = vmatpush1.msra.mxu0 %v8434
  %8562 = vmatprep.subr.mxu0 %v8439
  %8563 = vmatpush1.msra.mxu0 %v8438
  %8564 = vmatprep.subr.mxu0 %v8443
  %8565 = vmatpush1.msra.mxu0 %v8442
  %8566 = vmatprep.subr.mxu0 %v8447
  %8567 = vmatpush1.msra.mxu0 %v8446
  %8568 = vmatprep.subr.mxu0 %v8451
  %8569 = vmatpush1.msra.mxu0 %v8450
  %8570 = vmatprep.subr.mxu0 %v8455
  %8571 = vmatpush1.msra.mxu0 %v8454
  %8572 = vmatprep.subr.mxu0 %v8459
  %8573 = vmatpush1.msra.mxu0 %v8458
  %8574 = vmatprep.subr.mxu0 %v8463
  %8575 = vmatpush1.msra.mxu0 %v8462
  %8576 = vmatprep.subr.mxu0 %v8467
  %8577 = vmatpush1.msra.mxu0 %v8466
  %8578 = vmatprep.subr.mxu0 %v8471
  %8579 = vmatpush1.msra.mxu0 %v8470
  %8580 = vmatprep.subr.mxu0 %v8475
  %8581 = vmatpush1.msra.mxu0 %v8474
  %8582 = vmatprep.subr.mxu0 %v8479
  %8583 = vmatpush1.msra.mxu0 %v8478
  %8584 = vmatprep.subr.mxu0 %v8483
  %8585 = vmatpush1.msra.mxu0 %v8482
  %8586 = vmatprep.subr.mxu0 %v8487
  %8587 = vmatpush1.msra.mxu0 %v8486
  %8588 = vmatprep.subr.mxu0 %v8491
  %8589 = vmatpush1.msra.mxu0 %v8490
  %8590 = vmatprep.subr.mxu0 %v8495
  %8591 = vmatpush1.msra.mxu0 %v8494
  %8592 = vmatprep.subr.mxu0 %v8499
  %8593 = vmatpush1.msra.mxu0 %v8498
  %8594 = vmatprep.subr.mxu0 %v8503
  %8595 = vmatpush1.msra.mxu0 %v8502
  %8596 = vmatprep.subr.mxu0 %v8507
  %8597 = vmatpush1.msra.mxu0 %v8506
  %8598 = vmatprep.subr.mxu0 %v8511
  %8599 = vmatpush1.msra.mxu0 %v8510
  %8600 = vmatprep.subr.mxu0 %v8515
  %8601 = vmatpush1.msra.mxu0 %v8514
  %8602 = vmatprep.subr.mxu0 %v8519
  %8603 = vmatpush1.msra.mxu0 %v8518
  %8604 = vmatprep.subr.mxu0 %v8523
  %8605 = vmatpush1.msra.mxu0 %v8522
  %8606 = vmatprep.subr.mxu0 %v8527
  %8607 = vmatpush1.msra.mxu0 %v8526
  %8608 = vmatprep.subr.mxu0 %v8531
  %8609 = vmatpush1.msra.mxu0 %v8530
  %8610 = vmatprep.subr.mxu0 %v8535
  %8611 = vmatpush1.msra.mxu0 %v8534
  %8612 = vmatprep.subr.mxu0 %v8539
  %8613 = vmatpush1.msra.mxu0 %v8538
  %8614 = vmatprep.mubr.f32.mxu0 %v8543
  %8615 = vmatmul.mubr.f32.gmra.mrb[0].mxu0 %v8542
  %v8616 = vpop.f32.mrb[0].mxu0
  %v8617 = vadd.f32 0.0, %v8616
  %v8618 = vpop.f32.mrb[0].mxu0
  %v8619 = vadd.f32 0.0, %v8618
  %8620 = vmatprep.mubr.f32.mxu0 %v8545
  %8621 = vmatmul.mubr.f32.gmra.mrb[0].mxu0 %v8544
  %v8622 = vpop.f32.mrb[0].mxu0
  %v8623 = vadd.f32 0.0, %v8622
  %v8624 = vpop.f32.mrb[0].mxu0
  %v8625 = vadd.f32 0.0, %v8624
  %8626 = vmatprep.mubr.f32.mxu0 %v8547
  %8627 = vmatmul.mubr.f32.gmra.mrb[0].mxu0 %v8546
  %v8628 = vpop.f32.mrb[0].mxu0
  %v8629 = vadd.f32 0.0, %v8628
  %v8630 = vpop.f32.mrb[0].mxu0
  %v8631 = vadd.f32 0.0, %v8630
  %8632 = vmatprep.mubr.f32.mxu0 %v8549
  %8633 = vmatmul.mubr.f32.gmra.mrb[0].mxu0 %v8548
  %v8634 = vpop.f32.mrb[0].mxu0
  %v8635 = vadd.f32 0.0, %v8634
  %v8636 = vpop.f32.mrb[0].mxu0
  %v8637 = vadd.f32 0.0, %v8636
  %8638 = vdwg.mxu0
  %8639 = vmatprep.subr.mxu0 %v8417
  %8640 = vmatpush1.msra.mxu0 %v8416
  %8641 = vmatprep.subr.mxu0 %v8421
  %8642 = vmatpush1.msra.mxu0 %v8420
  %8643 = vmatprep.subr.mxu0 %v8425
  %8644 = vmatpush1.msra.mxu0 %v8424
  %8645 = vmatprep.subr.mxu0 %v8429
  %8646 = vmatpush1.msra.mxu0 %v8428
  %8647 = vmatprep.subr.mxu0 %v8433
  %8648 = vmatpush1.msra.mxu0 %v8432
  %8649 = vmatprep.subr.mxu0 %v8437
  %8650 = vmatpush1.msra.mxu0 %v8436
  %8651 = vmatprep.subr.mxu0 %v8441
  %8652 = vmatpush1.msra.mxu0 %v8440
  %8653 = vmatprep.subr.mxu0 %v8445
  %8654 = vmatpush1.msra.mxu0 %v8444
  %8655 = vmatprep.subr.mxu0 %v8449
  %8656 = vmatpush1.msra.mxu0 %v8448
  %8657 = vmatprep.subr.mxu0 %v8453
  %8658 = vmatpush1.msra.mxu0 %v8452
  %8659 = vmatprep.subr.mxu0 %v8457
  %8660 = vmatpush1.msra.mxu0 %v8456
  %8661 = vmatprep.subr.mxu0 %v8461
  %8662 = vmatpush1.msra.mxu0 %v8460
  %8663 = vmatprep.subr.mxu0 %v8465
  %8664 = vmatpush1.msra.mxu0 %v8464
  %8665 = vmatprep.subr.mxu0 %v8469
  %8666 = vmatpush1.msra.mxu0 %v8468
  %8667 = vmatprep.subr.mxu0 %v8473
  %8668 = vmatpush1.msra.mxu0 %v8472
  %8669 = vmatprep.subr.mxu0 %v8477
  %8670 = vmatpush1.msra.mxu0 %v8476
  %8671 = vmatprep.subr.mxu0 %v8481
  %8672 = vmatpush1.msra.mxu0 %v8480
  %8673 = vmatprep.subr.mxu0 %v8485
  %8674 = vmatpush1.msra.mxu0 %v8484
  %8675 = vmatprep.subr.mxu0 %v8489
  %8676 = vmatpush1.msra.mxu0 %v8488
  %8677 = vmatprep.subr.mxu0 %v8493
  %8678 = vmatpush1.msra.mxu0 %v8492
  %8679 = vmatprep.subr.mxu0 %v8497
  %8680 = vmatpush1.msra.mxu0 %v8496
  %8681 = vmatprep.subr.mxu0 %v8501
  %8682 = vmatpush1.msra.mxu0 %v8500
  %8683 = vmatprep.subr.mxu0 %v8505
  %8684 = vmatpush1.msra.mxu0 %v8504
  %8685 = vmatprep.subr.mxu0 %v8509
  %8686 = vmatpush1.msra.mxu0 %v8508
  %8687 = vmatprep.subr.mxu0 %v8513
  %8688 = vmatpush1.msra.mxu0 %v8512
  %8689 = vmatprep.subr.mxu0 %v8517
  %8690 = vmatpush1.msra.mxu0 %v8516
  %8691 = vmatprep.subr.mxu0 %v8521
  %8692 = vmatpush1.msra.mxu0 %v8520
  %8693 = vmatprep.subr.mxu0 %v8525
  %8694 = vmatpush1.msra.mxu0 %v8524
  %8695 = vmatprep.subr.mxu0 %v8529
  %8696 = vmatpush1.msra.mxu0 %v8528
  %8697 = vmatprep.subr.mxu0 %v8533
  %8698 = vmatpush1.msra.mxu0 %v8532
  %8699 = vmatprep.subr.mxu0 %v8537
  %8700 = vmatpush1.msra.mxu0 %v8536
  %8701 = vmatprep.subr.mxu0 %v8541
  %8702 = vmatpush1.msra.mxu0 %v8540
  %8703 = vmatprep.mubr.f32.mxu0 %v8543
  %8704 = vmatmul.mubr.f32.gmra.mrb[0].mxu0 %v8542
  %v8705 = vpop.f32.mrb[0].mxu0
  %v8706 = vadd.f32 0.0, %v8705
  %v8707 = vpop.f32.mrb[0].mxu0
  %v8708 = vadd.f32 0.0, %v8707
  %8709 = vmatprep.mubr.f32.mxu0 %v8545
  %8710 = vmatmul.mubr.f32.gmra.mrb[0].mxu0 %v8544
  %v8711 = vpop.f32.mrb[0].mxu0
  %v8712 = vadd.f32 0.0, %v8711
  %v8713 = vpop.f32.mrb[0].mxu0
  %v8714 = vadd.f32 0.0, %v8713
  %8715 = vmatprep.mubr.f32.mxu0 %v8547
  %8716 = vmatmul.mubr.f32.gmra.mrb[0].mxu0 %v8546
  %v8717 = vpop.f32.mrb[0].mxu0
  %v8718 = vadd.f32 0.0, %v8717
  %v8719 = vpop.f32.mrb[0].mxu0
  %v8720 = vadd.f32 0.0, %v8719
  %8721 = vmatprep.mubr.f32.mxu0 %v8549
  %8722 = vmatmul.mubr.f32.gmra.mrb[0].mxu0 %v8548
  %v8723 = vpop.f32.mrb[0].mxu0
  %v8724 = vadd.f32 0.0, %v8723
  %v8725 = vpop.f32.mrb[0].mxu0
  %v8726 = vadd.f32 0.0, %v8725
  %8727 = vdwg.mxu0
  %v8728 = vadd.f32 %v6574, %v8617
  %v8729 = vadd.f32 %v6575, %v8619
  %v8730 = vadd.f32 %v6576, %v8706
  %v8731 = vadd.f32 %v6577, %v8708
  %v8732 = vadd.f32 %v6578, %v8623
  %v8733 = vadd.f32 %v6579, %v8625
  %v8734 = vadd.f32 %v6580, %v8712
  %v8735 = vadd.f32 %v6581, %v8714
  %v8736 = vadd.f32 %v6582, %v8629
  %v8737 = vadd.f32 %v6583, %v8631
  %v8738 = vadd.f32 %v6584, %v8718
  %v8739 = vadd.f32 %v6585, %v8720
  %v8740 = vadd.f32 %v6586, %v8635
  %v8741 = vadd.f32 %v6587, %v8637
  %v8742 = vadd.f32 %v6588, %v8724
  %v8743 = vadd.f32 %v6589, %v8726
  %v8744 = vmax.f32 %v8728, -1.0
  %v8745 = vmax.f32 %v8729, -1.0
  %v8746 = vmax.f32 %v8730, -1.0
  %v8747 = vmax.f32 %v8731, -1.0
  %v8748 = vmax.f32 %v8732, -1.0
  %v8749 = vmax.f32 %v8733, -1.0
  %v8750 = vmax.f32 %v8734, -1.0
  %v8751 = vmax.f32 %v8735, -1.0
  %v8752 = vmax.f32 %v8736, -1.0
  %v8753 = vmax.f32 %v8737, -1.0
  %v8754 = vmax.f32 %v8738, -1.0
  %v8755 = vmax.f32 %v8739, -1.0
  %v8756 = vmax.f32 %v8740, -1.0
  %v8757 = vmax.f32 %v8741, -1.0
  %v8758 = vmax.f32 %v8742, -1.0
  %v8759 = vmax.f32 %v8743, -1.0
  %v8760 = vmin.f32 %v8744, 0.9921875
  %v8761 = vmin.f32 %v8745, 0.9921875
  %v8762 = vmin.f32 %v8746, 0.9921875
  %v8763 = vmin.f32 %v8747, 0.9921875
  %v8764 = vmin.f32 %v8748, 0.9921875
  %v8765 = vmin.f32 %v8749, 0.9921875
  %v8766 = vmin.f32 %v8750, 0.9921875
  %v8767 = vmin.f32 %v8751, 0.9921875
  %v8768 = vmin.f32 %v8752, 0.9921875
  %v8769 = vmin.f32 %v8753, 0.9921875
  %v8770 = vmin.f32 %v8754, 0.9921875
  %v8771 = vmin.f32 %v8755, 0.9921875
  %v8772 = vmin.f32 %v8756, 0.9921875
  %v8773 = vmin.f32 %v8757, 0.9921875
  %v8774 = vmin.f32 %v8758, 0.9921875
  %v8775 = vmin.f32 %v8759, 0.9921875
  %v8776 = vld [vmem:[%s2] sm:$0xff]
  %v8777 = vld [vmem:[%s2 + $0x8] sm:$0xff]
  %v8778 = vld [vmem:[%s2 + $0x10] sm:$0xff]
  %v8779 = vld [vmem:[%s2 + $0x18] sm:$0xff]
  %v8780 = vld [vmem:[%s3] sm:$0xff]
  %v8781 = vld [vmem:[%s3 + $0x8] sm:$0xff]
  %v8782 = vld [vmem:[%s3 + $0x10] sm:$0xff]
  %v8783 = vld [vmem:[%s3 + $0x18] sm:$0xff]
  %8785 = vset.pattern.permute.xlu0 0
  %8786 = vperm.xlu0 %8785, %v8780
  %v8787 = vpop.permute.xlu0 %8786
  %8790 = vset.pattern.permute.xlu0 0
  %8791 = vperm.xlu0 %8790, %v8781
  %v8792 = vpop.permute.xlu0 %8791
  %8795 = vset.pattern.permute.xlu0 0
  %8796 = vperm.xlu0 %8795, %v8782
  %v8797 = vpop.permute.xlu0 %8796
  %8800 = vset.pattern.permute.xlu0 0
  %8801 = vperm.xlu0 %8800, %v8783
  %v8802 = vpop.permute.xlu0 %8801
  %vm8804 = vcmask 261120
  %v8806 = vsel %vm8804, %v8776, 0
  %v8809 = vsel %vm8804, %v8777, 0
  %v8812 = vsel %vm8804, %v8778, 0
  %v8815 = vsel %vm8804, %v8779, 0
  %8817 = vmatprep.subr.mxu0 %v8761
  %8818 = vmatpush1.msra.mxu0 %v8760
  %8819 = vmatprep.subr.mxu0 %v8765
  %8820 = vmatpush1.msra.mxu0 %v8764
  %8821 = vmatprep.subr.mxu0 %v8769
  %8822 = vmatpush1.msra.mxu0 %v8768
  %8823 = vmatprep.subr.mxu0 %v8773
  %8824 = vmatpush1.msra.mxu0 %v8772
  %8825 = vmatprep.subr.mxu0 0.0
  %8826 = vmatpush1.msra.mxu0 0.0
  %8827 = vmatprep.subr.mxu0 0.0
  %8828 = vmatpush1.msra.mxu0 0.0
  %8829 = vmatprep.subr.mxu0 0.0
  %8830 = vmatpush1.msra.mxu0 0.0
  %8831 = vmatprep.subr.mxu0 0.0
  %8832 = vmatpush1.msra.mxu0 0.0
  %8833 = vmatprep.subr.mxu0 0.0
  %8834 = vmatpush1.msra.mxu0 0.0
  %8835 = vmatprep.subr.mxu0 0.0
  %8836 = vmatpush1.msra.mxu0 0.0
  %8837 = vmatprep.subr.mxu0 0.0
  %8838 = vmatpush1.msra.mxu0 0.0
  %8839 = vmatprep.subr.mxu0 0.0
  %8840 = vmatpush1.msra.mxu0 0.0
  %8841 = vmatprep.subr.mxu0 0.0
  %8842 = vmatpush1.msra.mxu0 0.0
  %8843 = vmatprep.subr.mxu0 0.0
  %8844 = vmatpush1.msra.mxu0 0.0
  %8845 = vmatprep.subr.mxu0 0.0
  %8846 = vmatpush1.msra.mxu0 0.0
  %8847 = vmatprep.subr.mxu0 0.0
  %8848 = vmatpush1.msra.mxu0 0.0
  %8849 = vmatprep.subr.mxu0 0.0
  %8850 = vmatpush1.msra.mxu0 0.0
  %8851 = vmatprep.subr.mxu0 0.0
  %8852 = vmatpush1.msra.mxu0 0.0
  %8853 = vmatprep.subr.mxu0 0.0
  %8854 = vmatpush1.msra.mxu0 0.0
  %8855 = vmatprep.subr.mxu0 0.0
  %8856 = vmatpush1.msra.mxu0 0.0
  %8857 = vmatprep.subr.mxu0 0.0
  %8858 = vmatpush1.msra.mxu0 0.0
  %8859 = vmatprep.subr.mxu0 0.0
  %8860 = vmatpush1.msra.mxu0 0.0
  %8861 = vmatprep.subr.mxu0 0.0
  %8862 = vmatpush1.msra.mxu0 0.0
  %8863 = vmatprep.subr.mxu0 0.0
  %8864 = vmatpush1.msra.mxu0 0.0
  %8865 = vmatprep.subr.mxu0 0.0
  %8866 = vmatpush1.msra.mxu0 0.0
  %8867 = vmatprep.subr.mxu0 0.0
  %8868 = vmatpush1.msra.mxu0 0.0
  %8869 = vmatprep.subr.mxu0 0.0
  %8870 = vmatpush1.msra.mxu0 0.0
  %8871 = vmatprep.subr.mxu0 0.0
  %8872 = vmatpush1.msra.mxu0 0.0
  %8873 = vmatprep.subr.mxu0 0.0
  %8874 = vmatpush1.msra.mxu0 0.0
  %8875 = vmatprep.subr.mxu0 0.0
  %8876 = vmatpush1.msra.mxu0 0.0
  %8877 = vmatprep.subr.mxu0 0.0
  %8878 = vmatpush1.msra.mxu0 0.0
  %8879 = vmatprep.subr.mxu0 0.0
  %8880 = vmatpush1.msra.mxu0 0.0
  %8881 = vmatprep.mubr.f32.mxu0 0.0
  %8882 = vmatmul.mubr.f32.gmra.mrb[0].mxu0 %v8806
  %v8883 = vpop.f32.mrb[0].mxu0
  %v8884 = vadd.f32 %v8787, %v8883
  %v8885 = vpop.f32.mrb[0].mxu0
  %v8886 = vadd.f32 %v8787, %v8885
  %8887 = vmatprep.mubr.f32.mxu0 0.0
  %8888 = vmatmul.mubr.f32.gmra.mrb[0].mxu0 %v8809
  %v8889 = vpop.f32.mrb[0].mxu0
  %v8890 = vadd.f32 %v8792, %v8889
  %v8891 = vpop.f32.mrb[0].mxu0
  %v8892 = vadd.f32 %v8792, %v8891
  %8893 = vmatprep.mubr.f32.mxu0 0.0
  %8894 = vmatmul.mubr.f32.gmra.mrb[0].mxu0 %v8812
  %v8895 = vpop.f32.mrb[0].mxu0
  %v8896 = vadd.f32 %v8797, %v8895
  %v8897 = vpop.f32.mrb[0].mxu0
  %v8898 = vadd.f32 %v8797, %v8897
  %8899 = vmatprep.mubr.f32.mxu0 0.0
  %8900 = vmatmul.mubr.f32.gmra.mrb[0].mxu0 %v8815
  %v8901 = vpop.f32.mrb[0].mxu0
  %v8902 = vadd.f32 %v8802, %v8901
  %v8903 = vpop.f32.mrb[0].mxu0
  %v8904 = vadd.f32 %v8802, %v8903
  %8905 = vdwg.mxu0
  %8906 = vmatprep.subr.mxu0 %v8763
  %8907 = vmatpush1.msra.mxu0 %v8762
  %8908 = vmatprep.subr.mxu0 %v8767
  %8909 = vmatpush1.msra.mxu0 %v8766
  %8910 = vmatprep.subr.mxu0 %v8771
  %8911 = vmatpush1.msra.mxu0 %v8770
  %8912 = vmatprep.subr.mxu0 %v8775
  %8913 = vmatpush1.msra.mxu0 %v8774
  %8914 = vmatprep.subr.mxu0 0.0
  %8915 = vmatpush1.msra.mxu0 0.0
  %8916 = vmatprep.subr.mxu0 0.0
  %8917 = vmatpush1.msra.mxu0 0.0
  %8918 = vmatprep.subr.mxu0 0.0
  %8919 = vmatpush1.msra.mxu0 0.0
  %8920 = vmatprep.subr.mxu0 0.0
  %8921 = vmatpush1.msra.mxu0 0.0
  %8922 = vmatprep.subr.mxu0 0.0
  %8923 = vmatpush1.msra.mxu0 0.0
  %8924 = vmatprep.subr.mxu0 0.0
  %8925 = vmatpush1.msra.mxu0 0.0
  %8926 = vmatprep.subr.mxu0 0.0
  %8927 = vmatpush1.msra.mxu0 0.0
  %8928 = vmatprep.subr.mxu0 0.0
  %8929 = vmatpush1.msra.mxu0 0.0
  %8930 = vmatprep.subr.mxu0 0.0
  %8931 = vmatpush1.msra.mxu0 0.0
  %8932 = vmatprep.subr.mxu0 0.0
  %8933 = vmatpush1.msra.mxu0 0.0
  %8934 = vmatprep.subr.mxu0 0.0
  %8935 = vmatpush1.msra.mxu0 0.0
  %8936 = vmatprep.subr.mxu0 0.0
  %8937 = vmatpush1.msra.mxu0 0.0
  %8938 = vmatprep.subr.mxu0 0.0
  %8939 = vmatpush1.msra.mxu0 0.0
  %8940 = vmatprep.subr.mxu0 0.0
  %8941 = vmatpush1.msra.mxu0 0.0
  %8942 = vmatprep.subr.mxu0 0.0
  %8943 = vmatpush1.msra.mxu0 0.0
  %8944 = vmatprep.subr.mxu0 0.0
  %8945 = vmatpush1.msra.mxu0 0.0
  %8946 = vmatprep.subr.mxu0 0.0
  %8947 = vmatpush1.msra.mxu0 0.0
  %8948 = vmatprep.subr.mxu0 0.0
  %8949 = vmatpush1.msra.mxu0 0.0
  %8950 = vmatprep.subr.mxu0 0.0
  %8951 = vmatpush1.msra.mxu0 0.0
  %8952 = vmatprep.subr.mxu0 0.0
  %8953 = vmatpush1.msra.mxu0 0.0
  %8954 = vmatprep.subr.mxu0 0.0
  %8955 = vmatpush1.msra.mxu0 0.0
  %8956 = vmatprep.subr.mxu0 0.0
  %8957 = vmatpush1.msra.mxu0 0.0
  %8958 = vmatprep.subr.mxu0 0.0
  %8959 = vmatpush1.msra.mxu0 0.0
  %8960 = vmatprep.subr.mxu0 0.0
  %8961 = vmatpush1.msra.mxu0 0.0
  %8962 = vmatprep.subr.mxu0 0.0
  %8963 = vmatpush1.msra.mxu0 0.0
  %8964 = vmatprep.subr.mxu0 0.0
  %8965 = vmatpush1.msra.mxu0 0.0
  %8966 = vmatprep.subr.mxu0 0.0
  %8967 = vmatpush1.msra.mxu0 0.0
  %8968 = vmatprep.subr.mxu0 0.0
  %8969 = vmatpush1.msra.mxu0 0.0
  %8970 = vmatprep.mubr.f32.mxu0 0.0
  %8971 = vmatmul.mubr.f32.gmra.mrb[0].mxu0 %v8806
  %v8972 = vpop.f32.mrb[0].mxu0
  %v8973 = vadd.f32 %v8787, %v8972
  %v8974 = vpop.f32.mrb[0].mxu0
  %v8975 = vadd.f32 %v8787, %v8974
  %8976 = vmatprep.mubr.f32.mxu0 0.0
  %8977 = vmatmul.mubr.f32.gmra.mrb[0].mxu0 %v8809
  %v8978 = vpop.f32.mrb[0].mxu0
  %v8979 = vadd.f32 %v8792, %v8978
  %v8980 = vpop.f32.mrb[0].mxu0
  %v8981 = vadd.f32 %v8792, %v8980
  %8982 = vmatprep.mubr.f32.mxu0 0.0
  %8983 = vmatmul.mubr.f32.gmra.mrb[0].mxu0 %v8812
  %v8984 = vpop.f32.mrb[0].mxu0
  %v8985 = vadd.f32 %v8797, %v8984
  %v8986 = vpop.f32.mrb[0].mxu0
  %v8987 = vadd.f32 %v8797, %v8986
  %8988 = vmatprep.mubr.f32.mxu0 0.0
  %8989 = vmatmul.mubr.f32.gmra.mrb[0].mxu0 %v8815
  %v8990 = vpop.f32.mrb[0].mxu0
  %v8991 = vadd.f32 %v8802, %v8990
  %v8992 = vpop.f32.mrb[0].mxu0
  %v8993 = vadd.f32 %v8802, %v8992
  %8994 = vdwg.mxu0
  %v8995 = vmax.f32 %v8884, 0.0
  %v8996 = vmax.f32 %v8886, 0.0
  %v8997 = vmax.f32 %v8973, 0.0
  %v8998 = vmax.f32 %v8975, 0.0
  %v8999 = vmax.f32 %v8890, 0.0
  %v9000 = vmax.f32 %v8892, 0.0
  %v9001 = vmax.f32 %v8979, 0.0
  %v9002 = vmax.f32 %v8981, 0.0
  %v9003 = vmax.f32 %v8896, 0.0
  %v9004 = vmax.f32 %v8898, 0.0
  %v9005 = vmax.f32 %v8985, 0.0
  %v9006 = vmax.f32 %v8987, 0.0
  %v9007 = vmax.f32 %v8902, 0.0
  %v9008 = vmax.f32 %v8904, 0.0
  %v9009 = vmax.f32 %v8991, 0.0
  %v9010 = vmax.f32 %v8993, 0.0
  %v9011 = vmin.f32 %v8995, 0.9921875
  %v9012 = vmin.f32 %v8996, 0.9921875
  %v9013 = vmin.f32 %v8997, 0.9921875
  %v9014 = vmin.f32 %v8998, 0.9921875
  %v9015 = vmin.f32 %v8999, 0.9921875
  %v9016 = vmin.f32 %v9000, 0.9921875
  %v9017 = vmin.f32 %v9001, 0.9921875
  %v9018 = vmin.f32 %v9002, 0.9921875
  %v9019 = vmin.f32 %v9003, 0.9921875
  %v9020 = vmin.f32 %v9004, 0.9921875
  %v9021 = vmin.f32 %v9005, 0.9921875
  %v9022 = vmin.f32 %v9006, 0.9921875
  %v9023 = vmin.f32 %v9007, 0.9921875
  %v9024 = vmin.f32 %v9008, 0.9921875
  %v9025 = vmin.f32 %v9009, 0.9921875
  %v9026 = vmin.f32 %v9010, 0.9921875
  %v9027 = vld [vmem:[%s4] sm:$0xff]
  %v9028 = vld [vmem:[%s4 + $0x8] sm:$0xff]
  %v9029 = vld [vmem:[%s4 + $0x10] sm:$0xff]
  %v9030 = vld [vmem:[%s4 + $0x18] sm:$0xff]
  %v9031 = vld [vmem:[%s5] sm:$0xff]
  %v9032 = vld [vmem:[%s5 + $0x8] sm:$0xff]
  %v9033 = vld [vmem:[%s5 + $0x10] sm:$0xff]
  %v9034 = vld [vmem:[%s5 + $0x18] sm:$0xff]
  %9036 = vset.pattern.permute.xlu0 0
  %9037 = vperm.xlu0 %9036, %v9031
  %v9038 = vpop.permute.xlu0 %9037
  %9041 = vset.pattern.permute.xlu0 0
  %9042 = vperm.xlu0 %9041, %v9032
  %v9043 = vpop.permute.xlu0 %9042
  %9046 = vset.pattern.permute.xlu0 0
  %9047 = vperm.xlu0 %9046, %v9033
  %v9048 = vpop.permute.xlu0 %9047
  %9051 = vset.pattern.permute.xlu0 0
  %9052 = vperm.xlu0 %9051, %v9034
  %v9053 = vpop.permute.xlu0 %9052
  %v9056 = vsel %vm8804, %v9027, 0
  %v9059 = vsel %vm8804, %v9028, 0
  %v9062 = vsel %vm8804, %v9029, 0
  %v9065 = vsel %vm8804, %v9030, 0
  %9067 = vmatprep.subr.mxu0 %v9012
  %9068 = vmatpush1.msra.mxu0 %v9011
  %9069 = vmatprep.subr.mxu0 %v9016
  %9070 = vmatpush1.msra.mxu0 %v9015
  %9071 = vmatprep.subr.mxu0 %v9020
  %9072 = vmatpush1.msra.mxu0 %v9019
  %9073 = vmatprep.subr.mxu0 %v9024
  %9074 = vmatpush1.msra.mxu0 %v9023
  %9075 = vmatprep.subr.mxu0 0.0
  %9076 = vmatpush1.msra.mxu0 0.0
  %9077 = vmatprep.subr.mxu0 0.0
  %9078 = vmatpush1.msra.mxu0 0.0
  %9079 = vmatprep.subr.mxu0 0.0
  %9080 = vmatpush1.msra.mxu0 0.0
  %9081 = vmatprep.subr.mxu0 0.0
  %9082 = vmatpush1.msra.mxu0 0.0
  %9083 = vmatprep.subr.mxu0 0.0
  %9084 = vmatpush1.msra.mxu0 0.0
  %9085 = vmatprep.subr.mxu0 0.0
  %9086 = vmatpush1.msra.mxu0 0.0
  %9087 = vmatprep.subr.mxu0 0.0
  %9088 = vmatpush1.msra.mxu0 0.0
  %9089 = vmatprep.subr.mxu0 0.0
  %9090 = vmatpush1.msra.mxu0 0.0
  %9091 = vmatprep.subr.mxu0 0.0
  %9092 = vmatpush1.msra.mxu0 0.0
  %9093 = vmatprep.subr.mxu0 0.0
  %9094 = vmatpush1.msra.mxu0 0.0
  %9095 = vmatprep.subr.mxu0 0.0
  %9096 = vmatpush1.msra.mxu0 0.0
  %9097 = vmatprep.subr.mxu0 0.0
  %9098 = vmatpush1.msra.mxu0 0.0
  %9099 = vmatprep.subr.mxu0 0.0
  %9100 = vmatpush1.msra.mxu0 0.0
  %9101 = vmatprep.subr.mxu0 0.0
  %9102 = vmatpush1.msra.mxu0 0.0
  %9103 = vmatprep.subr.mxu0 0.0
  %9104 = vmatpush1.msra.mxu0 0.0
  %9105 = vmatprep.subr.mxu0 0.0
  %9106 = vmatpush1.msra.mxu0 0.0
  %9107 = vmatprep.subr.mxu0 0.0
  %9108 = vmatpush1.msra.mxu0 0.0
  %9109 = vmatprep.subr.mxu0 0.0
  %9110 = vmatpush1.msra.mxu0 0.0
  %9111 = vmatprep.subr.mxu0 0.0
  %9112 = vmatpush1.msra.mxu0 0.0
  %9113 = vmatprep.subr.mxu0 0.0
  %9114 = vmatpush1.msra.mxu0 0.0
  %9115 = vmatprep.subr.mxu0 0.0
  %9116 = vmatpush1.msra.mxu0 0.0
  %9117 = vmatprep.subr.mxu0 0.0
  %9118 = vmatpush1.msra.mxu0 0.0
  %9119 = vmatprep.subr.mxu0 0.0
  %9120 = vmatpush1.msra.mxu0 0.0
  %9121 = vmatprep.subr.mxu0 0.0
  %9122 = vmatpush1.msra.mxu0 0.0
  %9123 = vmatprep.subr.mxu0 0.0
  %9124 = vmatpush1.msra.mxu0 0.0
  %9125 = vmatprep.subr.mxu0 0.0
  %9126 = vmatpush1.msra.mxu0 0.0
  %9127 = vmatprep.subr.mxu0 0.0
  %9128 = vmatpush1.msra.mxu0 0.0
  %9129 = vmatprep.subr.mxu0 0.0
  %9130 = vmatpush1.msra.mxu0 0.0
  %9131 = vmatprep.mubr.f32.mxu0 0.0
  %9132 = vmatmul.mubr.f32.gmra.mrb[0].mxu0 %v9056
  %v9133 = vpop.f32.mrb[0].mxu0
  %v9134 = vadd.f32 %v9038, %v9133
  %v9135 = vpop.f32.mrb[0].mxu0
  %v9136 = vadd.f32 %v9038, %v9135
  %9137 = vmatprep.mubr.f32.mxu0 0.0
  %9138 = vmatmul.mubr.f32.gmra.mrb[0].mxu0 %v9059
  %v9139 = vpop.f32.mrb[0].mxu0
  %v9140 = vadd.f32 %v9043, %v9139
  %v9141 = vpop.f32.mrb[0].mxu0
  %v9142 = vadd.f32 %v9043, %v9141
  %9143 = vmatprep.mubr.f32.mxu0 0.0
  %9144 = vmatmul.mubr.f32.gmra.mrb[0].mxu0 %v9062
  %v9145 = vpop.f32.mrb[0].mxu0
  %v9146 = vadd.f32 %v9048, %v9145
  %v9147 = vpop.f32.mrb[0].mxu0
  %v9148 = vadd.f32 %v9048, %v9147
  %9149 = vmatprep.mubr.f32.mxu0 0.0
  %9150 = vmatmul.mubr.f32.gmra.mrb[0].mxu0 %v9065
  %v9151 = vpop.f32.mrb[0].mxu0
  %v9152 = vadd.f32 %v9053, %v9151
  %v9153 = vpop.f32.mrb[0].mxu0
  %v9154 = vadd.f32 %v9053, %v9153
  %9155 = vdwg.mxu0
  %9156 = vmatprep.subr.mxu0 %v9014
  %9157 = vmatpush1.msra.mxu0 %v9013
  %9158 = vmatprep.subr.mxu0 %v9018
  %9159 = vmatpush1.msra.mxu0 %v9017
  %9160 = vmatprep.subr.mxu0 %v9022
  %9161 = vmatpush1.msra.mxu0 %v9021
  %9162 = vmatprep.subr.mxu0 %v9026
  %9163 = vmatpush1.msra.mxu0 %v9025
  %9164 = vmatprep.subr.mxu0 0.0
  %9165 = vmatpush1.msra.mxu0 0.0
  %9166 = vmatprep.subr.mxu0 0.0
  %9167 = vmatpush1.msra.mxu0 0.0
  %9168 = vmatprep.subr.mxu0 0.0
  %9169 = vmatpush1.msra.mxu0 0.0
  %9170 = vmatprep.subr.mxu0 0.0
  %9171 = vmatpush1.msra.mxu0 0.0
  %9172 = vmatprep.subr.mxu0 0.0
  %9173 = vmatpush1.msra.mxu0 0.0
  %9174 = vmatprep.subr.mxu0 0.0
  %9175 = vmatpush1.msra.mxu0 0.0
  %9176 = vmatprep.subr.mxu0 0.0
  %9177 = vmatpush1.msra.mxu0 0.0
  %9178 = vmatprep.subr.mxu0 0.0
  %9179 = vmatpush1.msra.mxu0 0.0
  %9180 = vmatprep.subr.mxu0 0.0
  %9181 = vmatpush1.msra.mxu0 0.0
  %9182 = vmatprep.subr.mxu0 0.0
  %9183 = vmatpush1.msra.mxu0 0.0
  %9184 = vmatprep.subr.mxu0 0.0
  %9185 = vmatpush1.msra.mxu0 0.0
  %9186 = vmatprep.subr.mxu0 0.0
  %9187 = vmatpush1.msra.mxu0 0.0
  %9188 = vmatprep.subr.mxu0 0.0
  %9189 = vmatpush1.msra.mxu0 0.0
  %9190 = vmatprep.subr.mxu0 0.0
  %9191 = vmatpush1.msra.mxu0 0.0
  %9192 = vmatprep.subr.mxu0 0.0
  %9193 = vmatpush1.msra.mxu0 0.0
  %9194 = vmatprep.subr.mxu0 0.0
  %9195 = vmatpush1.msra.mxu0 0.0
  %9196 = vmatprep.subr.mxu0 0.0
  %9197 = vmatpush1.msra.mxu0 0.0
  %9198 = vmatprep.subr.mxu0 0.0
  %9199 = vmatpush1.msra.mxu0 0.0
  %9200 = vmatprep.subr.mxu0 0.0
  %9201 = vmatpush1.msra.mxu0 0.0
  %9202 = vmatprep.subr.mxu0 0.0
  %9203 = vmatpush1.msra.mxu0 0.0
  %9204 = vmatprep.subr.mxu0 0.0
  %9205 = vmatpush1.msra.mxu0 0.0
  %9206 = vmatprep.subr.mxu0 0.0
  %9207 = vmatpush1.msra.mxu0 0.0
  %9208 = vmatprep.subr.mxu0 0.0
  %9209 = vmatpush1.msra.mxu0 0.0
  %9210 = vmatprep.subr.mxu0 0.0
  %9211 = vmatpush1.msra.mxu0 0.0
  %9212 = vmatprep.subr.mxu0 0.0
  %9213 = vmatpush1.msra.mxu0 0.0
  %9214 = vmatprep.subr.mxu0 0.0
  %9215 = vmatpush1.msra.mxu0 0.0
  %9216 = vmatprep.subr.mxu0 0.0
  %9217 = vmatpush1.msra.mxu0 0.0
  %9218 = vmatprep.subr.mxu0 0.0
  %9219 = vmatpush1.msra.mxu0 0.0
  %9220 = vmatprep.mubr.f32.mxu0 0.0
  %9221 = vmatmul.mubr.f32.gmra.mrb[0].mxu0 %v9056
  %v9222 = vpop.f32.mrb[0].mxu0
  %v9223 = vadd.f32 %v9038, %v9222
  %v9224 = vpop.f32.mrb[0].mxu0
  %v9225 = vadd.f32 %v9038, %v9224
  %9226 = vmatprep.mubr.f32.mxu0 0.0
  %9227 = vmatmul.mubr.f32.gmra.mrb[0].mxu0 %v9059
  %v9228 = vpop.f32.mrb[0].mxu0
  %v9229 = vadd.f32 %v9043, %v9228
  %v9230 = vpop.f32.mrb[0].mxu0
  %v9231 = vadd.f32 %v9043, %v9230
  %9232 = vmatprep.mubr.f32.mxu0 0.0
  %9233 = vmatmul.mubr.f32.gmra.mrb[0].mxu0 %v9062
  %v9234 = vpop.f32.mrb[0].mxu0
  %v9235 = vadd.f32 %v9048, %v9234
  %v9236 = vpop.f32.mrb[0].mxu0
  %v9237 = vadd.f32 %v9048, %v9236
  %9238 = vmatprep.mubr.f32.mxu0 0.0
  %9239 = vmatmul.mubr.f32.gmra.mrb[0].mxu0 %v9065
  %v9240 = vpop.f32.mrb[0].mxu0
  %v9241 = vadd.f32 %v9053, %v9240
  %v9242 = vpop.f32.mrb[0].mxu0
  %v9243 = vadd.f32 %v9053, %v9242
  %9244 = vdwg.mxu0
  %v9245 = vmax.f32 %v9134, 0.0
  %v9246 = vmax.f32 %v9136, 0.0
  %v9247 = vmax.f32 %v9223, 0.0
  %v9248 = vmax.f32 %v9225, 0.0
  %v9249 = vmax.f32 %v9140, 0.0
  %v9250 = vmax.f32 %v9142, 0.0
  %v9251 = vmax.f32 %v9229, 0.0
  %v9252 = vmax.f32 %v9231, 0.0
  %v9253 = vmax.f32 %v9146, 0.0
  %v9254 = vmax.f32 %v9148, 0.0
  %v9255 = vmax.f32 %v9235, 0.0
  %v9256 = vmax.f32 %v9237, 0.0
  %v9257 = vmax.f32 %v9152, 0.0
  %v9258 = vmax.f32 %v9154, 0.0
  %v9259 = vmax.f32 %v9241, 0.0
  %v9260 = vmax.f32 %v9243, 0.0
  %v9261 = vmin.f32 %v9245, 0.9921875
  %v9262 = vmin.f32 %v9246, 0.9921875
  %v9263 = vmin.f32 %v9247, 0.9921875
  %v9264 = vmin.f32 %v9248, 0.9921875
  %v9265 = vmin.f32 %v9249, 0.9921875
  %v9266 = vmin.f32 %v9250, 0.9921875
  %v9267 = vmin.f32 %v9251, 0.9921875
  %v9268 = vmin.f32 %v9252, 0.9921875
  %v9269 = vmin.f32 %v9253, 0.9921875
  %v9270 = vmin.f32 %v9254, 0.9921875
  %v9271 = vmin.f32 %v9255, 0.9921875
  %v9272 = vmin.f32 %v9256, 0.9921875
  %v9273 = vmin.f32 %v9257, 0.9921875
  %v9274 = vmin.f32 %v9258, 0.9921875
  %v9275 = vmin.f32 %v9259, 0.9921875
  %v9276 = vmin.f32 %v9260, 0.9921875
  %v9277 = vld [vmem:[%s6] sm:$0xff]
  %v9278 = vld [vmem:[%s7] sm:$0xff]
  %9280 = vset.pattern.permute.xlu0 0
  %9281 = vperm.xlu0 %9280, %v9278
  %v9282 = vpop.permute.xlu0 %9281
  %v9285 = vsel %vm8804, %v9277, 0
  %9287 = vmatprep.subr.mxu0 %v9262
  %9288 = vmatpush1.msra.mxu0 %v9261
  %9289 = vmatprep.subr.mxu0 %v9266
  %9290 = vmatpush1.msra.mxu0 %v9265
  %9291 = vmatprep.subr.mxu0 %v9270
  %9292 = vmatpush1.msra.mxu0 %v9269
  %9293 = vmatprep.subr.mxu0 %v9274
  %9294 = vmatpush1.msra.mxu0 %v9273
  %9295 = vmatprep.subr.mxu0 0.0
  %9296 = vmatpush1.msra.mxu0 0.0
  %9297 = vmatprep.subr.mxu0 0.0
  %9298 = vmatpush1.msra.mxu0 0.0
  %9299 = vmatprep.subr.mxu0 0.0
  %9300 = vmatpush1.msra.mxu0 0.0
  %9301 = vmatprep.subr.mxu0 0.0
  %9302 = vmatpush1.msra.mxu0 0.0
  %9303 = vmatprep.subr.mxu0 0.0
  %9304 = vmatpush1.msra.mxu0 0.0
  %9305 = vmatprep.subr.mxu0 0.0
  %9306 = vmatpush1.msra.mxu0 0.0
  %9307 = vmatprep.subr.mxu0 0.0
  %9308 = vmatpush1.msra.mxu0 0.0
  %9309 = vmatprep.subr.mxu0 0.0
  %9310 = vmatpush1.msra.mxu0 0.0
  %9311 = vmatprep.subr.mxu0 0.0
  %9312 = vmatpush1.msra.mxu0 0.0
  %9313 = vmatprep.subr.mxu0 0.0
  %9314 = vmatpush1.msra.mxu0 0.0
  %9315 = vmatprep.subr.mxu0 0.0
  %9316 = vmatpush1.msra.mxu0 0.0
  %9317 = vmatprep.subr.mxu0 0.0
  %9318 = vmatpush1.msra.mxu0 0.0
  %9319 = vmatprep.subr.mxu0 0.0
  %9320 = vmatpush1.msra.mxu0 0.0
  %9321 = vmatprep.subr.mxu0 0.0
  %9322 = vmatpush1.msra.mxu0 0.0
  %9323 = vmatprep.subr.mxu0 0.0
  %9324 = vmatpush1.msra.mxu0 0.0
  %9325 = vmatprep.subr.mxu0 0.0
  %9326 = vmatpush1.msra.mxu0 0.0
  %9327 = vmatprep.subr.mxu0 0.0
  %9328 = vmatpush1.msra.mxu0 0.0
  %9329 = vmatprep.subr.mxu0 0.0
  %9330 = vmatpush1.msra.mxu0 0.0
  %9331 = vmatprep.subr.mxu0 0.0
  %9332 = vmatpush1.msra.mxu0 0.0
  %9333 = vmatprep.subr.mxu0 0.0
  %9334 = vmatpush1.msra.mxu0 0.0
  %9335 = vmatprep.subr.mxu0 0.0
  %9336 = vmatpush1.msra.mxu0 0.0
  %9337 = vmatprep.subr.mxu0 0.0
  %9338 = vmatpush1.msra.mxu0 0.0
  %9339 = vmatprep.subr.mxu0 0.0
  %9340 = vmatpush1.msra.mxu0 0.0
  %9341 = vmatprep.subr.mxu0 0.0
  %9342 = vmatpush1.msra.mxu0 0.0
  %9343 = vmatprep.subr.mxu0 0.0
  %9344 = vmatpush1.msra.mxu0 0.0
  %9345 = vmatprep.subr.mxu0 0.0
  %9346 = vmatpush1.msra.mxu0 0.0
  %9347 = vmatprep.subr.mxu0 0.0
  %9348 = vmatpush1.msra.mxu0 0.0
  %9349 = vmatprep.subr.mxu0 0.0
  %9350 = vmatpush1.msra.mxu0 0.0
  %9351 = vmatprep.mubr.f32.mxu0 0.0
  %9352 = vmatmul.mubr.f32.gmra.mrb[0].mxu0 %v9285
  %v9353 = vpop.f32.mrb[0].mxu0
  %v9354 = vadd.f32 %v9282, %v9353
  %v9355 = vpop.f32.mrb[0].mxu0
  %v9356 = vadd.f32 %v9282, %v9355
  %9357 = vdwg.mxu0
  %9358 = vmatprep.subr.mxu0 %v9264
  %9359 = vmatpush1.msra.mxu0 %v9263
  %9360 = vmatprep.subr.mxu0 %v9268
  %9361 = vmatpush1.msra.mxu0 %v9267
  %9362 = vmatprep.subr.mxu0 %v9272
  %9363 = vmatpush1.msra.mxu0 %v9271
  %9364 = vmatprep.subr.mxu0 %v9276
  %9365 = vmatpush1.msra.mxu0 %v9275
  %9366 = vmatprep.subr.mxu0 0.0
  %9367 = vmatpush1.msra.mxu0 0.0
  %9368 = vmatprep.subr.mxu0 0.0
  %9369 = vmatpush1.msra.mxu0 0.0
  %9370 = vmatprep.subr.mxu0 0.0
  %9371 = vmatpush1.msra.mxu0 0.0
  %9372 = vmatprep.subr.mxu0 0.0
  %9373 = vmatpush1.msra.mxu0 0.0
  %9374 = vmatprep.subr.mxu0 0.0
  %9375 = vmatpush1.msra.mxu0 0.0
  %9376 = vmatprep.subr.mxu0 0.0
  %9377 = vmatpush1.msra.mxu0 0.0
  %9378 = vmatprep.subr.mxu0 0.0
  %9379 = vmatpush1.msra.mxu0 0.0
  %9380 = vmatprep.subr.mxu0 0.0
  %9381 = vmatpush1.msra.mxu0 0.0
  %9382 = vmatprep.subr.mxu0 0.0
  %9383 = vmatpush1.msra.mxu0 0.0
  %9384 = vmatprep.subr.mxu0 0.0
  %9385 = vmatpush1.msra.mxu0 0.0
  %9386 = vmatprep.subr.mxu0 0.0
  %9387 = vmatpush1.msra.mxu0 0.0
  %9388 = vmatprep.subr.mxu0 0.0
  %9389 = vmatpush1.msra.mxu0 0.0
  %9390 = vmatprep.subr.mxu0 0.0
  %9391 = vmatpush1.msra.mxu0 0.0
  %9392 = vmatprep.subr.mxu0 0.0
  %9393 = vmatpush1.msra.mxu0 0.0
  %9394 = vmatprep.subr.mxu0 0.0
  %9395 = vmatpush1.msra.mxu0 0.0
  %9396 = vmatprep.subr.mxu0 0.0
  %9397 = vmatpush1.msra.mxu0 0.0
  %9398 = vmatprep.subr.mxu0 0.0
  %9399 = vmatpush1.msra.mxu0 0.0
  %9400 = vmatprep.subr.mxu0 0.0
  %9401 = vmatpush1.msra.mxu0 0.0
  %9402 = vmatprep.subr.mxu0 0.0
  %9403 = vmatpush1.msra.mxu0 0.0
  %9404 = vmatprep.subr.mxu0 0.0
  %9405 = vmatpush1.msra.mxu0 0.0
  %9406 = vmatprep.subr.mxu0 0.0
  %9407 = vmatpush1.msra.mxu0 0.0
  %9408 = vmatprep.subr.mxu0 0.0
  %9409 = vmatpush1.msra.mxu0 0.0
  %9410 = vmatprep.subr.mxu0 0.0
  %9411 = vmatpush1.msra.mxu0 0.0
  %9412 = vmatprep.subr.mxu0 0.0
  %9413 = vmatpush1.msra.mxu0 0.0
  %9414 = vmatprep.subr.mxu0 0.0
  %9415 = vmatpush1.msra.mxu0 0.0
  %9416 = vmatprep.subr.mxu0 0.0
  %9417 = vmatpush1.msra.mxu0 0.0
  %9418 = vmatprep.subr.mxu0 0.0
  %9419 = vmatpush1.msra.mxu0 0.0
  %9420 = vmatprep.subr.mxu0 0.0
  %9421 = vmatpush1.msra.mxu0 0.0
  %9422 = vmatprep.mubr.f32.mxu0 0.0
  %9423 = vmatmul.mubr.f32.gmra.mrb[0].mxu0 %v9285
  %v9424 = vpop.f32.mrb[0].mxu0
  %v9425 = vadd.f32 %v9282, %v9424
  %v9426 = vpop.f32.mrb[0].mxu0
  %v9427 = vadd.f32 %v9282, %v9426
  %9428 = vdwg.mxu0
  %9429 = vst [vmem:[%s8] sm:$0xff] %v9354
  %9430 = vst [vmem:[%s8 + $0x8] sm:$0xff] %v9356
  %9431 = vst [vmem:[%s8 + $0x10] sm:$0xff] %v9425
  %9432 = vst [vmem:[%s8 + $0x18] sm:$0xff] %v9427
  // Predicated region
  $region34: #{flat_hash7x7_nnue_forward.1} parent=0 // pred_check
    _
  $region35: #{flat_hash7x7_nnue_forward.1} parent=0 // pred_check_branch
    %9434 = sbr.rel (0) target = $region37
  $region36: #{flat_hash7x7_nnue_forward.1} parent=0 // pred_region
    _
  $region37: #{flat_hash7x7_nnue_forward.1} parent=0 // pred_fallthru
    _
  // Predicated region
  $region38: #{flat_hash7x7_nnue_forward.1} parent=0 // pred_check
    _
  $region39: #{flat_hash7x7_nnue_forward.1} parent=0 // pred_check_branch
    %9436 = sbr.rel (0) target = $region41
  $region40: #{flat_hash7x7_nnue_forward.1} parent=0 // pred_region
    _
  $region41: #{flat_hash7x7_nnue_forward.1} parent=0 // pred_fallthru
    _

</llo_original>
